<compile_context>
chip_gen: v5e
topology: v5e:2x2
jax: 0.10.0
libtpu: 0.0.40
codegen_flags: <defaults>
</compile_context>

<pallas_src>
import jax
import jax.numpy as jnp
from jax.experimental import pallas as pl
from jax.experimental.pallas import tpu as pltpu

# Encoder layer sizes from the module definition.
SIZES = [1500, 512, 256, 128, 64, 32]
IN_PAD = 1536          # 1500 padded to 12 * 128 lanes (lane-dense rec store)
Y_PAD = 128            # 32-wide log-softmax padded to one full lane group


def _round_up(x, m):
    return (x + m - 1) // m * m


def _choose_batch_tiling(batch):
    """Pick (padded_batch, tile_b).

    * <=128 rows : one full-array tile (no pointless splitting / re-padding)
    * <=512 rows : exactly two tiles so both v7x TensorCores run
    * larger     : 256-row tiles -- M=256 fills the 256-wide MXU on v6e/v7x and
                   halves the ~0.35 us/step pipeline overhead vs. 128.
    """
    padded = _round_up(max(batch, 1), 8)
    if padded <= 128:
        return padded, padded
    if padded <= 512:
        tile = _round_up((padded + 1) // 2, 16)    # 16: bf16 sublane packing
        return _round_up(padded, tile), tile
    tile = 256
    return _round_up(padded, tile), tile


def _linear_relu(h_bf16, w_ref, b_ref):
    """relu(h @ W + b): bf16 operands, f32 accumulation / epilogue."""
    z = jnp.dot(h_bf16, w_ref[...], preferred_element_type=jnp.float32)
    z = z + b_ref[...]
    return jnp.maximum(z, 0.0)


def sae_kernel(x_ref,
               # encoder params (1536->512->256->128->64->32)
               we1, be1, we2, be2, we3, be3, we4, be4, we5, be5,
               # decoder params in reconstruct order (32->64->...->512->1536)
               wd5, bd5, wd4, bd4, wd3, bd3, wd2, bd2, wd1, bd1,
               y_ref, rec_ref):
    bf16 = jnp.bfloat16
    h = x_ref[...]                                    # (TILE_B, 1536) bf16

    # Encoder stack (Linear + Dropout(eval: identity) + ReLU).
    a = _linear_relu(h, we1, be1)                     # (TILE_B, 512) f32
    a = _linear_relu(a.astype(bf16), we2, be2)        # (TILE_B, 256)
    a = _linear_relu(a.astype(bf16), we3, be3)        # (TILE_B, 128)
    a = _linear_relu(a.astype(bf16), we4, be4)        # (TILE_B, 64)
    a5 = _linear_relu(a.astype(bf16), we5, be5)       # (TILE_B, 32) f32

    # LogSoftmax over dim=1 (features), in f32; store lane-dense (pad 32->128).
    m = jnp.max(a5, axis=1, keepdims=True)
    shifted = a5 - m
    lse = jnp.log(jnp.sum(jnp.exp(shifted), axis=1, keepdims=True))
    y = shifted - lse                                 # (TILE_B, 32) f32
    pad_cols = y_ref.shape[1] - y.shape[1]
    y_ref[...] = jnp.concatenate(
        [y, jnp.zeros((y.shape[0], pad_cols), jnp.float32)], axis=1)

    # Reconstruction path: ae5 -> ae4 -> ae3 -> ae2 -> ae1 backward passes.
    r = _linear_relu(a5.astype(bf16), wd5, bd5)       # 32   -> 64
    r = _linear_relu(r.astype(bf16), wd4, bd4)        # 64   -> 128
    r = _linear_relu(r.astype(bf16), wd3, bd3)        # 128  -> 256
    r = _linear_relu(r.astype(bf16), wd2, bd2)        # 256  -> 512
    r = _linear_relu(r.astype(bf16), wd1, bd1)        # 512  -> 1536 (lane-padded)
    rec_ref[...] = r.astype(rec_ref.dtype)            # bf16 store: halves HBM writes


@jax.jit
def stacked_autoencoder_forward(x, kernel_params):
    """x: (B, 1500) float32.  kernel_params: output of prepare_kernel_params()."""
    batch = x.shape[0]
    padded_b, tile_b = _choose_batch_tiling(batch)
    num_tiles = padded_b // tile_b

    # Cast to bf16 FIRST, then zero-pad batch rows and 1500 -> 1536 feature
    # columns (no padded f32 intermediate ever written to HBM).
    xp = jnp.pad(x.astype(jnp.bfloat16),
                 ((0, padded_b - batch), (0, IN_PAD - SIZES[0])))

    # Weights/biases: full-array blocks, constant block index -> stay resident.
    w_specs = [pl.BlockSpec(p.shape, lambda i: (0, 0)) for p in kernel_params]

    # Advisory cost estimate for the XLA scheduler.
    macs = sum(int(w.shape[0]) * int(w.shape[1]) for w in kernel_params[0::2])
    param_bytes = sum(int(p.size) * p.dtype.itemsize for p in kernel_params)
    cost = pl.CostEstimate(
        flops=2 * padded_b * macs,
        transcendentals=padded_b * (SIZES[-1] + 1),
        bytes_accessed=padded_b * (IN_PAD * 2 + Y_PAD * 4 + IN_PAD * 2) + param_bytes,
    )

    y_pad, rec_pad = pl.pallas_call(
        sae_kernel,
        out_shape=(
            jax.ShapeDtypeStruct((padded_b, Y_PAD), jnp.float32),    # log-softmax
            jax.ShapeDtypeStruct((padded_b, IN_PAD), jnp.bfloat16),  # reconstruction
        ),
        grid=(num_tiles,),
        in_specs=[pl.BlockSpec((tile_b, IN_PAD), lambda i: (i, 0))] + w_specs,
        out_specs=(
            pl.BlockSpec((tile_b, Y_PAD), lambda i: (i, 0)),
            pl.BlockSpec((tile_b, IN_PAD), lambda i: (i, 0)),
        ),
        compiler_params=pltpu.CompilerParams(
            dimension_semantics=("parallel",),       # shard batch tiles across TCs
            vmem_limit_bytes=32 * 1024 * 1024,       # footprint ~14 MiB @ tile 256
        ),
        cost_estimate=cost,
    )(xp, *kernel_params)

    y = y_pad[:batch, :SIZES[-1]]
    rec = rec_pad[:batch, :SIZES[0]].astype(jnp.float32)
    return y, rec


def init_params(key):
    """Deterministic f32 init mimicking nn.Linear default U(-1/sqrt(in), 1/sqrt(in)).

    Weights stored as (in_features, out_features); biases as (1, out_features).
    Flat list ordered: encoder (ae1..ae5), then decoder (ae5..ae1).
    """
    params = []
    for i in range(5):                                 # encoder: 1500->512->...->32
        fin, fout = SIZES[i], SIZES[i + 1]
        key, kw, kb = jax.random.split(key, 3)
        bound = 1.0 / (fin ** 0.5)
        params.append(jax.random.uniform(kw, (fin, fout), jnp.float32, -bound, bound))
        params.append(jax.random.uniform(kb, (1, fout), jnp.float32, -bound, bound))
    for i in range(5, 0, -1):                          # decoder: 32->64->...->1500
        fin, fout = SIZES[i], SIZES[i - 1]
        key, kw, kb = jax.random.split(key, 3)
        bound = 1.0 / (fin ** 0.5)
        params.append(jax.random.uniform(kw, (fin, fout), jnp.float32, -bound, bound))
        params.append(jax.random.uniform(kb, (1, fout), jnp.float32, -bound, bound))
    return params


def prepare_kernel_params(params):
    """Cast weights to bf16 (biases stay f32) and lane-pad the 1500-wide edges."""
    kp = []
    for idx in range(0, len(params), 2):
        kp.append(params[idx].astype(jnp.bfloat16))        # weight
        kp.append(params[idx + 1].astype(jnp.float32))      # bias
    # we1: pad input rows 1500 -> 1536 (zeros; padded x cols are zero too).
    we1 = kp[0]
    kp[0] = jnp.zeros((IN_PAD, we1.shape[1]), jnp.bfloat16).at[:we1.shape[0], :].set(we1)
    # wd1 / bd1: pad output columns 1500 -> 1536 (zeros; sliced off in wrapper).
    wd1, bd1 = kp[-2], kp[-1]
    kp[-2] = jnp.zeros((wd1.shape[0], IN_PAD), jnp.bfloat16).at[:, :wd1.shape[1]].set(wd1)
    kp[-1] = jnp.zeros((1, IN_PAD), jnp.float32).at[:, :bd1.shape[1]].set(bd1)
    return kp


def _reference_forward(x, params):
    """Pure-JAX reference matching the kernel's bf16/f32 mixed precision."""
    bf16 = jnp.bfloat16

    def lin(h, w, b):
        z = jnp.dot(h.astype(bf16), w.astype(bf16), preferred_element_type=jnp.float32)
        return jnp.maximum(z + b.astype(jnp.float32), 0.0)

    h = x
    for i in range(5):
        h = lin(h, params[2 * i], params[2 * i + 1])
    a5 = h
    y = jax.nn.log_softmax(a5, axis=1)
    r = a5
    for i in range(5, 10):
        r = lin(r, params[2 * i], params[2 * i + 1])
    return y, r


if __name__ == "__main__":
    key = jax.random.PRNGKey(0)
    key, kx = jax.random.split(key)
    batch = 8
    x = jax.random.normal(kx, (batch, SIZES[0]), jnp.float32)
    params = init_params(key)
    kernel_params = prepare_kernel_params(params)

    y, rec = stacked_autoencoder_forward(x, kernel_params)
    jax.block_until_ready((y, rec))

    y_ref, rec_ref = _reference_forward(x, params)
    assert y.shape == (batch, SIZES[-1]) and rec.shape == (batch, SIZES[0])
    assert jnp.allclose(y, y_ref, atol=1e-2, rtol=1e-2), \
        float(jnp.max(jnp.abs(y - y_ref)))
    assert jnp.allclose(rec, rec_ref, atol=1e-2, rtol=1e-2), \
        float(jnp.max(jnp.abs(rec - rec_ref)))

    print("KERNEL_OK")
</pallas_src>

<mosaic_0001>
module attributes {stable_mosaic.version = 11 : i64} {
  func.func @sae_kernel(%arg0: i32, %arg1: memref<8x1536xbf16, #tpu.memory_space<vmem>>, %arg2: memref<1536x512xbf16, #tpu.memory_space<vmem>>, %arg3: memref<1x512xf32, #tpu.memory_space<vmem>>, %arg4: memref<512x256xbf16, #tpu.memory_space<vmem>>, %arg5: memref<1x256xf32, #tpu.memory_space<vmem>>, %arg6: memref<256x128xbf16, #tpu.memory_space<vmem>>, %arg7: memref<1x128xf32, #tpu.memory_space<vmem>>, %arg8: memref<128x64xbf16, #tpu.memory_space<vmem>>, %arg9: memref<1x64xf32, #tpu.memory_space<vmem>>, %arg10: memref<64x32xbf16, #tpu.memory_space<vmem>>, %arg11: memref<1x32xf32, #tpu.memory_space<vmem>>, %arg12: memref<32x64xbf16, #tpu.memory_space<vmem>>, %arg13: memref<1x64xf32, #tpu.memory_space<vmem>>, %arg14: memref<64x128xbf16, #tpu.memory_space<vmem>>, %arg15: memref<1x128xf32, #tpu.memory_space<vmem>>, %arg16: memref<128x256xbf16, #tpu.memory_space<vmem>>, %arg17: memref<1x256xf32, #tpu.memory_space<vmem>>, %arg18: memref<256x512xbf16, #tpu.memory_space<vmem>>, %arg19: memref<1x512xf32, #tpu.memory_space<vmem>>, %arg20: memref<512x1536xbf16, #tpu.memory_space<vmem>>, %arg21: memref<1x1536xf32, #tpu.memory_space<vmem>>, %arg22: memref<8x128xf32, #tpu.memory_space<vmem>>, %arg23: memref<8x1536xbf16, #tpu.memory_space<vmem>>) attributes {dimension_semantics = [#tpu.dimension_semantics<parallel>], iteration_bounds = array<i64: 1>, scalar_prefetch = 0 : i64, scratch_operands = 0 : i64, tpu.core_type = #tpu.core_type<tc>, window_params = [{transform_indices = @transform_0, window_bounds = array<i64: 8, 1536>}, {pipeline_mode = #tpu.pipeline_mode<synchronous>, transform_indices = @transform_1, window_bounds = array<i64: 1536, 512>}, {pipeline_mode = #tpu.pipeline_mode<synchronous>, transform_indices = @transform_2, window_bounds = array<i64: 1, 512>}, {pipeline_mode = #tpu.pipeline_mode<synchronous>, transform_indices = @transform_3, window_bounds = array<i64: 512, 256>}, {pipeline_mode = #tpu.pipeline_mode<synchronous>, transform_indices = @transform_4, window_bounds = array<i64: 1, 256>}, {pipeline_mode = #tpu.pipeline_mode<synchronous>, transform_indices = @transform_5, window_bounds = array<i64: 256, 128>}, {pipeline_mode = #tpu.pipeline_mode<synchronous>, transform_indices = @transform_6, window_bounds = array<i64: 1, 128>}, {pipeline_mode = #tpu.pipeline_mode<synchronous>, transform_indices = @transform_7, window_bounds = array<i64: 128, 64>}, {pipeline_mode = #tpu.pipeline_mode<synchronous>, transform_indices = @transform_8, window_bounds = array<i64: 1, 64>}, {pipeline_mode = #tpu.pipeline_mode<synchronous>, transform_indices = @transform_9, window_bounds = array<i64: 64, 32>}, {pipeline_mode = #tpu.pipeline_mode<synchronous>, transform_indices = @transform_10, window_bounds = array<i64: 1, 32>}, {pipeline_mode = #tpu.pipeline_mode<synchronous>, transform_indices = @transform_11, window_bounds = array<i64: 32, 64>}, {pipeline_mode = #tpu.pipeline_mode<synchronous>, transform_indices = @transform_12, window_bounds = array<i64: 1, 64>}, {pipeline_mode = #tpu.pipeline_mode<synchronous>, transform_indices = @transform_13, window_bounds = array<i64: 64, 128>}, {pipeline_mode = #tpu.pipeline_mode<synchronous>, transform_indices = @transform_14, window_bounds = array<i64: 1, 128>}, {pipeline_mode = #tpu.pipeline_mode<synchronous>, transform_indices = @transform_15, window_bounds = array<i64: 128, 256>}, {pipeline_mode = #tpu.pipeline_mode<synchronous>, transform_indices = @transform_16, window_bounds = array<i64: 1, 256>}, {pipeline_mode = #tpu.pipeline_mode<synchronous>, transform_indices = @transform_17, window_bounds = array<i64: 256, 512>}, {pipeline_mode = #tpu.pipeline_mode<synchronous>, transform_indices = @transform_18, window_bounds = array<i64: 1, 512>}, {pipeline_mode = #tpu.pipeline_mode<synchronous>, transform_indices = @transform_19, window_bounds = array<i64: 512, 1536>}, {pipeline_mode = #tpu.pipeline_mode<synchronous>, transform_indices = @transform_20, window_bounds = array<i64: 1, 1536>}, {transform_indices = @transform_21, window_bounds = array<i64: 8, 128>}, {transform_indices = @transform_22, window_bounds = array<i64: 8, 1536>}]} {
    %c0 = arith.constant 0 : index
    %c0_0 = arith.constant 0 : index
    %0 = vector.load %arg1[%c0, %c0_0] : memref<8x1536xbf16, #tpu.memory_space<vmem>>, vector<8x1536xbf16>
    %c0_1 = arith.constant 0 : index
    %c0_2 = arith.constant 0 : index
    %1 = vector.load %arg2[%c0_1, %c0_2] : memref<1536x512xbf16, #tpu.memory_space<vmem>>, vector<1536x512xbf16>
    %cst = arith.constant dense<0.000000e+00> : vector<8x512xf32>
    %2 = tpu.matmul %0, %1, %cst {dimension_numbers = #tpu.dot_dimension_numbers<[1], [0], [0], [1], [0, 0, 1, 1], [], []>} : vector<8x1536xbf16>, vector<1536x512xbf16>, vector<8x512xf32> -> vector<8x512xf32>
    %c0_3 = arith.constant 0 : index
    %c0_4 = arith.constant 0 : index
    %3 = vector.load %arg3[%c0_3, %c0_4] : memref<1x512xf32, #tpu.memory_space<vmem>>, vector<1x512xf32>
    %4 = vector.broadcast %3 : vector<1x512xf32> to vector<8x512xf32>
    %5 = arith.addf %2, %4 : vector<8x512xf32>
    %cst_5 = arith.constant 0.000000e+00 : f32
    %6 = vector.broadcast %cst_5 : f32 to vector<8x512xf32>
    %7 = arith.maximumf %5, %6 : vector<8x512xf32>
    %8 = arith.truncf %7 : vector<8x512xf32> to vector<8x512xbf16>
    %c0_6 = arith.constant 0 : index
    %c0_7 = arith.constant 0 : index
    %9 = vector.load %arg4[%c0_6, %c0_7] : memref<512x256xbf16, #tpu.memory_space<vmem>>, vector<512x256xbf16>
    %cst_8 = arith.constant dense<0.000000e+00> : vector<8x256xf32>
    %10 = tpu.matmul %8, %9, %cst_8 {dimension_numbers = #tpu.dot_dimension_numbers<[1], [0], [0], [1], [0, 0, 1, 1], [], []>} : vector<8x512xbf16>, vector<512x256xbf16>, vector<8x256xf32> -> vector<8x256xf32>
    %c0_9 = arith.constant 0 : index
    %c0_10 = arith.constant 0 : index
    %11 = vector.load %arg5[%c0_9, %c0_10] : memref<1x256xf32, #tpu.memory_space<vmem>>, vector<1x256xf32>
    %12 = vector.broadcast %11 : vector<1x256xf32> to vector<8x256xf32>
    %13 = arith.addf %10, %12 : vector<8x256xf32>
    %cst_11 = arith.constant 0.000000e+00 : f32
    %14 = vector.broadcast %cst_11 : f32 to vector<8x256xf32>
    %15 = arith.maximumf %13, %14 : vector<8x256xf32>
    %16 = arith.truncf %15 : vector<8x256xf32> to vector<8x256xbf16>
    %c0_12 = arith.constant 0 : index
    %c0_13 = arith.constant 0 : index
    %17 = vector.load %arg6[%c0_12, %c0_13] : memref<256x128xbf16, #tpu.memory_space<vmem>>, vector<256x128xbf16>
    %cst_14 = arith.constant dense<0.000000e+00> : vector<8x128xf32>
    %18 = tpu.matmul %16, %17, %cst_14 {dimension_numbers = #tpu.dot_dimension_numbers<[1], [0], [0], [1], [0, 0, 1, 1], [], []>} : vector<8x256xbf16>, vector<256x128xbf16>, vector<8x128xf32> -> vector<8x128xf32>
    %c0_15 = arith.constant 0 : index
    %c0_16 = arith.constant 0 : index
    %19 = vector.load %arg7[%c0_15, %c0_16] : memref<1x128xf32, #tpu.memory_space<vmem>>, vector<1x128xf32>
    %20 = vector.broadcast %19 : vector<1x128xf32> to vector<8x128xf32>
    %21 = arith.addf %18, %20 : vector<8x128xf32>
    %cst_17 = arith.constant 0.000000e+00 : f32
    %22 = vector.broadcast %cst_17 : f32 to vector<8x128xf32>
    %23 = arith.maximumf %21, %22 : vector<8x128xf32>
    %24 = arith.truncf %23 : vector<8x128xf32> to vector<8x128xbf16>
    %c0_18 = arith.constant 0 : index
    %c0_19 = arith.constant 0 : index
    %25 = vector.load %arg8[%c0_18, %c0_19] : memref<128x64xbf16, #tpu.memory_space<vmem>>, vector<128x64xbf16>
    %cst_20 = arith.constant dense<0.000000e+00> : vector<8x64xf32>
    %26 = tpu.matmul %24, %25, %cst_20 {dimension_numbers = #tpu.dot_dimension_numbers<[1], [0], [0], [1], [0, 0, 1, 1], [], []>} : vector<8x128xbf16>, vector<128x64xbf16>, vector<8x64xf32> -> vector<8x64xf32>
    %c0_21 = arith.constant 0 : index
    %c0_22 = arith.constant 0 : index
    %27 = vector.load %arg9[%c0_21, %c0_22] : memref<1x64xf32, #tpu.memory_space<vmem>>, vector<1x64xf32>
    %28 = vector.broadcast %27 : vector<1x64xf32> to vector<8x64xf32>
    %29 = arith.addf %26, %28 : vector<8x64xf32>
    %cst_23 = arith.constant 0.000000e+00 : f32
    %30 = vector.broadcast %cst_23 : f32 to vector<8x64xf32>
    %31 = arith.maximumf %29, %30 : vector<8x64xf32>
    %32 = arith.truncf %31 : vector<8x64xf32> to vector<8x64xbf16>
    %c0_24 = arith.constant 0 : index
    %c0_25 = arith.constant 0 : index
    %33 = vector.load %arg10[%c0_24, %c0_25] : memref<64x32xbf16, #tpu.memory_space<vmem>>, vector<64x32xbf16>
    %cst_26 = arith.constant dense<0.000000e+00> : vector<8x32xf32>
    %34 = tpu.matmul %32, %33, %cst_26 {dimension_numbers = #tpu.dot_dimension_numbers<[1], [0], [0], [1], [0, 0, 1, 1], [], []>} : vector<8x64xbf16>, vector<64x32xbf16>, vector<8x32xf32> -> vector<8x32xf32>
    %c0_27 = arith.constant 0 : index
    %c0_28 = arith.constant 0 : index
    %35 = vector.load %arg11[%c0_27, %c0_28] : memref<1x32xf32, #tpu.memory_space<vmem>>, vector<1x32xf32>
    %36 = vector.broadcast %35 : vector<1x32xf32> to vector<8x32xf32>
    %37 = arith.addf %34, %36 : vector<8x32xf32>
    %cst_29 = arith.constant 0.000000e+00 : f32
    %38 = vector.broadcast %cst_29 : f32 to vector<8x32xf32>
    %39 = arith.maximumf %37, %38 : vector<8x32xf32>
    %cst_30 = arith.constant dense<0xFF800000> : vector<8xf32>
    %40 = vector.multi_reduction <maximumf>, %39, %cst_30 [1] : vector<8x32xf32> to vector<8xf32>
    %41 = vector.shape_cast %40 : vector<8xf32> to vector<8x1xf32>
    %42 = vector.broadcast %41 : vector<8x1xf32> to vector<8x32xf32>
    %43 = arith.subf %39, %42 : vector<8x32xf32>
    %44 = math.exp %43 : vector<8x32xf32>
    %cst_31 = arith.constant dense<0.000000e+00> : vector<8xf32>
    %45 = vector.multi_reduction <add>, %44, %cst_31 [1] : vector<8x32xf32> to vector<8xf32>
    %46 = vector.shape_cast %45 : vector<8xf32> to vector<8x1xf32>
    %47 = math.log %46 : vector<8x1xf32>
    %48 = vector.broadcast %47 : vector<8x1xf32> to vector<8x32xf32>
    %49 = arith.subf %43, %48 : vector<8x32xf32>
    %cst_32 = arith.constant 0.000000e+00 : f32
    %50 = vector.broadcast %cst_32 : f32 to vector<8x96xf32>
    %51 = tpu.concatenate %49, %50 in 1 : vector<8x32xf32>, vector<8x96xf32> -> vector<8x128xf32>
    %c0_33 = arith.constant 0 : index
    %c0_34 = arith.constant 0 : index
    %52 = vector.load %arg22[%c0_33, %c0_34] : memref<8x128xf32, #tpu.memory_space<vmem>>, vector<8x128xf32>
    tpu.vector_store %arg22[%c0_33, %c0_34], %51 {strides = array<i32>} : memref<8x128xf32, #tpu.memory_space<vmem>>, vector<8x128xf32>,
    %53 = arith.truncf %39 : vector<8x32xf32> to vector<8x32xbf16>
    %c0_35 = arith.constant 0 : index
    %c0_36 = arith.constant 0 : index
    %54 = vector.load %arg12[%c0_35, %c0_36] : memref<32x64xbf16, #tpu.memory_space<vmem>>, vector<32x64xbf16>
    %cst_37 = arith.constant dense<0.000000e+00> : vector<8x64xf32>
    %55 = tpu.matmul %53, %54, %cst_37 {dimension_numbers = #tpu.dot_dimension_numbers<[1], [0], [0], [1], [0, 0, 1, 1], [], []>} : vector<8x32xbf16>, vector<32x64xbf16>, vector<8x64xf32> -> vector<8x64xf32>
    %c0_38 = arith.constant 0 : index
    %c0_39 = arith.constant 0 : index
    %56 = vector.load %arg13[%c0_38, %c0_39] : memref<1x64xf32, #tpu.memory_space<vmem>>, vector<1x64xf32>
    %57 = vector.broadcast %56 : vector<1x64xf32> to vector<8x64xf32>
    %58 = arith.addf %55, %57 : vector<8x64xf32>
    %cst_40 = arith.constant 0.000000e+00 : f32
    %59 = vector.broadcast %cst_40 : f32 to vector<8x64xf32>
    %60 = arith.maximumf %58, %59 : vector<8x64xf32>
    %61 = arith.truncf %60 : vector<8x64xf32> to vector<8x64xbf16>
    %c0_41 = arith.constant 0 : index
    %c0_42 = arith.constant 0 : index
    %62 = vector.load %arg14[%c0_41, %c0_42] : memref<64x128xbf16, #tpu.memory_space<vmem>>, vector<64x128xbf16>
    %cst_43 = arith.constant dense<0.000000e+00> : vector<8x128xf32>
    %63 = tpu.matmul %61, %62, %cst_43 {dimension_numbers = #tpu.dot_dimension_numbers<[1], [0], [0], [1], [0, 0, 1, 1], [], []>} : vector<8x64xbf16>, vector<64x128xbf16>, vector<8x128xf32> -> vector<8x128xf32>
    %c0_44 = arith.constant 0 : index
    %c0_45 = arith.constant 0 : index
    %64 = vector.load %arg15[%c0_44, %c0_45] : memref<1x128xf32, #tpu.memory_space<vmem>>, vector<1x128xf32>
    %65 = vector.broadcast %64 : vector<1x128xf32> to vector<8x128xf32>
    %66 = arith.addf %63, %65 : vector<8x128xf32>
    %cst_46 = arith.constant 0.000000e+00 : f32
    %67 = vector.broadcast %cst_46 : f32 to vector<8x128xf32>
    %68 = arith.maximumf %66, %67 : vector<8x128xf32>
    %69 = arith.truncf %68 : vector<8x128xf32> to vector<8x128xbf16>
    %c0_47 = arith.constant 0 : index
    %c0_48 = arith.constant 0 : index
    %70 = vector.load %arg16[%c0_47, %c0_48] : memref<128x256xbf16, #tpu.memory_space<vmem>>, vector<128x256xbf16>
    %cst_49 = arith.constant dense<0.000000e+00> : vector<8x256xf32>
    %71 = tpu.matmul %69, %70, %cst_49 {dimension_numbers = #tpu.dot_dimension_numbers<[1], [0], [0], [1], [0, 0, 1, 1], [], []>} : vector<8x128xbf16>, vector<128x256xbf16>, vector<8x256xf32> -> vector<8x256xf32>
    %c0_50 = arith.constant 0 : index
    %c0_51 = arith.constant 0 : index
    %72 = vector.load %arg17[%c0_50, %c0_51] : memref<1x256xf32, #tpu.memory_space<vmem>>, vector<1x256xf32>
    %73 = vector.broadcast %72 : vector<1x256xf32> to vector<8x256xf32>
    %74 = arith.addf %71, %73 : vector<8x256xf32>
    %cst_52 = arith.constant 0.000000e+00 : f32
    %75 = vector.broadcast %cst_52 : f32 to vector<8x256xf32>
    %76 = arith.maximumf %74, %75 : vector<8x256xf32>
    %77 = arith.truncf %76 : vector<8x256xf32> to vector<8x256xbf16>
    %c0_53 = arith.constant 0 : index
    %c0_54 = arith.constant 0 : index
    %78 = vector.load %arg18[%c0_53, %c0_54] : memref<256x512xbf16, #tpu.memory_space<vmem>>, vector<256x512xbf16>
    %cst_55 = arith.constant dense<0.000000e+00> : vector<8x512xf32>
    %79 = tpu.matmul %77, %78, %cst_55 {dimension_numbers = #tpu.dot_dimension_numbers<[1], [0], [0], [1], [0, 0, 1, 1], [], []>} : vector<8x256xbf16>, vector<256x512xbf16>, vector<8x512xf32> -> vector<8x512xf32>
    %c0_56 = arith.constant 0 : index
    %c0_57 = arith.constant 0 : index
    %80 = vector.load %arg19[%c0_56, %c0_57] : memref<1x512xf32, #tpu.memory_space<vmem>>, vector<1x512xf32>
    %81 = vector.broadcast %80 : vector<1x512xf32> to vector<8x512xf32>
    %82 = arith.addf %79, %81 : vector<8x512xf32>
    %cst_58 = arith.constant 0.000000e+00 : f32
    %83 = vector.broadcast %cst_58 : f32 to vector<8x512xf32>
    %84 = arith.maximumf %82, %83 : vector<8x512xf32>
    %85 = arith.truncf %84 : vector<8x512xf32> to vector<8x512xbf16>
    %c0_59 = arith.constant 0 : index
    %c0_60 = arith.constant 0 : index
    %86 = vector.load %arg20[%c0_59, %c0_60] : memref<512x1536xbf16, #tpu.memory_space<vmem>>, vector<512x1536xbf16>
    %cst_61 = arith.constant dense<0.000000e+00> : vector<8x1536xf32>
    %87 = tpu.matmul %85, %86, %cst_61 {dimension_numbers = #tpu.dot_dimension_numbers<[1], [0], [0], [1], [0, 0, 1, 1], [], []>} : vector<8x512xbf16>, vector<512x1536xbf16>, vector<8x1536xf32> -> vector<8x1536xf32>
    %c0_62 = arith.constant 0 : index
    %c0_63 = arith.constant 0 : index
    %88 = vector.load %arg21[%c0_62, %c0_63] : memref<1x1536xf32, #tpu.memory_space<vmem>>, vector<1x1536xf32>
    %89 = vector.broadcast %88 : vector<1x1536xf32> to vector<8x1536xf32>
    %90 = arith.addf %87, %89 : vector<8x1536xf32>
    %cst_64 = arith.constant 0.000000e+00 : f32
    %91 = vector.broadcast %cst_64 : f32 to vector<8x1536xf32>
    %92 = arith.maximumf %90, %91 : vector<8x1536xf32>
    %93 = arith.truncf %92 : vector<8x1536xf32> to vector<8x1536xbf16>
    %c0_65 = arith.constant 0 : index
    %c0_66 = arith.constant 0 : index
    %94 = vector.load %arg23[%c0_65, %c0_66] : memref<8x1536xbf16, #tpu.memory_space<vmem>>, vector<8x1536xbf16>
    tpu.vector_store %arg23[%c0_65, %c0_66], %93 {strides = array<i32>} : memref<8x1536xbf16, #tpu.memory_space<vmem>>, vector<8x1536xbf16>,
    return
  }
  func.func @transform_0(%arg0: i32) -> (i32, i32) {
    %c0_i32 = arith.constant 0 : i32
    %c0_i32_0 = arith.constant 0 : i32
    return %arg0, %c0_i32 : i32, i32
  }
  func.func @transform_1(%arg0: i32) -> (i32, i32) {
    %c0_i32 = arith.constant 0 : i32
    %c0_i32_0 = arith.constant 0 : i32
    %c0_i32_1 = arith.constant 0 : i32
    return %c0_i32, %c0_i32_0 : i32, i32
  }
  func.func @transform_2(%arg0: i32) -> (i32, i32) {
    %c0_i32 = arith.constant 0 : i32
    %c0_i32_0 = arith.constant 0 : i32
    %c0_i32_1 = arith.constant 0 : i32
    return %c0_i32, %c0_i32_0 : i32, i32
  }
  func.func @transform_3(%arg0: i32) -> (i32, i32) {
    %c0_i32 = arith.constant 0 : i32
    %c0_i32_0 = arith.constant 0 : i32
    %c0_i32_1 = arith.constant 0 : i32
    return %c0_i32, %c0_i32_0 : i32, i32
  }
  func.func @transform_4(%arg0: i32) -> (i32, i32) {
    %c0_i32 = arith.constant 0 : i32
    %c0_i32_0 = arith.constant 0 : i32
    %c0_i32_1 = arith.constant 0 : i32
    return %c0_i32, %c0_i32_0 : i32, i32
  }
  func.func @transform_5(%arg0: i32) -> (i32, i32) {
    %c0_i32 = arith.constant 0 : i32
    %c0_i32_0 = arith.constant 0 : i32
    %c0_i32_1 = arith.constant 0 : i32
    return %c0_i32, %c0_i32_0 : i32, i32
  }
  func.func @transform_6(%arg0: i32) -> (i32, i32) {
    %c0_i32 = arith.constant 0 : i32
    %c0_i32_0 = arith.constant 0 : i32
    %c0_i32_1 = arith.constant 0 : i32
    return %c0_i32, %c0_i32_0 : i32, i32
  }
  func.func @transform_7(%arg0: i32) -> (i32, i32) {
    %c0_i32 = arith.constant 0 : i32
    %c0_i32_0 = arith.constant 0 : i32
    %c0_i32_1 = arith.constant 0 : i32
    return %c0_i32, %c0_i32_0 : i32, i32
  }
  func.func @transform_8(%arg0: i32) -> (i32, i32) {
    %c0_i32 = arith.constant 0 : i32
    %c0_i32_0 = arith.constant 0 : i32
    %c0_i32_1 = arith.constant 0 : i32
    return %c0_i32, %c0_i32_0 : i32, i32
  }
  func.func @transform_9(%arg0: i32) -> (i32, i32) {
    %c0_i32 = arith.constant 0 : i32
    %c0_i32_0 = arith.constant 0 : i32
    %c0_i32_1 = arith.constant 0 : i32
    return %c0_i32, %c0_i32_0 : i32, i32
  }
  func.func @transform_10(%arg0: i32) -> (i32, i32) {
    %c0_i32 = arith.constant 0 : i32
    %c0_i32_0 = arith.constant 0 : i32
    %c0_i32_1 = arith.constant 0 : i32
    return %c0_i32, %c0_i32_0 : i32, i32
  }
  func.func @transform_11(%arg0: i32) -> (i32, i32) {
    %c0_i32 = arith.constant 0 : i32
    %c0_i32_0 = arith.constant 0 : i32
    %c0_i32_1 = arith.constant 0 : i32
    return %c0_i32, %c0_i32_0 : i32, i32
  }
  func.func @transform_12(%arg0: i32) -> (i32, i32) {
    %c0_i32 = arith.constant 0 : i32
    %c0_i32_0 = arith.constant 0 : i32
    %c0_i32_1 = arith.constant 0 : i32
    return %c0_i32, %c0_i32_0 : i32, i32
  }
  func.func @transform_13(%arg0: i32) -> (i32, i32) {
    %c0_i32 = arith.constant 0 : i32
    %c0_i32_0 = arith.constant 0 : i32
    %c0_i32_1 = arith.constant 0 : i32
    return %c0_i32, %c0_i32_0 : i32, i32
  }
  func.func @transform_14(%arg0: i32) -> (i32, i32) {
    %c0_i32 = arith.constant 0 : i32
    %c0_i32_0 = arith.constant 0 : i32
    %c0_i32_1 = arith.constant 0 : i32
    return %c0_i32, %c0_i32_0 : i32, i32
  }
  func.func @transform_15(%arg0: i32) -> (i32, i32) {
    %c0_i32 = arith.constant 0 : i32
    %c0_i32_0 = arith.constant 0 : i32
    %c0_i32_1 = arith.constant 0 : i32
    return %c0_i32, %c0_i32_0 : i32, i32
  }
  func.func @transform_16(%arg0: i32) -> (i32, i32) {
    %c0_i32 = arith.constant 0 : i32
    %c0_i32_0 = arith.constant 0 : i32
    %c0_i32_1 = arith.constant 0 : i32
    return %c0_i32, %c0_i32_0 : i32, i32
  }
  func.func @transform_17(%arg0: i32) -> (i32, i32) {
    %c0_i32 = arith.constant 0 : i32
    %c0_i32_0 = arith.constant 0 : i32
    %c0_i32_1 = arith.constant 0 : i32
    return %c0_i32, %c0_i32_0 : i32, i32
  }
  func.func @transform_18(%arg0: i32) -> (i32, i32) {
    %c0_i32 = arith.constant 0 : i32
    %c0_i32_0 = arith.constant 0 : i32
    %c0_i32_1 = arith.constant 0 : i32
    return %c0_i32, %c0_i32_0 : i32, i32
  }
  func.func @transform_19(%arg0: i32) -> (i32, i32) {
    %c0_i32 = arith.constant 0 : i32
    %c0_i32_0 = arith.constant 0 : i32
    %c0_i32_1 = arith.constant 0 : i32
    return %c0_i32, %c0_i32_0 : i32, i32
  }
  func.func @transform_20(%arg0: i32) -> (i32, i32) {
    %c0_i32 = arith.constant 0 : i32
    %c0_i32_0 = arith.constant 0 : i32
    %c0_i32_1 = arith.constant 0 : i32
    return %c0_i32, %c0_i32_0 : i32, i32
  }
  func.func @transform_21(%arg0: i32) -> (i32, i32) {
    %c0_i32 = arith.constant 0 : i32
    %c0_i32_0 = arith.constant 0 : i32
    return %arg0, %c0_i32 : i32, i32
  }
  func.func @transform_22(%arg0: i32) -> (i32, i32) {
    %c0_i32 = arith.constant 0 : i32
    %c0_i32_0 = arith.constant 0 : i32
    return %arg0, %c0_i32 : i32, i32
  }
}

</mosaic_0001>

<llo_original>
// kernel: stacked_autoencoder_forward.1
$region0: #{stacked_autoencoder_forward.1}
  #allocation0 [shape = 'u32[]', space=smem, size = 0x4, offset = 0x4, fixed_abs, tag = 'smem constant byte address 0x4 - core index']
  #allocation1 [shape = 'u32[72,128]{1,0:T(1,128)}', space=vmem, size = 0x9000, scoped, tag = 'internal scratch']
  %s0 = inlined_call_operand.vmem [shape: bf16[8,1536], index: 0, kind: input, shape index: {}]
  %s1 = inlined_call_operand.hbm [shape: bf16[1536,512], index: 1, kind: input, shape index: {}]
  %s2 = inlined_call_operand.hbm [shape: f32[1,512], index: 2, kind: input, shape index: {}]
  %s3 = inlined_call_operand.hbm [shape: bf16[512,256], index: 3, kind: input, shape index: {}]
  %s4 = inlined_call_operand.hbm [shape: f32[1,256], index: 4, kind: input, shape index: {}]
  %s5 = inlined_call_operand.hbm [shape: bf16[256,128], index: 5, kind: input, shape index: {}]
  %s6 = inlined_call_operand.hbm [shape: f32[1,128], index: 6, kind: input, shape index: {}]
  %s7 = inlined_call_operand.vmem [shape: bf16[128,64], index: 7, kind: input, shape index: {}]
  %s8 = inlined_call_operand.hbm [shape: f32[1,64], index: 8, kind: input, shape index: {}]
  %s9 = inlined_call_operand.vmem [shape: bf16[64,32], index: 9, kind: input, shape index: {}]
  %s10 = inlined_call_operand.hbm [shape: f32[1,32], index: 10, kind: input, shape index: {}]
  %s11 = inlined_call_operand.hbm [shape: bf16[32,64], index: 11, kind: input, shape index: {}]
  %s12 = inlined_call_operand.hbm [shape: f32[1,64], index: 12, kind: input, shape index: {}]
  %s13 = inlined_call_operand.hbm [shape: bf16[64,128], index: 13, kind: input, shape index: {}]
  %s14 = inlined_call_operand.hbm [shape: f32[1,128], index: 14, kind: input, shape index: {}]
  %s15 = inlined_call_operand.hbm [shape: bf16[128,256], index: 15, kind: input, shape index: {}]
  %s16 = inlined_call_operand.hbm [shape: f32[1,256], index: 16, kind: input, shape index: {}]
  %s17 = inlined_call_operand.hbm [shape: bf16[256,512], index: 17, kind: input, shape index: {}]
  %s18 = inlined_call_operand.hbm [shape: f32[1,512], index: 18, kind: input, shape index: {}]
  %s19 = inlined_call_operand.hbm [shape: bf16[512,1536], index: 19, kind: input, shape index: {}]
  %s20 = inlined_call_operand.hbm [shape: f32[1,1536], index: 20, kind: input, shape index: {}]
  %s21 = inlined_call_operand.hbm [shape: f32[8,128], index: 21, kind: output, shape index: {0}]
  %s22 = inlined_call_operand.vmem [shape: bf16[8,1536], index: 22, kind: output, shape index: {1}]
  %23 = xla_tuple %s21, %s22
  %s24 = sld [smem:[#allocation0]]
  $region174: #{stacked_autoencoder_forward.1} parent=0
    _
  %s26 = ssub.s32 1, %s24
  %s27 = scalar_select 0, %s26, %s24
  $region1: #{stacked_autoencoder_forward.1} parent=0
    #allocation2 [shape = 'u8[1572864]{0}', space=vmem, size = 0x180000, scoped, tag = 'input window, operand 1, single buffered']
    #allocation3 [shape = 's32[1]{0}', space=sflag, size = 0x4, scoped, tag = 'scoped memory for stacked_autoencoder_forward.1']
    #allocation4 [shape = 's32[1]{0}', space=sflag, size = 0x4, scoped, tag = 'scoped memory for stacked_autoencoder_forward.1']
    #allocation5 [shape = 'u8[2048]{0}', space=vmem, size = 0x800, scoped, tag = 'input window, operand 2, single buffered']
    #allocation6 [shape = 's32[1]{0}', space=sflag, size = 0x4, scoped, tag = 'scoped memory for stacked_autoencoder_forward.1']
    #allocation7 [shape = 'u8[262144]{0}', space=vmem, size = 0x40000, scoped, tag = 'input window, operand 3, single buffered']
    #allocation8 [shape = 'u8[1024]{0}', space=vmem, size = 0x400, scoped, tag = 'input window, operand 4, single buffered']
    #allocation9 [shape = 's32[1]{0}', space=sflag, size = 0x4, scoped, tag = 'scoped memory for stacked_autoencoder_forward.1']
    #allocation10 [shape = 'u8[65536]{0}', space=vmem, size = 0x10000, scoped, tag = 'input window, operand 5, single buffered']
    #allocation11 [shape = 'u8[512]{0}', space=vmem, size = 0x400, scoped, tag = 'input window, operand 6, single buffered']
    #allocation12 [shape = 's32[1]{0}', space=sflag, size = 0x4, scoped, tag = 'scoped memory for stacked_autoencoder_forward.1']
    #allocation13 [shape = 'u8[512]{0}', space=vmem, size = 0x400, scoped, tag = 'input window, operand 8, single buffered']
    #allocation14 [shape = 'u8[512]{0}', space=vmem, size = 0x400, scoped, tag = 'input window, operand 10, single buffered']
    #allocation15 [shape = 's32[1]{0}', space=sflag, size = 0x4, scoped, tag = 'scoped memory for stacked_autoencoder_forward.1']
    #allocation16 [shape = 'u8[8192]{0}', space=vmem, size = 0x2000, scoped, tag = 'input window, operand 11, single buffered']
    #allocation17 [shape = 'u8[512]{0}', space=vmem, size = 0x400, scoped, tag = 'input window, operand 12, single buffered']
    #allocation18 [shape = 's32[1]{0}', space=sflag, size = 0x4, scoped, tag = 'scoped memory for stacked_autoencoder_forward.1']
    #allocation19 [shape = 'u8[16384]{0}', space=vmem, size = 0x4000, scoped, tag = 'input window, operand 13, single buffered']
    #allocation20 [shape = 'u8[512]{0}', space=vmem, size = 0x400, scoped, tag = 'input window, operand 14, single buffered']
    #allocation21 [shape = 's32[1]{0}', space=sflag, size = 0x4, scoped, tag = 'scoped memory for stacked_autoencoder_forward.1']
    #allocation22 [shape = 'u8[65536]{0}', space=vmem, size = 0x10000, scoped, tag = 'input window, operand 15, single buffered']
    #allocation23 [shape = 'u8[1024]{0}', space=vmem, size = 0x400, scoped, tag = 'input window, operand 16, single buffered']
    #allocation24 [shape = 's32[1]{0}', space=sflag, size = 0x4, scoped, tag = 'scoped memory for stacked_autoencoder_forward.1']
    #allocation25 [shape = 'u8[262144]{0}', space=vmem, size = 0x40000, scoped, tag = 'input window, operand 17, single buffered']
    #allocation26 [shape = 'u8[2048]{0}', space=vmem, size = 0x800, scoped, tag = 'input window, operand 18, single buffered']
    #allocation27 [shape = 's32[1]{0}', space=sflag, size = 0x4, scoped, tag = 'scoped memory for stacked_autoencoder_forward.1']
    #allocation28 [shape = 'u8[1572864]{0}', space=vmem, size = 0x180000, scoped, tag = 'input window, operand 19, single buffered']
    #allocation29 [shape = 'u8[6144]{0}', space=vmem, size = 0x1800, scoped, tag = 'input window, operand 20, single buffered']
    #allocation30 [shape = 's32[1]{0}', space=sflag, size = 0x4, scoped, tag = 'scoped memory for stacked_autoencoder_forward.1']
    #allocation31 [shape = 'u8[4096]{0}', space=vmem, size = 0x1000, scoped, tag = 'output window, operand 0, single buffered']
    %28 = vsyncpa [#allocation3], 0
    %29 = vsyncpa [#allocation6], 0
    %30 = vsyncpa [#allocation9], 0
    %31 = vsyncpa [#allocation12], 0
    %32 = vsyncpa [#allocation15], 0
    %33 = vsyncpa [#allocation18], 0
    %34 = vsyncpa [#allocation21], 0
    %35 = vsyncpa [#allocation24], 0
    %36 = vsyncpa [#allocation27], 0
    %37 = vsyncpa [#allocation30], 0
    %38 = vsyncpa [#allocation4], 0
    // Predicated region
    $region2: #{stacked_autoencoder_forward.1} parent=1 // pred_check
      _
    $region3: #{stacked_autoencoder_forward.1} parent=1 // pred_check_branch
      %40 = sbr.rel (0) target = $region5
    $region4: #{stacked_autoencoder_forward.1} parent=1 // pred_region
      _
    $region5: #{stacked_autoencoder_forward.1} parent=1 // pred_fallthru
      _
    // Predicated region
    $region6: #{stacked_autoencoder_forward.1} parent=1 // pred_check
      _
    $region7: #{stacked_autoencoder_forward.1} parent=1 // pred_check_branch
      %42 = sbr.rel (0) target = $region9
    $region8: #{stacked_autoencoder_forward.1} parent=1 // pred_region
      %44 = vsyncadd [#allocation3], 0
      %s45 = sshll.u32 %s1, 4
      %s46 = int_to_ptr.hbm [resolvable:$true] %s45
      %s47 = sshll.u32 [#allocation2], 4
      %s48 = int_to_ptr.vmem [resolvable:$true] %s47
      %53 = dma.hbm_to_vmem [thread:$0]  %s46, 49152, %s48, [#allocation3], 256, 256, 16
    $region9: #{stacked_autoencoder_forward.1} parent=1 // pred_fallthru
      _
    // Predicated region
    $region10: #{stacked_autoencoder_forward.1} parent=1 // pred_check
      _
    $region11: #{stacked_autoencoder_forward.1} parent=1 // pred_check_branch
      %55 = sbr.rel (0) target = $region13
    $region12: #{stacked_autoencoder_forward.1} parent=1 // pred_region
      %57 = vsyncadd [#allocation6], 0
      %s59 = sshll.u32 %s2, 4
      %s60 = int_to_ptr.hbm [resolvable:$true] %s59
      %s61 = sshll.u32 [#allocation5], 4
      %s62 = int_to_ptr.vmem [resolvable:$true] %s61
      %64 = dma.hbm_to_vmem [thread:$0]  %s60, 64, %s62, [#allocation6]
    $region13: #{stacked_autoencoder_forward.1} parent=1 // pred_fallthru
      _
    // Predicated region
    $region14: #{stacked_autoencoder_forward.1} parent=1 // pred_check
      _
    $region15: #{stacked_autoencoder_forward.1} parent=1 // pred_check_branch
      %66 = sbr.rel (0) target = $region17
    $region16: #{stacked_autoencoder_forward.1} parent=1 // pred_region
      %68 = vsyncadd [#allocation6], 0
      %s69 = sshll.u32 %s3, 4
      %s70 = int_to_ptr.hbm [resolvable:$true] %s69
      %s71 = sshll.u32 [#allocation7], 4
      %s72 = int_to_ptr.vmem [resolvable:$true] %s71
      %77 = dma.hbm_to_vmem [thread:$0]  %s70, 8192, %s72, [#allocation6], 128, 128, 8
    $region17: #{stacked_autoencoder_forward.1} parent=1 // pred_fallthru
      _
    // Predicated region
    $region18: #{stacked_autoencoder_forward.1} parent=1 // pred_check
      _
    $region19: #{stacked_autoencoder_forward.1} parent=1 // pred_check_branch
      %79 = sbr.rel (0) target = $region21
    $region20: #{stacked_autoencoder_forward.1} parent=1 // pred_region
      %81 = vsyncadd [#allocation9], 0
      %s83 = sshll.u32 %s4, 4
      %s84 = int_to_ptr.hbm [resolvable:$true] %s83
      %s85 = sshll.u32 [#allocation8], 4
      %s86 = int_to_ptr.vmem [resolvable:$true] %s85
      %88 = dma.hbm_to_vmem [thread:$0]  %s84, 32, %s86, [#allocation9]
    $region21: #{stacked_autoencoder_forward.1} parent=1 // pred_fallthru
      _
    // Predicated region
    $region22: #{stacked_autoencoder_forward.1} parent=1 // pred_check
      _
    $region23: #{stacked_autoencoder_forward.1} parent=1 // pred_check_branch
      %90 = sbr.rel (0) target = $region25
    $region24: #{stacked_autoencoder_forward.1} parent=1 // pred_region
      %92 = vsyncadd [#allocation9], 0
      %s93 = sshll.u32 %s5, 4
      %s94 = int_to_ptr.hbm [resolvable:$true] %s93
      %s95 = sshll.u32 [#allocation10], 4
      %s96 = int_to_ptr.vmem [resolvable:$true] %s95
      %101 = dma.hbm_to_vmem [thread:$0]  %s94, 2048, %s96, [#allocation9], 64, 64, 4
    $region25: #{stacked_autoencoder_forward.1} parent=1 // pred_fallthru
      _
    // Predicated region
    $region26: #{stacked_autoencoder_forward.1} parent=1 // pred_check
      _
    $region27: #{stacked_autoencoder_forward.1} parent=1 // pred_check_branch
      %103 = sbr.rel (0) target = $region29
    $region28: #{stacked_autoencoder_forward.1} parent=1 // pred_region
      %105 = vsyncadd [#allocation12], 0
      %s107 = sshll.u32 %s6, 4
      %s108 = int_to_ptr.hbm [resolvable:$true] %s107
      %s109 = sshll.u32 [#allocation11], 4
      %s110 = int_to_ptr.vmem [resolvable:$true] %s109
      %112 = dma.hbm_to_vmem [thread:$0]  %s108, 16, %s110, [#allocation12]
    $region29: #{stacked_autoencoder_forward.1} parent=1 // pred_fallthru
      _
    // Predicated region
    $region30: #{stacked_autoencoder_forward.1} parent=1 // pred_check
      _
    $region31: #{stacked_autoencoder_forward.1} parent=1 // pred_check_branch
      %114 = sbr.rel (0) target = $region33
    $region32: #{stacked_autoencoder_forward.1} parent=1 // pred_region
      _
    $region33: #{stacked_autoencoder_forward.1} parent=1 // pred_fallthru
      _
    // Predicated region
    $region34: #{stacked_autoencoder_forward.1} parent=1 // pred_check
      _
    $region35: #{stacked_autoencoder_forward.1} parent=1 // pred_check_branch
      %116 = sbr.rel (0) target = $region37
    $region36: #{stacked_autoencoder_forward.1} parent=1 // pred_region
      %118 = vsyncadd [#allocation12], 0
      %s120 = sshll.u32 %s8, 4
      %s121 = int_to_ptr.hbm [resolvable:$true] %s120
      %s122 = sshll.u32 [#allocation13], 4
      %s123 = int_to_ptr.vmem [resolvable:$true] %s122
      %125 = dma.hbm_to_vmem [thread:$0]  %s121, 16, %s123, [#allocation12]
    $region37: #{stacked_autoencoder_forward.1} parent=1 // pred_fallthru
      _
    // Predicated region
    $region38: #{stacked_autoencoder_forward.1} parent=1 // pred_check
      _
    $region39: #{stacked_autoencoder_forward.1} parent=1 // pred_check_branch
      %127 = sbr.rel (0) target = $region41
    $region40: #{stacked_autoencoder_forward.1} parent=1 // pred_region
      _
    $region41: #{stacked_autoencoder_forward.1} parent=1 // pred_fallthru
      _
    // Predicated region
    $region42: #{stacked_autoencoder_forward.1} parent=1 // pred_check
      _
    $region43: #{stacked_autoencoder_forward.1} parent=1 // pred_check_branch
      %129 = sbr.rel (0) target = $region45
    $region44: #{stacked_autoencoder_forward.1} parent=1 // pred_region
      %131 = vsyncadd [#allocation15], 0
      %s133 = sshll.u32 %s10, 4
      %s134 = int_to_ptr.hbm [resolvable:$true] %s133
      %s135 = sshll.u32 [#allocation14], 4
      %s136 = int_to_ptr.vmem [resolvable:$true] %s135
      %138 = dma.hbm_to_vmem [thread:$0]  %s134, 16, %s136, [#allocation15]
    $region45: #{stacked_autoencoder_forward.1} parent=1 // pred_fallthru
      _
    // Predicated region
    $region46: #{stacked_autoencoder_forward.1} parent=1 // pred_check
      _
    $region47: #{stacked_autoencoder_forward.1} parent=1 // pred_check_branch
      %140 = sbr.rel (0) target = $region49
    $region48: #{stacked_autoencoder_forward.1} parent=1 // pred_region
      %142 = vsyncadd [#allocation15], 0
      %s143 = sshll.u32 %s11, 4
      %s144 = int_to_ptr.hbm [resolvable:$true] %s143
      %s145 = sshll.u32 [#allocation16], 4
      %s146 = int_to_ptr.vmem [resolvable:$true] %s145
      %151 = dma.hbm_to_vmem [thread:$0]  %s144, 256, %s146, [#allocation15], 64, 64, 4
    $region49: #{stacked_autoencoder_forward.1} parent=1 // pred_fallthru
      _
    // Predicated region
    $region50: #{stacked_autoencoder_forward.1} parent=1 // pred_check
      _
    $region51: #{stacked_autoencoder_forward.1} parent=1 // pred_check_branch
      %153 = sbr.rel (0) target = $region53
    $region52: #{stacked_autoencoder_forward.1} parent=1 // pred_region
      %155 = vsyncadd [#allocation18], 0
      %s157 = sshll.u32 %s12, 4
      %s158 = int_to_ptr.hbm [resolvable:$true] %s157
      %s159 = sshll.u32 [#allocation17], 4
      %s160 = int_to_ptr.vmem [resolvable:$true] %s159
      %162 = dma.hbm_to_vmem [thread:$0]  %s158, 16, %s160, [#allocation18]
    $region53: #{stacked_autoencoder_forward.1} parent=1 // pred_fallthru
      _
    // Predicated region
    $region54: #{stacked_autoencoder_forward.1} parent=1 // pred_check
      _
    $region55: #{stacked_autoencoder_forward.1} parent=1 // pred_check_branch
      %164 = sbr.rel (0) target = $region57
    $region56: #{stacked_autoencoder_forward.1} parent=1 // pred_region
      %166 = vsyncadd [#allocation18], 0
      %s167 = sshll.u32 %s13, 4
      %s168 = int_to_ptr.hbm [resolvable:$true] %s167
      %s169 = sshll.u32 [#allocation19], 4
      %s170 = int_to_ptr.vmem [resolvable:$true] %s169
      %175 = dma.hbm_to_vmem [thread:$0]  %s168, 512, %s170, [#allocation18], 64, 64, 4
    $region57: #{stacked_autoencoder_forward.1} parent=1 // pred_fallthru
      _
    // Predicated region
    $region58: #{stacked_autoencoder_forward.1} parent=1 // pred_check
      _
    $region59: #{stacked_autoencoder_forward.1} parent=1 // pred_check_branch
      %177 = sbr.rel (0) target = $region61
    $region60: #{stacked_autoencoder_forward.1} parent=1 // pred_region
      %179 = vsyncadd [#allocation21], 0
      %s181 = sshll.u32 %s14, 4
      %s182 = int_to_ptr.hbm [resolvable:$true] %s181
      %s183 = sshll.u32 [#allocation20], 4
      %s184 = int_to_ptr.vmem [resolvable:$true] %s183
      %186 = dma.hbm_to_vmem [thread:$0]  %s182, 16, %s184, [#allocation21]
    $region61: #{stacked_autoencoder_forward.1} parent=1 // pred_fallthru
      _
    // Predicated region
    $region62: #{stacked_autoencoder_forward.1} parent=1 // pred_check
      _
    $region63: #{stacked_autoencoder_forward.1} parent=1 // pred_check_branch
      %188 = sbr.rel (0) target = $region65
    $region64: #{stacked_autoencoder_forward.1} parent=1 // pred_region
      %190 = vsyncadd [#allocation21], 0
      %s191 = sshll.u32 %s15, 4
      %s192 = int_to_ptr.hbm [resolvable:$true] %s191
      %s193 = sshll.u32 [#allocation22], 4
      %s194 = int_to_ptr.vmem [resolvable:$true] %s193
      %199 = dma.hbm_to_vmem [thread:$0]  %s192, 2048, %s194, [#allocation21], 128, 128, 8
    $region65: #{stacked_autoencoder_forward.1} parent=1 // pred_fallthru
      _
    // Predicated region
    $region66: #{stacked_autoencoder_forward.1} parent=1 // pred_check
      _
    $region67: #{stacked_autoencoder_forward.1} parent=1 // pred_check_branch
      %201 = sbr.rel (0) target = $region69
    $region68: #{stacked_autoencoder_forward.1} parent=1 // pred_region
      %203 = vsyncadd [#allocation24], 0
      %s205 = sshll.u32 %s16, 4
      %s206 = int_to_ptr.hbm [resolvable:$true] %s205
      %s207 = sshll.u32 [#allocation23], 4
      %s208 = int_to_ptr.vmem [resolvable:$true] %s207
      %210 = dma.hbm_to_vmem [thread:$0]  %s206, 32, %s208, [#allocation24]
    $region69: #{stacked_autoencoder_forward.1} parent=1 // pred_fallthru
      _
    // Predicated region
    $region70: #{stacked_autoencoder_forward.1} parent=1 // pred_check
      _
    $region71: #{stacked_autoencoder_forward.1} parent=1 // pred_check_branch
      %212 = sbr.rel (0) target = $region73
    $region72: #{stacked_autoencoder_forward.1} parent=1 // pred_region
      %214 = vsyncadd [#allocation24], 0
      %s215 = sshll.u32 %s17, 4
      %s216 = int_to_ptr.hbm [resolvable:$true] %s215
      %s217 = sshll.u32 [#allocation25], 4
      %s218 = int_to_ptr.vmem [resolvable:$true] %s217
      %223 = dma.hbm_to_vmem [thread:$0]  %s216, 8192, %s218, [#allocation24], 256, 256, 16
    $region73: #{stacked_autoencoder_forward.1} parent=1 // pred_fallthru
      _
    // Predicated region
    $region74: #{stacked_autoencoder_forward.1} parent=1 // pred_check
      _
    $region75: #{stacked_autoencoder_forward.1} parent=1 // pred_check_branch
      %225 = sbr.rel (0) target = $region77
    $region76: #{stacked_autoencoder_forward.1} parent=1 // pred_region
      %227 = vsyncadd [#allocation27], 0
      %s229 = sshll.u32 %s18, 4
      %s230 = int_to_ptr.hbm [resolvable:$true] %s229
      %s231 = sshll.u32 [#allocation26], 4
      %s232 = int_to_ptr.vmem [resolvable:$true] %s231
      %234 = dma.hbm_to_vmem [thread:$0]  %s230, 64, %s232, [#allocation27]
    $region77: #{stacked_autoencoder_forward.1} parent=1 // pred_fallthru
      _
    // Predicated region
    $region78: #{stacked_autoencoder_forward.1} parent=1 // pred_check
      _
    $region79: #{stacked_autoencoder_forward.1} parent=1 // pred_check_branch
      %236 = sbr.rel (0) target = $region81
    $region80: #{stacked_autoencoder_forward.1} parent=1 // pred_region
      %238 = vsyncadd [#allocation27], 0
      %s239 = sshll.u32 %s19, 4
      %s240 = int_to_ptr.hbm [resolvable:$true] %s239
      %s241 = sshll.u32 [#allocation28], 4
      %s242 = int_to_ptr.vmem [resolvable:$true] %s241
      %247 = dma.hbm_to_vmem [thread:$0]  %s240, 49152, %s242, [#allocation27], 768, 768, 48
    $region81: #{stacked_autoencoder_forward.1} parent=1 // pred_fallthru
      _
    // Predicated region
    $region82: #{stacked_autoencoder_forward.1} parent=1 // pred_check
      _
    $region83: #{stacked_autoencoder_forward.1} parent=1 // pred_check_branch
      %249 = sbr.rel (0) target = $region85
    $region84: #{stacked_autoencoder_forward.1} parent=1 // pred_region
      %251 = vsyncadd [#allocation30], 0
      %s253 = sshll.u32 %s20, 4
      %s254 = int_to_ptr.hbm [resolvable:$true] %s253
      %s255 = sshll.u32 [#allocation29], 4
      %s256 = int_to_ptr.vmem [resolvable:$true] %s255
      %258 = dma.hbm_to_vmem [thread:$0]  %s254, 192, %s256, [#allocation30]
    $region85: #{stacked_autoencoder_forward.1} parent=1 // pred_fallthru
      _
    // Predicated region
    $region86: #{stacked_autoencoder_forward.1} parent=1 // pred_check
      _
    $region87: #{stacked_autoencoder_forward.1} parent=1 // pred_check_branch
      %260 = sbr.rel (0) target = $region89
    $region88: #{stacked_autoencoder_forward.1} parent=1 // pred_region
      %262 = dma.done [#allocation3], 49152
    $region89: #{stacked_autoencoder_forward.1} parent=1 // pred_fallthru
      _
    // Predicated region
    $region90: #{stacked_autoencoder_forward.1} parent=1 // pred_check
      _
    $region91: #{stacked_autoencoder_forward.1} parent=1 // pred_check_branch
      %264 = sbr.rel (0) target = $region93
    $region92: #{stacked_autoencoder_forward.1} parent=1 // pred_region
      %266 = dma.done [#allocation6], 64
    $region93: #{stacked_autoencoder_forward.1} parent=1 // pred_fallthru
      _
    // Predicated region
    $region94: #{stacked_autoencoder_forward.1} parent=1 // pred_check
      _
    $region95: #{stacked_autoencoder_forward.1} parent=1 // pred_check_branch
      %268 = sbr.rel (0) target = $region97
    $region96: #{stacked_autoencoder_forward.1} parent=1 // pred_region
      %270 = dma.done [#allocation6], 8192
    $region97: #{stacked_autoencoder_forward.1} parent=1 // pred_fallthru
      _
    // Predicated region
    $region98: #{stacked_autoencoder_forward.1} parent=1 // pred_check
      _
    $region99: #{stacked_autoencoder_forward.1} parent=1 // pred_check_branch
      %272 = sbr.rel (0) target = $region101
    $region100: #{stacked_autoencoder_forward.1} parent=1 // pred_region
      %274 = dma.done [#allocation9], 32
    $region101: #{stacked_autoencoder_forward.1} parent=1 // pred_fallthru
      _
    // Predicated region
    $region102: #{stacked_autoencoder_forward.1} parent=1 // pred_check
      _
    $region103: #{stacked_autoencoder_forward.1} parent=1 // pred_check_branch
      %276 = sbr.rel (0) target = $region105
    $region104: #{stacked_autoencoder_forward.1} parent=1 // pred_region
      %278 = dma.done [#allocation9], 2048
    $region105: #{stacked_autoencoder_forward.1} parent=1 // pred_fallthru
      _
    // Predicated region
    $region106: #{stacked_autoencoder_forward.1} parent=1 // pred_check
      _
    $region107: #{stacked_autoencoder_forward.1} parent=1 // pred_check_branch
      %280 = sbr.rel (0) target = $region109
    $region108: #{stacked_autoencoder_forward.1} parent=1 // pred_region
      %282 = dma.done [#allocation12], 16
    $region109: #{stacked_autoencoder_forward.1} parent=1 // pred_fallthru
      _
    // Predicated region
    $region110: #{stacked_autoencoder_forward.1} parent=1 // pred_check
      _
    $region111: #{stacked_autoencoder_forward.1} parent=1 // pred_check_branch
      %284 = sbr.rel (0) target = $region113
    $region112: #{stacked_autoencoder_forward.1} parent=1 // pred_region
      %286 = dma.done [#allocation12], 16
    $region113: #{stacked_autoencoder_forward.1} parent=1 // pred_fallthru
      _
    // Predicated region
    $region114: #{stacked_autoencoder_forward.1} parent=1 // pred_check
      _
    $region115: #{stacked_autoencoder_forward.1} parent=1 // pred_check_branch
      %288 = sbr.rel (0) target = $region117
    $region116: #{stacked_autoencoder_forward.1} parent=1 // pred_region
      %290 = dma.done [#allocation15], 16
    $region117: #{stacked_autoencoder_forward.1} parent=1 // pred_fallthru
      _
    // Predicated region
    $region118: #{stacked_autoencoder_forward.1} parent=1 // pred_check
      _
    $region119: #{stacked_autoencoder_forward.1} parent=1 // pred_check_branch
      %292 = sbr.rel (0) target = $region121
    $region120: #{stacked_autoencoder_forward.1} parent=1 // pred_region
      %294 = dma.done [#allocation15], 256
    $region121: #{stacked_autoencoder_forward.1} parent=1 // pred_fallthru
      _
    // Predicated region
    $region122: #{stacked_autoencoder_forward.1} parent=1 // pred_check
      _
    $region123: #{stacked_autoencoder_forward.1} parent=1 // pred_check_branch
      %296 = sbr.rel (0) target = $region125
    $region124: #{stacked_autoencoder_forward.1} parent=1 // pred_region
      %298 = dma.done [#allocation18], 16
    $region125: #{stacked_autoencoder_forward.1} parent=1 // pred_fallthru
      _
    // Predicated region
    $region126: #{stacked_autoencoder_forward.1} parent=1 // pred_check
      _
    $region127: #{stacked_autoencoder_forward.1} parent=1 // pred_check_branch
      %300 = sbr.rel (0) target = $region129
    $region128: #{stacked_autoencoder_forward.1} parent=1 // pred_region
      %302 = dma.done [#allocation18], 512
    $region129: #{stacked_autoencoder_forward.1} parent=1 // pred_fallthru
      _
    // Predicated region
    $region130: #{stacked_autoencoder_forward.1} parent=1 // pred_check
      _
    $region131: #{stacked_autoencoder_forward.1} parent=1 // pred_check_branch
      %304 = sbr.rel (0) target = $region133
    $region132: #{stacked_autoencoder_forward.1} parent=1 // pred_region
      %306 = dma.done [#allocation21], 16
    $region133: #{stacked_autoencoder_forward.1} parent=1 // pred_fallthru
      _
    // Predicated region
    $region134: #{stacked_autoencoder_forward.1} parent=1 // pred_check
      _
    $region135: #{stacked_autoencoder_forward.1} parent=1 // pred_check_branch
      %308 = sbr.rel (0) target = $region137
    $region136: #{stacked_autoencoder_forward.1} parent=1 // pred_region
      %310 = dma.done [#allocation21], 2048
    $region137: #{stacked_autoencoder_forward.1} parent=1 // pred_fallthru
      _
    // Predicated region
    $region138: #{stacked_autoencoder_forward.1} parent=1 // pred_check
      _
    $region139: #{stacked_autoencoder_forward.1} parent=1 // pred_check_branch
      %312 = sbr.rel (0) target = $region141
    $region140: #{stacked_autoencoder_forward.1} parent=1 // pred_region
      %314 = dma.done [#allocation24], 32
    $region141: #{stacked_autoencoder_forward.1} parent=1 // pred_fallthru
      _
    // Predicated region
    $region142: #{stacked_autoencoder_forward.1} parent=1 // pred_check
      _
    $region143: #{stacked_autoencoder_forward.1} parent=1 // pred_check_branch
      %316 = sbr.rel (0) target = $region145
    $region144: #{stacked_autoencoder_forward.1} parent=1 // pred_region
      %318 = dma.done [#allocation24], 8192
    $region145: #{stacked_autoencoder_forward.1} parent=1 // pred_fallthru
      _
    // Predicated region
    $region146: #{stacked_autoencoder_forward.1} parent=1 // pred_check
      _
    $region147: #{stacked_autoencoder_forward.1} parent=1 // pred_check_branch
      %320 = sbr.rel (0) target = $region149
    $region148: #{stacked_autoencoder_forward.1} parent=1 // pred_region
      %322 = dma.done [#allocation27], 64
    $region149: #{stacked_autoencoder_forward.1} parent=1 // pred_fallthru
      _
    // Predicated region
    $region150: #{stacked_autoencoder_forward.1} parent=1 // pred_check
      _
    $region151: #{stacked_autoencoder_forward.1} parent=1 // pred_check_branch
      %324 = sbr.rel (0) target = $region153
    $region152: #{stacked_autoencoder_forward.1} parent=1 // pred_region
      %326 = dma.done [#allocation27], 49152
    $region153: #{stacked_autoencoder_forward.1} parent=1 // pred_fallthru
      _
    // Predicated region
    $region154: #{stacked_autoencoder_forward.1} parent=1 // pred_check
      _
    $region155: #{stacked_autoencoder_forward.1} parent=1 // pred_check_branch
      %328 = sbr.rel (0) target = $region157
    $region156: #{stacked_autoencoder_forward.1} parent=1 // pred_region
      %330 = dma.done [#allocation30], 192
    $region157: #{stacked_autoencoder_forward.1} parent=1 // pred_fallthru
      _
    %v332 = vld [vmem:[%s0] sm:$0xff]
    %v333 = vld [vmem:[%s0 + $0x8] sm:$0xff]
    %v334 = vld [vmem:[%s0 + $0x10] sm:$0xff]
    %v335 = vld [vmem:[%s0 + $0x18] sm:$0xff]
    %v336 = vld [vmem:[%s0 + $0x20] sm:$0xff]
    %v337 = vld [vmem:[%s0 + $0x28] sm:$0xff]
    %v338 = vld [vmem:[#allocation2] sm:$0xff]
    %v339 = vld [vmem:[#allocation2 + $0x8] sm:$0xff]
    %v340 = vld [vmem:[#allocation2 + $0x10] sm:$0xff]
    %v341 = vld [vmem:[#allocation2 + $0x18] sm:$0xff]
    %v342 = vld [vmem:[#allocation2 + $0x20] sm:$0xff]
    %v343 = vld [vmem:[#allocation2 + $0x28] sm:$0xff]
    %v344 = vld [vmem:[#allocation2 + $0x30] sm:$0xff]
    %v345 = vld [vmem:[#allocation2 + $0x38] sm:$0xff]
    %v346 = vld [vmem:[#allocation2 + $0x40] sm:$0xff]
    %v347 = vld [vmem:[#allocation2 + $0x48] sm:$0xff]
    %v348 = vld [vmem:[#allocation2 + $0x50] sm:$0xff]
    %v349 = vld [vmem:[#allocation2 + $0x58] sm:$0xff]
    %v350 = vld [vmem:[#allocation2 + $0x60] sm:$0xff]
    %v351 = vld [vmem:[#allocation2 + $0x68] sm:$0xff]
    %v352 = vld [vmem:[#allocation2 + $0x70] sm:$0xff]
    %v353 = vld [vmem:[#allocation2 + $0x78] sm:$0xff]
    %v354 = vld [vmem:[#allocation2 + $0x80] sm:$0xff]
    %v355 = vld [vmem:[#allocation2 + $0x88] sm:$0xff]
    %v356 = vld [vmem:[#allocation2 + $0x90] sm:$0xff]
    %v357 = vld [vmem:[#allocation2 + $0x98] sm:$0xff]
    %v358 = vld [vmem:[#allocation2 + $0xa0] sm:$0xff]
    %v359 = vld [vmem:[#allocation2 + $0xa8] sm:$0xff]
    %v360 = vld [vmem:[#allocation2 + $0xb0] sm:$0xff]
    %v361 = vld [vmem:[#allocation2 + $0xb8] sm:$0xff]
    %v362 = vld [vmem:[#allocation2 + $0xc0] sm:$0xff]
    %v363 = vld [vmem:[#allocation2 + $0xc8] sm:$0xff]
    %v364 = vld [vmem:[#allocation2 + $0xd0] sm:$0xff]
    %v365 = vld [vmem:[#allocation2 + $0xd8] sm:$0xff]
    %v366 = vld [vmem:[#allocation2 + $0xe0] sm:$0xff]
    %v367 = vld [vmem:[#allocation2 + $0xe8] sm:$0xff]
    %v368 = vld [vmem:[#allocation2 + $0xf0] sm:$0xff]
    %v369 = vld [vmem:[#allocation2 + $0xf8] sm:$0xff]
    %v370 = vld [vmem:[#allocation2 + $0x100] sm:$0xff]
    %v371 = vld [vmem:[#allocation2 + $0x108] sm:$0xff]
    %v372 = vld [vmem:[#allocation2 + $0x110] sm:$0xff]
    %v373 = vld [vmem:[#allocation2 + $0x118] sm:$0xff]
    %v374 = vld [vmem:[#allocation2 + $0x120] sm:$0xff]
    %v375 = vld [vmem:[#allocation2 + $0x128] sm:$0xff]
    %v376 = vld [vmem:[#allocation2 + $0x130] sm:$0xff]
    %v377 = vld [vmem:[#allocation2 + $0x138] sm:$0xff]
    %v378 = vld [vmem:[#allocation2 + $0x140] sm:$0xff]
    %v379 = vld [vmem:[#allocation2 + $0x148] sm:$0xff]
    %v380 = vld [vmem:[#allocation2 + $0x150] sm:$0xff]
    %v381 = vld [vmem:[#allocation2 + $0x158] sm:$0xff]
    %v382 = vld [vmem:[#allocation2 + $0x160] sm:$0xff]
    %v383 = vld [vmem:[#allocation2 + $0x168] sm:$0xff]
    %v384 = vld [vmem:[#allocation2 + $0x170] sm:$0xff]
    %v385 = vld [vmem:[#allocation2 + $0x178] sm:$0xff]
    %v386 = vld [vmem:[#allocation2 + $0x180] sm:$0xff]
    %v387 = vld [vmem:[#allocation2 + $0x188] sm:$0xff]
    %v388 = vld [vmem:[#allocation2 + $0x190] sm:$0xff]
    %v389 = vld [vmem:[#allocation2 + $0x198] sm:$0xff]
    %v390 = vld [vmem:[#allocation2 + $0x1a0] sm:$0xff]
    %v391 = vld [vmem:[#allocation2 + $0x1a8] sm:$0xff]
    %v392 = vld [vmem:[#allocation2 + $0x1b0] sm:$0xff]
    %v393 = vld [vmem:[#allocation2 + $0x1b8] sm:$0xff]
    %v394 = vld [vmem:[#allocation2 + $0x1c0] sm:$0xff]
    %v395 = vld [vmem:[#allocation2 + $0x1c8] sm:$0xff]
    %v396 = vld [vmem:[#allocation2 + $0x1d0] sm:$0xff]
    %v397 = vld [vmem:[#allocation2 + $0x1d8] sm:$0xff]
    %v398 = vld [vmem:[#allocation2 + $0x1e0] sm:$0xff]
    %v399 = vld [vmem:[#allocation2 + $0x1e8] sm:$0xff]
    %v400 = vld [vmem:[#allocation2 + $0x1f0] sm:$0xff]
    %v401 = vld [vmem:[#allocation2 + $0x1f8] sm:$0xff]
    %v402 = vld [vmem:[#allocation2 + $0x200] sm:$0xff]
    %v403 = vld [vmem:[#allocation2 + $0x208] sm:$0xff]
    %v404 = vld [vmem:[#allocation2 + $0x210] sm:$0xff]
    %v405 = vld [vmem:[#allocation2 + $0x218] sm:$0xff]
    %v406 = vld [vmem:[#allocation2 + $0x220] sm:$0xff]
    %v407 = vld [vmem:[#allocation2 + $0x228] sm:$0xff]
    %v408 = vld [vmem:[#allocation2 + $0x230] sm:$0xff]
    %v409 = vld [vmem:[#allocation2 + $0x238] sm:$0xff]
    %v410 = vld [vmem:[#allocation2 + $0x240] sm:$0xff]
    %v411 = vld [vmem:[#allocation2 + $0x248] sm:$0xff]
    %v412 = vld [vmem:[#allocation2 + $0x250] sm:$0xff]
    %v413 = vld [vmem:[#allocation2 + $0x258] sm:$0xff]
    %v414 = vld [vmem:[#allocation2 + $0x260] sm:$0xff]
    %v415 = vld [vmem:[#allocation2 + $0x268] sm:$0xff]
    %v416 = vld [vmem:[#allocation2 + $0x270] sm:$0xff]
    %v417 = vld [vmem:[#allocation2 + $0x278] sm:$0xff]
    %v418 = vld [vmem:[#allocation2 + $0x280] sm:$0xff]
    %v419 = vld [vmem:[#allocation2 + $0x288] sm:$0xff]
    %v420 = vld [vmem:[#allocation2 + $0x290] sm:$0xff]
    %v421 = vld [vmem:[#allocation2 + $0x298] sm:$0xff]
    %v422 = vld [vmem:[#allocation2 + $0x2a0] sm:$0xff]
    %v423 = vld [vmem:[#allocation2 + $0x2a8] sm:$0xff]
    %v424 = vld [vmem:[#allocation2 + $0x2b0] sm:$0xff]
    %v425 = vld [vmem:[#allocation2 + $0x2b8] sm:$0xff]
    %v426 = vld [vmem:[#allocation2 + $0x2c0] sm:$0xff]
    %v427 = vld [vmem:[#allocation2 + $0x2c8] sm:$0xff]
    %v428 = vld [vmem:[#allocation2 + $0x2d0] sm:$0xff]
    %v429 = vld [vmem:[#allocation2 + $0x2d8] sm:$0xff]
    %v430 = vld [vmem:[#allocation2 + $0x2e0] sm:$0xff]
    %v431 = vld [vmem:[#allocation2 + $0x2e8] sm:$0xff]
    %v432 = vld [vmem:[#allocation2 + $0x2f0] sm:$0xff]
    %v433 = vld [vmem:[#allocation2 + $0x2f8] sm:$0xff]
    %v434 = vld [vmem:[#allocation2 + $0x300] sm:$0xff]
    %v435 = vld [vmem:[#allocation2 + $0x308] sm:$0xff]
    %v436 = vld [vmem:[#allocation2 + $0x310] sm:$0xff]
    %v437 = vld [vmem:[#allocation2 + $0x318] sm:$0xff]
    %v438 = vld [vmem:[#allocation2 + $0x320] sm:$0xff]
    %v439 = vld [vmem:[#allocation2 + $0x328] sm:$0xff]
    %v440 = vld [vmem:[#allocation2 + $0x330] sm:$0xff]
    %v441 = vld [vmem:[#allocation2 + $0x338] sm:$0xff]
    %v442 = vld [vmem:[#allocation2 + $0x340] sm:$0xff]
    %v443 = vld [vmem:[#allocation2 + $0x348] sm:$0xff]
    %v444 = vld [vmem:[#allocation2 + $0x350] sm:$0xff]
    %v445 = vld [vmem:[#allocation2 + $0x358] sm:$0xff]
    %v446 = vld [vmem:[#allocation2 + $0x360] sm:$0xff]
    %v447 = vld [vmem:[#allocation2 + $0x368] sm:$0xff]
    %v448 = vld [vmem:[#allocation2 + $0x370] sm:$0xff]
    %v449 = vld [vmem:[#allocation2 + $0x378] sm:$0xff]
    %v450 = vld [vmem:[#allocation2 + $0x380] sm:$0xff]
    %v451 = vld [vmem:[#allocation2 + $0x388] sm:$0xff]
    %v452 = vld [vmem:[#allocation2 + $0x390] sm:$0xff]
    %v453 = vld [vmem:[#allocation2 + $0x398] sm:$0xff]
    %v454 = vld [vmem:[#allocation2 + $0x3a0] sm:$0xff]
    %v455 = vld [vmem:[#allocation2 + $0x3a8] sm:$0xff]
    %v456 = vld [vmem:[#allocation2 + $0x3b0] sm:$0xff]
    %v457 = vld [vmem:[#allocation2 + $0x3b8] sm:$0xff]
    %v458 = vld [vmem:[#allocation2 + $0x3c0] sm:$0xff]
    %v459 = vld [vmem:[#allocation2 + $0x3c8] sm:$0xff]
    %v460 = vld [vmem:[#allocation2 + $0x3d0] sm:$0xff]
    %v461 = vld [vmem:[#allocation2 + $0x3d8] sm:$0xff]
    %v462 = vld [vmem:[#allocation2 + $0x3e0] sm:$0xff]
    %v463 = vld [vmem:[#allocation2 + $0x3e8] sm:$0xff]
    %v464 = vld [vmem:[#allocation2 + $0x3f0] sm:$0xff]
    %v465 = vld [vmem:[#allocation2 + $0x3f8] sm:$0xff]
    %v466 = vld [vmem:[#allocation2 + $0x400] sm:$0xff]
    %v467 = vld [vmem:[#allocation2 + $0x408] sm:$0xff]
    %v468 = vld [vmem:[#allocation2 + $0x410] sm:$0xff]
    %v469 = vld [vmem:[#allocation2 + $0x418] sm:$0xff]
    %v470 = vld [vmem:[#allocation2 + $0x420] sm:$0xff]
    %v471 = vld [vmem:[#allocation2 + $0x428] sm:$0xff]
    %v472 = vld [vmem:[#allocation2 + $0x430] sm:$0xff]
    %v473 = vld [vmem:[#allocation2 + $0x438] sm:$0xff]
    %v474 = vld [vmem:[#allocation2 + $0x440] sm:$0xff]
    %v475 = vld [vmem:[#allocation2 + $0x448] sm:$0xff]
    %v476 = vld [vmem:[#allocation2 + $0x450] sm:$0xff]
    %v477 = vld [vmem:[#allocation2 + $0x458] sm:$0xff]
    %v478 = vld [vmem:[#allocation2 + $0x460] sm:$0xff]
    %v479 = vld [vmem:[#allocation2 + $0x468] sm:$0xff]
    %v480 = vld [vmem:[#allocation2 + $0x470] sm:$0xff]
    %v481 = vld [vmem:[#allocation2 + $0x478] sm:$0xff]
    %v482 = vld [vmem:[#allocation2 + $0x480] sm:$0xff]
    %v483 = vld [vmem:[#allocation2 + $0x488] sm:$0xff]
    %v484 = vld [vmem:[#allocation2 + $0x490] sm:$0xff]
    %v485 = vld [vmem:[#allocation2 + $0x498] sm:$0xff]
    %v486 = vld [vmem:[#allocation2 + $0x4a0] sm:$0xff]
    %v487 = vld [vmem:[#allocation2 + $0x4a8] sm:$0xff]
    %v488 = vld [vmem:[#allocation2 + $0x4b0] sm:$0xff]
    %v489 = vld [vmem:[#allocation2 + $0x4b8] sm:$0xff]
    %v490 = vld [vmem:[#allocation2 + $0x4c0] sm:$0xff]
    %v491 = vld [vmem:[#allocation2 + $0x4c8] sm:$0xff]
    %v492 = vld [vmem:[#allocation2 + $0x4d0] sm:$0xff]
    %v493 = vld [vmem:[#allocation2 + $0x4d8] sm:$0xff]
    %v494 = vld [vmem:[#allocation2 + $0x4e0] sm:$0xff]
    %v495 = vld [vmem:[#allocation2 + $0x4e8] sm:$0xff]
    %v496 = vld [vmem:[#allocation2 + $0x4f0] sm:$0xff]
    %v497 = vld [vmem:[#allocation2 + $0x4f8] sm:$0xff]
    %v498 = vld [vmem:[#allocation2 + $0x500] sm:$0xff]
    %v499 = vld [vmem:[#allocation2 + $0x508] sm:$0xff]
    %v500 = vld [vmem:[#allocation2 + $0x510] sm:$0xff]
    %v501 = vld [vmem:[#allocation2 + $0x518] sm:$0xff]
    %v502 = vld [vmem:[#allocation2 + $0x520] sm:$0xff]
    %v503 = vld [vmem:[#allocation2 + $0x528] sm:$0xff]
    %v504 = vld [vmem:[#allocation2 + $0x530] sm:$0xff]
    %v505 = vld [vmem:[#allocation2 + $0x538] sm:$0xff]
    %v506 = vld [vmem:[#allocation2 + $0x540] sm:$0xff]
    %v507 = vld [vmem:[#allocation2 + $0x548] sm:$0xff]
    %v508 = vld [vmem:[#allocation2 + $0x550] sm:$0xff]
    %v509 = vld [vmem:[#allocation2 + $0x558] sm:$0xff]
    %v510 = vld [vmem:[#allocation2 + $0x560] sm:$0xff]
    %v511 = vld [vmem:[#allocation2 + $0x568] sm:$0xff]
    %v512 = vld [vmem:[#allocation2 + $0x570] sm:$0xff]
    %v513 = vld [vmem:[#allocation2 + $0x578] sm:$0xff]
    %v514 = vld [vmem:[#allocation2 + $0x580] sm:$0xff]
    %v515 = vld [vmem:[#allocation2 + $0x588] sm:$0xff]
    %v516 = vld [vmem:[#allocation2 + $0x590] sm:$0xff]
    %v517 = vld [vmem:[#allocation2 + $0x598] sm:$0xff]
    %v518 = vld [vmem:[#allocation2 + $0x5a0] sm:$0xff]
    %v519 = vld [vmem:[#allocation2 + $0x5a8] sm:$0xff]
    %v520 = vld [vmem:[#allocation2 + $0x5b0] sm:$0xff]
    %v521 = vld [vmem:[#allocation2 + $0x5b8] sm:$0xff]
    %v522 = vld [vmem:[#allocation2 + $0x5c0] sm:$0xff]
    %v523 = vld [vmem:[#allocation2 + $0x5c8] sm:$0xff]
    %v524 = vld [vmem:[#allocation2 + $0x5d0] sm:$0xff]
    %v525 = vld [vmem:[#allocation2 + $0x5d8] sm:$0xff]
    %v526 = vld [vmem:[#allocation2 + $0x5e0] sm:$0xff]
    %v527 = vld [vmem:[#allocation2 + $0x5e8] sm:$0xff]
    %v528 = vld [vmem:[#allocation2 + $0x5f0] sm:$0xff]
    %v529 = vld [vmem:[#allocation2 + $0x5f8] sm:$0xff]
    %v530 = vld [vmem:[#allocation2 + $0x600] sm:$0xff]
    %v531 = vld [vmem:[#allocation2 + $0x608] sm:$0xff]
    %v532 = vld [vmem:[#allocation2 + $0x610] sm:$0xff]
    %v533 = vld [vmem:[#allocation2 + $0x618] sm:$0xff]
    %v534 = vld [vmem:[#allocation2 + $0x620] sm:$0xff]
    %v535 = vld [vmem:[#allocation2 + $0x628] sm:$0xff]
    %v536 = vld [vmem:[#allocation2 + $0x630] sm:$0xff]
    %v537 = vld [vmem:[#allocation2 + $0x638] sm:$0xff]
    %v538 = vld [vmem:[#allocation2 + $0x640] sm:$0xff]
    %v539 = vld [vmem:[#allocation2 + $0x648] sm:$0xff]
    %v540 = vld [vmem:[#allocation2 + $0x650] sm:$0xff]
    %v541 = vld [vmem:[#allocation2 + $0x658] sm:$0xff]
    %v542 = vld [vmem:[#allocation2 + $0x660] sm:$0xff]
    %v543 = vld [vmem:[#allocation2 + $0x668] sm:$0xff]
    %v544 = vld [vmem:[#allocation2 + $0x670] sm:$0xff]
    %v545 = vld [vmem:[#allocation2 + $0x678] sm:$0xff]
    %v546 = vld [vmem:[#allocation2 + $0x680] sm:$0xff]
    %v547 = vld [vmem:[#allocation2 + $0x688] sm:$0xff]
    %v548 = vld [vmem:[#allocation2 + $0x690] sm:$0xff]
    %v549 = vld [vmem:[#allocation2 + $0x698] sm:$0xff]
    %v550 = vld [vmem:[#allocation2 + $0x6a0] sm:$0xff]
    %v551 = vld [vmem:[#allocation2 + $0x6a8] sm:$0xff]
    %v552 = vld [vmem:[#allocation2 + $0x6b0] sm:$0xff]
    %v553 = vld [vmem:[#allocation2 + $0x6b8] sm:$0xff]
    %v554 = vld [vmem:[#allocation2 + $0x6c0] sm:$0xff]
    %v555 = vld [vmem:[#allocation2 + $0x6c8] sm:$0xff]
    %v556 = vld [vmem:[#allocation2 + $0x6d0] sm:$0xff]
    %v557 = vld [vmem:[#allocation2 + $0x6d8] sm:$0xff]
    %v558 = vld [vmem:[#allocation2 + $0x6e0] sm:$0xff]
    %v559 = vld [vmem:[#allocation2 + $0x6e8] sm:$0xff]
    %v560 = vld [vmem:[#allocation2 + $0x6f0] sm:$0xff]
    %v561 = vld [vmem:[#allocation2 + $0x6f8] sm:$0xff]
    %v562 = vld [vmem:[#allocation2 + $0x700] sm:$0xff]
    %v563 = vld [vmem:[#allocation2 + $0x708] sm:$0xff]
    %v564 = vld [vmem:[#allocation2 + $0x710] sm:$0xff]
    %v565 = vld [vmem:[#allocation2 + $0x718] sm:$0xff]
    %v566 = vld [vmem:[#allocation2 + $0x720] sm:$0xff]
    %v567 = vld [vmem:[#allocation2 + $0x728] sm:$0xff]
    %v568 = vld [vmem:[#allocation2 + $0x730] sm:$0xff]
    %v569 = vld [vmem:[#allocation2 + $0x738] sm:$0xff]
    %v570 = vld [vmem:[#allocation2 + $0x740] sm:$0xff]
    %v571 = vld [vmem:[#allocation2 + $0x748] sm:$0xff]
    %v572 = vld [vmem:[#allocation2 + $0x750] sm:$0xff]
    %v573 = vld [vmem:[#allocation2 + $0x758] sm:$0xff]
    %v574 = vld [vmem:[#allocation2 + $0x760] sm:$0xff]
    %v575 = vld [vmem:[#allocation2 + $0x768] sm:$0xff]
    %v576 = vld [vmem:[#allocation2 + $0x770] sm:$0xff]
    %v577 = vld [vmem:[#allocation2 + $0x778] sm:$0xff]
    %v578 = vld [vmem:[#allocation2 + $0x780] sm:$0xff]
    %v579 = vld [vmem:[#allocation2 + $0x788] sm:$0xff]
    %v580 = vld [vmem:[#allocation2 + $0x790] sm:$0xff]
    %v581 = vld [vmem:[#allocation2 + $0x798] sm:$0xff]
    %v582 = vld [vmem:[#allocation2 + $0x7a0] sm:$0xff]
    %v583 = vld [vmem:[#allocation2 + $0x7a8] sm:$0xff]
    %v584 = vld [vmem:[#allocation2 + $0x7b0] sm:$0xff]
    %v585 = vld [vmem:[#allocation2 + $0x7b8] sm:$0xff]
    %v586 = vld [vmem:[#allocation2 + $0x7c0] sm:$0xff]
    %v587 = vld [vmem:[#allocation2 + $0x7c8] sm:$0xff]
    %v588 = vld [vmem:[#allocation2 + $0x7d0] sm:$0xff]
    %v589 = vld [vmem:[#allocation2 + $0x7d8] sm:$0xff]
    %v590 = vld [vmem:[#allocation2 + $0x7e0] sm:$0xff]
    %v591 = vld [vmem:[#allocation2 + $0x7e8] sm:$0xff]
    %v592 = vld [vmem:[#allocation2 + $0x7f0] sm:$0xff]
    %v593 = vld [vmem:[#allocation2 + $0x7f8] sm:$0xff]
    %v594 = vld [vmem:[#allocation2 + $0x800] sm:$0xff]
    %v595 = vld [vmem:[#allocation2 + $0x808] sm:$0xff]
    %v596 = vld [vmem:[#allocation2 + $0x810] sm:$0xff]
    %v597 = vld [vmem:[#allocation2 + $0x818] sm:$0xff]
    %v598 = vld [vmem:[#allocation2 + $0x820] sm:$0xff]
    %v599 = vld [vmem:[#allocation2 + $0x828] sm:$0xff]
    %v600 = vld [vmem:[#allocation2 + $0x830] sm:$0xff]
    %v601 = vld [vmem:[#allocation2 + $0x838] sm:$0xff]
    %v602 = vld [vmem:[#allocation2 + $0x840] sm:$0xff]
    %v603 = vld [vmem:[#allocation2 + $0x848] sm:$0xff]
    %v604 = vld [vmem:[#allocation2 + $0x850] sm:$0xff]
    %v605 = vld [vmem:[#allocation2 + $0x858] sm:$0xff]
    %v606 = vld [vmem:[#allocation2 + $0x860] sm:$0xff]
    %v607 = vld [vmem:[#allocation2 + $0x868] sm:$0xff]
    %v608 = vld [vmem:[#allocation2 + $0x870] sm:$0xff]
    %v609 = vld [vmem:[#allocation2 + $0x878] sm:$0xff]
    %v610 = vld [vmem:[#allocation2 + $0x880] sm:$0xff]
    %v611 = vld [vmem:[#allocation2 + $0x888] sm:$0xff]
    %v612 = vld [vmem:[#allocation2 + $0x890] sm:$0xff]
    %v613 = vld [vmem:[#allocation2 + $0x898] sm:$0xff]
    %v614 = vld [vmem:[#allocation2 + $0x8a0] sm:$0xff]
    %v615 = vld [vmem:[#allocation2 + $0x8a8] sm:$0xff]
    %v616 = vld [vmem:[#allocation2 + $0x8b0] sm:$0xff]
    %v617 = vld [vmem:[#allocation2 + $0x8b8] sm:$0xff]
    %v618 = vld [vmem:[#allocation2 + $0x8c0] sm:$0xff]
    %v619 = vld [vmem:[#allocation2 + $0x8c8] sm:$0xff]
    %v620 = vld [vmem:[#allocation2 + $0x8d0] sm:$0xff]
    %v621 = vld [vmem:[#allocation2 + $0x8d8] sm:$0xff]
    %v622 = vld [vmem:[#allocation2 + $0x8e0] sm:$0xff]
    %v623 = vld [vmem:[#allocation2 + $0x8e8] sm:$0xff]
    %v624 = vld [vmem:[#allocation2 + $0x8f0] sm:$0xff]
    %v625 = vld [vmem:[#allocation2 + $0x8f8] sm:$0xff]
    %v626 = vld [vmem:[#allocation2 + $0x900] sm:$0xff]
    %v627 = vld [vmem:[#allocation2 + $0x908] sm:$0xff]
    %v628 = vld [vmem:[#allocation2 + $0x910] sm:$0xff]
    %v629 = vld [vmem:[#allocation2 + $0x918] sm:$0xff]
    %v630 = vld [vmem:[#allocation2 + $0x920] sm:$0xff]
    %v631 = vld [vmem:[#allocation2 + $0x928] sm:$0xff]
    %v632 = vld [vmem:[#allocation2 + $0x930] sm:$0xff]
    %v633 = vld [vmem:[#allocation2 + $0x938] sm:$0xff]
    %v634 = vld [vmem:[#allocation2 + $0x940] sm:$0xff]
    %v635 = vld [vmem:[#allocation2 + $0x948] sm:$0xff]
    %v636 = vld [vmem:[#allocation2 + $0x950] sm:$0xff]
    %v637 = vld [vmem:[#allocation2 + $0x958] sm:$0xff]
    %v638 = vld [vmem:[#allocation2 + $0x960] sm:$0xff]
    %v639 = vld [vmem:[#allocation2 + $0x968] sm:$0xff]
    %v640 = vld [vmem:[#allocation2 + $0x970] sm:$0xff]
    %v641 = vld [vmem:[#allocation2 + $0x978] sm:$0xff]
    %v642 = vld [vmem:[#allocation2 + $0x980] sm:$0xff]
    %v643 = vld [vmem:[#allocation2 + $0x988] sm:$0xff]
    %v644 = vld [vmem:[#allocation2 + $0x990] sm:$0xff]
    %v645 = vld [vmem:[#allocation2 + $0x998] sm:$0xff]
    %v646 = vld [vmem:[#allocation2 + $0x9a0] sm:$0xff]
    %v647 = vld [vmem:[#allocation2 + $0x9a8] sm:$0xff]
    %v648 = vld [vmem:[#allocation2 + $0x9b0] sm:$0xff]
    %v649 = vld [vmem:[#allocation2 + $0x9b8] sm:$0xff]
    %v650 = vld [vmem:[#allocation2 + $0x9c0] sm:$0xff]
    %v651 = vld [vmem:[#allocation2 + $0x9c8] sm:$0xff]
    %v652 = vld [vmem:[#allocation2 + $0x9d0] sm:$0xff]
    %v653 = vld [vmem:[#allocation2 + $0x9d8] sm:$0xff]
    %v654 = vld [vmem:[#allocation2 + $0x9e0] sm:$0xff]
    %v655 = vld [vmem:[#allocation2 + $0x9e8] sm:$0xff]
    %v656 = vld [vmem:[#allocation2 + $0x9f0] sm:$0xff]
    %v657 = vld [vmem:[#allocation2 + $0x9f8] sm:$0xff]
    %v658 = vld [vmem:[#allocation2 + $0xa00] sm:$0xff]
    %v659 = vld [vmem:[#allocation2 + $0xa08] sm:$0xff]
    %v660 = vld [vmem:[#allocation2 + $0xa10] sm:$0xff]
    %v661 = vld [vmem:[#allocation2 + $0xa18] sm:$0xff]
    %v662 = vld [vmem:[#allocation2 + $0xa20] sm:$0xff]
    %v663 = vld [vmem:[#allocation2 + $0xa28] sm:$0xff]
    %v664 = vld [vmem:[#allocation2 + $0xa30] sm:$0xff]
    %v665 = vld [vmem:[#allocation2 + $0xa38] sm:$0xff]
    %v666 = vld [vmem:[#allocation2 + $0xa40] sm:$0xff]
    %v667 = vld [vmem:[#allocation2 + $0xa48] sm:$0xff]
    %v668 = vld [vmem:[#allocation2 + $0xa50] sm:$0xff]
    %v669 = vld [vmem:[#allocation2 + $0xa58] sm:$0xff]
    %v670 = vld [vmem:[#allocation2 + $0xa60] sm:$0xff]
    %v671 = vld [vmem:[#allocation2 + $0xa68] sm:$0xff]
    %v672 = vld [vmem:[#allocation2 + $0xa70] sm:$0xff]
    %v673 = vld [vmem:[#allocation2 + $0xa78] sm:$0xff]
    %v674 = vld [vmem:[#allocation2 + $0xa80] sm:$0xff]
    %v675 = vld [vmem:[#allocation2 + $0xa88] sm:$0xff]
    %v676 = vld [vmem:[#allocation2 + $0xa90] sm:$0xff]
    %v677 = vld [vmem:[#allocation2 + $0xa98] sm:$0xff]
    %v678 = vld [vmem:[#allocation2 + $0xaa0] sm:$0xff]
    %v679 = vld [vmem:[#allocation2 + $0xaa8] sm:$0xff]
    %v680 = vld [vmem:[#allocation2 + $0xab0] sm:$0xff]
    %v681 = vld [vmem:[#allocation2 + $0xab8] sm:$0xff]
    %v682 = vld [vmem:[#allocation2 + $0xac0] sm:$0xff]
    %v683 = vld [vmem:[#allocation2 + $0xac8] sm:$0xff]
    %v684 = vld [vmem:[#allocation2 + $0xad0] sm:$0xff]
    %v685 = vld [vmem:[#allocation2 + $0xad8] sm:$0xff]
    %v686 = vld [vmem:[#allocation2 + $0xae0] sm:$0xff]
    %v687 = vld [vmem:[#allocation2 + $0xae8] sm:$0xff]
    %v688 = vld [vmem:[#allocation2 + $0xaf0] sm:$0xff]
    %v689 = vld [vmem:[#allocation2 + $0xaf8] sm:$0xff]
    %v690 = vld [vmem:[#allocation2 + $0xb00] sm:$0xff]
    %v691 = vld [vmem:[#allocation2 + $0xb08] sm:$0xff]
    %v692 = vld [vmem:[#allocation2 + $0xb10] sm:$0xff]
    %v693 = vld [vmem:[#allocation2 + $0xb18] sm:$0xff]
    %v694 = vld [vmem:[#allocation2 + $0xb20] sm:$0xff]
    %v695 = vld [vmem:[#allocation2 + $0xb28] sm:$0xff]
    %v696 = vld [vmem:[#allocation2 + $0xb30] sm:$0xff]
    %v697 = vld [vmem:[#allocation2 + $0xb38] sm:$0xff]
    %v698 = vld [vmem:[#allocation2 + $0xb40] sm:$0xff]
    %v699 = vld [vmem:[#allocation2 + $0xb48] sm:$0xff]
    %v700 = vld [vmem:[#allocation2 + $0xb50] sm:$0xff]
    %v701 = vld [vmem:[#allocation2 + $0xb58] sm:$0xff]
    %v702 = vld [vmem:[#allocation2 + $0xb60] sm:$0xff]
    %v703 = vld [vmem:[#allocation2 + $0xb68] sm:$0xff]
    %v704 = vld [vmem:[#allocation2 + $0xb70] sm:$0xff]
    %v705 = vld [vmem:[#allocation2 + $0xb78] sm:$0xff]
    %v706 = vld [vmem:[#allocation2 + $0xb80] sm:$0xff]
    %v707 = vld [vmem:[#allocation2 + $0xb88] sm:$0xff]
    %v708 = vld [vmem:[#allocation2 + $0xb90] sm:$0xff]
    %v709 = vld [vmem:[#allocation2 + $0xb98] sm:$0xff]
    %v710 = vld [vmem:[#allocation2 + $0xba0] sm:$0xff]
    %v711 = vld [vmem:[#allocation2 + $0xba8] sm:$0xff]
    %v712 = vld [vmem:[#allocation2 + $0xbb0] sm:$0xff]
    %v713 = vld [vmem:[#allocation2 + $0xbb8] sm:$0xff]
    %v714 = vld [vmem:[#allocation2 + $0xbc0] sm:$0xff]
    %v715 = vld [vmem:[#allocation2 + $0xbc8] sm:$0xff]
    %v716 = vld [vmem:[#allocation2 + $0xbd0] sm:$0xff]
    %v717 = vld [vmem:[#allocation2 + $0xbd8] sm:$0xff]
    %v718 = vld [vmem:[#allocation2 + $0xbe0] sm:$0xff]
    %v719 = vld [vmem:[#allocation2 + $0xbe8] sm:$0xff]
    %v720 = vld [vmem:[#allocation2 + $0xbf0] sm:$0xff]
    %v721 = vld [vmem:[#allocation2 + $0xbf8] sm:$0xff]
    %v722 = vld [vmem:[#allocation5] sm:$0xf]
    %v724 = vperm.slane %v722, 0
    %v725 = vperm.slane %v722, 1
    %v726 = vperm.slane %v722, 2
    %v727 = vperm.slane %v722, 3
    %v738 = vunpack.c.l.b16 %v332
    %v739 = vunpack.c.h.b16 %v332
    %v740 = vunpack.c.l.b16 %v333
    %v741 = vunpack.c.h.b16 %v333
    %v742 = vunpack.c.l.b16 %v334
    %v743 = vunpack.c.h.b16 %v334
    %v744 = vunpack.c.l.b16 %v335
    %v745 = vunpack.c.h.b16 %v335
    %v746 = vunpack.c.l.b16 %v336
    %v747 = vunpack.c.h.b16 %v336
    %v748 = vunpack.c.l.b16 %v337
    %v749 = vunpack.c.h.b16 %v337
    %v750 = vpack.c.b16 %v738, %v738
    %v751 = vpack.c.b16 %v739, %v739
    %v752 = vpack.c.b16 %v740, %v740
    %v753 = vpack.c.b16 %v741, %v741
    %v754 = vpack.c.b16 %v742, %v742
    %v755 = vpack.c.b16 %v743, %v743
    %v756 = vpack.c.b16 %v744, %v744
    %v757 = vpack.c.b16 %v745, %v745
    %v758 = vpack.c.b16 %v746, %v746
    %v759 = vpack.c.b16 %v747, %v747
    %v760 = vpack.c.b16 %v748, %v748
    %v761 = vpack.c.b16 %v749, %v749
    %v1158 = vunpack.c.l.b16 %v338
    %v1159 = vunpack.c.h.b16 %v338
    %v1160 = vunpack.c.l.b16 %v339
    %v1161 = vunpack.c.h.b16 %v339
    %v1162 = vunpack.c.l.b16 %v340
    %v1163 = vunpack.c.h.b16 %v340
    %v1164 = vunpack.c.l.b16 %v341
    %v1165 = vunpack.c.h.b16 %v341
    %v1166 = vunpack.c.l.b16 %v342
    %v1167 = vunpack.c.h.b16 %v342
    %v1168 = vunpack.c.l.b16 %v343
    %v1169 = vunpack.c.h.b16 %v343
    %v1170 = vunpack.c.l.b16 %v344
    %v1171 = vunpack.c.h.b16 %v344
    %v1172 = vunpack.c.l.b16 %v345
    %v1173 = vunpack.c.h.b16 %v345
    %v1174 = vunpack.c.l.b16 %v346
    %v1175 = vunpack.c.h.b16 %v346
    %v1176 = vunpack.c.l.b16 %v347
    %v1177 = vunpack.c.h.b16 %v347
    %v1178 = vunpack.c.l.b16 %v348
    %v1179 = vunpack.c.h.b16 %v348
    %v1180 = vunpack.c.l.b16 %v349
    %v1181 = vunpack.c.h.b16 %v349
    %v1182 = vunpack.c.l.b16 %v350
    %v1183 = vunpack.c.h.b16 %v350
    %v1184 = vunpack.c.l.b16 %v351
    %v1185 = vunpack.c.h.b16 %v351
    %v1186 = vunpack.c.l.b16 %v352
    %v1187 = vunpack.c.h.b16 %v352
    %v1188 = vunpack.c.l.b16 %v353
    %v1189 = vunpack.c.h.b16 %v353
    %v1190 = vunpack.c.l.b16 %v354
    %v1191 = vunpack.c.h.b16 %v354
    %v1192 = vunpack.c.l.b16 %v355
    %v1193 = vunpack.c.h.b16 %v355
    %v1194 = vunpack.c.l.b16 %v356
    %v1195 = vunpack.c.h.b16 %v356
    %v1196 = vunpack.c.l.b16 %v357
    %v1197 = vunpack.c.h.b16 %v357
    %v1198 = vunpack.c.l.b16 %v358
    %v1199 = vunpack.c.h.b16 %v358
    %v1200 = vunpack.c.l.b16 %v359
    %v1201 = vunpack.c.h.b16 %v359
    %v1202 = vunpack.c.l.b16 %v360
    %v1203 = vunpack.c.h.b16 %v360
    %v1204 = vunpack.c.l.b16 %v361
    %v1205 = vunpack.c.h.b16 %v361
    %v1206 = vunpack.c.l.b16 %v362
    %v1207 = vunpack.c.h.b16 %v362
    %v1208 = vunpack.c.l.b16 %v363
    %v1209 = vunpack.c.h.b16 %v363
    %v1210 = vunpack.c.l.b16 %v364
    %v1211 = vunpack.c.h.b16 %v364
    %v1212 = vunpack.c.l.b16 %v365
    %v1213 = vunpack.c.h.b16 %v365
    %v1214 = vunpack.c.l.b16 %v366
    %v1215 = vunpack.c.h.b16 %v366
    %v1216 = vunpack.c.l.b16 %v367
    %v1217 = vunpack.c.h.b16 %v367
    %v1218 = vunpack.c.l.b16 %v368
    %v1219 = vunpack.c.h.b16 %v368
    %v1220 = vunpack.c.l.b16 %v369
    %v1221 = vunpack.c.h.b16 %v369
    %v1222 = vunpack.c.l.b16 %v370
    %v1223 = vunpack.c.h.b16 %v370
    %v1224 = vunpack.c.l.b16 %v371
    %v1225 = vunpack.c.h.b16 %v371
    %v1226 = vunpack.c.l.b16 %v372
    %v1227 = vunpack.c.h.b16 %v372
    %v1228 = vunpack.c.l.b16 %v373
    %v1229 = vunpack.c.h.b16 %v373
    %v1230 = vunpack.c.l.b16 %v374
    %v1231 = vunpack.c.h.b16 %v374
    %v1232 = vunpack.c.l.b16 %v375
    %v1233 = vunpack.c.h.b16 %v375
    %v1234 = vunpack.c.l.b16 %v376
    %v1235 = vunpack.c.h.b16 %v376
    %v1236 = vunpack.c.l.b16 %v377
    %v1237 = vunpack.c.h.b16 %v377
    %v1238 = vunpack.c.l.b16 %v378
    %v1239 = vunpack.c.h.b16 %v378
    %v1240 = vunpack.c.l.b16 %v379
    %v1241 = vunpack.c.h.b16 %v379
    %v1242 = vunpack.c.l.b16 %v380
    %v1243 = vunpack.c.h.b16 %v380
    %v1244 = vunpack.c.l.b16 %v381
    %v1245 = vunpack.c.h.b16 %v381
    %v1246 = vunpack.c.l.b16 %v382
    %v1247 = vunpack.c.h.b16 %v382
    %v1248 = vunpack.c.l.b16 %v383
    %v1249 = vunpack.c.h.b16 %v383
    %v1250 = vunpack.c.l.b16 %v384
    %v1251 = vunpack.c.h.b16 %v384
    %v1252 = vunpack.c.l.b16 %v385
    %v1253 = vunpack.c.h.b16 %v385
    %v1254 = vunpack.c.l.b16 %v386
    %v1255 = vunpack.c.h.b16 %v386
    %v1256 = vunpack.c.l.b16 %v387
    %v1257 = vunpack.c.h.b16 %v387
    %v1258 = vunpack.c.l.b16 %v388
    %v1259 = vunpack.c.h.b16 %v388
    %v1260 = vunpack.c.l.b16 %v389
    %v1261 = vunpack.c.h.b16 %v389
    %v1262 = vunpack.c.l.b16 %v390
    %v1263 = vunpack.c.h.b16 %v390
    %v1264 = vunpack.c.l.b16 %v391
    %v1265 = vunpack.c.h.b16 %v391
    %v1266 = vunpack.c.l.b16 %v392
    %v1267 = vunpack.c.h.b16 %v392
    %v1268 = vunpack.c.l.b16 %v393
    %v1269 = vunpack.c.h.b16 %v393
    %v1270 = vunpack.c.l.b16 %v394
    %v1271 = vunpack.c.h.b16 %v394
    %v1272 = vunpack.c.l.b16 %v395
    %v1273 = vunpack.c.h.b16 %v395
    %v1274 = vunpack.c.l.b16 %v396
    %v1275 = vunpack.c.h.b16 %v396
    %v1276 = vunpack.c.l.b16 %v397
    %v1277 = vunpack.c.h.b16 %v397
    %v1278 = vunpack.c.l.b16 %v398
    %v1279 = vunpack.c.h.b16 %v398
    %v1280 = vunpack.c.l.b16 %v399
    %v1281 = vunpack.c.h.b16 %v399
    %v1282 = vunpack.c.l.b16 %v400
    %v1283 = vunpack.c.h.b16 %v400
    %v1284 = vunpack.c.l.b16 %v401
    %v1285 = vunpack.c.h.b16 %v401
    %v1286 = vunpack.c.l.b16 %v402
    %v1287 = vunpack.c.h.b16 %v402
    %v1288 = vunpack.c.l.b16 %v403
    %v1289 = vunpack.c.h.b16 %v403
    %v1290 = vunpack.c.l.b16 %v404
    %v1291 = vunpack.c.h.b16 %v404
    %v1292 = vunpack.c.l.b16 %v405
    %v1293 = vunpack.c.h.b16 %v405
    %v1294 = vunpack.c.l.b16 %v406
    %v1295 = vunpack.c.h.b16 %v406
    %v1296 = vunpack.c.l.b16 %v407
    %v1297 = vunpack.c.h.b16 %v407
    %v1298 = vunpack.c.l.b16 %v408
    %v1299 = vunpack.c.h.b16 %v408
    %v1300 = vunpack.c.l.b16 %v409
    %v1301 = vunpack.c.h.b16 %v409
    %v1302 = vunpack.c.l.b16 %v410
    %v1303 = vunpack.c.h.b16 %v410
    %v1304 = vunpack.c.l.b16 %v411
    %v1305 = vunpack.c.h.b16 %v411
    %v1306 = vunpack.c.l.b16 %v412
    %v1307 = vunpack.c.h.b16 %v412
    %v1308 = vunpack.c.l.b16 %v413
    %v1309 = vunpack.c.h.b16 %v413
    %v1310 = vunpack.c.l.b16 %v414
    %v1311 = vunpack.c.h.b16 %v414
    %v1312 = vunpack.c.l.b16 %v415
    %v1313 = vunpack.c.h.b16 %v415
    %v1314 = vunpack.c.l.b16 %v416
    %v1315 = vunpack.c.h.b16 %v416
    %v1316 = vunpack.c.l.b16 %v417
    %v1317 = vunpack.c.h.b16 %v417
    %v1318 = vunpack.c.l.b16 %v418
    %v1319 = vunpack.c.h.b16 %v418
    %v1320 = vunpack.c.l.b16 %v419
    %v1321 = vunpack.c.h.b16 %v419
    %v1322 = vunpack.c.l.b16 %v420
    %v1323 = vunpack.c.h.b16 %v420
    %v1324 = vunpack.c.l.b16 %v421
    %v1325 = vunpack.c.h.b16 %v421
    %v1326 = vunpack.c.l.b16 %v422
    %v1327 = vunpack.c.h.b16 %v422
    %v1328 = vunpack.c.l.b16 %v423
    %v1329 = vunpack.c.h.b16 %v423
    %v1330 = vunpack.c.l.b16 %v424
    %v1331 = vunpack.c.h.b16 %v424
    %v1332 = vunpack.c.l.b16 %v425
    %v1333 = vunpack.c.h.b16 %v425
    %v1334 = vunpack.c.l.b16 %v426
    %v1335 = vunpack.c.h.b16 %v426
    %v1336 = vunpack.c.l.b16 %v427
    %v1337 = vunpack.c.h.b16 %v427
    %v1338 = vunpack.c.l.b16 %v428
    %v1339 = vunpack.c.h.b16 %v428
    %v1340 = vunpack.c.l.b16 %v429
    %v1341 = vunpack.c.h.b16 %v429
    %v1342 = vunpack.c.l.b16 %v430
    %v1343 = vunpack.c.h.b16 %v430
    %v1344 = vunpack.c.l.b16 %v431
    %v1345 = vunpack.c.h.b16 %v431
    %v1346 = vunpack.c.l.b16 %v432
    %v1347 = vunpack.c.h.b16 %v432
    %v1348 = vunpack.c.l.b16 %v433
    %v1349 = vunpack.c.h.b16 %v433
    %v1350 = vunpack.c.l.b16 %v434
    %v1351 = vunpack.c.h.b16 %v434
    %v1352 = vunpack.c.l.b16 %v435
    %v1353 = vunpack.c.h.b16 %v435
    %v1354 = vunpack.c.l.b16 %v436
    %v1355 = vunpack.c.h.b16 %v436
    %v1356 = vunpack.c.l.b16 %v437
    %v1357 = vunpack.c.h.b16 %v437
    %v1358 = vunpack.c.l.b16 %v438
    %v1359 = vunpack.c.h.b16 %v438
    %v1360 = vunpack.c.l.b16 %v439
    %v1361 = vunpack.c.h.b16 %v439
    %v1362 = vunpack.c.l.b16 %v440
    %v1363 = vunpack.c.h.b16 %v440
    %v1364 = vunpack.c.l.b16 %v441
    %v1365 = vunpack.c.h.b16 %v441
    %v1366 = vunpack.c.l.b16 %v442
    %v1367 = vunpack.c.h.b16 %v442
    %v1368 = vunpack.c.l.b16 %v443
    %v1369 = vunpack.c.h.b16 %v443
    %v1370 = vunpack.c.l.b16 %v444
    %v1371 = vunpack.c.h.b16 %v444
    %v1372 = vunpack.c.l.b16 %v445
    %v1373 = vunpack.c.h.b16 %v445
    %v1374 = vunpack.c.l.b16 %v446
    %v1375 = vunpack.c.h.b16 %v446
    %v1376 = vunpack.c.l.b16 %v447
    %v1377 = vunpack.c.h.b16 %v447
    %v1378 = vunpack.c.l.b16 %v448
    %v1379 = vunpack.c.h.b16 %v448
    %v1380 = vunpack.c.l.b16 %v449
    %v1381 = vunpack.c.h.b16 %v449
    %v1382 = vunpack.c.l.b16 %v450
    %v1383 = vunpack.c.h.b16 %v450
    %v1384 = vunpack.c.l.b16 %v451
    %v1385 = vunpack.c.h.b16 %v451
    %v1386 = vunpack.c.l.b16 %v452
    %v1387 = vunpack.c.h.b16 %v452
    %v1388 = vunpack.c.l.b16 %v453
    %v1389 = vunpack.c.h.b16 %v453
    %v1390 = vunpack.c.l.b16 %v454
    %v1391 = vunpack.c.h.b16 %v454
    %v1392 = vunpack.c.l.b16 %v455
    %v1393 = vunpack.c.h.b16 %v455
    %v1394 = vunpack.c.l.b16 %v456
    %v1395 = vunpack.c.h.b16 %v456
    %v1396 = vunpack.c.l.b16 %v457
    %v1397 = vunpack.c.h.b16 %v457
    %v1398 = vunpack.c.l.b16 %v458
    %v1399 = vunpack.c.h.b16 %v458
    %v1400 = vunpack.c.l.b16 %v459
    %v1401 = vunpack.c.h.b16 %v459
    %v1402 = vunpack.c.l.b16 %v460
    %v1403 = vunpack.c.h.b16 %v460
    %v1404 = vunpack.c.l.b16 %v461
    %v1405 = vunpack.c.h.b16 %v461
    %v1406 = vunpack.c.l.b16 %v462
    %v1407 = vunpack.c.h.b16 %v462
    %v1408 = vunpack.c.l.b16 %v463
    %v1409 = vunpack.c.h.b16 %v463
    %v1410 = vunpack.c.l.b16 %v464
    %v1411 = vunpack.c.h.b16 %v464
    %v1412 = vunpack.c.l.b16 %v465
    %v1413 = vunpack.c.h.b16 %v465
    %v1414 = vunpack.c.l.b16 %v466
    %v1415 = vunpack.c.h.b16 %v466
    %v1416 = vunpack.c.l.b16 %v467
    %v1417 = vunpack.c.h.b16 %v467
    %v1418 = vunpack.c.l.b16 %v468
    %v1419 = vunpack.c.h.b16 %v468
    %v1420 = vunpack.c.l.b16 %v469
    %v1421 = vunpack.c.h.b16 %v469
    %v1422 = vunpack.c.l.b16 %v470
    %v1423 = vunpack.c.h.b16 %v470
    %v1424 = vunpack.c.l.b16 %v471
    %v1425 = vunpack.c.h.b16 %v471
    %v1426 = vunpack.c.l.b16 %v472
    %v1427 = vunpack.c.h.b16 %v472
    %v1428 = vunpack.c.l.b16 %v473
    %v1429 = vunpack.c.h.b16 %v473
    %v1430 = vunpack.c.l.b16 %v474
    %v1431 = vunpack.c.h.b16 %v474
    %v1432 = vunpack.c.l.b16 %v475
    %v1433 = vunpack.c.h.b16 %v475
    %v1434 = vunpack.c.l.b16 %v476
    %v1435 = vunpack.c.h.b16 %v476
    %v1436 = vunpack.c.l.b16 %v477
    %v1437 = vunpack.c.h.b16 %v477
    %v1438 = vunpack.c.l.b16 %v478
    %v1439 = vunpack.c.h.b16 %v478
    %v1440 = vunpack.c.l.b16 %v479
    %v1441 = vunpack.c.h.b16 %v479
    %v1442 = vunpack.c.l.b16 %v480
    %v1443 = vunpack.c.h.b16 %v480
    %v1444 = vunpack.c.l.b16 %v481
    %v1445 = vunpack.c.h.b16 %v481
    %v1446 = vunpack.c.l.b16 %v482
    %v1447 = vunpack.c.h.b16 %v482
    %v1448 = vunpack.c.l.b16 %v483
    %v1449 = vunpack.c.h.b16 %v483
    %v1450 = vunpack.c.l.b16 %v484
    %v1451 = vunpack.c.h.b16 %v484
    %v1452 = vunpack.c.l.b16 %v485
    %v1453 = vunpack.c.h.b16 %v485
    %v1454 = vunpack.c.l.b16 %v486
    %v1455 = vunpack.c.h.b16 %v486
    %v1456 = vunpack.c.l.b16 %v487
    %v1457 = vunpack.c.h.b16 %v487
    %v1458 = vunpack.c.l.b16 %v488
    %v1459 = vunpack.c.h.b16 %v488
    %v1460 = vunpack.c.l.b16 %v489
    %v1461 = vunpack.c.h.b16 %v489
    %v1462 = vunpack.c.l.b16 %v490
    %v1463 = vunpack.c.h.b16 %v490
    %v1464 = vunpack.c.l.b16 %v491
    %v1465 = vunpack.c.h.b16 %v491
    %v1466 = vunpack.c.l.b16 %v492
    %v1467 = vunpack.c.h.b16 %v492
    %v1468 = vunpack.c.l.b16 %v493
    %v1469 = vunpack.c.h.b16 %v493
    %v1470 = vunpack.c.l.b16 %v494
    %v1471 = vunpack.c.h.b16 %v494
    %v1472 = vunpack.c.l.b16 %v495
    %v1473 = vunpack.c.h.b16 %v495
    %v1474 = vunpack.c.l.b16 %v496
    %v1475 = vunpack.c.h.b16 %v496
    %v1476 = vunpack.c.l.b16 %v497
    %v1477 = vunpack.c.h.b16 %v497
    %v1478 = vunpack.c.l.b16 %v498
    %v1479 = vunpack.c.h.b16 %v498
    %v1480 = vunpack.c.l.b16 %v499
    %v1481 = vunpack.c.h.b16 %v499
    %v1482 = vunpack.c.l.b16 %v500
    %v1483 = vunpack.c.h.b16 %v500
    %v1484 = vunpack.c.l.b16 %v501
    %v1485 = vunpack.c.h.b16 %v501
    %v1486 = vunpack.c.l.b16 %v502
    %v1487 = vunpack.c.h.b16 %v502
    %v1488 = vunpack.c.l.b16 %v503
    %v1489 = vunpack.c.h.b16 %v503
    %v1490 = vunpack.c.l.b16 %v504
    %v1491 = vunpack.c.h.b16 %v504
    %v1492 = vunpack.c.l.b16 %v505
    %v1493 = vunpack.c.h.b16 %v505
    %v1494 = vunpack.c.l.b16 %v506
    %v1495 = vunpack.c.h.b16 %v506
    %v1496 = vunpack.c.l.b16 %v507
    %v1497 = vunpack.c.h.b16 %v507
    %v1498 = vunpack.c.l.b16 %v508
    %v1499 = vunpack.c.h.b16 %v508
    %v1500 = vunpack.c.l.b16 %v509
    %v1501 = vunpack.c.h.b16 %v509
    %v1502 = vunpack.c.l.b16 %v510
    %v1503 = vunpack.c.h.b16 %v510
    %v1504 = vunpack.c.l.b16 %v511
    %v1505 = vunpack.c.h.b16 %v511
    %v1506 = vunpack.c.l.b16 %v512
    %v1507 = vunpack.c.h.b16 %v512
    %v1508 = vunpack.c.l.b16 %v513
    %v1509 = vunpack.c.h.b16 %v513
    %v1510 = vunpack.c.l.b16 %v514
    %v1511 = vunpack.c.h.b16 %v514
    %v1512 = vunpack.c.l.b16 %v515
    %v1513 = vunpack.c.h.b16 %v515
    %v1514 = vunpack.c.l.b16 %v516
    %v1515 = vunpack.c.h.b16 %v516
    %v1516 = vunpack.c.l.b16 %v517
    %v1517 = vunpack.c.h.b16 %v517
    %v1518 = vunpack.c.l.b16 %v518
    %v1519 = vunpack.c.h.b16 %v518
    %v1520 = vunpack.c.l.b16 %v519
    %v1521 = vunpack.c.h.b16 %v519
    %v1522 = vunpack.c.l.b16 %v520
    %v1523 = vunpack.c.h.b16 %v520
    %v1524 = vunpack.c.l.b16 %v521
    %v1525 = vunpack.c.h.b16 %v521
    %v1526 = vunpack.c.l.b16 %v522
    %v1527 = vunpack.c.h.b16 %v522
    %v1528 = vunpack.c.l.b16 %v523
    %v1529 = vunpack.c.h.b16 %v523
    %v1530 = vunpack.c.l.b16 %v524
    %v1531 = vunpack.c.h.b16 %v524
    %v1532 = vunpack.c.l.b16 %v525
    %v1533 = vunpack.c.h.b16 %v525
    %v1534 = vunpack.c.l.b16 %v526
    %v1535 = vunpack.c.h.b16 %v526
    %v1536 = vunpack.c.l.b16 %v527
    %v1537 = vunpack.c.h.b16 %v527
    %v1538 = vunpack.c.l.b16 %v528
    %v1539 = vunpack.c.h.b16 %v528
    %v1540 = vunpack.c.l.b16 %v529
    %v1541 = vunpack.c.h.b16 %v529
    %v1542 = vunpack.c.l.b16 %v530
    %v1543 = vunpack.c.h.b16 %v530
    %v1544 = vunpack.c.l.b16 %v531
    %v1545 = vunpack.c.h.b16 %v531
    %v1546 = vunpack.c.l.b16 %v532
    %v1547 = vunpack.c.h.b16 %v532
    %v1548 = vunpack.c.l.b16 %v533
    %v1549 = vunpack.c.h.b16 %v533
    %v1550 = vunpack.c.l.b16 %v534
    %v1551 = vunpack.c.h.b16 %v534
    %v1552 = vunpack.c.l.b16 %v535
    %v1553 = vunpack.c.h.b16 %v535
    %v1554 = vunpack.c.l.b16 %v536
    %v1555 = vunpack.c.h.b16 %v536
    %v1556 = vunpack.c.l.b16 %v537
    %v1557 = vunpack.c.h.b16 %v537
    %v1558 = vunpack.c.l.b16 %v538
    %v1559 = vunpack.c.h.b16 %v538
    %v1560 = vunpack.c.l.b16 %v539
    %v1561 = vunpack.c.h.b16 %v539
    %v1562 = vunpack.c.l.b16 %v540
    %v1563 = vunpack.c.h.b16 %v540
    %v1564 = vunpack.c.l.b16 %v541
    %v1565 = vunpack.c.h.b16 %v541
    %v1566 = vunpack.c.l.b16 %v542
    %v1567 = vunpack.c.h.b16 %v542
    %v1568 = vunpack.c.l.b16 %v543
    %v1569 = vunpack.c.h.b16 %v543
    %v1570 = vunpack.c.l.b16 %v544
    %v1571 = vunpack.c.h.b16 %v544
    %v1572 = vunpack.c.l.b16 %v545
    %v1573 = vunpack.c.h.b16 %v545
    %v1574 = vunpack.c.l.b16 %v546
    %v1575 = vunpack.c.h.b16 %v546
    %v1576 = vunpack.c.l.b16 %v547
    %v1577 = vunpack.c.h.b16 %v547
    %v1578 = vunpack.c.l.b16 %v548
    %v1579 = vunpack.c.h.b16 %v548
    %v1580 = vunpack.c.l.b16 %v549
    %v1581 = vunpack.c.h.b16 %v549
    %v1582 = vunpack.c.l.b16 %v550
    %v1583 = vunpack.c.h.b16 %v550
    %v1584 = vunpack.c.l.b16 %v551
    %v1585 = vunpack.c.h.b16 %v551
    %v1586 = vunpack.c.l.b16 %v552
    %v1587 = vunpack.c.h.b16 %v552
    %v1588 = vunpack.c.l.b16 %v553
    %v1589 = vunpack.c.h.b16 %v553
    %v1590 = vunpack.c.l.b16 %v554
    %v1591 = vunpack.c.h.b16 %v554
    %v1592 = vunpack.c.l.b16 %v555
    %v1593 = vunpack.c.h.b16 %v555
    %v1594 = vunpack.c.l.b16 %v556
    %v1595 = vunpack.c.h.b16 %v556
    %v1596 = vunpack.c.l.b16 %v557
    %v1597 = vunpack.c.h.b16 %v557
    %v1598 = vunpack.c.l.b16 %v558
    %v1599 = vunpack.c.h.b16 %v558
    %v1600 = vunpack.c.l.b16 %v559
    %v1601 = vunpack.c.h.b16 %v559
    %v1602 = vunpack.c.l.b16 %v560
    %v1603 = vunpack.c.h.b16 %v560
    %v1604 = vunpack.c.l.b16 %v561
    %v1605 = vunpack.c.h.b16 %v561
    %v1606 = vunpack.c.l.b16 %v562
    %v1607 = vunpack.c.h.b16 %v562
    %v1608 = vunpack.c.l.b16 %v563
    %v1609 = vunpack.c.h.b16 %v563
    %v1610 = vunpack.c.l.b16 %v564
    %v1611 = vunpack.c.h.b16 %v564
    %v1612 = vunpack.c.l.b16 %v565
    %v1613 = vunpack.c.h.b16 %v565
    %v1614 = vunpack.c.l.b16 %v566
    %v1615 = vunpack.c.h.b16 %v566
    %v1616 = vunpack.c.l.b16 %v567
    %v1617 = vunpack.c.h.b16 %v567
    %v1618 = vunpack.c.l.b16 %v568
    %v1619 = vunpack.c.h.b16 %v568
    %v1620 = vunpack.c.l.b16 %v569
    %v1621 = vunpack.c.h.b16 %v569
    %v1622 = vunpack.c.l.b16 %v570
    %v1623 = vunpack.c.h.b16 %v570
    %v1624 = vunpack.c.l.b16 %v571
    %v1625 = vunpack.c.h.b16 %v571
    %v1626 = vunpack.c.l.b16 %v572
    %v1627 = vunpack.c.h.b16 %v572
    %v1628 = vunpack.c.l.b16 %v573
    %v1629 = vunpack.c.h.b16 %v573
    %v1630 = vunpack.c.l.b16 %v574
    %v1631 = vunpack.c.h.b16 %v574
    %v1632 = vunpack.c.l.b16 %v575
    %v1633 = vunpack.c.h.b16 %v575
    %v1634 = vunpack.c.l.b16 %v576
    %v1635 = vunpack.c.h.b16 %v576
    %v1636 = vunpack.c.l.b16 %v577
    %v1637 = vunpack.c.h.b16 %v577
    %v1638 = vunpack.c.l.b16 %v578
    %v1639 = vunpack.c.h.b16 %v578
    %v1640 = vunpack.c.l.b16 %v579
    %v1641 = vunpack.c.h.b16 %v579
    %v1642 = vunpack.c.l.b16 %v580
    %v1643 = vunpack.c.h.b16 %v580
    %v1644 = vunpack.c.l.b16 %v581
    %v1645 = vunpack.c.h.b16 %v581
    %v1646 = vunpack.c.l.b16 %v582
    %v1647 = vunpack.c.h.b16 %v582
    %v1648 = vunpack.c.l.b16 %v583
    %v1649 = vunpack.c.h.b16 %v583
    %v1650 = vunpack.c.l.b16 %v584
    %v1651 = vunpack.c.h.b16 %v584
    %v1652 = vunpack.c.l.b16 %v585
    %v1653 = vunpack.c.h.b16 %v585
    %v1654 = vunpack.c.l.b16 %v586
    %v1655 = vunpack.c.h.b16 %v586
    %v1656 = vunpack.c.l.b16 %v587
    %v1657 = vunpack.c.h.b16 %v587
    %v1658 = vunpack.c.l.b16 %v588
    %v1659 = vunpack.c.h.b16 %v588
    %v1660 = vunpack.c.l.b16 %v589
    %v1661 = vunpack.c.h.b16 %v589
    %v1662 = vunpack.c.l.b16 %v590
    %v1663 = vunpack.c.h.b16 %v590
    %v1664 = vunpack.c.l.b16 %v591
    %v1665 = vunpack.c.h.b16 %v591
    %v1666 = vunpack.c.l.b16 %v592
    %v1667 = vunpack.c.h.b16 %v592
    %v1668 = vunpack.c.l.b16 %v593
    %v1669 = vunpack.c.h.b16 %v593
    %v1670 = vunpack.c.l.b16 %v594
    %v1671 = vunpack.c.h.b16 %v594
    %v1672 = vunpack.c.l.b16 %v595
    %v1673 = vunpack.c.h.b16 %v595
    %v1674 = vunpack.c.l.b16 %v596
    %v1675 = vunpack.c.h.b16 %v596
    %v1676 = vunpack.c.l.b16 %v597
    %v1677 = vunpack.c.h.b16 %v597
    %v1678 = vunpack.c.l.b16 %v598
    %v1679 = vunpack.c.h.b16 %v598
    %v1680 = vunpack.c.l.b16 %v599
    %v1681 = vunpack.c.h.b16 %v599
    %v1682 = vunpack.c.l.b16 %v600
    %v1683 = vunpack.c.h.b16 %v600
    %v1684 = vunpack.c.l.b16 %v601
    %v1685 = vunpack.c.h.b16 %v601
    %v1686 = vunpack.c.l.b16 %v602
    %v1687 = vunpack.c.h.b16 %v602
    %v1688 = vunpack.c.l.b16 %v603
    %v1689 = vunpack.c.h.b16 %v603
    %v1690 = vunpack.c.l.b16 %v604
    %v1691 = vunpack.c.h.b16 %v604
    %v1692 = vunpack.c.l.b16 %v605
    %v1693 = vunpack.c.h.b16 %v605
    %v1694 = vunpack.c.l.b16 %v606
    %v1695 = vunpack.c.h.b16 %v606
    %v1696 = vunpack.c.l.b16 %v607
    %v1697 = vunpack.c.h.b16 %v607
    %v1698 = vunpack.c.l.b16 %v608
    %v1699 = vunpack.c.h.b16 %v608
    %v1700 = vunpack.c.l.b16 %v609
    %v1701 = vunpack.c.h.b16 %v609
    %v1702 = vunpack.c.l.b16 %v610
    %v1703 = vunpack.c.h.b16 %v610
    %v1704 = vunpack.c.l.b16 %v611
    %v1705 = vunpack.c.h.b16 %v611
    %v1706 = vunpack.c.l.b16 %v612
    %v1707 = vunpack.c.h.b16 %v612
    %v1708 = vunpack.c.l.b16 %v613
    %v1709 = vunpack.c.h.b16 %v613
    %v1710 = vunpack.c.l.b16 %v614
    %v1711 = vunpack.c.h.b16 %v614
    %v1712 = vunpack.c.l.b16 %v615
    %v1713 = vunpack.c.h.b16 %v615
    %v1714 = vunpack.c.l.b16 %v616
    %v1715 = vunpack.c.h.b16 %v616
    %v1716 = vunpack.c.l.b16 %v617
    %v1717 = vunpack.c.h.b16 %v617
    %v1718 = vunpack.c.l.b16 %v618
    %v1719 = vunpack.c.h.b16 %v618
    %v1720 = vunpack.c.l.b16 %v619
    %v1721 = vunpack.c.h.b16 %v619
    %v1722 = vunpack.c.l.b16 %v620
    %v1723 = vunpack.c.h.b16 %v620
    %v1724 = vunpack.c.l.b16 %v621
    %v1725 = vunpack.c.h.b16 %v621
    %v1726 = vunpack.c.l.b16 %v622
    %v1727 = vunpack.c.h.b16 %v622
    %v1728 = vunpack.c.l.b16 %v623
    %v1729 = vunpack.c.h.b16 %v623
    %v1730 = vunpack.c.l.b16 %v624
    %v1731 = vunpack.c.h.b16 %v624
    %v1732 = vunpack.c.l.b16 %v625
    %v1733 = vunpack.c.h.b16 %v625
    %v1734 = vunpack.c.l.b16 %v626
    %v1735 = vunpack.c.h.b16 %v626
    %v1736 = vunpack.c.l.b16 %v627
    %v1737 = vunpack.c.h.b16 %v627
    %v1738 = vunpack.c.l.b16 %v628
    %v1739 = vunpack.c.h.b16 %v628
    %v1740 = vunpack.c.l.b16 %v629
    %v1741 = vunpack.c.h.b16 %v629
    %v1742 = vunpack.c.l.b16 %v630
    %v1743 = vunpack.c.h.b16 %v630
    %v1744 = vunpack.c.l.b16 %v631
    %v1745 = vunpack.c.h.b16 %v631
    %v1746 = vunpack.c.l.b16 %v632
    %v1747 = vunpack.c.h.b16 %v632
    %v1748 = vunpack.c.l.b16 %v633
    %v1749 = vunpack.c.h.b16 %v633
    %v1750 = vunpack.c.l.b16 %v634
    %v1751 = vunpack.c.h.b16 %v634
    %v1752 = vunpack.c.l.b16 %v635
    %v1753 = vunpack.c.h.b16 %v635
    %v1754 = vunpack.c.l.b16 %v636
    %v1755 = vunpack.c.h.b16 %v636
    %v1756 = vunpack.c.l.b16 %v637
    %v1757 = vunpack.c.h.b16 %v637
    %v1758 = vunpack.c.l.b16 %v638
    %v1759 = vunpack.c.h.b16 %v638
    %v1760 = vunpack.c.l.b16 %v639
    %v1761 = vunpack.c.h.b16 %v639
    %v1762 = vunpack.c.l.b16 %v640
    %v1763 = vunpack.c.h.b16 %v640
    %v1764 = vunpack.c.l.b16 %v641
    %v1765 = vunpack.c.h.b16 %v641
    %v1766 = vunpack.c.l.b16 %v642
    %v1767 = vunpack.c.h.b16 %v642
    %v1768 = vunpack.c.l.b16 %v643
    %v1769 = vunpack.c.h.b16 %v643
    %v1770 = vunpack.c.l.b16 %v644
    %v1771 = vunpack.c.h.b16 %v644
    %v1772 = vunpack.c.l.b16 %v645
    %v1773 = vunpack.c.h.b16 %v645
    %v1774 = vunpack.c.l.b16 %v646
    %v1775 = vunpack.c.h.b16 %v646
    %v1776 = vunpack.c.l.b16 %v647
    %v1777 = vunpack.c.h.b16 %v647
    %v1778 = vunpack.c.l.b16 %v648
    %v1779 = vunpack.c.h.b16 %v648
    %v1780 = vunpack.c.l.b16 %v649
    %v1781 = vunpack.c.h.b16 %v649
    %v1782 = vunpack.c.l.b16 %v650
    %v1783 = vunpack.c.h.b16 %v650
    %v1784 = vunpack.c.l.b16 %v651
    %v1785 = vunpack.c.h.b16 %v651
    %v1786 = vunpack.c.l.b16 %v652
    %v1787 = vunpack.c.h.b16 %v652
    %v1788 = vunpack.c.l.b16 %v653
    %v1789 = vunpack.c.h.b16 %v653
    %v1790 = vunpack.c.l.b16 %v654
    %v1791 = vunpack.c.h.b16 %v654
    %v1792 = vunpack.c.l.b16 %v655
    %v1793 = vunpack.c.h.b16 %v655
    %v1794 = vunpack.c.l.b16 %v656
    %v1795 = vunpack.c.h.b16 %v656
    %v1796 = vunpack.c.l.b16 %v657
    %v1797 = vunpack.c.h.b16 %v657
    %v1798 = vunpack.c.l.b16 %v658
    %v1799 = vunpack.c.h.b16 %v658
    %v1800 = vunpack.c.l.b16 %v659
    %v1801 = vunpack.c.h.b16 %v659
    %v1802 = vunpack.c.l.b16 %v660
    %v1803 = vunpack.c.h.b16 %v660
    %v1804 = vunpack.c.l.b16 %v661
    %v1805 = vunpack.c.h.b16 %v661
    %v1806 = vunpack.c.l.b16 %v662
    %v1807 = vunpack.c.h.b16 %v662
    %v1808 = vunpack.c.l.b16 %v663
    %v1809 = vunpack.c.h.b16 %v663
    %v1810 = vunpack.c.l.b16 %v664
    %v1811 = vunpack.c.h.b16 %v664
    %v1812 = vunpack.c.l.b16 %v665
    %v1813 = vunpack.c.h.b16 %v665
    %v1814 = vunpack.c.l.b16 %v666
    %v1815 = vunpack.c.h.b16 %v666
    %v1816 = vunpack.c.l.b16 %v667
    %v1817 = vunpack.c.h.b16 %v667
    %v1818 = vunpack.c.l.b16 %v668
    %v1819 = vunpack.c.h.b16 %v668
    %v1820 = vunpack.c.l.b16 %v669
    %v1821 = vunpack.c.h.b16 %v669
    %v1822 = vunpack.c.l.b16 %v670
    %v1823 = vunpack.c.h.b16 %v670
    %v1824 = vunpack.c.l.b16 %v671
    %v1825 = vunpack.c.h.b16 %v671
    %v1826 = vunpack.c.l.b16 %v672
    %v1827 = vunpack.c.h.b16 %v672
    %v1828 = vunpack.c.l.b16 %v673
    %v1829 = vunpack.c.h.b16 %v673
    %v1830 = vunpack.c.l.b16 %v674
    %v1831 = vunpack.c.h.b16 %v674
    %v1832 = vunpack.c.l.b16 %v675
    %v1833 = vunpack.c.h.b16 %v675
    %v1834 = vunpack.c.l.b16 %v676
    %v1835 = vunpack.c.h.b16 %v676
    %v1836 = vunpack.c.l.b16 %v677
    %v1837 = vunpack.c.h.b16 %v677
    %v1838 = vunpack.c.l.b16 %v678
    %v1839 = vunpack.c.h.b16 %v678
    %v1840 = vunpack.c.l.b16 %v679
    %v1841 = vunpack.c.h.b16 %v679
    %v1842 = vunpack.c.l.b16 %v680
    %v1843 = vunpack.c.h.b16 %v680
    %v1844 = vunpack.c.l.b16 %v681
    %v1845 = vunpack.c.h.b16 %v681
    %v1846 = vunpack.c.l.b16 %v682
    %v1847 = vunpack.c.h.b16 %v682
    %v1848 = vunpack.c.l.b16 %v683
    %v1849 = vunpack.c.h.b16 %v683
    %v1850 = vunpack.c.l.b16 %v684
    %v1851 = vunpack.c.h.b16 %v684
    %v1852 = vunpack.c.l.b16 %v685
    %v1853 = vunpack.c.h.b16 %v685
    %v1854 = vunpack.c.l.b16 %v686
    %v1855 = vunpack.c.h.b16 %v686
    %v1856 = vunpack.c.l.b16 %v687
    %v1857 = vunpack.c.h.b16 %v687
    %v1858 = vunpack.c.l.b16 %v688
    %v1859 = vunpack.c.h.b16 %v688
    %v1860 = vunpack.c.l.b16 %v689
    %v1861 = vunpack.c.h.b16 %v689
    %v1862 = vunpack.c.l.b16 %v690
    %v1863 = vunpack.c.h.b16 %v690
    %v1864 = vunpack.c.l.b16 %v691
    %v1865 = vunpack.c.h.b16 %v691
    %v1866 = vunpack.c.l.b16 %v692
    %v1867 = vunpack.c.h.b16 %v692
    %v1868 = vunpack.c.l.b16 %v693
    %v1869 = vunpack.c.h.b16 %v693
    %v1870 = vunpack.c.l.b16 %v694
    %v1871 = vunpack.c.h.b16 %v694
    %v1872 = vunpack.c.l.b16 %v695
    %v1873 = vunpack.c.h.b16 %v695
    %v1874 = vunpack.c.l.b16 %v696
    %v1875 = vunpack.c.h.b16 %v696
    %v1876 = vunpack.c.l.b16 %v697
    %v1877 = vunpack.c.h.b16 %v697
    %v1878 = vunpack.c.l.b16 %v698
    %v1879 = vunpack.c.h.b16 %v698
    %v1880 = vunpack.c.l.b16 %v699
    %v1881 = vunpack.c.h.b16 %v699
    %v1882 = vunpack.c.l.b16 %v700
    %v1883 = vunpack.c.h.b16 %v700
    %v1884 = vunpack.c.l.b16 %v701
    %v1885 = vunpack.c.h.b16 %v701
    %v1886 = vunpack.c.l.b16 %v702
    %v1887 = vunpack.c.h.b16 %v702
    %v1888 = vunpack.c.l.b16 %v703
    %v1889 = vunpack.c.h.b16 %v703
    %v1890 = vunpack.c.l.b16 %v704
    %v1891 = vunpack.c.h.b16 %v704
    %v1892 = vunpack.c.l.b16 %v705
    %v1893 = vunpack.c.h.b16 %v705
    %v1894 = vunpack.c.l.b16 %v706
    %v1895 = vunpack.c.h.b16 %v706
    %v1896 = vunpack.c.l.b16 %v707
    %v1897 = vunpack.c.h.b16 %v707
    %v1898 = vunpack.c.l.b16 %v708
    %v1899 = vunpack.c.h.b16 %v708
    %v1900 = vunpack.c.l.b16 %v709
    %v1901 = vunpack.c.h.b16 %v709
    %v1902 = vunpack.c.l.b16 %v710
    %v1903 = vunpack.c.h.b16 %v710
    %v1904 = vunpack.c.l.b16 %v711
    %v1905 = vunpack.c.h.b16 %v711
    %v1906 = vunpack.c.l.b16 %v712
    %v1907 = vunpack.c.h.b16 %v712
    %v1908 = vunpack.c.l.b16 %v713
    %v1909 = vunpack.c.h.b16 %v713
    %v1910 = vunpack.c.l.b16 %v714
    %v1911 = vunpack.c.h.b16 %v714
    %v1912 = vunpack.c.l.b16 %v715
    %v1913 = vunpack.c.h.b16 %v715
    %v1914 = vunpack.c.l.b16 %v716
    %v1915 = vunpack.c.h.b16 %v716
    %v1916 = vunpack.c.l.b16 %v717
    %v1917 = vunpack.c.h.b16 %v717
    %v1918 = vunpack.c.l.b16 %v718
    %v1919 = vunpack.c.h.b16 %v718
    %v1920 = vunpack.c.l.b16 %v719
    %v1921 = vunpack.c.h.b16 %v719
    %v1922 = vunpack.c.l.b16 %v720
    %v1923 = vunpack.c.h.b16 %v720
    %v1924 = vunpack.c.l.b16 %v721
    %v1925 = vunpack.c.h.b16 %v721
    %v1926 = vpack.c.b16 %v1162, %v1158
    %v1927 = vpack.c.b16 %v1163, %v1159
    %v1928 = vpack.c.b16 %v1164, %v1160
    %v1929 = vpack.c.b16 %v1165, %v1161
    %v1930 = vpack.c.b16 %v1170, %v1166
    %v1931 = vpack.c.b16 %v1171, %v1167
    %v1932 = vpack.c.b16 %v1172, %v1168
    %v1933 = vpack.c.b16 %v1173, %v1169
    %v1934 = vpack.c.b16 %v1178, %v1174
    %v1935 = vpack.c.b16 %v1179, %v1175
    %v1936 = vpack.c.b16 %v1180, %v1176
    %v1937 = vpack.c.b16 %v1181, %v1177
    %v1938 = vpack.c.b16 %v1186, %v1182
    %v1939 = vpack.c.b16 %v1187, %v1183
    %v1940 = vpack.c.b16 %v1188, %v1184
    %v1941 = vpack.c.b16 %v1189, %v1185
    %v1942 = vpack.c.b16 %v1194, %v1190
    %v1943 = vpack.c.b16 %v1195, %v1191
    %v1944 = vpack.c.b16 %v1196, %v1192
    %v1945 = vpack.c.b16 %v1197, %v1193
    %v1946 = vpack.c.b16 %v1202, %v1198
    %v1947 = vpack.c.b16 %v1203, %v1199
    %v1948 = vpack.c.b16 %v1204, %v1200
    %v1949 = vpack.c.b16 %v1205, %v1201
    %v1950 = vpack.c.b16 %v1210, %v1206
    %v1951 = vpack.c.b16 %v1211, %v1207
    %v1952 = vpack.c.b16 %v1212, %v1208
    %v1953 = vpack.c.b16 %v1213, %v1209
    %v1954 = vpack.c.b16 %v1218, %v1214
    %v1955 = vpack.c.b16 %v1219, %v1215
    %v1956 = vpack.c.b16 %v1220, %v1216
    %v1957 = vpack.c.b16 %v1221, %v1217
    %v1958 = vpack.c.b16 %v1226, %v1222
    %v1959 = vpack.c.b16 %v1227, %v1223
    %v1960 = vpack.c.b16 %v1228, %v1224
    %v1961 = vpack.c.b16 %v1229, %v1225
    %v1962 = vpack.c.b16 %v1234, %v1230
    %v1963 = vpack.c.b16 %v1235, %v1231
    %v1964 = vpack.c.b16 %v1236, %v1232
    %v1965 = vpack.c.b16 %v1237, %v1233
    %v1966 = vpack.c.b16 %v1242, %v1238
    %v1967 = vpack.c.b16 %v1243, %v1239
    %v1968 = vpack.c.b16 %v1244, %v1240
    %v1969 = vpack.c.b16 %v1245, %v1241
    %v1970 = vpack.c.b16 %v1250, %v1246
    %v1971 = vpack.c.b16 %v1251, %v1247
    %v1972 = vpack.c.b16 %v1252, %v1248
    %v1973 = vpack.c.b16 %v1253, %v1249
    %v1974 = vpack.c.b16 %v1258, %v1254
    %v1975 = vpack.c.b16 %v1259, %v1255
    %v1976 = vpack.c.b16 %v1260, %v1256
    %v1977 = vpack.c.b16 %v1261, %v1257
    %v1978 = vpack.c.b16 %v1266, %v1262
    %v1979 = vpack.c.b16 %v1267, %v1263
    %v1980 = vpack.c.b16 %v1268, %v1264
    %v1981 = vpack.c.b16 %v1269, %v1265
    %v1982 = vpack.c.b16 %v1274, %v1270
    %v1983 = vpack.c.b16 %v1275, %v1271
    %v1984 = vpack.c.b16 %v1276, %v1272
    %v1985 = vpack.c.b16 %v1277, %v1273
    %v1986 = vpack.c.b16 %v1282, %v1278
    %v1987 = vpack.c.b16 %v1283, %v1279
    %v1988 = vpack.c.b16 %v1284, %v1280
    %v1989 = vpack.c.b16 %v1285, %v1281
    %v1990 = vpack.c.b16 %v1290, %v1286
    %v1991 = vpack.c.b16 %v1291, %v1287
    %v1992 = vpack.c.b16 %v1292, %v1288
    %v1993 = vpack.c.b16 %v1293, %v1289
    %v1994 = vpack.c.b16 %v1298, %v1294
    %v1995 = vpack.c.b16 %v1299, %v1295
    %v1996 = vpack.c.b16 %v1300, %v1296
    %v1997 = vpack.c.b16 %v1301, %v1297
    %v1998 = vpack.c.b16 %v1306, %v1302
    %v1999 = vpack.c.b16 %v1307, %v1303
    %v2000 = vpack.c.b16 %v1308, %v1304
    %v2001 = vpack.c.b16 %v1309, %v1305
    %v2002 = vpack.c.b16 %v1314, %v1310
    %v2003 = vpack.c.b16 %v1315, %v1311
    %v2004 = vpack.c.b16 %v1316, %v1312
    %v2005 = vpack.c.b16 %v1317, %v1313
    %v2006 = vpack.c.b16 %v1322, %v1318
    %v2007 = vpack.c.b16 %v1323, %v1319
    %v2008 = vpack.c.b16 %v1324, %v1320
    %v2009 = vpack.c.b16 %v1325, %v1321
    %v2010 = vpack.c.b16 %v1330, %v1326
    %v2011 = vpack.c.b16 %v1331, %v1327
    %v2012 = vpack.c.b16 %v1332, %v1328
    %v2013 = vpack.c.b16 %v1333, %v1329
    %v2014 = vpack.c.b16 %v1338, %v1334
    %v2015 = vpack.c.b16 %v1339, %v1335
    %v2016 = vpack.c.b16 %v1340, %v1336
    %v2017 = vpack.c.b16 %v1341, %v1337
    %v2018 = vpack.c.b16 %v1346, %v1342
    %v2019 = vpack.c.b16 %v1347, %v1343
    %v2020 = vpack.c.b16 %v1348, %v1344
    %v2021 = vpack.c.b16 %v1349, %v1345
    %v2022 = vpack.c.b16 %v1354, %v1350
    %v2023 = vpack.c.b16 %v1355, %v1351
    %v2024 = vpack.c.b16 %v1356, %v1352
    %v2025 = vpack.c.b16 %v1357, %v1353
    %v2026 = vpack.c.b16 %v1362, %v1358
    %v2027 = vpack.c.b16 %v1363, %v1359
    %v2028 = vpack.c.b16 %v1364, %v1360
    %v2029 = vpack.c.b16 %v1365, %v1361
    %v2030 = vpack.c.b16 %v1370, %v1366
    %v2031 = vpack.c.b16 %v1371, %v1367
    %v2032 = vpack.c.b16 %v1372, %v1368
    %v2033 = vpack.c.b16 %v1373, %v1369
    %v2034 = vpack.c.b16 %v1378, %v1374
    %v2035 = vpack.c.b16 %v1379, %v1375
    %v2036 = vpack.c.b16 %v1380, %v1376
    %v2037 = vpack.c.b16 %v1381, %v1377
    %v2038 = vpack.c.b16 %v1386, %v1382
    %v2039 = vpack.c.b16 %v1387, %v1383
    %v2040 = vpack.c.b16 %v1388, %v1384
    %v2041 = vpack.c.b16 %v1389, %v1385
    %v2042 = vpack.c.b16 %v1394, %v1390
    %v2043 = vpack.c.b16 %v1395, %v1391
    %v2044 = vpack.c.b16 %v1396, %v1392
    %v2045 = vpack.c.b16 %v1397, %v1393
    %v2046 = vpack.c.b16 %v1402, %v1398
    %v2047 = vpack.c.b16 %v1403, %v1399
    %v2048 = vpack.c.b16 %v1404, %v1400
    %v2049 = vpack.c.b16 %v1405, %v1401
    %v2050 = vpack.c.b16 %v1410, %v1406
    %v2051 = vpack.c.b16 %v1411, %v1407
    %v2052 = vpack.c.b16 %v1412, %v1408
    %v2053 = vpack.c.b16 %v1413, %v1409
    %v2054 = vpack.c.b16 %v1418, %v1414
    %v2055 = vpack.c.b16 %v1419, %v1415
    %v2056 = vpack.c.b16 %v1420, %v1416
    %v2057 = vpack.c.b16 %v1421, %v1417
    %v2058 = vpack.c.b16 %v1426, %v1422
    %v2059 = vpack.c.b16 %v1427, %v1423
    %v2060 = vpack.c.b16 %v1428, %v1424
    %v2061 = vpack.c.b16 %v1429, %v1425
    %v2062 = vpack.c.b16 %v1434, %v1430
    %v2063 = vpack.c.b16 %v1435, %v1431
    %v2064 = vpack.c.b16 %v1436, %v1432
    %v2065 = vpack.c.b16 %v1437, %v1433
    %v2066 = vpack.c.b16 %v1442, %v1438
    %v2067 = vpack.c.b16 %v1443, %v1439
    %v2068 = vpack.c.b16 %v1444, %v1440
    %v2069 = vpack.c.b16 %v1445, %v1441
    %v2070 = vpack.c.b16 %v1450, %v1446
    %v2071 = vpack.c.b16 %v1451, %v1447
    %v2072 = vpack.c.b16 %v1452, %v1448
    %v2073 = vpack.c.b16 %v1453, %v1449
    %v2074 = vpack.c.b16 %v1458, %v1454
    %v2075 = vpack.c.b16 %v1459, %v1455
    %v2076 = vpack.c.b16 %v1460, %v1456
    %v2077 = vpack.c.b16 %v1461, %v1457
    %v2078 = vpack.c.b16 %v1466, %v1462
    %v2079 = vpack.c.b16 %v1467, %v1463
    %v2080 = vpack.c.b16 %v1468, %v1464
    %v2081 = vpack.c.b16 %v1469, %v1465
    %v2082 = vpack.c.b16 %v1474, %v1470
    %v2083 = vpack.c.b16 %v1475, %v1471
    %v2084 = vpack.c.b16 %v1476, %v1472
    %v2085 = vpack.c.b16 %v1477, %v1473
    %v2086 = vpack.c.b16 %v1482, %v1478
    %v2087 = vpack.c.b16 %v1483, %v1479
    %v2088 = vpack.c.b16 %v1484, %v1480
    %v2089 = vpack.c.b16 %v1485, %v1481
    %v2090 = vpack.c.b16 %v1490, %v1486
    %v2091 = vpack.c.b16 %v1491, %v1487
    %v2092 = vpack.c.b16 %v1492, %v1488
    %v2093 = vpack.c.b16 %v1493, %v1489
    %v2094 = vpack.c.b16 %v1498, %v1494
    %v2095 = vpack.c.b16 %v1499, %v1495
    %v2096 = vpack.c.b16 %v1500, %v1496
    %v2097 = vpack.c.b16 %v1501, %v1497
    %v2098 = vpack.c.b16 %v1506, %v1502
    %v2099 = vpack.c.b16 %v1507, %v1503
    %v2100 = vpack.c.b16 %v1508, %v1504
    %v2101 = vpack.c.b16 %v1509, %v1505
    %v2102 = vpack.c.b16 %v1514, %v1510
    %v2103 = vpack.c.b16 %v1515, %v1511
    %v2104 = vpack.c.b16 %v1516, %v1512
    %v2105 = vpack.c.b16 %v1517, %v1513
    %v2106 = vpack.c.b16 %v1522, %v1518
    %v2107 = vpack.c.b16 %v1523, %v1519
    %v2108 = vpack.c.b16 %v1524, %v1520
    %v2109 = vpack.c.b16 %v1525, %v1521
    %v2110 = vpack.c.b16 %v1530, %v1526
    %v2111 = vpack.c.b16 %v1531, %v1527
    %v2112 = vpack.c.b16 %v1532, %v1528
    %v2113 = vpack.c.b16 %v1533, %v1529
    %v2114 = vpack.c.b16 %v1538, %v1534
    %v2115 = vpack.c.b16 %v1539, %v1535
    %v2116 = vpack.c.b16 %v1540, %v1536
    %v2117 = vpack.c.b16 %v1541, %v1537
    %v2118 = vpack.c.b16 %v1546, %v1542
    %v2119 = vpack.c.b16 %v1547, %v1543
    %v2120 = vpack.c.b16 %v1548, %v1544
    %v2121 = vpack.c.b16 %v1549, %v1545
    %v2122 = vpack.c.b16 %v1554, %v1550
    %v2123 = vpack.c.b16 %v1555, %v1551
    %v2124 = vpack.c.b16 %v1556, %v1552
    %v2125 = vpack.c.b16 %v1557, %v1553
    %v2126 = vpack.c.b16 %v1562, %v1558
    %v2127 = vpack.c.b16 %v1563, %v1559
    %v2128 = vpack.c.b16 %v1564, %v1560
    %v2129 = vpack.c.b16 %v1565, %v1561
    %v2130 = vpack.c.b16 %v1570, %v1566
    %v2131 = vpack.c.b16 %v1571, %v1567
    %v2132 = vpack.c.b16 %v1572, %v1568
    %v2133 = vpack.c.b16 %v1573, %v1569
    %v2134 = vpack.c.b16 %v1578, %v1574
    %v2135 = vpack.c.b16 %v1579, %v1575
    %v2136 = vpack.c.b16 %v1580, %v1576
    %v2137 = vpack.c.b16 %v1581, %v1577
    %v2138 = vpack.c.b16 %v1586, %v1582
    %v2139 = vpack.c.b16 %v1587, %v1583
    %v2140 = vpack.c.b16 %v1588, %v1584
    %v2141 = vpack.c.b16 %v1589, %v1585
    %v2142 = vpack.c.b16 %v1594, %v1590
    %v2143 = vpack.c.b16 %v1595, %v1591
    %v2144 = vpack.c.b16 %v1596, %v1592
    %v2145 = vpack.c.b16 %v1597, %v1593
    %v2146 = vpack.c.b16 %v1602, %v1598
    %v2147 = vpack.c.b16 %v1603, %v1599
    %v2148 = vpack.c.b16 %v1604, %v1600
    %v2149 = vpack.c.b16 %v1605, %v1601
    %v2150 = vpack.c.b16 %v1610, %v1606
    %v2151 = vpack.c.b16 %v1611, %v1607
    %v2152 = vpack.c.b16 %v1612, %v1608
    %v2153 = vpack.c.b16 %v1613, %v1609
    %v2154 = vpack.c.b16 %v1618, %v1614
    %v2155 = vpack.c.b16 %v1619, %v1615
    %v2156 = vpack.c.b16 %v1620, %v1616
    %v2157 = vpack.c.b16 %v1621, %v1617
    %v2158 = vpack.c.b16 %v1626, %v1622
    %v2159 = vpack.c.b16 %v1627, %v1623
    %v2160 = vpack.c.b16 %v1628, %v1624
    %v2161 = vpack.c.b16 %v1629, %v1625
    %v2162 = vpack.c.b16 %v1634, %v1630
    %v2163 = vpack.c.b16 %v1635, %v1631
    %v2164 = vpack.c.b16 %v1636, %v1632
    %v2165 = vpack.c.b16 %v1637, %v1633
    %v2166 = vpack.c.b16 %v1642, %v1638
    %v2167 = vpack.c.b16 %v1643, %v1639
    %v2168 = vpack.c.b16 %v1644, %v1640
    %v2169 = vpack.c.b16 %v1645, %v1641
    %v2170 = vpack.c.b16 %v1650, %v1646
    %v2171 = vpack.c.b16 %v1651, %v1647
    %v2172 = vpack.c.b16 %v1652, %v1648
    %v2173 = vpack.c.b16 %v1653, %v1649
    %v2174 = vpack.c.b16 %v1658, %v1654
    %v2175 = vpack.c.b16 %v1659, %v1655
    %v2176 = vpack.c.b16 %v1660, %v1656
    %v2177 = vpack.c.b16 %v1661, %v1657
    %v2178 = vpack.c.b16 %v1666, %v1662
    %v2179 = vpack.c.b16 %v1667, %v1663
    %v2180 = vpack.c.b16 %v1668, %v1664
    %v2181 = vpack.c.b16 %v1669, %v1665
    %v2182 = vpack.c.b16 %v1674, %v1670
    %v2183 = vpack.c.b16 %v1675, %v1671
    %v2184 = vpack.c.b16 %v1676, %v1672
    %v2185 = vpack.c.b16 %v1677, %v1673
    %v2186 = vpack.c.b16 %v1682, %v1678
    %v2187 = vpack.c.b16 %v1683, %v1679
    %v2188 = vpack.c.b16 %v1684, %v1680
    %v2189 = vpack.c.b16 %v1685, %v1681
    %v2190 = vpack.c.b16 %v1690, %v1686
    %v2191 = vpack.c.b16 %v1691, %v1687
    %v2192 = vpack.c.b16 %v1692, %v1688
    %v2193 = vpack.c.b16 %v1693, %v1689
    %v2194 = vpack.c.b16 %v1698, %v1694
    %v2195 = vpack.c.b16 %v1699, %v1695
    %v2196 = vpack.c.b16 %v1700, %v1696
    %v2197 = vpack.c.b16 %v1701, %v1697
    %v2198 = vpack.c.b16 %v1706, %v1702
    %v2199 = vpack.c.b16 %v1707, %v1703
    %v2200 = vpack.c.b16 %v1708, %v1704
    %v2201 = vpack.c.b16 %v1709, %v1705
    %v2202 = vpack.c.b16 %v1714, %v1710
    %v2203 = vpack.c.b16 %v1715, %v1711
    %v2204 = vpack.c.b16 %v1716, %v1712
    %v2205 = vpack.c.b16 %v1717, %v1713
    %v2206 = vpack.c.b16 %v1722, %v1718
    %v2207 = vpack.c.b16 %v1723, %v1719
    %v2208 = vpack.c.b16 %v1724, %v1720
    %v2209 = vpack.c.b16 %v1725, %v1721
    %v2210 = vpack.c.b16 %v1730, %v1726
    %v2211 = vpack.c.b16 %v1731, %v1727
    %v2212 = vpack.c.b16 %v1732, %v1728
    %v2213 = vpack.c.b16 %v1733, %v1729
    %v2214 = vpack.c.b16 %v1738, %v1734
    %v2215 = vpack.c.b16 %v1739, %v1735
    %v2216 = vpack.c.b16 %v1740, %v1736
    %v2217 = vpack.c.b16 %v1741, %v1737
    %v2218 = vpack.c.b16 %v1746, %v1742
    %v2219 = vpack.c.b16 %v1747, %v1743
    %v2220 = vpack.c.b16 %v1748, %v1744
    %v2221 = vpack.c.b16 %v1749, %v1745
    %v2222 = vpack.c.b16 %v1754, %v1750
    %v2223 = vpack.c.b16 %v1755, %v1751
    %v2224 = vpack.c.b16 %v1756, %v1752
    %v2225 = vpack.c.b16 %v1757, %v1753
    %v2226 = vpack.c.b16 %v1762, %v1758
    %v2227 = vpack.c.b16 %v1763, %v1759
    %v2228 = vpack.c.b16 %v1764, %v1760
    %v2229 = vpack.c.b16 %v1765, %v1761
    %v2230 = vpack.c.b16 %v1770, %v1766
    %v2231 = vpack.c.b16 %v1771, %v1767
    %v2232 = vpack.c.b16 %v1772, %v1768
    %v2233 = vpack.c.b16 %v1773, %v1769
    %v2234 = vpack.c.b16 %v1778, %v1774
    %v2235 = vpack.c.b16 %v1779, %v1775
    %v2236 = vpack.c.b16 %v1780, %v1776
    %v2237 = vpack.c.b16 %v1781, %v1777
    %v2238 = vpack.c.b16 %v1786, %v1782
    %v2239 = vpack.c.b16 %v1787, %v1783
    %v2240 = vpack.c.b16 %v1788, %v1784
    %v2241 = vpack.c.b16 %v1789, %v1785
    %v2242 = vpack.c.b16 %v1794, %v1790
    %v2243 = vpack.c.b16 %v1795, %v1791
    %v2244 = vpack.c.b16 %v1796, %v1792
    %v2245 = vpack.c.b16 %v1797, %v1793
    %v2246 = vpack.c.b16 %v1802, %v1798
    %v2247 = vpack.c.b16 %v1803, %v1799
    %v2248 = vpack.c.b16 %v1804, %v1800
    %v2249 = vpack.c.b16 %v1805, %v1801
    %v2250 = vpack.c.b16 %v1810, %v1806
    %v2251 = vpack.c.b16 %v1811, %v1807
    %v2252 = vpack.c.b16 %v1812, %v1808
    %v2253 = vpack.c.b16 %v1813, %v1809
    %v2254 = vpack.c.b16 %v1818, %v1814
    %v2255 = vpack.c.b16 %v1819, %v1815
    %v2256 = vpack.c.b16 %v1820, %v1816
    %v2257 = vpack.c.b16 %v1821, %v1817
    %v2258 = vpack.c.b16 %v1826, %v1822
    %v2259 = vpack.c.b16 %v1827, %v1823
    %v2260 = vpack.c.b16 %v1828, %v1824
    %v2261 = vpack.c.b16 %v1829, %v1825
    %v2262 = vpack.c.b16 %v1834, %v1830
    %v2263 = vpack.c.b16 %v1835, %v1831
    %v2264 = vpack.c.b16 %v1836, %v1832
    %v2265 = vpack.c.b16 %v1837, %v1833
    %v2266 = vpack.c.b16 %v1842, %v1838
    %v2267 = vpack.c.b16 %v1843, %v1839
    %v2268 = vpack.c.b16 %v1844, %v1840
    %v2269 = vpack.c.b16 %v1845, %v1841
    %v2270 = vpack.c.b16 %v1850, %v1846
    %v2271 = vpack.c.b16 %v1851, %v1847
    %v2272 = vpack.c.b16 %v1852, %v1848
    %v2273 = vpack.c.b16 %v1853, %v1849
    %v2274 = vpack.c.b16 %v1858, %v1854
    %v2275 = vpack.c.b16 %v1859, %v1855
    %v2276 = vpack.c.b16 %v1860, %v1856
    %v2277 = vpack.c.b16 %v1861, %v1857
    %v2278 = vpack.c.b16 %v1866, %v1862
    %v2279 = vpack.c.b16 %v1867, %v1863
    %v2280 = vpack.c.b16 %v1868, %v1864
    %v2281 = vpack.c.b16 %v1869, %v1865
    %v2282 = vpack.c.b16 %v1874, %v1870
    %v2283 = vpack.c.b16 %v1875, %v1871
    %v2284 = vpack.c.b16 %v1876, %v1872
    %v2285 = vpack.c.b16 %v1877, %v1873
    %v2286 = vpack.c.b16 %v1882, %v1878
    %v2287 = vpack.c.b16 %v1883, %v1879
    %v2288 = vpack.c.b16 %v1884, %v1880
    %v2289 = vpack.c.b16 %v1885, %v1881
    %v2290 = vpack.c.b16 %v1890, %v1886
    %v2291 = vpack.c.b16 %v1891, %v1887
    %v2292 = vpack.c.b16 %v1892, %v1888
    %v2293 = vpack.c.b16 %v1893, %v1889
    %v2294 = vpack.c.b16 %v1898, %v1894
    %v2295 = vpack.c.b16 %v1899, %v1895
    %v2296 = vpack.c.b16 %v1900, %v1896
    %v2297 = vpack.c.b16 %v1901, %v1897
    %v2298 = vpack.c.b16 %v1906, %v1902
    %v2299 = vpack.c.b16 %v1907, %v1903
    %v2300 = vpack.c.b16 %v1908, %v1904
    %v2301 = vpack.c.b16 %v1909, %v1905
    %v2302 = vpack.c.b16 %v1914, %v1910
    %v2303 = vpack.c.b16 %v1915, %v1911
    %v2304 = vpack.c.b16 %v1916, %v1912
    %v2305 = vpack.c.b16 %v1917, %v1913
    %v2306 = vpack.c.b16 %v1922, %v1918
    %v2307 = vpack.c.b16 %v1923, %v1919
    %v2308 = vpack.c.b16 %v1924, %v1920
    %v2309 = vpack.c.b16 %v1925, %v1921
    %2694 = vmatpush.bf16.msra.mxu0 %v1954
    %2695 = vmatpush.bf16.msra.mxu0 %v1950
    %2696 = vmatpush.bf16.msra.mxu0 %v1946
    %2697 = vmatpush.bf16.msra.mxu0 %v1942
    %2698 = vmatpush.bf16.msra.mxu0 %v1938
    %2699 = vmatpush.bf16.msra.mxu0 %v1934
    %2700 = vmatpush.bf16.msra.mxu0 %v1930
    %2701 = vmatpush.bf16.msra.mxu0 %v1926
    %2702 = vmatmul.bf16.gmra.mxu0 %v750
    %v2703 = vpop.f32.mrf.mxu0
    %v2704 = vadd.f32 %v724, %v2703
    %v2705 = vpop.f32.mrf.mxu0
    %2706 = vdwg.mxu0
    %2707 = vmatpush.bf16.msra.mxu0 %v1986
    %2708 = vmatpush.bf16.msra.mxu0 %v1982
    %2709 = vmatpush.bf16.msra.mxu0 %v1978
    %2710 = vmatpush.bf16.msra.mxu0 %v1974
    %2711 = vmatpush.bf16.msra.mxu0 %v1970
    %2712 = vmatpush.bf16.msra.mxu0 %v1966
    %2713 = vmatpush.bf16.msra.mxu0 %v1962
    %2714 = vmatpush.bf16.msra.mxu0 %v1958
    %2715 = vmatmul.bf16.gmra.mxu0 %v751
    %v2716 = vpop.f32.mrf.mxu0
    %v2717 = vadd.f32 %v2704, %v2716
    %v2718 = vpop.f32.mrf.mxu0
    %2719 = vdwg.mxu0
    %2720 = vmatpush.bf16.msra.mxu0 %v2018
    %2721 = vmatpush.bf16.msra.mxu0 %v2014
    %2722 = vmatpush.bf16.msra.mxu0 %v2010
    %2723 = vmatpush.bf16.msra.mxu0 %v2006
    %2724 = vmatpush.bf16.msra.mxu0 %v2002
    %2725 = vmatpush.bf16.msra.mxu0 %v1998
    %2726 = vmatpush.bf16.msra.mxu0 %v1994
    %2727 = vmatpush.bf16.msra.mxu0 %v1990
    %2728 = vmatmul.bf16.gmra.mxu0 %v752
    %v2729 = vpop.f32.mrf.mxu0
    %v2730 = vadd.f32 %v2717, %v2729
    %v2731 = vpop.f32.mrf.mxu0
    %2732 = vdwg.mxu0
    %2733 = vmatpush.bf16.msra.mxu0 %v2050
    %2734 = vmatpush.bf16.msra.mxu0 %v2046
    %2735 = vmatpush.bf16.msra.mxu0 %v2042
    %2736 = vmatpush.bf16.msra.mxu0 %v2038
    %2737 = vmatpush.bf16.msra.mxu0 %v2034
    %2738 = vmatpush.bf16.msra.mxu0 %v2030
    %2739 = vmatpush.bf16.msra.mxu0 %v2026
    %2740 = vmatpush.bf16.msra.mxu0 %v2022
    %2741 = vmatmul.bf16.gmra.mxu0 %v753
    %v2742 = vpop.f32.mrf.mxu0
    %v2743 = vadd.f32 %v2730, %v2742
    %v2744 = vpop.f32.mrf.mxu0
    %2745 = vdwg.mxu0
    %2746 = vmatpush.bf16.msra.mxu0 %v2082
    %2747 = vmatpush.bf16.msra.mxu0 %v2078
    %2748 = vmatpush.bf16.msra.mxu0 %v2074
    %2749 = vmatpush.bf16.msra.mxu0 %v2070
    %2750 = vmatpush.bf16.msra.mxu0 %v2066
    %2751 = vmatpush.bf16.msra.mxu0 %v2062
    %2752 = vmatpush.bf16.msra.mxu0 %v2058
    %2753 = vmatpush.bf16.msra.mxu0 %v2054
    %2754 = vmatmul.bf16.gmra.mxu0 %v754
    %v2755 = vpop.f32.mrf.mxu0
    %v2756 = vadd.f32 %v2743, %v2755
    %v2757 = vpop.f32.mrf.mxu0
    %2758 = vdwg.mxu0
    %2759 = vmatpush.bf16.msra.mxu0 %v2114
    %2760 = vmatpush.bf16.msra.mxu0 %v2110
    %2761 = vmatpush.bf16.msra.mxu0 %v2106
    %2762 = vmatpush.bf16.msra.mxu0 %v2102
    %2763 = vmatpush.bf16.msra.mxu0 %v2098
    %2764 = vmatpush.bf16.msra.mxu0 %v2094
    %2765 = vmatpush.bf16.msra.mxu0 %v2090
    %2766 = vmatpush.bf16.msra.mxu0 %v2086
    %2767 = vmatmul.bf16.gmra.mxu0 %v755
    %v2768 = vpop.f32.mrf.mxu0
    %v2769 = vadd.f32 %v2756, %v2768
    %v2770 = vpop.f32.mrf.mxu0
    %2771 = vdwg.mxu0
    %2772 = vmatpush.bf16.msra.mxu0 %v2146
    %2773 = vmatpush.bf16.msra.mxu0 %v2142
    %2774 = vmatpush.bf16.msra.mxu0 %v2138
    %2775 = vmatpush.bf16.msra.mxu0 %v2134
    %2776 = vmatpush.bf16.msra.mxu0 %v2130
    %2777 = vmatpush.bf16.msra.mxu0 %v2126
    %2778 = vmatpush.bf16.msra.mxu0 %v2122
    %2779 = vmatpush.bf16.msra.mxu0 %v2118
    %2780 = vmatmul.bf16.gmra.mxu0 %v756
    %v2781 = vpop.f32.mrf.mxu0
    %v2782 = vadd.f32 %v2769, %v2781
    %v2783 = vpop.f32.mrf.mxu0
    %2784 = vdwg.mxu0
    %2785 = vmatpush.bf16.msra.mxu0 %v2178
    %2786 = vmatpush.bf16.msra.mxu0 %v2174
    %2787 = vmatpush.bf16.msra.mxu0 %v2170
    %2788 = vmatpush.bf16.msra.mxu0 %v2166
    %2789 = vmatpush.bf16.msra.mxu0 %v2162
    %2790 = vmatpush.bf16.msra.mxu0 %v2158
    %2791 = vmatpush.bf16.msra.mxu0 %v2154
    %2792 = vmatpush.bf16.msra.mxu0 %v2150
    %2793 = vmatmul.bf16.gmra.mxu0 %v757
    %v2794 = vpop.f32.mrf.mxu0
    %v2795 = vadd.f32 %v2782, %v2794
    %v2796 = vpop.f32.mrf.mxu0
    %2797 = vdwg.mxu0
    %2798 = vmatpush.bf16.msra.mxu0 %v2210
    %2799 = vmatpush.bf16.msra.mxu0 %v2206
    %2800 = vmatpush.bf16.msra.mxu0 %v2202
    %2801 = vmatpush.bf16.msra.mxu0 %v2198
    %2802 = vmatpush.bf16.msra.mxu0 %v2194
    %2803 = vmatpush.bf16.msra.mxu0 %v2190
    %2804 = vmatpush.bf16.msra.mxu0 %v2186
    %2805 = vmatpush.bf16.msra.mxu0 %v2182
    %2806 = vmatmul.bf16.gmra.mxu0 %v758
    %v2807 = vpop.f32.mrf.mxu0
    %v2808 = vadd.f32 %v2795, %v2807
    %v2809 = vpop.f32.mrf.mxu0
    %2810 = vdwg.mxu0
    %2811 = vmatpush.bf16.msra.mxu0 %v2242
    %2812 = vmatpush.bf16.msra.mxu0 %v2238
    %2813 = vmatpush.bf16.msra.mxu0 %v2234
    %2814 = vmatpush.bf16.msra.mxu0 %v2230
    %2815 = vmatpush.bf16.msra.mxu0 %v2226
    %2816 = vmatpush.bf16.msra.mxu0 %v2222
    %2817 = vmatpush.bf16.msra.mxu0 %v2218
    %2818 = vmatpush.bf16.msra.mxu0 %v2214
    %2819 = vmatmul.bf16.gmra.mxu0 %v759
    %v2820 = vpop.f32.mrf.mxu0
    %v2821 = vadd.f32 %v2808, %v2820
    %v2822 = vpop.f32.mrf.mxu0
    %2823 = vdwg.mxu0
    %2824 = vmatpush.bf16.msra.mxu0 %v2274
    %2825 = vmatpush.bf16.msra.mxu0 %v2270
    %2826 = vmatpush.bf16.msra.mxu0 %v2266
    %2827 = vmatpush.bf16.msra.mxu0 %v2262
    %2828 = vmatpush.bf16.msra.mxu0 %v2258
    %2829 = vmatpush.bf16.msra.mxu0 %v2254
    %2830 = vmatpush.bf16.msra.mxu0 %v2250
    %2831 = vmatpush.bf16.msra.mxu0 %v2246
    %2832 = vmatmul.bf16.gmra.mxu0 %v760
    %v2833 = vpop.f32.mrf.mxu0
    %v2834 = vadd.f32 %v2821, %v2833
    %v2835 = vpop.f32.mrf.mxu0
    %2836 = vdwg.mxu0
    %2837 = vmatpush.bf16.msra.mxu0 %v2306
    %2838 = vmatpush.bf16.msra.mxu0 %v2302
    %2839 = vmatpush.bf16.msra.mxu0 %v2298
    %2840 = vmatpush.bf16.msra.mxu0 %v2294
    %2841 = vmatpush.bf16.msra.mxu0 %v2290
    %2842 = vmatpush.bf16.msra.mxu0 %v2286
    %2843 = vmatpush.bf16.msra.mxu0 %v2282
    %2844 = vmatpush.bf16.msra.mxu0 %v2278
    %2845 = vmatmul.bf16.gmra.mxu0 %v761
    %v2846 = vpop.f32.mrf.mxu0
    %v2847 = vadd.f32 %v2834, %v2846
    %v2848 = vpop.f32.mrf.mxu0
    %2849 = vdwg.mxu0
    %2850 = vmatpush.bf16.msra.mxu0 %v1955
    %2851 = vmatpush.bf16.msra.mxu0 %v1951
    %2852 = vmatpush.bf16.msra.mxu0 %v1947
    %2853 = vmatpush.bf16.msra.mxu0 %v1943
    %2854 = vmatpush.bf16.msra.mxu0 %v1939
    %2855 = vmatpush.bf16.msra.mxu0 %v1935
    %2856 = vmatpush.bf16.msra.mxu0 %v1931
    %2857 = vmatpush.bf16.msra.mxu0 %v1927
    %2858 = vmatmul.bf16.gmra.mxu0 %v750
    %v2859 = vpop.f32.mrf.mxu0
    %v2860 = vadd.f32 %v725, %v2859
    %v2861 = vpop.f32.mrf.mxu0
    %2862 = vdwg.mxu0
    %2863 = vmatpush.bf16.msra.mxu0 %v1987
    %2864 = vmatpush.bf16.msra.mxu0 %v1983
    %2865 = vmatpush.bf16.msra.mxu0 %v1979
    %2866 = vmatpush.bf16.msra.mxu0 %v1975
    %2867 = vmatpush.bf16.msra.mxu0 %v1971
    %2868 = vmatpush.bf16.msra.mxu0 %v1967
    %2869 = vmatpush.bf16.msra.mxu0 %v1963
    %2870 = vmatpush.bf16.msra.mxu0 %v1959
    %2871 = vmatmul.bf16.gmra.mxu0 %v751
    %v2872 = vpop.f32.mrf.mxu0
    %v2873 = vadd.f32 %v2860, %v2872
    %v2874 = vpop.f32.mrf.mxu0
    %2875 = vdwg.mxu0
    %2876 = vmatpush.bf16.msra.mxu0 %v2019
    %2877 = vmatpush.bf16.msra.mxu0 %v2015
    %2878 = vmatpush.bf16.msra.mxu0 %v2011
    %2879 = vmatpush.bf16.msra.mxu0 %v2007
    %2880 = vmatpush.bf16.msra.mxu0 %v2003
    %2881 = vmatpush.bf16.msra.mxu0 %v1999
    %2882 = vmatpush.bf16.msra.mxu0 %v1995
    %2883 = vmatpush.bf16.msra.mxu0 %v1991
    %2884 = vmatmul.bf16.gmra.mxu0 %v752
    %v2885 = vpop.f32.mrf.mxu0
    %v2886 = vadd.f32 %v2873, %v2885
    %v2887 = vpop.f32.mrf.mxu0
    %2888 = vdwg.mxu0
    %2889 = vmatpush.bf16.msra.mxu0 %v2051
    %2890 = vmatpush.bf16.msra.mxu0 %v2047
    %2891 = vmatpush.bf16.msra.mxu0 %v2043
    %2892 = vmatpush.bf16.msra.mxu0 %v2039
    %2893 = vmatpush.bf16.msra.mxu0 %v2035
    %2894 = vmatpush.bf16.msra.mxu0 %v2031
    %2895 = vmatpush.bf16.msra.mxu0 %v2027
    %2896 = vmatpush.bf16.msra.mxu0 %v2023
    %2897 = vmatmul.bf16.gmra.mxu0 %v753
    %v2898 = vpop.f32.mrf.mxu0
    %v2899 = vadd.f32 %v2886, %v2898
    %v2900 = vpop.f32.mrf.mxu0
    %2901 = vdwg.mxu0
    %2902 = vmatpush.bf16.msra.mxu0 %v2083
    %2903 = vmatpush.bf16.msra.mxu0 %v2079
    %2904 = vmatpush.bf16.msra.mxu0 %v2075
    %2905 = vmatpush.bf16.msra.mxu0 %v2071
    %2906 = vmatpush.bf16.msra.mxu0 %v2067
    %2907 = vmatpush.bf16.msra.mxu0 %v2063
    %2908 = vmatpush.bf16.msra.mxu0 %v2059
    %2909 = vmatpush.bf16.msra.mxu0 %v2055
    %2910 = vmatmul.bf16.gmra.mxu0 %v754
    %v2911 = vpop.f32.mrf.mxu0
    %v2912 = vadd.f32 %v2899, %v2911
    %v2913 = vpop.f32.mrf.mxu0
    %2914 = vdwg.mxu0
    %2915 = vmatpush.bf16.msra.mxu0 %v2115
    %2916 = vmatpush.bf16.msra.mxu0 %v2111
    %2917 = vmatpush.bf16.msra.mxu0 %v2107
    %2918 = vmatpush.bf16.msra.mxu0 %v2103
    %2919 = vmatpush.bf16.msra.mxu0 %v2099
    %2920 = vmatpush.bf16.msra.mxu0 %v2095
    %2921 = vmatpush.bf16.msra.mxu0 %v2091
    %2922 = vmatpush.bf16.msra.mxu0 %v2087
    %2923 = vmatmul.bf16.gmra.mxu0 %v755
    %v2924 = vpop.f32.mrf.mxu0
    %v2925 = vadd.f32 %v2912, %v2924
    %v2926 = vpop.f32.mrf.mxu0
    %2927 = vdwg.mxu0
    %2928 = vmatpush.bf16.msra.mxu0 %v2147
    %2929 = vmatpush.bf16.msra.mxu0 %v2143
    %2930 = vmatpush.bf16.msra.mxu0 %v2139
    %2931 = vmatpush.bf16.msra.mxu0 %v2135
    %2932 = vmatpush.bf16.msra.mxu0 %v2131
    %2933 = vmatpush.bf16.msra.mxu0 %v2127
    %2934 = vmatpush.bf16.msra.mxu0 %v2123
    %2935 = vmatpush.bf16.msra.mxu0 %v2119
    %2936 = vmatmul.bf16.gmra.mxu0 %v756
    %v2937 = vpop.f32.mrf.mxu0
    %v2938 = vadd.f32 %v2925, %v2937
    %v2939 = vpop.f32.mrf.mxu0
    %2940 = vdwg.mxu0
    %2941 = vmatpush.bf16.msra.mxu0 %v2179
    %2942 = vmatpush.bf16.msra.mxu0 %v2175
    %2943 = vmatpush.bf16.msra.mxu0 %v2171
    %2944 = vmatpush.bf16.msra.mxu0 %v2167
    %2945 = vmatpush.bf16.msra.mxu0 %v2163
    %2946 = vmatpush.bf16.msra.mxu0 %v2159
    %2947 = vmatpush.bf16.msra.mxu0 %v2155
    %2948 = vmatpush.bf16.msra.mxu0 %v2151
    %2949 = vmatmul.bf16.gmra.mxu0 %v757
    %v2950 = vpop.f32.mrf.mxu0
    %v2951 = vadd.f32 %v2938, %v2950
    %v2952 = vpop.f32.mrf.mxu0
    %2953 = vdwg.mxu0
    %2954 = vmatpush.bf16.msra.mxu0 %v2211
    %2955 = vmatpush.bf16.msra.mxu0 %v2207
    %2956 = vmatpush.bf16.msra.mxu0 %v2203
    %2957 = vmatpush.bf16.msra.mxu0 %v2199
    %2958 = vmatpush.bf16.msra.mxu0 %v2195
    %2959 = vmatpush.bf16.msra.mxu0 %v2191
    %2960 = vmatpush.bf16.msra.mxu0 %v2187
    %2961 = vmatpush.bf16.msra.mxu0 %v2183
    %2962 = vmatmul.bf16.gmra.mxu0 %v758
    %v2963 = vpop.f32.mrf.mxu0
    %v2964 = vadd.f32 %v2951, %v2963
    %v2965 = vpop.f32.mrf.mxu0
    %2966 = vdwg.mxu0
    %2967 = vmatpush.bf16.msra.mxu0 %v2243
    %2968 = vmatpush.bf16.msra.mxu0 %v2239
    %2969 = vmatpush.bf16.msra.mxu0 %v2235
    %2970 = vmatpush.bf16.msra.mxu0 %v2231
    %2971 = vmatpush.bf16.msra.mxu0 %v2227
    %2972 = vmatpush.bf16.msra.mxu0 %v2223
    %2973 = vmatpush.bf16.msra.mxu0 %v2219
    %2974 = vmatpush.bf16.msra.mxu0 %v2215
    %2975 = vmatmul.bf16.gmra.mxu0 %v759
    %v2976 = vpop.f32.mrf.mxu0
    %v2977 = vadd.f32 %v2964, %v2976
    %v2978 = vpop.f32.mrf.mxu0
    %2979 = vdwg.mxu0
    %2980 = vmatpush.bf16.msra.mxu0 %v2275
    %2981 = vmatpush.bf16.msra.mxu0 %v2271
    %2982 = vmatpush.bf16.msra.mxu0 %v2267
    %2983 = vmatpush.bf16.msra.mxu0 %v2263
    %2984 = vmatpush.bf16.msra.mxu0 %v2259
    %2985 = vmatpush.bf16.msra.mxu0 %v2255
    %2986 = vmatpush.bf16.msra.mxu0 %v2251
    %2987 = vmatpush.bf16.msra.mxu0 %v2247
    %2988 = vmatmul.bf16.gmra.mxu0 %v760
    %v2989 = vpop.f32.mrf.mxu0
    %v2990 = vadd.f32 %v2977, %v2989
    %v2991 = vpop.f32.mrf.mxu0
    %2992 = vdwg.mxu0
    %2993 = vmatpush.bf16.msra.mxu0 %v2307
    %2994 = vmatpush.bf16.msra.mxu0 %v2303
    %2995 = vmatpush.bf16.msra.mxu0 %v2299
    %2996 = vmatpush.bf16.msra.mxu0 %v2295
    %2997 = vmatpush.bf16.msra.mxu0 %v2291
    %2998 = vmatpush.bf16.msra.mxu0 %v2287
    %2999 = vmatpush.bf16.msra.mxu0 %v2283
    %3000 = vmatpush.bf16.msra.mxu0 %v2279
    %3001 = vmatmul.bf16.gmra.mxu0 %v761
    %v3002 = vpop.f32.mrf.mxu0
    %v3003 = vadd.f32 %v2990, %v3002
    %v3004 = vpop.f32.mrf.mxu0
    %3005 = vdwg.mxu0
    %3006 = vmatpush.bf16.msra.mxu0 %v1956
    %3007 = vmatpush.bf16.msra.mxu0 %v1952
    %3008 = vmatpush.bf16.msra.mxu0 %v1948
    %3009 = vmatpush.bf16.msra.mxu0 %v1944
    %3010 = vmatpush.bf16.msra.mxu0 %v1940
    %3011 = vmatpush.bf16.msra.mxu0 %v1936
    %3012 = vmatpush.bf16.msra.mxu0 %v1932
    %3013 = vmatpush.bf16.msra.mxu0 %v1928
    %3014 = vmatmul.bf16.gmra.mxu0 %v750
    %v3015 = vpop.f32.mrf.mxu0
    %v3016 = vadd.f32 %v726, %v3015
    %v3017 = vpop.f32.mrf.mxu0
    %3018 = vdwg.mxu0
    %3019 = vmatpush.bf16.msra.mxu0 %v1988
    %3020 = vmatpush.bf16.msra.mxu0 %v1984
    %3021 = vmatpush.bf16.msra.mxu0 %v1980
    %3022 = vmatpush.bf16.msra.mxu0 %v1976
    %3023 = vmatpush.bf16.msra.mxu0 %v1972
    %3024 = vmatpush.bf16.msra.mxu0 %v1968
    %3025 = vmatpush.bf16.msra.mxu0 %v1964
    %3026 = vmatpush.bf16.msra.mxu0 %v1960
    %3027 = vmatmul.bf16.gmra.mxu0 %v751
    %v3028 = vpop.f32.mrf.mxu0
    %v3029 = vadd.f32 %v3016, %v3028
    %v3030 = vpop.f32.mrf.mxu0
    %3031 = vdwg.mxu0
    %3032 = vmatpush.bf16.msra.mxu0 %v2020
    %3033 = vmatpush.bf16.msra.mxu0 %v2016
    %3034 = vmatpush.bf16.msra.mxu0 %v2012
    %3035 = vmatpush.bf16.msra.mxu0 %v2008
    %3036 = vmatpush.bf16.msra.mxu0 %v2004
    %3037 = vmatpush.bf16.msra.mxu0 %v2000
    %3038 = vmatpush.bf16.msra.mxu0 %v1996
    %3039 = vmatpush.bf16.msra.mxu0 %v1992
    %3040 = vmatmul.bf16.gmra.mxu0 %v752
    %v3041 = vpop.f32.mrf.mxu0
    %v3042 = vadd.f32 %v3029, %v3041
    %v3043 = vpop.f32.mrf.mxu0
    %3044 = vdwg.mxu0
    %3045 = vmatpush.bf16.msra.mxu0 %v2052
    %3046 = vmatpush.bf16.msra.mxu0 %v2048
    %3047 = vmatpush.bf16.msra.mxu0 %v2044
    %3048 = vmatpush.bf16.msra.mxu0 %v2040
    %3049 = vmatpush.bf16.msra.mxu0 %v2036
    %3050 = vmatpush.bf16.msra.mxu0 %v2032
    %3051 = vmatpush.bf16.msra.mxu0 %v2028
    %3052 = vmatpush.bf16.msra.mxu0 %v2024
    %3053 = vmatmul.bf16.gmra.mxu0 %v753
    %v3054 = vpop.f32.mrf.mxu0
    %v3055 = vadd.f32 %v3042, %v3054
    %v3056 = vpop.f32.mrf.mxu0
    %3057 = vdwg.mxu0
    %3058 = vmatpush.bf16.msra.mxu0 %v2084
    %3059 = vmatpush.bf16.msra.mxu0 %v2080
    %3060 = vmatpush.bf16.msra.mxu0 %v2076
    %3061 = vmatpush.bf16.msra.mxu0 %v2072
    %3062 = vmatpush.bf16.msra.mxu0 %v2068
    %3063 = vmatpush.bf16.msra.mxu0 %v2064
    %3064 = vmatpush.bf16.msra.mxu0 %v2060
    %3065 = vmatpush.bf16.msra.mxu0 %v2056
    %3066 = vmatmul.bf16.gmra.mxu0 %v754
    %v3067 = vpop.f32.mrf.mxu0
    %v3068 = vadd.f32 %v3055, %v3067
    %v3069 = vpop.f32.mrf.mxu0
    %3070 = vdwg.mxu0
    %3071 = vmatpush.bf16.msra.mxu0 %v2116
    %3072 = vmatpush.bf16.msra.mxu0 %v2112
    %3073 = vmatpush.bf16.msra.mxu0 %v2108
    %3074 = vmatpush.bf16.msra.mxu0 %v2104
    %3075 = vmatpush.bf16.msra.mxu0 %v2100
    %3076 = vmatpush.bf16.msra.mxu0 %v2096
    %3077 = vmatpush.bf16.msra.mxu0 %v2092
    %3078 = vmatpush.bf16.msra.mxu0 %v2088
    %3079 = vmatmul.bf16.gmra.mxu0 %v755
    %v3080 = vpop.f32.mrf.mxu0
    %v3081 = vadd.f32 %v3068, %v3080
    %v3082 = vpop.f32.mrf.mxu0
    %3083 = vdwg.mxu0
    %3084 = vmatpush.bf16.msra.mxu0 %v2148
    %3085 = vmatpush.bf16.msra.mxu0 %v2144
    %3086 = vmatpush.bf16.msra.mxu0 %v2140
    %3087 = vmatpush.bf16.msra.mxu0 %v2136
    %3088 = vmatpush.bf16.msra.mxu0 %v2132
    %3089 = vmatpush.bf16.msra.mxu0 %v2128
    %3090 = vmatpush.bf16.msra.mxu0 %v2124
    %3091 = vmatpush.bf16.msra.mxu0 %v2120
    %3092 = vmatmul.bf16.gmra.mxu0 %v756
    %v3093 = vpop.f32.mrf.mxu0
    %v3094 = vadd.f32 %v3081, %v3093
    %v3095 = vpop.f32.mrf.mxu0
    %3096 = vdwg.mxu0
    %3097 = vmatpush.bf16.msra.mxu0 %v2180
    %3098 = vmatpush.bf16.msra.mxu0 %v2176
    %3099 = vmatpush.bf16.msra.mxu0 %v2172
    %3100 = vmatpush.bf16.msra.mxu0 %v2168
    %3101 = vmatpush.bf16.msra.mxu0 %v2164
    %3102 = vmatpush.bf16.msra.mxu0 %v2160
    %3103 = vmatpush.bf16.msra.mxu0 %v2156
    %3104 = vmatpush.bf16.msra.mxu0 %v2152
    %3105 = vmatmul.bf16.gmra.mxu0 %v757
    %v3106 = vpop.f32.mrf.mxu0
    %v3107 = vadd.f32 %v3094, %v3106
    %v3108 = vpop.f32.mrf.mxu0
    %3109 = vdwg.mxu0
    %3110 = vmatpush.bf16.msra.mxu0 %v2212
    %3111 = vmatpush.bf16.msra.mxu0 %v2208
    %3112 = vmatpush.bf16.msra.mxu0 %v2204
    %3113 = vmatpush.bf16.msra.mxu0 %v2200
    %3114 = vmatpush.bf16.msra.mxu0 %v2196
    %3115 = vmatpush.bf16.msra.mxu0 %v2192
    %3116 = vmatpush.bf16.msra.mxu0 %v2188
    %3117 = vmatpush.bf16.msra.mxu0 %v2184
    %3118 = vmatmul.bf16.gmra.mxu0 %v758
    %v3119 = vpop.f32.mrf.mxu0
    %v3120 = vadd.f32 %v3107, %v3119
    %v3121 = vpop.f32.mrf.mxu0
    %3122 = vdwg.mxu0
    %3123 = vmatpush.bf16.msra.mxu0 %v2244
    %3124 = vmatpush.bf16.msra.mxu0 %v2240
    %3125 = vmatpush.bf16.msra.mxu0 %v2236
    %3126 = vmatpush.bf16.msra.mxu0 %v2232
    %3127 = vmatpush.bf16.msra.mxu0 %v2228
    %3128 = vmatpush.bf16.msra.mxu0 %v2224
    %3129 = vmatpush.bf16.msra.mxu0 %v2220
    %3130 = vmatpush.bf16.msra.mxu0 %v2216
    %3131 = vmatmul.bf16.gmra.mxu0 %v759
    %v3132 = vpop.f32.mrf.mxu0
    %v3133 = vadd.f32 %v3120, %v3132
    %v3134 = vpop.f32.mrf.mxu0
    %3135 = vdwg.mxu0
    %3136 = vmatpush.bf16.msra.mxu0 %v2276
    %3137 = vmatpush.bf16.msra.mxu0 %v2272
    %3138 = vmatpush.bf16.msra.mxu0 %v2268
    %3139 = vmatpush.bf16.msra.mxu0 %v2264
    %3140 = vmatpush.bf16.msra.mxu0 %v2260
    %3141 = vmatpush.bf16.msra.mxu0 %v2256
    %3142 = vmatpush.bf16.msra.mxu0 %v2252
    %3143 = vmatpush.bf16.msra.mxu0 %v2248
    %3144 = vmatmul.bf16.gmra.mxu0 %v760
    %v3145 = vpop.f32.mrf.mxu0
    %v3146 = vadd.f32 %v3133, %v3145
    %v3147 = vpop.f32.mrf.mxu0
    %3148 = vdwg.mxu0
    %3149 = vmatpush.bf16.msra.mxu0 %v2308
    %3150 = vmatpush.bf16.msra.mxu0 %v2304
    %3151 = vmatpush.bf16.msra.mxu0 %v2300
    %3152 = vmatpush.bf16.msra.mxu0 %v2296
    %3153 = vmatpush.bf16.msra.mxu0 %v2292
    %3154 = vmatpush.bf16.msra.mxu0 %v2288
    %3155 = vmatpush.bf16.msra.mxu0 %v2284
    %3156 = vmatpush.bf16.msra.mxu0 %v2280
    %3157 = vmatmul.bf16.gmra.mxu0 %v761
    %v3158 = vpop.f32.mrf.mxu0
    %v3159 = vadd.f32 %v3146, %v3158
    %v3160 = vpop.f32.mrf.mxu0
    %3161 = vdwg.mxu0
    %3162 = vmatpush.bf16.msra.mxu0 %v1957
    %3163 = vmatpush.bf16.msra.mxu0 %v1953
    %3164 = vmatpush.bf16.msra.mxu0 %v1949
    %3165 = vmatpush.bf16.msra.mxu0 %v1945
    %3166 = vmatpush.bf16.msra.mxu0 %v1941
    %3167 = vmatpush.bf16.msra.mxu0 %v1937
    %3168 = vmatpush.bf16.msra.mxu0 %v1933
    %3169 = vmatpush.bf16.msra.mxu0 %v1929
    %3170 = vmatmul.bf16.gmra.mxu0 %v750
    %v3171 = vpop.f32.mrf.mxu0
    %v3172 = vadd.f32 %v727, %v3171
    %v3173 = vpop.f32.mrf.mxu0
    %3174 = vdwg.mxu0
    %3175 = vmatpush.bf16.msra.mxu0 %v1989
    %3176 = vmatpush.bf16.msra.mxu0 %v1985
    %3177 = vmatpush.bf16.msra.mxu0 %v1981
    %3178 = vmatpush.bf16.msra.mxu0 %v1977
    %3179 = vmatpush.bf16.msra.mxu0 %v1973
    %3180 = vmatpush.bf16.msra.mxu0 %v1969
    %3181 = vmatpush.bf16.msra.mxu0 %v1965
    %3182 = vmatpush.bf16.msra.mxu0 %v1961
    %3183 = vmatmul.bf16.gmra.mxu0 %v751
    %v3184 = vpop.f32.mrf.mxu0
    %v3185 = vadd.f32 %v3172, %v3184
    %v3186 = vpop.f32.mrf.mxu0
    %3187 = vdwg.mxu0
    %3188 = vmatpush.bf16.msra.mxu0 %v2021
    %3189 = vmatpush.bf16.msra.mxu0 %v2017
    %3190 = vmatpush.bf16.msra.mxu0 %v2013
    %3191 = vmatpush.bf16.msra.mxu0 %v2009
    %3192 = vmatpush.bf16.msra.mxu0 %v2005
    %3193 = vmatpush.bf16.msra.mxu0 %v2001
    %3194 = vmatpush.bf16.msra.mxu0 %v1997
    %3195 = vmatpush.bf16.msra.mxu0 %v1993
    %3196 = vmatmul.bf16.gmra.mxu0 %v752
    %v3197 = vpop.f32.mrf.mxu0
    %v3198 = vadd.f32 %v3185, %v3197
    %v3199 = vpop.f32.mrf.mxu0
    %3200 = vdwg.mxu0
    %3201 = vmatpush.bf16.msra.mxu0 %v2053
    %3202 = vmatpush.bf16.msra.mxu0 %v2049
    %3203 = vmatpush.bf16.msra.mxu0 %v2045
    %3204 = vmatpush.bf16.msra.mxu0 %v2041
    %3205 = vmatpush.bf16.msra.mxu0 %v2037
    %3206 = vmatpush.bf16.msra.mxu0 %v2033
    %3207 = vmatpush.bf16.msra.mxu0 %v2029
    %3208 = vmatpush.bf16.msra.mxu0 %v2025
    %3209 = vmatmul.bf16.gmra.mxu0 %v753
    %v3210 = vpop.f32.mrf.mxu0
    %v3211 = vadd.f32 %v3198, %v3210
    %v3212 = vpop.f32.mrf.mxu0
    %3213 = vdwg.mxu0
    %3214 = vmatpush.bf16.msra.mxu0 %v2085
    %3215 = vmatpush.bf16.msra.mxu0 %v2081
    %3216 = vmatpush.bf16.msra.mxu0 %v2077
    %3217 = vmatpush.bf16.msra.mxu0 %v2073
    %3218 = vmatpush.bf16.msra.mxu0 %v2069
    %3219 = vmatpush.bf16.msra.mxu0 %v2065
    %3220 = vmatpush.bf16.msra.mxu0 %v2061
    %3221 = vmatpush.bf16.msra.mxu0 %v2057
    %3222 = vmatmul.bf16.gmra.mxu0 %v754
    %v3223 = vpop.f32.mrf.mxu0
    %v3224 = vadd.f32 %v3211, %v3223
    %v3225 = vpop.f32.mrf.mxu0
    %3226 = vdwg.mxu0
    %3227 = vmatpush.bf16.msra.mxu0 %v2117
    %3228 = vmatpush.bf16.msra.mxu0 %v2113
    %3229 = vmatpush.bf16.msra.mxu0 %v2109
    %3230 = vmatpush.bf16.msra.mxu0 %v2105
    %3231 = vmatpush.bf16.msra.mxu0 %v2101
    %3232 = vmatpush.bf16.msra.mxu0 %v2097
    %3233 = vmatpush.bf16.msra.mxu0 %v2093
    %3234 = vmatpush.bf16.msra.mxu0 %v2089
    %3235 = vmatmul.bf16.gmra.mxu0 %v755
    %v3236 = vpop.f32.mrf.mxu0
    %v3237 = vadd.f32 %v3224, %v3236
    %v3238 = vpop.f32.mrf.mxu0
    %3239 = vdwg.mxu0
    %3240 = vmatpush.bf16.msra.mxu0 %v2149
    %3241 = vmatpush.bf16.msra.mxu0 %v2145
    %3242 = vmatpush.bf16.msra.mxu0 %v2141
    %3243 = vmatpush.bf16.msra.mxu0 %v2137
    %3244 = vmatpush.bf16.msra.mxu0 %v2133
    %3245 = vmatpush.bf16.msra.mxu0 %v2129
    %3246 = vmatpush.bf16.msra.mxu0 %v2125
    %3247 = vmatpush.bf16.msra.mxu0 %v2121
    %3248 = vmatmul.bf16.gmra.mxu0 %v756
    %v3249 = vpop.f32.mrf.mxu0
    %v3250 = vadd.f32 %v3237, %v3249
    %v3251 = vpop.f32.mrf.mxu0
    %3252 = vdwg.mxu0
    %3253 = vmatpush.bf16.msra.mxu0 %v2181
    %3254 = vmatpush.bf16.msra.mxu0 %v2177
    %3255 = vmatpush.bf16.msra.mxu0 %v2173
    %3256 = vmatpush.bf16.msra.mxu0 %v2169
    %3257 = vmatpush.bf16.msra.mxu0 %v2165
    %3258 = vmatpush.bf16.msra.mxu0 %v2161
    %3259 = vmatpush.bf16.msra.mxu0 %v2157
    %3260 = vmatpush.bf16.msra.mxu0 %v2153
    %3261 = vmatmul.bf16.gmra.mxu0 %v757
    %v3262 = vpop.f32.mrf.mxu0
    %v3263 = vadd.f32 %v3250, %v3262
    %v3264 = vpop.f32.mrf.mxu0
    %3265 = vdwg.mxu0
    %3266 = vmatpush.bf16.msra.mxu0 %v2213
    %3267 = vmatpush.bf16.msra.mxu0 %v2209
    %3268 = vmatpush.bf16.msra.mxu0 %v2205
    %3269 = vmatpush.bf16.msra.mxu0 %v2201
    %3270 = vmatpush.bf16.msra.mxu0 %v2197
    %3271 = vmatpush.bf16.msra.mxu0 %v2193
    %3272 = vmatpush.bf16.msra.mxu0 %v2189
    %3273 = vmatpush.bf16.msra.mxu0 %v2185
    %3274 = vmatmul.bf16.gmra.mxu0 %v758
    %v3275 = vpop.f32.mrf.mxu0
    %v3276 = vadd.f32 %v3263, %v3275
    %v3277 = vpop.f32.mrf.mxu0
    %3278 = vdwg.mxu0
    %3279 = vmatpush.bf16.msra.mxu0 %v2245
    %3280 = vmatpush.bf16.msra.mxu0 %v2241
    %3281 = vmatpush.bf16.msra.mxu0 %v2237
    %3282 = vmatpush.bf16.msra.mxu0 %v2233
    %3283 = vmatpush.bf16.msra.mxu0 %v2229
    %3284 = vmatpush.bf16.msra.mxu0 %v2225
    %3285 = vmatpush.bf16.msra.mxu0 %v2221
    %3286 = vmatpush.bf16.msra.mxu0 %v2217
    %3287 = vmatmul.bf16.gmra.mxu0 %v759
    %v3288 = vpop.f32.mrf.mxu0
    %v3289 = vadd.f32 %v3276, %v3288
    %v3290 = vpop.f32.mrf.mxu0
    %3291 = vdwg.mxu0
    %3292 = vmatpush.bf16.msra.mxu0 %v2277
    %3293 = vmatpush.bf16.msra.mxu0 %v2273
    %3294 = vmatpush.bf16.msra.mxu0 %v2269
    %3295 = vmatpush.bf16.msra.mxu0 %v2265
    %3296 = vmatpush.bf16.msra.mxu0 %v2261
    %3297 = vmatpush.bf16.msra.mxu0 %v2257
    %3298 = vmatpush.bf16.msra.mxu0 %v2253
    %3299 = vmatpush.bf16.msra.mxu0 %v2249
    %3300 = vmatmul.bf16.gmra.mxu0 %v760
    %v3301 = vpop.f32.mrf.mxu0
    %v3302 = vadd.f32 %v3289, %v3301
    %v3303 = vpop.f32.mrf.mxu0
    %3304 = vdwg.mxu0
    %3305 = vmatpush.bf16.msra.mxu0 %v2309
    %3306 = vmatpush.bf16.msra.mxu0 %v2305
    %3307 = vmatpush.bf16.msra.mxu0 %v2301
    %3308 = vmatpush.bf16.msra.mxu0 %v2297
    %3309 = vmatpush.bf16.msra.mxu0 %v2293
    %3310 = vmatpush.bf16.msra.mxu0 %v2289
    %3311 = vmatpush.bf16.msra.mxu0 %v2285
    %3312 = vmatpush.bf16.msra.mxu0 %v2281
    %3313 = vmatmul.bf16.gmra.mxu0 %v761
    %v3314 = vpop.f32.mrf.mxu0
    %v3315 = vadd.f32 %v3302, %v3314
    %v3316 = vpop.f32.mrf.mxu0
    %3317 = vdwg.mxu0
    %v3318 = vmax.f32 %v2847, 0.0
    %v3319 = vmax.f32 %v3003, 0.0
    %v3320 = vmax.f32 %v3159, 0.0
    %v3321 = vmax.f32 %v3315, 0.0
    %v3322 = vpack.c.bf16 %v3318, %v3318
    %v3323 = vpack.c.bf16 %v3319, %v3319
    %v3324 = vpack.c.bf16 %v3320, %v3320
    %v3325 = vpack.c.bf16 %v3321, %v3321
    %v3326 = vld [vmem:[#allocation7] sm:$0xff]
    %v3327 = vld [vmem:[#allocation7 + $0x8] sm:$0xff]
    %v3328 = vld [vmem:[#allocation7 + $0x10] sm:$0xff]
    %v3329 = vld [vmem:[#allocation7 + $0x18] sm:$0xff]
    %v3330 = vld [vmem:[#allocation7 + $0x20] sm:$0xff]
    %v3331 = vld [vmem:[#allocation7 + $0x28] sm:$0xff]
    %v3332 = vld [vmem:[#allocation7 + $0x30] sm:$0xff]
    %v3333 = vld [vmem:[#allocation7 + $0x38] sm:$0xff]
    %v3334 = vld [vmem:[#allocation7 + $0x40] sm:$0xff]
    %v3335 = vld [vmem:[#allocation7 + $0x48] sm:$0xff]
    %v3336 = vld [vmem:[#allocation7 + $0x50] sm:$0xff]
    %v3337 = vld [vmem:[#allocation7 + $0x58] sm:$0xff]
    %v3338 = vld [vmem:[#allocation7 + $0x60] sm:$0xff]
    %v3339 = vld [vmem:[#allocation7 + $0x68] sm:$0xff]
    %v3340 = vld [vmem:[#allocation7 + $0x70] sm:$0xff]
    %v3341 = vld [vmem:[#allocation7 + $0x78] sm:$0xff]
    %v3342 = vld [vmem:[#allocation7 + $0x80] sm:$0xff]
    %v3343 = vld [vmem:[#allocation7 + $0x88] sm:$0xff]
    %v3344 = vld [vmem:[#allocation7 + $0x90] sm:$0xff]
    %v3345 = vld [vmem:[#allocation7 + $0x98] sm:$0xff]
    %v3346 = vld [vmem:[#allocation7 + $0xa0] sm:$0xff]
    %v3347 = vld [vmem:[#allocation7 + $0xa8] sm:$0xff]
    %v3348 = vld [vmem:[#allocation7 + $0xb0] sm:$0xff]
    %v3349 = vld [vmem:[#allocation7 + $0xb8] sm:$0xff]
    %v3350 = vld [vmem:[#allocation7 + $0xc0] sm:$0xff]
    %v3351 = vld [vmem:[#allocation7 + $0xc8] sm:$0xff]
    %v3352 = vld [vmem:[#allocation7 + $0xd0] sm:$0xff]
    %v3353 = vld [vmem:[#allocation7 + $0xd8] sm:$0xff]
    %v3354 = vld [vmem:[#allocation7 + $0xe0] sm:$0xff]
    %v3355 = vld [vmem:[#allocation7 + $0xe8] sm:$0xff]
    %v3356 = vld [vmem:[#allocation7 + $0xf0] sm:$0xff]
    %v3357 = vld [vmem:[#allocation7 + $0xf8] sm:$0xff]
    %v3358 = vld [vmem:[#allocation7 + $0x100] sm:$0xff]
    %v3359 = vld [vmem:[#allocation7 + $0x108] sm:$0xff]
    %v3360 = vld [vmem:[#allocation7 + $0x110] sm:$0xff]
    %v3361 = vld [vmem:[#allocation7 + $0x118] sm:$0xff]
    %v3362 = vld [vmem:[#allocation7 + $0x120] sm:$0xff]
    %v3363 = vld [vmem:[#allocation7 + $0x128] sm:$0xff]
    %v3364 = vld [vmem:[#allocation7 + $0x130] sm:$0xff]
    %v3365 = vld [vmem:[#allocation7 + $0x138] sm:$0xff]
    %v3366 = vld [vmem:[#allocation7 + $0x140] sm:$0xff]
    %v3367 = vld [vmem:[#allocation7 + $0x148] sm:$0xff]
    %v3368 = vld [vmem:[#allocation7 + $0x150] sm:$0xff]
    %v3369 = vld [vmem:[#allocation7 + $0x158] sm:$0xff]
    %v3370 = vld [vmem:[#allocation7 + $0x160] sm:$0xff]
    %v3371 = vld [vmem:[#allocation7 + $0x168] sm:$0xff]
    %v3372 = vld [vmem:[#allocation7 + $0x170] sm:$0xff]
    %v3373 = vld [vmem:[#allocation7 + $0x178] sm:$0xff]
    %v3374 = vld [vmem:[#allocation7 + $0x180] sm:$0xff]
    %v3375 = vld [vmem:[#allocation7 + $0x188] sm:$0xff]
    %v3376 = vld [vmem:[#allocation7 + $0x190] sm:$0xff]
    %v3377 = vld [vmem:[#allocation7 + $0x198] sm:$0xff]
    %v3378 = vld [vmem:[#allocation7 + $0x1a0] sm:$0xff]
    %v3379 = vld [vmem:[#allocation7 + $0x1a8] sm:$0xff]
    %v3380 = vld [vmem:[#allocation7 + $0x1b0] sm:$0xff]
    %v3381 = vld [vmem:[#allocation7 + $0x1b8] sm:$0xff]
    %v3382 = vld [vmem:[#allocation7 + $0x1c0] sm:$0xff]
    %v3383 = vld [vmem:[#allocation7 + $0x1c8] sm:$0xff]
    %v3384 = vld [vmem:[#allocation7 + $0x1d0] sm:$0xff]
    %v3385 = vld [vmem:[#allocation7 + $0x1d8] sm:$0xff]
    %v3386 = vld [vmem:[#allocation7 + $0x1e0] sm:$0xff]
    %v3387 = vld [vmem:[#allocation7 + $0x1e8] sm:$0xff]
    %v3388 = vld [vmem:[#allocation7 + $0x1f0] sm:$0xff]
    %v3389 = vld [vmem:[#allocation7 + $0x1f8] sm:$0xff]
    %v3390 = vld [vmem:[#allocation8] sm:$0x3]
    %v3392 = vperm.slane %v3390, 0
    %v3393 = vperm.slane %v3390, 1
    %v3460 = vunpack.c.l.b16 %v3326
    %v3461 = vunpack.c.h.b16 %v3326
    %v3462 = vunpack.c.l.b16 %v3327
    %v3463 = vunpack.c.h.b16 %v3327
    %v3464 = vunpack.c.l.b16 %v3328
    %v3465 = vunpack.c.h.b16 %v3328
    %v3466 = vunpack.c.l.b16 %v3329
    %v3467 = vunpack.c.h.b16 %v3329
    %v3468 = vunpack.c.l.b16 %v3330
    %v3469 = vunpack.c.h.b16 %v3330
    %v3470 = vunpack.c.l.b16 %v3331
    %v3471 = vunpack.c.h.b16 %v3331
    %v3472 = vunpack.c.l.b16 %v3332
    %v3473 = vunpack.c.h.b16 %v3332
    %v3474 = vunpack.c.l.b16 %v3333
    %v3475 = vunpack.c.h.b16 %v3333
    %v3476 = vunpack.c.l.b16 %v3334
    %v3477 = vunpack.c.h.b16 %v3334
    %v3478 = vunpack.c.l.b16 %v3335
    %v3479 = vunpack.c.h.b16 %v3335
    %v3480 = vunpack.c.l.b16 %v3336
    %v3481 = vunpack.c.h.b16 %v3336
    %v3482 = vunpack.c.l.b16 %v3337
    %v3483 = vunpack.c.h.b16 %v3337
    %v3484 = vunpack.c.l.b16 %v3338
    %v3485 = vunpack.c.h.b16 %v3338
    %v3486 = vunpack.c.l.b16 %v3339
    %v3487 = vunpack.c.h.b16 %v3339
    %v3488 = vunpack.c.l.b16 %v3340
    %v3489 = vunpack.c.h.b16 %v3340
    %v3490 = vunpack.c.l.b16 %v3341
    %v3491 = vunpack.c.h.b16 %v3341
    %v3492 = vunpack.c.l.b16 %v3342
    %v3493 = vunpack.c.h.b16 %v3342
    %v3494 = vunpack.c.l.b16 %v3343
    %v3495 = vunpack.c.h.b16 %v3343
    %v3496 = vunpack.c.l.b16 %v3344
    %v3497 = vunpack.c.h.b16 %v3344
    %v3498 = vunpack.c.l.b16 %v3345
    %v3499 = vunpack.c.h.b16 %v3345
    %v3500 = vunpack.c.l.b16 %v3346
    %v3501 = vunpack.c.h.b16 %v3346
    %v3502 = vunpack.c.l.b16 %v3347
    %v3503 = vunpack.c.h.b16 %v3347
    %v3504 = vunpack.c.l.b16 %v3348
    %v3505 = vunpack.c.h.b16 %v3348
    %v3506 = vunpack.c.l.b16 %v3349
    %v3507 = vunpack.c.h.b16 %v3349
    %v3508 = vunpack.c.l.b16 %v3350
    %v3509 = vunpack.c.h.b16 %v3350
    %v3510 = vunpack.c.l.b16 %v3351
    %v3511 = vunpack.c.h.b16 %v3351
    %v3512 = vunpack.c.l.b16 %v3352
    %v3513 = vunpack.c.h.b16 %v3352
    %v3514 = vunpack.c.l.b16 %v3353
    %v3515 = vunpack.c.h.b16 %v3353
    %v3516 = vunpack.c.l.b16 %v3354
    %v3517 = vunpack.c.h.b16 %v3354
    %v3518 = vunpack.c.l.b16 %v3355
    %v3519 = vunpack.c.h.b16 %v3355
    %v3520 = vunpack.c.l.b16 %v3356
    %v3521 = vunpack.c.h.b16 %v3356
    %v3522 = vunpack.c.l.b16 %v3357
    %v3523 = vunpack.c.h.b16 %v3357
    %v3524 = vunpack.c.l.b16 %v3358
    %v3525 = vunpack.c.h.b16 %v3358
    %v3526 = vunpack.c.l.b16 %v3359
    %v3527 = vunpack.c.h.b16 %v3359
    %v3528 = vunpack.c.l.b16 %v3360
    %v3529 = vunpack.c.h.b16 %v3360
    %v3530 = vunpack.c.l.b16 %v3361
    %v3531 = vunpack.c.h.b16 %v3361
    %v3532 = vunpack.c.l.b16 %v3362
    %v3533 = vunpack.c.h.b16 %v3362
    %v3534 = vunpack.c.l.b16 %v3363
    %v3535 = vunpack.c.h.b16 %v3363
    %v3536 = vunpack.c.l.b16 %v3364
    %v3537 = vunpack.c.h.b16 %v3364
    %v3538 = vunpack.c.l.b16 %v3365
    %v3539 = vunpack.c.h.b16 %v3365
    %v3540 = vunpack.c.l.b16 %v3366
    %v3541 = vunpack.c.h.b16 %v3366
    %v3542 = vunpack.c.l.b16 %v3367
    %v3543 = vunpack.c.h.b16 %v3367
    %v3544 = vunpack.c.l.b16 %v3368
    %v3545 = vunpack.c.h.b16 %v3368
    %v3546 = vunpack.c.l.b16 %v3369
    %v3547 = vunpack.c.h.b16 %v3369
    %v3548 = vunpack.c.l.b16 %v3370
    %v3549 = vunpack.c.h.b16 %v3370
    %v3550 = vunpack.c.l.b16 %v3371
    %v3551 = vunpack.c.h.b16 %v3371
    %v3552 = vunpack.c.l.b16 %v3372
    %v3553 = vunpack.c.h.b16 %v3372
    %v3554 = vunpack.c.l.b16 %v3373
    %v3555 = vunpack.c.h.b16 %v3373
    %v3556 = vunpack.c.l.b16 %v3374
    %v3557 = vunpack.c.h.b16 %v3374
    %v3558 = vunpack.c.l.b16 %v3375
    %v3559 = vunpack.c.h.b16 %v3375
    %v3560 = vunpack.c.l.b16 %v3376
    %v3561 = vunpack.c.h.b16 %v3376
    %v3562 = vunpack.c.l.b16 %v3377
    %v3563 = vunpack.c.h.b16 %v3377
    %v3564 = vunpack.c.l.b16 %v3378
    %v3565 = vunpack.c.h.b16 %v3378
    %v3566 = vunpack.c.l.b16 %v3379
    %v3567 = vunpack.c.h.b16 %v3379
    %v3568 = vunpack.c.l.b16 %v3380
    %v3569 = vunpack.c.h.b16 %v3380
    %v3570 = vunpack.c.l.b16 %v3381
    %v3571 = vunpack.c.h.b16 %v3381
    %v3572 = vunpack.c.l.b16 %v3382
    %v3573 = vunpack.c.h.b16 %v3382
    %v3574 = vunpack.c.l.b16 %v3383
    %v3575 = vunpack.c.h.b16 %v3383
    %v3576 = vunpack.c.l.b16 %v3384
    %v3577 = vunpack.c.h.b16 %v3384
    %v3578 = vunpack.c.l.b16 %v3385
    %v3579 = vunpack.c.h.b16 %v3385
    %v3580 = vunpack.c.l.b16 %v3386
    %v3581 = vunpack.c.h.b16 %v3386
    %v3582 = vunpack.c.l.b16 %v3387
    %v3583 = vunpack.c.h.b16 %v3387
    %v3584 = vunpack.c.l.b16 %v3388
    %v3585 = vunpack.c.h.b16 %v3388
    %v3586 = vunpack.c.l.b16 %v3389
    %v3587 = vunpack.c.h.b16 %v3389
    %v3588 = vpack.c.b16 %v3462, %v3460
    %v3589 = vpack.c.b16 %v3463, %v3461
    %v3590 = vpack.c.b16 %v3466, %v3464
    %v3591 = vpack.c.b16 %v3467, %v3465
    %v3592 = vpack.c.b16 %v3470, %v3468
    %v3593 = vpack.c.b16 %v3471, %v3469
    %v3594 = vpack.c.b16 %v3474, %v3472
    %v3595 = vpack.c.b16 %v3475, %v3473
    %v3596 = vpack.c.b16 %v3478, %v3476
    %v3597 = vpack.c.b16 %v3479, %v3477
    %v3598 = vpack.c.b16 %v3482, %v3480
    %v3599 = vpack.c.b16 %v3483, %v3481
    %v3600 = vpack.c.b16 %v3486, %v3484
    %v3601 = vpack.c.b16 %v3487, %v3485
    %v3602 = vpack.c.b16 %v3490, %v3488
    %v3603 = vpack.c.b16 %v3491, %v3489
    %v3604 = vpack.c.b16 %v3494, %v3492
    %v3605 = vpack.c.b16 %v3495, %v3493
    %v3606 = vpack.c.b16 %v3498, %v3496
    %v3607 = vpack.c.b16 %v3499, %v3497
    %v3608 = vpack.c.b16 %v3502, %v3500
    %v3609 = vpack.c.b16 %v3503, %v3501
    %v3610 = vpack.c.b16 %v3506, %v3504
    %v3611 = vpack.c.b16 %v3507, %v3505
    %v3612 = vpack.c.b16 %v3510, %v3508
    %v3613 = vpack.c.b16 %v3511, %v3509
    %v3614 = vpack.c.b16 %v3514, %v3512
    %v3615 = vpack.c.b16 %v3515, %v3513
    %v3616 = vpack.c.b16 %v3518, %v3516
    %v3617 = vpack.c.b16 %v3519, %v3517
    %v3618 = vpack.c.b16 %v3522, %v3520
    %v3619 = vpack.c.b16 %v3523, %v3521
    %v3620 = vpack.c.b16 %v3526, %v3524
    %v3621 = vpack.c.b16 %v3527, %v3525
    %v3622 = vpack.c.b16 %v3530, %v3528
    %v3623 = vpack.c.b16 %v3531, %v3529
    %v3624 = vpack.c.b16 %v3534, %v3532
    %v3625 = vpack.c.b16 %v3535, %v3533
    %v3626 = vpack.c.b16 %v3538, %v3536
    %v3627 = vpack.c.b16 %v3539, %v3537
    %v3628 = vpack.c.b16 %v3542, %v3540
    %v3629 = vpack.c.b16 %v3543, %v3541
    %v3630 = vpack.c.b16 %v3546, %v3544
    %v3631 = vpack.c.b16 %v3547, %v3545
    %v3632 = vpack.c.b16 %v3550, %v3548
    %v3633 = vpack.c.b16 %v3551, %v3549
    %v3634 = vpack.c.b16 %v3554, %v3552
    %v3635 = vpack.c.b16 %v3555, %v3553
    %v3636 = vpack.c.b16 %v3558, %v3556
    %v3637 = vpack.c.b16 %v3559, %v3557
    %v3638 = vpack.c.b16 %v3562, %v3560
    %v3639 = vpack.c.b16 %v3563, %v3561
    %v3640 = vpack.c.b16 %v3566, %v3564
    %v3641 = vpack.c.b16 %v3567, %v3565
    %v3642 = vpack.c.b16 %v3570, %v3568
    %v3643 = vpack.c.b16 %v3571, %v3569
    %v3644 = vpack.c.b16 %v3574, %v3572
    %v3645 = vpack.c.b16 %v3575, %v3573
    %v3646 = vpack.c.b16 %v3578, %v3576
    %v3647 = vpack.c.b16 %v3579, %v3577
    %v3648 = vpack.c.b16 %v3582, %v3580
    %v3649 = vpack.c.b16 %v3583, %v3581
    %v3650 = vpack.c.b16 %v3586, %v3584
    %v3651 = vpack.c.b16 %v3587, %v3585
    %3716 = vmatpush.bf16.msra.mxu0 %v3602
    %3717 = vmatpush.bf16.msra.mxu0 %v3600
    %3718 = vmatpush.bf16.msra.mxu0 %v3598
    %3719 = vmatpush.bf16.msra.mxu0 %v3596
    %3720 = vmatpush.bf16.msra.mxu0 %v3594
    %3721 = vmatpush.bf16.msra.mxu0 %v3592
    %3722 = vmatpush.bf16.msra.mxu0 %v3590
    %3723 = vmatpush.bf16.msra.mxu0 %v3588
    %3724 = vmatmul.bf16.gmra.mxu0 %v3322
    %v3725 = vpop.f32.mrf.mxu0
    %v3726 = vadd.f32 %v3392, %v3725
    %v3727 = vpop.f32.mrf.mxu0
    %3728 = vdwg.mxu0
    %3729 = vmatpush.bf16.msra.mxu0 %v3618
    %3730 = vmatpush.bf16.msra.mxu0 %v3616
    %3731 = vmatpush.bf16.msra.mxu0 %v3614
    %3732 = vmatpush.bf16.msra.mxu0 %v3612
    %3733 = vmatpush.bf16.msra.mxu0 %v3610
    %3734 = vmatpush.bf16.msra.mxu0 %v3608
    %3735 = vmatpush.bf16.msra.mxu0 %v3606
    %3736 = vmatpush.bf16.msra.mxu0 %v3604
    %3737 = vmatmul.bf16.gmra.mxu0 %v3323
    %v3738 = vpop.f32.mrf.mxu0
    %v3739 = vadd.f32 %v3726, %v3738
    %v3740 = vpop.f32.mrf.mxu0
    %3741 = vdwg.mxu0
    %3742 = vmatpush.bf16.msra.mxu0 %v3634
    %3743 = vmatpush.bf16.msra.mxu0 %v3632
    %3744 = vmatpush.bf16.msra.mxu0 %v3630
    %3745 = vmatpush.bf16.msra.mxu0 %v3628
    %3746 = vmatpush.bf16.msra.mxu0 %v3626
    %3747 = vmatpush.bf16.msra.mxu0 %v3624
    %3748 = vmatpush.bf16.msra.mxu0 %v3622
    %3749 = vmatpush.bf16.msra.mxu0 %v3620
    %3750 = vmatmul.bf16.gmra.mxu0 %v3324
    %v3751 = vpop.f32.mrf.mxu0
    %v3752 = vadd.f32 %v3739, %v3751
    %v3753 = vpop.f32.mrf.mxu0
    %3754 = vdwg.mxu0
    %3755 = vmatpush.bf16.msra.mxu0 %v3650
    %3756 = vmatpush.bf16.msra.mxu0 %v3648
    %3757 = vmatpush.bf16.msra.mxu0 %v3646
    %3758 = vmatpush.bf16.msra.mxu0 %v3644
    %3759 = vmatpush.bf16.msra.mxu0 %v3642
    %3760 = vmatpush.bf16.msra.mxu0 %v3640
    %3761 = vmatpush.bf16.msra.mxu0 %v3638
    %3762 = vmatpush.bf16.msra.mxu0 %v3636
    %3763 = vmatmul.bf16.gmra.mxu0 %v3325
    %v3764 = vpop.f32.mrf.mxu0
    %v3765 = vadd.f32 %v3752, %v3764
    %v3766 = vpop.f32.mrf.mxu0
    %3767 = vdwg.mxu0
    %3768 = vmatpush.bf16.msra.mxu0 %v3603
    %3769 = vmatpush.bf16.msra.mxu0 %v3601
    %3770 = vmatpush.bf16.msra.mxu0 %v3599
    %3771 = vmatpush.bf16.msra.mxu0 %v3597
    %3772 = vmatpush.bf16.msra.mxu0 %v3595
    %3773 = vmatpush.bf16.msra.mxu0 %v3593
    %3774 = vmatpush.bf16.msra.mxu0 %v3591
    %3775 = vmatpush.bf16.msra.mxu0 %v3589
    %3776 = vmatmul.bf16.gmra.mxu0 %v3322
    %v3777 = vpop.f32.mrf.mxu0
    %v3778 = vadd.f32 %v3393, %v3777
    %v3779 = vpop.f32.mrf.mxu0
    %3780 = vdwg.mxu0
    %3781 = vmatpush.bf16.msra.mxu0 %v3619
    %3782 = vmatpush.bf16.msra.mxu0 %v3617
    %3783 = vmatpush.bf16.msra.mxu0 %v3615
    %3784 = vmatpush.bf16.msra.mxu0 %v3613
    %3785 = vmatpush.bf16.msra.mxu0 %v3611
    %3786 = vmatpush.bf16.msra.mxu0 %v3609
    %3787 = vmatpush.bf16.msra.mxu0 %v3607
    %3788 = vmatpush.bf16.msra.mxu0 %v3605
    %3789 = vmatmul.bf16.gmra.mxu0 %v3323
    %v3790 = vpop.f32.mrf.mxu0
    %v3791 = vadd.f32 %v3778, %v3790
    %v3792 = vpop.f32.mrf.mxu0
    %3793 = vdwg.mxu0
    %3794 = vmatpush.bf16.msra.mxu0 %v3635
    %3795 = vmatpush.bf16.msra.mxu0 %v3633
    %3796 = vmatpush.bf16.msra.mxu0 %v3631
    %3797 = vmatpush.bf16.msra.mxu0 %v3629
    %3798 = vmatpush.bf16.msra.mxu0 %v3627
    %3799 = vmatpush.bf16.msra.mxu0 %v3625
    %3800 = vmatpush.bf16.msra.mxu0 %v3623
    %3801 = vmatpush.bf16.msra.mxu0 %v3621
    %3802 = vmatmul.bf16.gmra.mxu0 %v3324
    %v3803 = vpop.f32.mrf.mxu0
    %v3804 = vadd.f32 %v3791, %v3803
    %v3805 = vpop.f32.mrf.mxu0
    %3806 = vdwg.mxu0
    %3807 = vmatpush.bf16.msra.mxu0 %v3651
    %3808 = vmatpush.bf16.msra.mxu0 %v3649
    %3809 = vmatpush.bf16.msra.mxu0 %v3647
    %3810 = vmatpush.bf16.msra.mxu0 %v3645
    %3811 = vmatpush.bf16.msra.mxu0 %v3643
    %3812 = vmatpush.bf16.msra.mxu0 %v3641
    %3813 = vmatpush.bf16.msra.mxu0 %v3639
    %3814 = vmatpush.bf16.msra.mxu0 %v3637
    %3815 = vmatmul.bf16.gmra.mxu0 %v3325
    %v3816 = vpop.f32.mrf.mxu0
    %v3817 = vadd.f32 %v3804, %v3816
    %v3818 = vpop.f32.mrf.mxu0
    %3819 = vdwg.mxu0
    %v3820 = vmax.f32 %v3765, 0.0
    %v3821 = vmax.f32 %v3817, 0.0
    %v3822 = vpack.c.bf16 %v3820, %v3820
    %v3823 = vpack.c.bf16 %v3821, %v3821
    %v3824 = vld [vmem:[#allocation10] sm:$0xf]
    %v3825 = vld [vmem:[#allocation10 + $0x4] sm:$0xf]
    %v3826 = vld [vmem:[#allocation10 + $0x8] sm:$0xf]
    %v3827 = vld [vmem:[#allocation10 + $0xc] sm:$0xf]
    %v3828 = vld [vmem:[#allocation10 + $0x10] sm:$0xf]
    %v3829 = vld [vmem:[#allocation10 + $0x14] sm:$0xf]
    %v3830 = vld [vmem:[#allocation10 + $0x18] sm:$0xf]
    %v3831 = vld [vmem:[#allocation10 + $0x1c] sm:$0xf]
    %v3832 = vld [vmem:[#allocation10 + $0x20] sm:$0xf]
    %v3833 = vld [vmem:[#allocation10 + $0x24] sm:$0xf]
    %v3834 = vld [vmem:[#allocation10 + $0x28] sm:$0xf]
    %v3835 = vld [vmem:[#allocation10 + $0x2c] sm:$0xf]
    %v3836 = vld [vmem:[#allocation10 + $0x30] sm:$0xf]
    %v3837 = vld [vmem:[#allocation10 + $0x34] sm:$0xf]
    %v3838 = vld [vmem:[#allocation10 + $0x38] sm:$0xf]
    %v3839 = vld [vmem:[#allocation10 + $0x3c] sm:$0xf]
    %v3840 = vld [vmem:[#allocation10 + $0x40] sm:$0xf]
    %v3841 = vld [vmem:[#allocation10 + $0x44] sm:$0xf]
    %v3842 = vld [vmem:[#allocation10 + $0x48] sm:$0xf]
    %v3843 = vld [vmem:[#allocation10 + $0x4c] sm:$0xf]
    %v3844 = vld [vmem:[#allocation10 + $0x50] sm:$0xf]
    %v3845 = vld [vmem:[#allocation10 + $0x54] sm:$0xf]
    %v3846 = vld [vmem:[#allocation10 + $0x58] sm:$0xf]
    %v3847 = vld [vmem:[#allocation10 + $0x5c] sm:$0xf]
    %v3848 = vld [vmem:[#allocation10 + $0x60] sm:$0xf]
    %v3849 = vld [vmem:[#allocation10 + $0x64] sm:$0xf]
    %v3850 = vld [vmem:[#allocation10 + $0x68] sm:$0xf]
    %v3851 = vld [vmem:[#allocation10 + $0x6c] sm:$0xf]
    %v3852 = vld [vmem:[#allocation10 + $0x70] sm:$0xf]
    %v3853 = vld [vmem:[#allocation10 + $0x74] sm:$0xf]
    %v3854 = vld [vmem:[#allocation10 + $0x78] sm:$0xf]
    %v3855 = vld [vmem:[#allocation10 + $0x7c] sm:$0xf]
    %v3856 = vld [vmem:[#allocation11] sm:$0x1]
    %v3858 = vperm.slane %v3856, 0
    %v3892 = vunpack.c.l.b16 %v3824
    %v3893 = vunpack.c.l.b16 %v3825
    %v3894 = vunpack.c.l.b16 %v3826
    %v3895 = vunpack.c.l.b16 %v3827
    %v3896 = vunpack.c.l.b16 %v3828
    %v3897 = vunpack.c.l.b16 %v3829
    %v3898 = vunpack.c.l.b16 %v3830
    %v3899 = vunpack.c.l.b16 %v3831
    %v3900 = vunpack.c.l.b16 %v3832
    %v3901 = vunpack.c.l.b16 %v3833
    %v3902 = vunpack.c.l.b16 %v3834
    %v3903 = vunpack.c.l.b16 %v3835
    %v3904 = vunpack.c.l.b16 %v3836
    %v3905 = vunpack.c.l.b16 %v3837
    %v3906 = vunpack.c.l.b16 %v3838
    %v3907 = vunpack.c.l.b16 %v3839
    %v3908 = vunpack.c.l.b16 %v3840
    %v3909 = vunpack.c.l.b16 %v3841
    %v3910 = vunpack.c.l.b16 %v3842
    %v3911 = vunpack.c.l.b16 %v3843
    %v3912 = vunpack.c.l.b16 %v3844
    %v3913 = vunpack.c.l.b16 %v3845
    %v3914 = vunpack.c.l.b16 %v3846
    %v3915 = vunpack.c.l.b16 %v3847
    %v3916 = vunpack.c.l.b16 %v3848
    %v3917 = vunpack.c.l.b16 %v3849
    %v3918 = vunpack.c.l.b16 %v3850
    %v3919 = vunpack.c.l.b16 %v3851
    %v3920 = vunpack.c.l.b16 %v3852
    %v3921 = vunpack.c.l.b16 %v3853
    %v3922 = vunpack.c.l.b16 %v3854
    %v3923 = vunpack.c.l.b16 %v3855
    %v3924 = vpack.c.b16 %v3893, %v3892
    %v3925 = vpack.c.b16 %v3895, %v3894
    %v3926 = vpack.c.b16 %v3897, %v3896
    %v3927 = vpack.c.b16 %v3899, %v3898
    %v3928 = vpack.c.b16 %v3901, %v3900
    %v3929 = vpack.c.b16 %v3903, %v3902
    %v3930 = vpack.c.b16 %v3905, %v3904
    %v3931 = vpack.c.b16 %v3907, %v3906
    %v3932 = vpack.c.b16 %v3909, %v3908
    %v3933 = vpack.c.b16 %v3911, %v3910
    %v3934 = vpack.c.b16 %v3913, %v3912
    %v3935 = vpack.c.b16 %v3915, %v3914
    %v3936 = vpack.c.b16 %v3917, %v3916
    %v3937 = vpack.c.b16 %v3919, %v3918
    %v3938 = vpack.c.b16 %v3921, %v3920
    %v3939 = vpack.c.b16 %v3923, %v3922
    %3956 = vmatpush.bf16.msra.mxu0 %v3931
    %3957 = vmatpush.bf16.msra.mxu0 %v3930
    %3958 = vmatpush.bf16.msra.mxu0 %v3929
    %3959 = vmatpush.bf16.msra.mxu0 %v3928
    %3960 = vmatpush.bf16.msra.mxu0 %v3927
    %3961 = vmatpush.bf16.msra.mxu0 %v3926
    %3962 = vmatpush.bf16.msra.mxu0 %v3925
    %3963 = vmatpush.bf16.msra.mxu0 %v3924
    %3964 = vmatmul.bf16.gmra.mxu0 %v3822
    %v3965 = vpop.f32.mrf.mxu0
    %v3966 = vadd.f32 %v3858, %v3965
    %v3967 = vpop.f32.mrf.mxu0
    %3968 = vdwg.mxu0
    %3969 = vmatpush.bf16.msra.mxu0 %v3939
    %3970 = vmatpush.bf16.msra.mxu0 %v3938
    %3971 = vmatpush.bf16.msra.mxu0 %v3937
    %3972 = vmatpush.bf16.msra.mxu0 %v3936
    %3973 = vmatpush.bf16.msra.mxu0 %v3935
    %3974 = vmatpush.bf16.msra.mxu0 %v3934
    %3975 = vmatpush.bf16.msra.mxu0 %v3933
    %3976 = vmatpush.bf16.msra.mxu0 %v3932
    %3977 = vmatmul.bf16.gmra.mxu0 %v3823
    %v3978 = vpop.f32.mrf.mxu0
    %v3979 = vadd.f32 %v3966, %v3978
    %v3980 = vpop.f32.mrf.mxu0
    %3981 = vdwg.mxu0
    %v3982 = vmax.f32 %v3979, 0.0
    %v3983 = vpack.c.bf16 %v3982, %v3982
    %v3984 = vld [vmem:[%s7] sm:$0xf]
    %v3985 = vld [vmem:[%s7 + $0x4] sm:$0xf]
    %v3986 = vld [vmem:[%s7 + $0x8] sm:$0xf]
    %v3987 = vld [vmem:[%s7 + $0xc] sm:$0xf]
    %v3988 = vld [vmem:[%s7 + $0x10] sm:$0xf]
    %v3989 = vld [vmem:[%s7 + $0x14] sm:$0xf]
    %v3990 = vld [vmem:[%s7 + $0x18] sm:$0xf]
    %v3991 = vld [vmem:[%s7 + $0x1c] sm:$0xf]
    %v3992 = vld [vmem:[%s7 + $0x20] sm:$0xf]
    %v3993 = vld [vmem:[%s7 + $0x24] sm:$0xf]
    %v3994 = vld [vmem:[%s7 + $0x28] sm:$0xf]
    %v3995 = vld [vmem:[%s7 + $0x2c] sm:$0xf]
    %v3996 = vld [vmem:[%s7 + $0x30] sm:$0xf]
    %v3997 = vld [vmem:[%s7 + $0x34] sm:$0xf]
    %v3998 = vld [vmem:[%s7 + $0x38] sm:$0xf]
    %v3999 = vld [vmem:[%s7 + $0x3c] sm:$0xf]
    %v4000 = vld [vmem:[#allocation13] sm:$0x1]
    %v4002 = vperm.slane %v4000, 0
    %v4020 = vunpack.c.l.b16 %v3984
    %v4021 = vunpack.c.l.b16 %v3985
    %v4022 = vunpack.c.l.b16 %v3986
    %v4023 = vunpack.c.l.b16 %v3987
    %v4024 = vunpack.c.l.b16 %v3988
    %v4025 = vunpack.c.l.b16 %v3989
    %v4026 = vunpack.c.l.b16 %v3990
    %v4027 = vunpack.c.l.b16 %v3991
    %v4028 = vunpack.c.l.b16 %v3992
    %v4029 = vunpack.c.l.b16 %v3993
    %v4030 = vunpack.c.l.b16 %v3994
    %v4031 = vunpack.c.l.b16 %v3995
    %v4032 = vunpack.c.l.b16 %v3996
    %v4033 = vunpack.c.l.b16 %v3997
    %v4034 = vunpack.c.l.b16 %v3998
    %v4035 = vunpack.c.l.b16 %v3999
    %v4036 = vpack.c.b16 %v4021, %v4020
    %v4037 = vpack.c.b16 %v4023, %v4022
    %v4038 = vpack.c.b16 %v4025, %v4024
    %v4039 = vpack.c.b16 %v4027, %v4026
    %v4040 = vpack.c.b16 %v4029, %v4028
    %v4041 = vpack.c.b16 %v4031, %v4030
    %v4042 = vpack.c.b16 %v4033, %v4032
    %v4043 = vpack.c.b16 %v4035, %v4034
    %4052 = vmatpush.bf16.msra.mxu0 %v4043
    %4053 = vmatpush.bf16.msra.mxu0 %v4042
    %4054 = vmatpush.bf16.msra.mxu0 %v4041
    %4055 = vmatpush.bf16.msra.mxu0 %v4040
    %4056 = vmatpush.bf16.msra.mxu0 %v4039
    %4057 = vmatpush.bf16.msra.mxu0 %v4038
    %4058 = vmatpush.bf16.msra.mxu0 %v4037
    %4059 = vmatpush.bf16.msra.mxu0 %v4036
    %4060 = vmatmul.bf16.gmra.mxu0 %v3983
    %v4061 = vpop.f32.mrf.mxu0
    %v4062 = vadd.f32 %v4002, %v4061
    %v4063 = vpop.f32.mrf.mxu0
    %4064 = vdwg.mxu0
    %v4065 = vmax.f32 %v4062, 0.0
    %v4066 = vpack.c.bf16 %v4065, %v4065
    %v4067 = vld [vmem:[%s9] sm:$0xf]
    %v4068 = vld [vmem:[%s9 + $0x4] sm:$0xf]
    %v4069 = vld [vmem:[%s9 + $0x8] sm:$0xf]
    %v4070 = vld [vmem:[%s9 + $0xc] sm:$0xf]
    %v4071 = vld [vmem:[%s9 + $0x10] sm:$0xf]
    %v4072 = vld [vmem:[%s9 + $0x14] sm:$0xf]
    %v4073 = vld [vmem:[%s9 + $0x18] sm:$0xf]
    %v4074 = vld [vmem:[%s9 + $0x1c] sm:$0xf]
    %v4075 = vld [vmem:[#allocation14] sm:$0x1]
    %v4077 = vperm.slane %v4075, 0
    %v4087 = vunpack.c.l.b16 %v4067
    %v4088 = vunpack.c.l.b16 %v4068
    %v4089 = vunpack.c.l.b16 %v4069
    %v4090 = vunpack.c.l.b16 %v4070
    %v4091 = vunpack.c.l.b16 %v4071
    %v4092 = vunpack.c.l.b16 %v4072
    %v4093 = vunpack.c.l.b16 %v4073
    %v4094 = vunpack.c.l.b16 %v4074
    %v4095 = vpack.c.b16 %v4088, %v4087
    %v4096 = vpack.c.b16 %v4090, %v4089
    %v4097 = vpack.c.b16 %v4092, %v4091
    %v4098 = vpack.c.b16 %v4094, %v4093
    %vm4103 = vcmask 523264
    %v4105 = vsel %vm4103, %v4066, 0
    %4107 = vmatpush.bf16.msra.mxu0 0
    %4108 = vmatpush.bf16.msra.mxu0 0
    %4109 = vmatpush.bf16.msra.mxu0 0
    %4110 = vmatpush.bf16.msra.mxu0 0
    %4111 = vmatpush.bf16.msra.mxu0 %v4098
    %4112 = vmatpush.bf16.msra.mxu0 %v4097
    %4113 = vmatpush.bf16.msra.mxu0 %v4096
    %4114 = vmatpush.bf16.msra.mxu0 %v4095
    %4115 = vmatmul.bf16.gmra.mxu0 %v4105
    %v4116 = vpop.f32.mrf.mxu0
    %v4117 = vadd.f32 %v4077, %v4116
    %v4118 = vpop.f32.mrf.mxu0
    %4119 = vdwg.mxu0
    %v4120 = vmax.f32 %v4117, 0.0
    %vm4121 = vcmask 261120
    %v4122 = vsel %vm4121, %v4120, -inf
    %4123 = vmax.xlane.f32.xlu0 %v4122
    %v4124 = vpop.xlane.xlu0 %4123
    %v4125 = vsub.f32 %v4120, %v4124
    %v4126 = vmul.f32 %v4125, 1.442695
    %v4127 = vpow.pop %v4126
    %v4128 = vsel %vm4121, %v4127, 0.0
    %4129 = vadd.xlane.f32.xlu0 %v4128
    %v4130 = vpop.xlane.xlu0 %4129
    %v4131 = vlog2.pop %v4130
    %v4132 = vmul.f32 %v4131, 0.6931472
    %v4133 = vsub.f32 %v4125, %v4132
    %v4134 = vsel %vm4121, %v4133, 0.0
    %4135 = vst [vmem:[#allocation31] sm:$0xff] %v4134
    %v4136 = vpack.c.bf16 %v4120, %v4120
    %v4137 = vld [vmem:[#allocation16] sm:$0xf]
    %v4138 = vld [vmem:[#allocation16 + $0x4] sm:$0xf]
    %v4139 = vld [vmem:[#allocation16 + $0x8] sm:$0xf]
    %v4140 = vld [vmem:[#allocation16 + $0xc] sm:$0xf]
    %v4141 = vld [vmem:[#allocation17] sm:$0x1]
    %v4143 = vperm.slane %v4141, 0
    %v4149 = vunpack.c.l.b16 %v4137
    %v4150 = vunpack.c.l.b16 %v4138
    %v4151 = vunpack.c.l.b16 %v4139
    %v4152 = vunpack.c.l.b16 %v4140
    %v4153 = vpack.c.b16 %v4150, %v4149
    %v4154 = vpack.c.b16 %v4152, %v4151
    %v4158 = vsel %vm4121, %v4136, 0
    %4160 = vmatpush.bf16.msra.mxu0 0
    %4161 = vmatpush.bf16.msra.mxu0 0
    %4162 = vmatpush.bf16.msra.mxu0 0
    %4163 = vmatpush.bf16.msra.mxu0 0
    %4164 = vmatpush.bf16.msra.mxu0 0
    %4165 = vmatpush.bf16.msra.mxu0 0
    %4166 = vmatpush.bf16.msra.mxu0 %v4154
    %4167 = vmatpush.bf16.msra.mxu0 %v4153
    %4168 = vmatmul.bf16.gmra.mxu0 %v4158
    %v4169 = vpop.f32.mrf.mxu0
    %v4170 = vadd.f32 %v4143, %v4169
    %v4171 = vpop.f32.mrf.mxu0
    %4172 = vdwg.mxu0
    %v4173 = vmax.f32 %v4170, 0.0
    %v4174 = vpack.c.bf16 %v4173, %v4173
    %v4175 = vld [vmem:[#allocation19] sm:$0xf]
    %v4176 = vld [vmem:[#allocation19 + $0x4] sm:$0xf]
    %v4177 = vld [vmem:[#allocation19 + $0x8] sm:$0xf]
    %v4178 = vld [vmem:[#allocation19 + $0xc] sm:$0xf]
    %v4179 = vld [vmem:[#allocation19 + $0x10] sm:$0xf]
    %v4180 = vld [vmem:[#allocation19 + $0x14] sm:$0xf]
    %v4181 = vld [vmem:[#allocation19 + $0x18] sm:$0xf]
    %v4182 = vld [vmem:[#allocation19 + $0x1c] sm:$0xf]
    %v4183 = vld [vmem:[#allocation20] sm:$0x1]
    %v4185 = vperm.slane %v4183, 0
    %v4195 = vunpack.c.l.b16 %v4175
    %v4196 = vunpack.c.l.b16 %v4176
    %v4197 = vunpack.c.l.b16 %v4177
    %v4198 = vunpack.c.l.b16 %v4178
    %v4199 = vunpack.c.l.b16 %v4179
    %v4200 = vunpack.c.l.b16 %v4180
    %v4201 = vunpack.c.l.b16 %v4181
    %v4202 = vunpack.c.l.b16 %v4182
    %v4203 = vpack.c.b16 %v4196, %v4195
    %v4204 = vpack.c.b16 %v4198, %v4197
    %v4205 = vpack.c.b16 %v4200, %v4199
    %v4206 = vpack.c.b16 %v4202, %v4201
    %v4212 = vsel %vm4103, %v4174, 0
    %4214 = vmatpush.bf16.msra.mxu0 0
    %4215 = vmatpush.bf16.msra.mxu0 0
    %4216 = vmatpush.bf16.msra.mxu0 0
    %4217 = vmatpush.bf16.msra.mxu0 0
    %4218 = vmatpush.bf16.msra.mxu0 %v4206
    %4219 = vmatpush.bf16.msra.mxu0 %v4205
    %4220 = vmatpush.bf16.msra.mxu0 %v4204
    %4221 = vmatpush.bf16.msra.mxu0 %v4203
    %4222 = vmatmul.bf16.gmra.mxu0 %v4212
    %v4223 = vpop.f32.mrf.mxu0
    %v4224 = vadd.f32 %v4185, %v4223
    %v4225 = vpop.f32.mrf.mxu0
    %4226 = vdwg.mxu0
    %v4227 = vmax.f32 %v4224, 0.0
    %v4228 = vpack.c.bf16 %v4227, %v4227
    %v4229 = vld [vmem:[#allocation22] sm:$0xff]
    %v4230 = vld [vmem:[#allocation22 + $0x8] sm:$0xff]
    %v4231 = vld [vmem:[#allocation22 + $0x10] sm:$0xff]
    %v4232 = vld [vmem:[#allocation22 + $0x18] sm:$0xff]
    %v4233 = vld [vmem:[#allocation22 + $0x20] sm:$0xff]
    %v4234 = vld [vmem:[#allocation22 + $0x28] sm:$0xff]
    %v4235 = vld [vmem:[#allocation22 + $0x30] sm:$0xff]
    %v4236 = vld [vmem:[#allocation22 + $0x38] sm:$0xff]
    %v4237 = vld [vmem:[#allocation22 + $0x40] sm:$0xff]
    %v4238 = vld [vmem:[#allocation22 + $0x48] sm:$0xff]
    %v4239 = vld [vmem:[#allocation22 + $0x50] sm:$0xff]
    %v4240 = vld [vmem:[#allocation22 + $0x58] sm:$0xff]
    %v4241 = vld [vmem:[#allocation22 + $0x60] sm:$0xff]
    %v4242 = vld [vmem:[#allocation22 + $0x68] sm:$0xff]
    %v4243 = vld [vmem:[#allocation22 + $0x70] sm:$0xff]
    %v4244 = vld [vmem:[#allocation22 + $0x78] sm:$0xff]
    %v4245 = vld [vmem:[#allocation23] sm:$0x3]
    %v4247 = vperm.slane %v4245, 0
    %v4248 = vperm.slane %v4245, 1
    %v4267 = vunpack.c.l.b16 %v4229
    %v4268 = vunpack.c.h.b16 %v4229
    %v4269 = vunpack.c.l.b16 %v4230
    %v4270 = vunpack.c.h.b16 %v4230
    %v4271 = vunpack.c.l.b16 %v4231
    %v4272 = vunpack.c.h.b16 %v4231
    %v4273 = vunpack.c.l.b16 %v4232
    %v4274 = vunpack.c.h.b16 %v4232
    %v4275 = vunpack.c.l.b16 %v4233
    %v4276 = vunpack.c.h.b16 %v4233
    %v4277 = vunpack.c.l.b16 %v4234
    %v4278 = vunpack.c.h.b16 %v4234
    %v4279 = vunpack.c.l.b16 %v4235
    %v4280 = vunpack.c.h.b16 %v4235
    %v4281 = vunpack.c.l.b16 %v4236
    %v4282 = vunpack.c.h.b16 %v4236
    %v4283 = vunpack.c.l.b16 %v4237
    %v4284 = vunpack.c.h.b16 %v4237
    %v4285 = vunpack.c.l.b16 %v4238
    %v4286 = vunpack.c.h.b16 %v4238
    %v4287 = vunpack.c.l.b16 %v4239
    %v4288 = vunpack.c.h.b16 %v4239
    %v4289 = vunpack.c.l.b16 %v4240
    %v4290 = vunpack.c.h.b16 %v4240
    %v4291 = vunpack.c.l.b16 %v4241
    %v4292 = vunpack.c.h.b16 %v4241
    %v4293 = vunpack.c.l.b16 %v4242
    %v4294 = vunpack.c.h.b16 %v4242
    %v4295 = vunpack.c.l.b16 %v4243
    %v4296 = vunpack.c.h.b16 %v4243
    %v4297 = vunpack.c.l.b16 %v4244
    %v4298 = vunpack.c.h.b16 %v4244
    %v4299 = vpack.c.b16 %v4269, %v4267
    %v4300 = vpack.c.b16 %v4270, %v4268
    %v4301 = vpack.c.b16 %v4273, %v4271
    %v4302 = vpack.c.b16 %v4274, %v4272
    %v4303 = vpack.c.b16 %v4277, %v4275
    %v4304 = vpack.c.b16 %v4278, %v4276
    %v4305 = vpack.c.b16 %v4281, %v4279
    %v4306 = vpack.c.b16 %v4282, %v4280
    %v4307 = vpack.c.b16 %v4285, %v4283
    %v4308 = vpack.c.b16 %v4286, %v4284
    %v4309 = vpack.c.b16 %v4289, %v4287
    %v4310 = vpack.c.b16 %v4290, %v4288
    %v4311 = vpack.c.b16 %v4293, %v4291
    %v4312 = vpack.c.b16 %v4294, %v4292
    %v4313 = vpack.c.b16 %v4297, %v4295
    %v4314 = vpack.c.b16 %v4298, %v4296
    %4331 = vmatpush.bf16.msra.mxu0 %v4313
    %4332 = vmatpush.bf16.msra.mxu0 %v4311
    %4333 = vmatpush.bf16.msra.mxu0 %v4309
    %4334 = vmatpush.bf16.msra.mxu0 %v4307
    %4335 = vmatpush.bf16.msra.mxu0 %v4305
    %4336 = vmatpush.bf16.msra.mxu0 %v4303
    %4337 = vmatpush.bf16.msra.mxu0 %v4301
    %4338 = vmatpush.bf16.msra.mxu0 %v4299
    %4339 = vmatmul.bf16.gmra.mxu0 %v4228
    %v4340 = vpop.f32.mrf.mxu0
    %v4341 = vadd.f32 %v4247, %v4340
    %v4342 = vpop.f32.mrf.mxu0
    %4343 = vdwg.mxu0
    %4344 = vmatpush.bf16.msra.mxu0 %v4314
    %4345 = vmatpush.bf16.msra.mxu0 %v4312
    %4346 = vmatpush.bf16.msra.mxu0 %v4310
    %4347 = vmatpush.bf16.msra.mxu0 %v4308
    %4348 = vmatpush.bf16.msra.mxu0 %v4306
    %4349 = vmatpush.bf16.msra.mxu0 %v4304
    %4350 = vmatpush.bf16.msra.mxu0 %v4302
    %4351 = vmatpush.bf16.msra.mxu0 %v4300
    %4352 = vmatmul.bf16.gmra.mxu0 %v4228
    %v4353 = vpop.f32.mrf.mxu0
    %v4354 = vadd.f32 %v4248, %v4353
    %v4355 = vpop.f32.mrf.mxu0
    %4356 = vdwg.mxu0
    %v4357 = vmax.f32 %v4341, 0.0
    %v4358 = vmax.f32 %v4354, 0.0
    %v4359 = vpack.c.bf16 %v4357, %v4357
    %v4360 = vpack.c.bf16 %v4358, %v4358
    %v4361 = vld [vmem:[#allocation25] sm:$0xff]
    %v4362 = vld [vmem:[#allocation25 + $0x8] sm:$0xff]
    %v4363 = vld [vmem:[#allocation25 + $0x10] sm:$0xff]
    %v4364 = vld [vmem:[#allocation25 + $0x18] sm:$0xff]
    %v4365 = vld [vmem:[#allocation25 + $0x20] sm:$0xff]
    %v4366 = vld [vmem:[#allocation25 + $0x28] sm:$0xff]
    %v4367 = vld [vmem:[#allocation25 + $0x30] sm:$0xff]
    %v4368 = vld [vmem:[#allocation25 + $0x38] sm:$0xff]
    %v4369 = vld [vmem:[#allocation25 + $0x40] sm:$0xff]
    %v4370 = vld [vmem:[#allocation25 + $0x48] sm:$0xff]
    %v4371 = vld [vmem:[#allocation25 + $0x50] sm:$0xff]
    %v4372 = vld [vmem:[#allocation25 + $0x58] sm:$0xff]
    %v4373 = vld [vmem:[#allocation25 + $0x60] sm:$0xff]
    %v4374 = vld [vmem:[#allocation25 + $0x68] sm:$0xff]
    %v4375 = vld [vmem:[#allocation25 + $0x70] sm:$0xff]
    %v4376 = vld [vmem:[#allocation25 + $0x78] sm:$0xff]
    %v4377 = vld [vmem:[#allocation25 + $0x80] sm:$0xff]
    %v4378 = vld [vmem:[#allocation25 + $0x88] sm:$0xff]
    %v4379 = vld [vmem:[#allocation25 + $0x90] sm:$0xff]
    %v4380 = vld [vmem:[#allocation25 + $0x98] sm:$0xff]
    %v4381 = vld [vmem:[#allocation25 + $0xa0] sm:$0xff]
    %v4382 = vld [vmem:[#allocation25 + $0xa8] sm:$0xff]
    %v4383 = vld [vmem:[#allocation25 + $0xb0] sm:$0xff]
    %v4384 = vld [vmem:[#allocation25 + $0xb8] sm:$0xff]
    %v4385 = vld [vmem:[#allocation25 + $0xc0] sm:$0xff]
    %v4386 = vld [vmem:[#allocation25 + $0xc8] sm:$0xff]
    %v4387 = vld [vmem:[#allocation25 + $0xd0] sm:$0xff]
    %v4388 = vld [vmem:[#allocation25 + $0xd8] sm:$0xff]
    %v4389 = vld [vmem:[#allocation25 + $0xe0] sm:$0xff]
    %v4390 = vld [vmem:[#allocation25 + $0xe8] sm:$0xff]
    %v4391 = vld [vmem:[#allocation25 + $0xf0] sm:$0xff]
    %v4392 = vld [vmem:[#allocation25 + $0xf8] sm:$0xff]
    %v4393 = vld [vmem:[#allocation25 + $0x100] sm:$0xff]
    %v4394 = vld [vmem:[#allocation25 + $0x108] sm:$0xff]
    %v4395 = vld [vmem:[#allocation25 + $0x110] sm:$0xff]
    %v4396 = vld [vmem:[#allocation25 + $0x118] sm:$0xff]
    %v4397 = vld [vmem:[#allocation25 + $0x120] sm:$0xff]
    %v4398 = vld [vmem:[#allocation25 + $0x128] sm:$0xff]
    %v4399 = vld [vmem:[#allocation25 + $0x130] sm:$0xff]
    %v4400 = vld [vmem:[#allocation25 + $0x138] sm:$0xff]
    %v4401 = vld [vmem:[#allocation25 + $0x140] sm:$0xff]
    %v4402 = vld [vmem:[#allocation25 + $0x148] sm:$0xff]
    %v4403 = vld [vmem:[#allocation25 + $0x150] sm:$0xff]
    %v4404 = vld [vmem:[#allocation25 + $0x158] sm:$0xff]
    %v4405 = vld [vmem:[#allocation25 + $0x160] sm:$0xff]
    %v4406 = vld [vmem:[#allocation25 + $0x168] sm:$0xff]
    %v4407 = vld [vmem:[#allocation25 + $0x170] sm:$0xff]
    %v4408 = vld [vmem:[#allocation25 + $0x178] sm:$0xff]
    %v4409 = vld [vmem:[#allocation25 + $0x180] sm:$0xff]
    %v4410 = vld [vmem:[#allocation25 + $0x188] sm:$0xff]
    %v4411 = vld [vmem:[#allocation25 + $0x190] sm:$0xff]
    %v4412 = vld [vmem:[#allocation25 + $0x198] sm:$0xff]
    %v4413 = vld [vmem:[#allocation25 + $0x1a0] sm:$0xff]
    %v4414 = vld [vmem:[#allocation25 + $0x1a8] sm:$0xff]
    %v4415 = vld [vmem:[#allocation25 + $0x1b0] sm:$0xff]
    %v4416 = vld [vmem:[#allocation25 + $0x1b8] sm:$0xff]
    %v4417 = vld [vmem:[#allocation25 + $0x1c0] sm:$0xff]
    %v4418 = vld [vmem:[#allocation25 + $0x1c8] sm:$0xff]
    %v4419 = vld [vmem:[#allocation25 + $0x1d0] sm:$0xff]
    %v4420 = vld [vmem:[#allocation25 + $0x1d8] sm:$0xff]
    %v4421 = vld [vmem:[#allocation25 + $0x1e0] sm:$0xff]
    %v4422 = vld [vmem:[#allocation25 + $0x1e8] sm:$0xff]
    %v4423 = vld [vmem:[#allocation25 + $0x1f0] sm:$0xff]
    %v4424 = vld [vmem:[#allocation25 + $0x1f8] sm:$0xff]
    %v4425 = vld [vmem:[#allocation26] sm:$0xf]
    %v4427 = vperm.slane %v4425, 0
    %v4428 = vperm.slane %v4425, 1
    %v4429 = vperm.slane %v4425, 2
    %v4430 = vperm.slane %v4425, 3
    %v4499 = vunpack.c.l.b16 %v4361
    %v4500 = vunpack.c.h.b16 %v4361
    %v4501 = vunpack.c.l.b16 %v4362
    %v4502 = vunpack.c.h.b16 %v4362
    %v4503 = vunpack.c.l.b16 %v4363
    %v4504 = vunpack.c.h.b16 %v4363
    %v4505 = vunpack.c.l.b16 %v4364
    %v4506 = vunpack.c.h.b16 %v4364
    %v4507 = vunpack.c.l.b16 %v4365
    %v4508 = vunpack.c.h.b16 %v4365
    %v4509 = vunpack.c.l.b16 %v4366
    %v4510 = vunpack.c.h.b16 %v4366
    %v4511 = vunpack.c.l.b16 %v4367
    %v4512 = vunpack.c.h.b16 %v4367
    %v4513 = vunpack.c.l.b16 %v4368
    %v4514 = vunpack.c.h.b16 %v4368
    %v4515 = vunpack.c.l.b16 %v4369
    %v4516 = vunpack.c.h.b16 %v4369
    %v4517 = vunpack.c.l.b16 %v4370
    %v4518 = vunpack.c.h.b16 %v4370
    %v4519 = vunpack.c.l.b16 %v4371
    %v4520 = vunpack.c.h.b16 %v4371
    %v4521 = vunpack.c.l.b16 %v4372
    %v4522 = vunpack.c.h.b16 %v4372
    %v4523 = vunpack.c.l.b16 %v4373
    %v4524 = vunpack.c.h.b16 %v4373
    %v4525 = vunpack.c.l.b16 %v4374
    %v4526 = vunpack.c.h.b16 %v4374
    %v4527 = vunpack.c.l.b16 %v4375
    %v4528 = vunpack.c.h.b16 %v4375
    %v4529 = vunpack.c.l.b16 %v4376
    %v4530 = vunpack.c.h.b16 %v4376
    %v4531 = vunpack.c.l.b16 %v4377
    %v4532 = vunpack.c.h.b16 %v4377
    %v4533 = vunpack.c.l.b16 %v4378
    %v4534 = vunpack.c.h.b16 %v4378
    %v4535 = vunpack.c.l.b16 %v4379
    %v4536 = vunpack.c.h.b16 %v4379
    %v4537 = vunpack.c.l.b16 %v4380
    %v4538 = vunpack.c.h.b16 %v4380
    %v4539 = vunpack.c.l.b16 %v4381
    %v4540 = vunpack.c.h.b16 %v4381
    %v4541 = vunpack.c.l.b16 %v4382
    %v4542 = vunpack.c.h.b16 %v4382
    %v4543 = vunpack.c.l.b16 %v4383
    %v4544 = vunpack.c.h.b16 %v4383
    %v4545 = vunpack.c.l.b16 %v4384
    %v4546 = vunpack.c.h.b16 %v4384
    %v4547 = vunpack.c.l.b16 %v4385
    %v4548 = vunpack.c.h.b16 %v4385
    %v4549 = vunpack.c.l.b16 %v4386
    %v4550 = vunpack.c.h.b16 %v4386
    %v4551 = vunpack.c.l.b16 %v4387
    %v4552 = vunpack.c.h.b16 %v4387
    %v4553 = vunpack.c.l.b16 %v4388
    %v4554 = vunpack.c.h.b16 %v4388
    %v4555 = vunpack.c.l.b16 %v4389
    %v4556 = vunpack.c.h.b16 %v4389
    %v4557 = vunpack.c.l.b16 %v4390
    %v4558 = vunpack.c.h.b16 %v4390
    %v4559 = vunpack.c.l.b16 %v4391
    %v4560 = vunpack.c.h.b16 %v4391
    %v4561 = vunpack.c.l.b16 %v4392
    %v4562 = vunpack.c.h.b16 %v4392
    %v4563 = vunpack.c.l.b16 %v4393
    %v4564 = vunpack.c.h.b16 %v4393
    %v4565 = vunpack.c.l.b16 %v4394
    %v4566 = vunpack.c.h.b16 %v4394
    %v4567 = vunpack.c.l.b16 %v4395
    %v4568 = vunpack.c.h.b16 %v4395
    %v4569 = vunpack.c.l.b16 %v4396
    %v4570 = vunpack.c.h.b16 %v4396
    %v4571 = vunpack.c.l.b16 %v4397
    %v4572 = vunpack.c.h.b16 %v4397
    %v4573 = vunpack.c.l.b16 %v4398
    %v4574 = vunpack.c.h.b16 %v4398
    %v4575 = vunpack.c.l.b16 %v4399
    %v4576 = vunpack.c.h.b16 %v4399
    %v4577 = vunpack.c.l.b16 %v4400
    %v4578 = vunpack.c.h.b16 %v4400
    %v4579 = vunpack.c.l.b16 %v4401
    %v4580 = vunpack.c.h.b16 %v4401
    %v4581 = vunpack.c.l.b16 %v4402
    %v4582 = vunpack.c.h.b16 %v4402
    %v4583 = vunpack.c.l.b16 %v4403
    %v4584 = vunpack.c.h.b16 %v4403
    %v4585 = vunpack.c.l.b16 %v4404
    %v4586 = vunpack.c.h.b16 %v4404
    %v4587 = vunpack.c.l.b16 %v4405
    %v4588 = vunpack.c.h.b16 %v4405
    %v4589 = vunpack.c.l.b16 %v4406
    %v4590 = vunpack.c.h.b16 %v4406
    %v4591 = vunpack.c.l.b16 %v4407
    %v4592 = vunpack.c.h.b16 %v4407
    %v4593 = vunpack.c.l.b16 %v4408
    %v4594 = vunpack.c.h.b16 %v4408
    %v4595 = vunpack.c.l.b16 %v4409
    %v4596 = vunpack.c.h.b16 %v4409
    %v4597 = vunpack.c.l.b16 %v4410
    %v4598 = vunpack.c.h.b16 %v4410
    %v4599 = vunpack.c.l.b16 %v4411
    %v4600 = vunpack.c.h.b16 %v4411
    %v4601 = vunpack.c.l.b16 %v4412
    %v4602 = vunpack.c.h.b16 %v4412
    %v4603 = vunpack.c.l.b16 %v4413
    %v4604 = vunpack.c.h.b16 %v4413
    %v4605 = vunpack.c.l.b16 %v4414
    %v4606 = vunpack.c.h.b16 %v4414
    %v4607 = vunpack.c.l.b16 %v4415
    %v4608 = vunpack.c.h.b16 %v4415
    %v4609 = vunpack.c.l.b16 %v4416
    %v4610 = vunpack.c.h.b16 %v4416
    %v4611 = vunpack.c.l.b16 %v4417
    %v4612 = vunpack.c.h.b16 %v4417
    %v4613 = vunpack.c.l.b16 %v4418
    %v4614 = vunpack.c.h.b16 %v4418
    %v4615 = vunpack.c.l.b16 %v4419
    %v4616 = vunpack.c.h.b16 %v4419
    %v4617 = vunpack.c.l.b16 %v4420
    %v4618 = vunpack.c.h.b16 %v4420
    %v4619 = vunpack.c.l.b16 %v4421
    %v4620 = vunpack.c.h.b16 %v4421
    %v4621 = vunpack.c.l.b16 %v4422
    %v4622 = vunpack.c.h.b16 %v4422
    %v4623 = vunpack.c.l.b16 %v4423
    %v4624 = vunpack.c.h.b16 %v4423
    %v4625 = vunpack.c.l.b16 %v4424
    %v4626 = vunpack.c.h.b16 %v4424
    %v4627 = vpack.c.b16 %v4503, %v4499
    %v4628 = vpack.c.b16 %v4504, %v4500
    %v4629 = vpack.c.b16 %v4505, %v4501
    %v4630 = vpack.c.b16 %v4506, %v4502
    %v4631 = vpack.c.b16 %v4511, %v4507
    %v4632 = vpack.c.b16 %v4512, %v4508
    %v4633 = vpack.c.b16 %v4513, %v4509
    %v4634 = vpack.c.b16 %v4514, %v4510
    %v4635 = vpack.c.b16 %v4519, %v4515
    %v4636 = vpack.c.b16 %v4520, %v4516
    %v4637 = vpack.c.b16 %v4521, %v4517
    %v4638 = vpack.c.b16 %v4522, %v4518
    %v4639 = vpack.c.b16 %v4527, %v4523
    %v4640 = vpack.c.b16 %v4528, %v4524
    %v4641 = vpack.c.b16 %v4529, %v4525
    %v4642 = vpack.c.b16 %v4530, %v4526
    %v4643 = vpack.c.b16 %v4535, %v4531
    %v4644 = vpack.c.b16 %v4536, %v4532
    %v4645 = vpack.c.b16 %v4537, %v4533
    %v4646 = vpack.c.b16 %v4538, %v4534
    %v4647 = vpack.c.b16 %v4543, %v4539
    %v4648 = vpack.c.b16 %v4544, %v4540
    %v4649 = vpack.c.b16 %v4545, %v4541
    %v4650 = vpack.c.b16 %v4546, %v4542
    %v4651 = vpack.c.b16 %v4551, %v4547
    %v4652 = vpack.c.b16 %v4552, %v4548
    %v4653 = vpack.c.b16 %v4553, %v4549
    %v4654 = vpack.c.b16 %v4554, %v4550
    %v4655 = vpack.c.b16 %v4559, %v4555
    %v4656 = vpack.c.b16 %v4560, %v4556
    %v4657 = vpack.c.b16 %v4561, %v4557
    %v4658 = vpack.c.b16 %v4562, %v4558
    %v4659 = vpack.c.b16 %v4567, %v4563
    %v4660 = vpack.c.b16 %v4568, %v4564
    %v4661 = vpack.c.b16 %v4569, %v4565
    %v4662 = vpack.c.b16 %v4570, %v4566
    %v4663 = vpack.c.b16 %v4575, %v4571
    %v4664 = vpack.c.b16 %v4576, %v4572
    %v4665 = vpack.c.b16 %v4577, %v4573
    %v4666 = vpack.c.b16 %v4578, %v4574
    %v4667 = vpack.c.b16 %v4583, %v4579
    %v4668 = vpack.c.b16 %v4584, %v4580
    %v4669 = vpack.c.b16 %v4585, %v4581
    %v4670 = vpack.c.b16 %v4586, %v4582
    %v4671 = vpack.c.b16 %v4591, %v4587
    %v4672 = vpack.c.b16 %v4592, %v4588
    %v4673 = vpack.c.b16 %v4593, %v4589
    %v4674 = vpack.c.b16 %v4594, %v4590
    %v4675 = vpack.c.b16 %v4599, %v4595
    %v4676 = vpack.c.b16 %v4600, %v4596
    %v4677 = vpack.c.b16 %v4601, %v4597
    %v4678 = vpack.c.b16 %v4602, %v4598
    %v4679 = vpack.c.b16 %v4607, %v4603
    %v4680 = vpack.c.b16 %v4608, %v4604
    %v4681 = vpack.c.b16 %v4609, %v4605
    %v4682 = vpack.c.b16 %v4610, %v4606
    %v4683 = vpack.c.b16 %v4615, %v4611
    %v4684 = vpack.c.b16 %v4616, %v4612
    %v4685 = vpack.c.b16 %v4617, %v4613
    %v4686 = vpack.c.b16 %v4618, %v4614
    %v4687 = vpack.c.b16 %v4623, %v4619
    %v4688 = vpack.c.b16 %v4624, %v4620
    %v4689 = vpack.c.b16 %v4625, %v4621
    %v4690 = vpack.c.b16 %v4626, %v4622
    %4755 = vmatpush.bf16.msra.mxu0 %v4655
    %4756 = vmatpush.bf16.msra.mxu0 %v4651
    %4757 = vmatpush.bf16.msra.mxu0 %v4647
    %4758 = vmatpush.bf16.msra.mxu0 %v4643
    %4759 = vmatpush.bf16.msra.mxu0 %v4639
    %4760 = vmatpush.bf16.msra.mxu0 %v4635
    %4761 = vmatpush.bf16.msra.mxu0 %v4631
    %4762 = vmatpush.bf16.msra.mxu0 %v4627
    %4763 = vmatmul.bf16.gmra.mxu0 %v4359
    %v4764 = vpop.f32.mrf.mxu0
    %v4765 = vadd.f32 %v4427, %v4764
    %v4766 = vpop.f32.mrf.mxu0
    %4767 = vdwg.mxu0
    %4768 = vmatpush.bf16.msra.mxu0 %v4687
    %4769 = vmatpush.bf16.msra.mxu0 %v4683
    %4770 = vmatpush.bf16.msra.mxu0 %v4679
    %4771 = vmatpush.bf16.msra.mxu0 %v4675
    %4772 = vmatpush.bf16.msra.mxu0 %v4671
    %4773 = vmatpush.bf16.msra.mxu0 %v4667
    %4774 = vmatpush.bf16.msra.mxu0 %v4663
    %4775 = vmatpush.bf16.msra.mxu0 %v4659
    %4776 = vmatmul.bf16.gmra.mxu0 %v4360
    %v4777 = vpop.f32.mrf.mxu0
    %v4778 = vadd.f32 %v4765, %v4777
    %v4779 = vpop.f32.mrf.mxu0
    %4780 = vdwg.mxu0
    %4781 = vmatpush.bf16.msra.mxu0 %v4656
    %4782 = vmatpush.bf16.msra.mxu0 %v4652
    %4783 = vmatpush.bf16.msra.mxu0 %v4648
    %4784 = vmatpush.bf16.msra.mxu0 %v4644
    %4785 = vmatpush.bf16.msra.mxu0 %v4640
    %4786 = vmatpush.bf16.msra.mxu0 %v4636
    %4787 = vmatpush.bf16.msra.mxu0 %v4632
    %4788 = vmatpush.bf16.msra.mxu0 %v4628
    %4789 = vmatmul.bf16.gmra.mxu0 %v4359
    %v4790 = vpop.f32.mrf.mxu0
    %v4791 = vadd.f32 %v4428, %v4790
    %v4792 = vpop.f32.mrf.mxu0
    %4793 = vdwg.mxu0
    %4794 = vmatpush.bf16.msra.mxu0 %v4688
    %4795 = vmatpush.bf16.msra.mxu0 %v4684
    %4796 = vmatpush.bf16.msra.mxu0 %v4680
    %4797 = vmatpush.bf16.msra.mxu0 %v4676
    %4798 = vmatpush.bf16.msra.mxu0 %v4672
    %4799 = vmatpush.bf16.msra.mxu0 %v4668
    %4800 = vmatpush.bf16.msra.mxu0 %v4664
    %4801 = vmatpush.bf16.msra.mxu0 %v4660
    %4802 = vmatmul.bf16.gmra.mxu0 %v4360
    %v4803 = vpop.f32.mrf.mxu0
    %v4804 = vadd.f32 %v4791, %v4803
    %v4805 = vpop.f32.mrf.mxu0
    %4806 = vdwg.mxu0
    %4807 = vmatpush.bf16.msra.mxu0 %v4657
    %4808 = vmatpush.bf16.msra.mxu0 %v4653
    %4809 = vmatpush.bf16.msra.mxu0 %v4649
    %4810 = vmatpush.bf16.msra.mxu0 %v4645
    %4811 = vmatpush.bf16.msra.mxu0 %v4641
    %4812 = vmatpush.bf16.msra.mxu0 %v4637
    %4813 = vmatpush.bf16.msra.mxu0 %v4633
    %4814 = vmatpush.bf16.msra.mxu0 %v4629
    %4815 = vmatmul.bf16.gmra.mxu0 %v4359
    %v4816 = vpop.f32.mrf.mxu0
    %v4817 = vadd.f32 %v4429, %v4816
    %v4818 = vpop.f32.mrf.mxu0
    %4819 = vdwg.mxu0
    %4820 = vmatpush.bf16.msra.mxu0 %v4689
    %4821 = vmatpush.bf16.msra.mxu0 %v4685
    %4822 = vmatpush.bf16.msra.mxu0 %v4681
    %4823 = vmatpush.bf16.msra.mxu0 %v4677
    %4824 = vmatpush.bf16.msra.mxu0 %v4673
    %4825 = vmatpush.bf16.msra.mxu0 %v4669
    %4826 = vmatpush.bf16.msra.mxu0 %v4665
    %4827 = vmatpush.bf16.msra.mxu0 %v4661
    %4828 = vmatmul.bf16.gmra.mxu0 %v4360
    %v4829 = vpop.f32.mrf.mxu0
    %v4830 = vadd.f32 %v4817, %v4829
    %v4831 = vpop.f32.mrf.mxu0
    %4832 = vdwg.mxu0
    %4833 = vmatpush.bf16.msra.mxu0 %v4658
    %4834 = vmatpush.bf16.msra.mxu0 %v4654
    %4835 = vmatpush.bf16.msra.mxu0 %v4650
    %4836 = vmatpush.bf16.msra.mxu0 %v4646
    %4837 = vmatpush.bf16.msra.mxu0 %v4642
    %4838 = vmatpush.bf16.msra.mxu0 %v4638
    %4839 = vmatpush.bf16.msra.mxu0 %v4634
    %4840 = vmatpush.bf16.msra.mxu0 %v4630
    %4841 = vmatmul.bf16.gmra.mxu0 %v4359
    %v4842 = vpop.f32.mrf.mxu0
    %v4843 = vadd.f32 %v4430, %v4842
    %v4844 = vpop.f32.mrf.mxu0
    %4845 = vdwg.mxu0
    %4846 = vmatpush.bf16.msra.mxu0 %v4690
    %4847 = vmatpush.bf16.msra.mxu0 %v4686
    %4848 = vmatpush.bf16.msra.mxu0 %v4682
    %4849 = vmatpush.bf16.msra.mxu0 %v4678
    %4850 = vmatpush.bf16.msra.mxu0 %v4674
    %4851 = vmatpush.bf16.msra.mxu0 %v4670
    %4852 = vmatpush.bf16.msra.mxu0 %v4666
    %4853 = vmatpush.bf16.msra.mxu0 %v4662
    %4854 = vmatmul.bf16.gmra.mxu0 %v4360
    %v4855 = vpop.f32.mrf.mxu0
    %v4856 = vadd.f32 %v4843, %v4855
    %v4857 = vpop.f32.mrf.mxu0
    %4858 = vdwg.mxu0
    %v4859 = vmax.f32 %v4778, 0.0
    %v4860 = vmax.f32 %v4804, 0.0
    %v4861 = vmax.f32 %v4830, 0.0
    %v4862 = vmax.f32 %v4856, 0.0
    %v4863 = vpack.c.bf16 %v4859, %v4859
    %v4864 = vpack.c.bf16 %v4860, %v4860
    %v4865 = vpack.c.bf16 %v4861, %v4861
    %v4866 = vpack.c.bf16 %v4862, %v4862
    %v4867 = vld [vmem:[#allocation28] sm:$0xff]
    %v4868 = vld [vmem:[#allocation28 + $0x8] sm:$0xff]
    %v4869 = vld [vmem:[#allocation28 + $0x10] sm:$0xff]
    %v4870 = vld [vmem:[#allocation28 + $0x18] sm:$0xff]
    %v4871 = vld [vmem:[#allocation28 + $0x20] sm:$0xff]
    %v4872 = vld [vmem:[#allocation28 + $0x28] sm:$0xff]
    %v4873 = vld [vmem:[#allocation28 + $0x30] sm:$0xff]
    %v4874 = vld [vmem:[#allocation28 + $0x38] sm:$0xff]
    %v4875 = vld [vmem:[#allocation28 + $0x40] sm:$0xff]
    %v4876 = vld [vmem:[#allocation28 + $0x48] sm:$0xff]
    %v4877 = vld [vmem:[#allocation28 + $0x50] sm:$0xff]
    %v4878 = vld [vmem:[#allocation28 + $0x58] sm:$0xff]
    %v4879 = vld [vmem:[#allocation28 + $0x60] sm:$0xff]
    %v4880 = vld [vmem:[#allocation28 + $0x68] sm:$0xff]
    %v4881 = vld [vmem:[#allocation28 + $0x70] sm:$0xff]
    %v4882 = vld [vmem:[#allocation28 + $0x78] sm:$0xff]
    %v4883 = vld [vmem:[#allocation28 + $0x80] sm:$0xff]
    %v4884 = vld [vmem:[#allocation28 + $0x88] sm:$0xff]
    %v4885 = vld [vmem:[#allocation28 + $0x90] sm:$0xff]
    %v4886 = vld [vmem:[#allocation28 + $0x98] sm:$0xff]
    %v4887 = vld [vmem:[#allocation28 + $0xa0] sm:$0xff]
    %v4888 = vld [vmem:[#allocation28 + $0xa8] sm:$0xff]
    %v4889 = vld [vmem:[#allocation28 + $0xb0] sm:$0xff]
    %v4890 = vld [vmem:[#allocation28 + $0xb8] sm:$0xff]
    %v4891 = vld [vmem:[#allocation28 + $0xc0] sm:$0xff]
    %v4892 = vld [vmem:[#allocation28 + $0xc8] sm:$0xff]
    %v4893 = vld [vmem:[#allocation28 + $0xd0] sm:$0xff]
    %v4894 = vld [vmem:[#allocation28 + $0xd8] sm:$0xff]
    %v4895 = vld [vmem:[#allocation28 + $0xe0] sm:$0xff]
    %v4896 = vld [vmem:[#allocation28 + $0xe8] sm:$0xff]
    %v4897 = vld [vmem:[#allocation28 + $0xf0] sm:$0xff]
    %v4898 = vld [vmem:[#allocation28 + $0xf8] sm:$0xff]
    %v4899 = vld [vmem:[#allocation28 + $0x100] sm:$0xff]
    %v4900 = vld [vmem:[#allocation28 + $0x108] sm:$0xff]
    %v4901 = vld [vmem:[#allocation28 + $0x110] sm:$0xff]
    %v4902 = vld [vmem:[#allocation28 + $0x118] sm:$0xff]
    %v4903 = vld [vmem:[#allocation28 + $0x120] sm:$0xff]
    %v4904 = vld [vmem:[#allocation28 + $0x128] sm:$0xff]
    %v4905 = vld [vmem:[#allocation28 + $0x130] sm:$0xff]
    %v4906 = vld [vmem:[#allocation28 + $0x138] sm:$0xff]
    %v4907 = vld [vmem:[#allocation28 + $0x140] sm:$0xff]
    %v4908 = vld [vmem:[#allocation28 + $0x148] sm:$0xff]
    %v4909 = vld [vmem:[#allocation28 + $0x150] sm:$0xff]
    %v4910 = vld [vmem:[#allocation28 + $0x158] sm:$0xff]
    %v4911 = vld [vmem:[#allocation28 + $0x160] sm:$0xff]
    %v4912 = vld [vmem:[#allocation28 + $0x168] sm:$0xff]
    %v4913 = vld [vmem:[#allocation28 + $0x170] sm:$0xff]
    %v4914 = vld [vmem:[#allocation28 + $0x178] sm:$0xff]
    %v4915 = vld [vmem:[#allocation28 + $0x180] sm:$0xff]
    %v4916 = vld [vmem:[#allocation28 + $0x188] sm:$0xff]
    %v4917 = vld [vmem:[#allocation28 + $0x190] sm:$0xff]
    %v4918 = vld [vmem:[#allocation28 + $0x198] sm:$0xff]
    %v4919 = vld [vmem:[#allocation28 + $0x1a0] sm:$0xff]
    %v4920 = vld [vmem:[#allocation28 + $0x1a8] sm:$0xff]
    %v4921 = vld [vmem:[#allocation28 + $0x1b0] sm:$0xff]
    %v4922 = vld [vmem:[#allocation28 + $0x1b8] sm:$0xff]
    %v4923 = vld [vmem:[#allocation28 + $0x1c0] sm:$0xff]
    %v4924 = vld [vmem:[#allocation28 + $0x1c8] sm:$0xff]
    %v4925 = vld [vmem:[#allocation28 + $0x1d0] sm:$0xff]
    %v4926 = vld [vmem:[#allocation28 + $0x1d8] sm:$0xff]
    %v4927 = vld [vmem:[#allocation28 + $0x1e0] sm:$0xff]
    %v4928 = vld [vmem:[#allocation28 + $0x1e8] sm:$0xff]
    %v4929 = vld [vmem:[#allocation28 + $0x1f0] sm:$0xff]
    %v4930 = vld [vmem:[#allocation28 + $0x1f8] sm:$0xff]
    %v4931 = vld [vmem:[#allocation28 + $0x200] sm:$0xff]
    %v4932 = vld [vmem:[#allocation28 + $0x208] sm:$0xff]
    %v4933 = vld [vmem:[#allocation28 + $0x210] sm:$0xff]
    %v4934 = vld [vmem:[#allocation28 + $0x218] sm:$0xff]
    %v4935 = vld [vmem:[#allocation28 + $0x220] sm:$0xff]
    %v4936 = vld [vmem:[#allocation28 + $0x228] sm:$0xff]
    %v4937 = vld [vmem:[#allocation28 + $0x230] sm:$0xff]
    %v4938 = vld [vmem:[#allocation28 + $0x238] sm:$0xff]
    %v4939 = vld [vmem:[#allocation28 + $0x240] sm:$0xff]
    %v4940 = vld [vmem:[#allocation28 + $0x248] sm:$0xff]
    %v4941 = vld [vmem:[#allocation28 + $0x250] sm:$0xff]
    %v4942 = vld [vmem:[#allocation28 + $0x258] sm:$0xff]
    %v4943 = vld [vmem:[#allocation28 + $0x260] sm:$0xff]
    %v4944 = vld [vmem:[#allocation28 + $0x268] sm:$0xff]
    %v4945 = vld [vmem:[#allocation28 + $0x270] sm:$0xff]
    %v4946 = vld [vmem:[#allocation28 + $0x278] sm:$0xff]
    %v4947 = vld [vmem:[#allocation28 + $0x280] sm:$0xff]
    %v4948 = vld [vmem:[#allocation28 + $0x288] sm:$0xff]
    %v4949 = vld [vmem:[#allocation28 + $0x290] sm:$0xff]
    %v4950 = vld [vmem:[#allocation28 + $0x298] sm:$0xff]
    %v4951 = vld [vmem:[#allocation28 + $0x2a0] sm:$0xff]
    %v4952 = vld [vmem:[#allocation28 + $0x2a8] sm:$0xff]
    %v4953 = vld [vmem:[#allocation28 + $0x2b0] sm:$0xff]
    %v4954 = vld [vmem:[#allocation28 + $0x2b8] sm:$0xff]
    %v4955 = vld [vmem:[#allocation28 + $0x2c0] sm:$0xff]
    %v4956 = vld [vmem:[#allocation28 + $0x2c8] sm:$0xff]
    %v4957 = vld [vmem:[#allocation28 + $0x2d0] sm:$0xff]
    %v4958 = vld [vmem:[#allocation28 + $0x2d8] sm:$0xff]
    %v4959 = vld [vmem:[#allocation28 + $0x2e0] sm:$0xff]
    %v4960 = vld [vmem:[#allocation28 + $0x2e8] sm:$0xff]
    %v4961 = vld [vmem:[#allocation28 + $0x2f0] sm:$0xff]
    %v4962 = vld [vmem:[#allocation28 + $0x2f8] sm:$0xff]
    %v4963 = vld [vmem:[#allocation28 + $0x300] sm:$0xff]
    %v4964 = vld [vmem:[#allocation28 + $0x308] sm:$0xff]
    %v4965 = vld [vmem:[#allocation28 + $0x310] sm:$0xff]
    %v4966 = vld [vmem:[#allocation28 + $0x318] sm:$0xff]
    %v4967 = vld [vmem:[#allocation28 + $0x320] sm:$0xff]
    %v4968 = vld [vmem:[#allocation28 + $0x328] sm:$0xff]
    %v4969 = vld [vmem:[#allocation28 + $0x330] sm:$0xff]
    %v4970 = vld [vmem:[#allocation28 + $0x338] sm:$0xff]
    %v4971 = vld [vmem:[#allocation28 + $0x340] sm:$0xff]
    %v4972 = vld [vmem:[#allocation28 + $0x348] sm:$0xff]
    %v4973 = vld [vmem:[#allocation28 + $0x350] sm:$0xff]
    %v4974 = vld [vmem:[#allocation28 + $0x358] sm:$0xff]
    %v4975 = vld [vmem:[#allocation28 + $0x360] sm:$0xff]
    %v4976 = vld [vmem:[#allocation28 + $0x368] sm:$0xff]
    %v4977 = vld [vmem:[#allocation28 + $0x370] sm:$0xff]
    %v4978 = vld [vmem:[#allocation28 + $0x378] sm:$0xff]
    %v4979 = vld [vmem:[#allocation28 + $0x380] sm:$0xff]
    %v4980 = vld [vmem:[#allocation28 + $0x388] sm:$0xff]
    %v4981 = vld [vmem:[#allocation28 + $0x390] sm:$0xff]
    %v4982 = vld [vmem:[#allocation28 + $0x398] sm:$0xff]
    %v4983 = vld [vmem:[#allocation28 + $0x3a0] sm:$0xff]
    %v4984 = vld [vmem:[#allocation28 + $0x3a8] sm:$0xff]
    %v4985 = vld [vmem:[#allocation28 + $0x3b0] sm:$0xff]
    %v4986 = vld [vmem:[#allocation28 + $0x3b8] sm:$0xff]
    %v4987 = vld [vmem:[#allocation28 + $0x3c0] sm:$0xff]
    %v4988 = vld [vmem:[#allocation28 + $0x3c8] sm:$0xff]
    %v4989 = vld [vmem:[#allocation28 + $0x3d0] sm:$0xff]
    %v4990 = vld [vmem:[#allocation28 + $0x3d8] sm:$0xff]
    %v4991 = vld [vmem:[#allocation28 + $0x3e0] sm:$0xff]
    %v4992 = vld [vmem:[#allocation28 + $0x3e8] sm:$0xff]
    %v4993 = vld [vmem:[#allocation28 + $0x3f0] sm:$0xff]
    %v4994 = vld [vmem:[#allocation28 + $0x3f8] sm:$0xff]
    %v4995 = vld [vmem:[#allocation28 + $0x400] sm:$0xff]
    %v4996 = vld [vmem:[#allocation28 + $0x408] sm:$0xff]
    %v4997 = vld [vmem:[#allocation28 + $0x410] sm:$0xff]
    %v4998 = vld [vmem:[#allocation28 + $0x418] sm:$0xff]
    %v4999 = vld [vmem:[#allocation28 + $0x420] sm:$0xff]
    %v5000 = vld [vmem:[#allocation28 + $0x428] sm:$0xff]
    %v5001 = vld [vmem:[#allocation28 + $0x430] sm:$0xff]
    %v5002 = vld [vmem:[#allocation28 + $0x438] sm:$0xff]
    %v5003 = vld [vmem:[#allocation28 + $0x440] sm:$0xff]
    %v5004 = vld [vmem:[#allocation28 + $0x448] sm:$0xff]
    %v5005 = vld [vmem:[#allocation28 + $0x450] sm:$0xff]
    %v5006 = vld [vmem:[#allocation28 + $0x458] sm:$0xff]
    %v5007 = vld [vmem:[#allocation28 + $0x460] sm:$0xff]
    %v5008 = vld [vmem:[#allocation28 + $0x468] sm:$0xff]
    %v5009 = vld [vmem:[#allocation28 + $0x470] sm:$0xff]
    %v5010 = vld [vmem:[#allocation28 + $0x478] sm:$0xff]
    %v5011 = vld [vmem:[#allocation28 + $0x480] sm:$0xff]
    %v5012 = vld [vmem:[#allocation28 + $0x488] sm:$0xff]
    %v5013 = vld [vmem:[#allocation28 + $0x490] sm:$0xff]
    %v5014 = vld [vmem:[#allocation28 + $0x498] sm:$0xff]
    %v5015 = vld [vmem:[#allocation28 + $0x4a0] sm:$0xff]
    %v5016 = vld [vmem:[#allocation28 + $0x4a8] sm:$0xff]
    %v5017 = vld [vmem:[#allocation28 + $0x4b0] sm:$0xff]
    %v5018 = vld [vmem:[#allocation28 + $0x4b8] sm:$0xff]
    %v5019 = vld [vmem:[#allocation28 + $0x4c0] sm:$0xff]
    %v5020 = vld [vmem:[#allocation28 + $0x4c8] sm:$0xff]
    %v5021 = vld [vmem:[#allocation28 + $0x4d0] sm:$0xff]
    %v5022 = vld [vmem:[#allocation28 + $0x4d8] sm:$0xff]
    %v5023 = vld [vmem:[#allocation28 + $0x4e0] sm:$0xff]
    %v5024 = vld [vmem:[#allocation28 + $0x4e8] sm:$0xff]
    %v5025 = vld [vmem:[#allocation28 + $0x4f0] sm:$0xff]
    %v5026 = vld [vmem:[#allocation28 + $0x4f8] sm:$0xff]
    %v5027 = vld [vmem:[#allocation28 + $0x500] sm:$0xff]
    %v5028 = vld [vmem:[#allocation28 + $0x508] sm:$0xff]
    %v5029 = vld [vmem:[#allocation28 + $0x510] sm:$0xff]
    %v5030 = vld [vmem:[#allocation28 + $0x518] sm:$0xff]
    %v5031 = vld [vmem:[#allocation28 + $0x520] sm:$0xff]
    %v5032 = vld [vmem:[#allocation28 + $0x528] sm:$0xff]
    %v5033 = vld [vmem:[#allocation28 + $0x530] sm:$0xff]
    %v5034 = vld [vmem:[#allocation28 + $0x538] sm:$0xff]
    %v5035 = vld [vmem:[#allocation28 + $0x540] sm:$0xff]
    %v5036 = vld [vmem:[#allocation28 + $0x548] sm:$0xff]
    %v5037 = vld [vmem:[#allocation28 + $0x550] sm:$0xff]
    %v5038 = vld [vmem:[#allocation28 + $0x558] sm:$0xff]
    %v5039 = vld [vmem:[#allocation28 + $0x560] sm:$0xff]
    %v5040 = vld [vmem:[#allocation28 + $0x568] sm:$0xff]
    %v5041 = vld [vmem:[#allocation28 + $0x570] sm:$0xff]
    %v5042 = vld [vmem:[#allocation28 + $0x578] sm:$0xff]
    %v5043 = vld [vmem:[#allocation28 + $0x580] sm:$0xff]
    %v5044 = vld [vmem:[#allocation28 + $0x588] sm:$0xff]
    %v5045 = vld [vmem:[#allocation28 + $0x590] sm:$0xff]
    %v5046 = vld [vmem:[#allocation28 + $0x598] sm:$0xff]
    %v5047 = vld [vmem:[#allocation28 + $0x5a0] sm:$0xff]
    %v5048 = vld [vmem:[#allocation28 + $0x5a8] sm:$0xff]
    %v5049 = vld [vmem:[#allocation28 + $0x5b0] sm:$0xff]
    %v5050 = vld [vmem:[#allocation28 + $0x5b8] sm:$0xff]
    %v5051 = vld [vmem:[#allocation28 + $0x5c0] sm:$0xff]
    %v5052 = vld [vmem:[#allocation28 + $0x5c8] sm:$0xff]
    %v5053 = vld [vmem:[#allocation28 + $0x5d0] sm:$0xff]
    %v5054 = vld [vmem:[#allocation28 + $0x5d8] sm:$0xff]
    %v5055 = vld [vmem:[#allocation28 + $0x5e0] sm:$0xff]
    %v5056 = vld [vmem:[#allocation28 + $0x5e8] sm:$0xff]
    %v5057 = vld [vmem:[#allocation28 + $0x5f0] sm:$0xff]
    %v5058 = vld [vmem:[#allocation28 + $0x5f8] sm:$0xff]
    %v5059 = vld [vmem:[#allocation28 + $0x600] sm:$0xff]
    %v5060 = vld [vmem:[#allocation28 + $0x608] sm:$0xff]
    %v5061 = vld [vmem:[#allocation28 + $0x610] sm:$0xff]
    %v5062 = vld [vmem:[#allocation28 + $0x618] sm:$0xff]
    %v5063 = vld [vmem:[#allocation28 + $0x620] sm:$0xff]
    %v5064 = vld [vmem:[#allocation28 + $0x628] sm:$0xff]
    %v5065 = vld [vmem:[#allocation28 + $0x630] sm:$0xff]
    %v5066 = vld [vmem:[#allocation28 + $0x638] sm:$0xff]
    %v5067 = vld [vmem:[#allocation28 + $0x640] sm:$0xff]
    %v5068 = vld [vmem:[#allocation28 + $0x648] sm:$0xff]
    %v5069 = vld [vmem:[#allocation28 + $0x650] sm:$0xff]
    %v5070 = vld [vmem:[#allocation28 + $0x658] sm:$0xff]
    %v5071 = vld [vmem:[#allocation28 + $0x660] sm:$0xff]
    %v5072 = vld [vmem:[#allocation28 + $0x668] sm:$0xff]
    %v5073 = vld [vmem:[#allocation28 + $0x670] sm:$0xff]
    %v5074 = vld [vmem:[#allocation28 + $0x678] sm:$0xff]
    %v5075 = vld [vmem:[#allocation28 + $0x680] sm:$0xff]
    %v5076 = vld [vmem:[#allocation28 + $0x688] sm:$0xff]
    %v5077 = vld [vmem:[#allocation28 + $0x690] sm:$0xff]
    %v5078 = vld [vmem:[#allocation28 + $0x698] sm:$0xff]
    %v5079 = vld [vmem:[#allocation28 + $0x6a0] sm:$0xff]
    %v5080 = vld [vmem:[#allocation28 + $0x6a8] sm:$0xff]
    %v5081 = vld [vmem:[#allocation28 + $0x6b0] sm:$0xff]
    %v5082 = vld [vmem:[#allocation28 + $0x6b8] sm:$0xff]
    %v5083 = vld [vmem:[#allocation28 + $0x6c0] sm:$0xff]
    %v5084 = vld [vmem:[#allocation28 + $0x6c8] sm:$0xff]
    %v5085 = vld [vmem:[#allocation28 + $0x6d0] sm:$0xff]
    %v5086 = vld [vmem:[#allocation28 + $0x6d8] sm:$0xff]
    %v5087 = vld [vmem:[#allocation28 + $0x6e0] sm:$0xff]
    %v5088 = vld [vmem:[#allocation28 + $0x6e8] sm:$0xff]
    %v5089 = vld [vmem:[#allocation28 + $0x6f0] sm:$0xff]
    %v5090 = vld [vmem:[#allocation28 + $0x6f8] sm:$0xff]
    %v5091 = vld [vmem:[#allocation28 + $0x700] sm:$0xff]
    %v5092 = vld [vmem:[#allocation28 + $0x708] sm:$0xff]
    %v5093 = vld [vmem:[#allocation28 + $0x710] sm:$0xff]
    %v5094 = vld [vmem:[#allocation28 + $0x718] sm:$0xff]
    %v5095 = vld [vmem:[#allocation28 + $0x720] sm:$0xff]
    %v5096 = vld [vmem:[#allocation28 + $0x728] sm:$0xff]
    %v5097 = vld [vmem:[#allocation28 + $0x730] sm:$0xff]
    %v5098 = vld [vmem:[#allocation28 + $0x738] sm:$0xff]
    %v5099 = vld [vmem:[#allocation28 + $0x740] sm:$0xff]
    %v5100 = vld [vmem:[#allocation28 + $0x748] sm:$0xff]
    %v5101 = vld [vmem:[#allocation28 + $0x750] sm:$0xff]
    %v5102 = vld [vmem:[#allocation28 + $0x758] sm:$0xff]
    %v5103 = vld [vmem:[#allocation28 + $0x760] sm:$0xff]
    %v5104 = vld [vmem:[#allocation28 + $0x768] sm:$0xff]
    %v5105 = vld [vmem:[#allocation28 + $0x770] sm:$0xff]
    %v5106 = vld [vmem:[#allocation28 + $0x778] sm:$0xff]
    %v5107 = vld [vmem:[#allocation28 + $0x780] sm:$0xff]
    %v5108 = vld [vmem:[#allocation28 + $0x788] sm:$0xff]
    %v5109 = vld [vmem:[#allocation28 + $0x790] sm:$0xff]
    %v5110 = vld [vmem:[#allocation28 + $0x798] sm:$0xff]
    %v5111 = vld [vmem:[#allocation28 + $0x7a0] sm:$0xff]
    %v5112 = vld [vmem:[#allocation28 + $0x7a8] sm:$0xff]
    %v5113 = vld [vmem:[#allocation28 + $0x7b0] sm:$0xff]
    %v5114 = vld [vmem:[#allocation28 + $0x7b8] sm:$0xff]
    %v5115 = vld [vmem:[#allocation28 + $0x7c0] sm:$0xff]
    %v5116 = vld [vmem:[#allocation28 + $0x7c8] sm:$0xff]
    %v5117 = vld [vmem:[#allocation28 + $0x7d0] sm:$0xff]
    %v5118 = vld [vmem:[#allocation28 + $0x7d8] sm:$0xff]
    %v5119 = vld [vmem:[#allocation28 + $0x7e0] sm:$0xff]
    %v5120 = vld [vmem:[#allocation28 + $0x7e8] sm:$0xff]
    %v5121 = vld [vmem:[#allocation28 + $0x7f0] sm:$0xff]
    %v5122 = vld [vmem:[#allocation28 + $0x7f8] sm:$0xff]
    %v5123 = vld [vmem:[#allocation28 + $0x800] sm:$0xff]
    %v5124 = vld [vmem:[#allocation28 + $0x808] sm:$0xff]
    %v5125 = vld [vmem:[#allocation28 + $0x810] sm:$0xff]
    %v5126 = vld [vmem:[#allocation28 + $0x818] sm:$0xff]
    %v5127 = vld [vmem:[#allocation28 + $0x820] sm:$0xff]
    %v5128 = vld [vmem:[#allocation28 + $0x828] sm:$0xff]
    %v5129 = vld [vmem:[#allocation28 + $0x830] sm:$0xff]
    %v5130 = vld [vmem:[#allocation28 + $0x838] sm:$0xff]
    %v5131 = vld [vmem:[#allocation28 + $0x840] sm:$0xff]
    %v5132 = vld [vmem:[#allocation28 + $0x848] sm:$0xff]
    %v5133 = vld [vmem:[#allocation28 + $0x850] sm:$0xff]
    %v5134 = vld [vmem:[#allocation28 + $0x858] sm:$0xff]
    %v5135 = vld [vmem:[#allocation28 + $0x860] sm:$0xff]
    %v5136 = vld [vmem:[#allocation28 + $0x868] sm:$0xff]
    %v5137 = vld [vmem:[#allocation28 + $0x870] sm:$0xff]
    %v5138 = vld [vmem:[#allocation28 + $0x878] sm:$0xff]
    %v5139 = vld [vmem:[#allocation28 + $0x880] sm:$0xff]
    %v5140 = vld [vmem:[#allocation28 + $0x888] sm:$0xff]
    %v5141 = vld [vmem:[#allocation28 + $0x890] sm:$0xff]
    %v5142 = vld [vmem:[#allocation28 + $0x898] sm:$0xff]
    %v5143 = vld [vmem:[#allocation28 + $0x8a0] sm:$0xff]
    %v5144 = vld [vmem:[#allocation28 + $0x8a8] sm:$0xff]
    %v5145 = vld [vmem:[#allocation28 + $0x8b0] sm:$0xff]
    %v5146 = vld [vmem:[#allocation28 + $0x8b8] sm:$0xff]
    %v5147 = vld [vmem:[#allocation28 + $0x8c0] sm:$0xff]
    %v5148 = vld [vmem:[#allocation28 + $0x8c8] sm:$0xff]
    %v5149 = vld [vmem:[#allocation28 + $0x8d0] sm:$0xff]
    %v5150 = vld [vmem:[#allocation28 + $0x8d8] sm:$0xff]
    %v5151 = vld [vmem:[#allocation28 + $0x8e0] sm:$0xff]
    %v5152 = vld [vmem:[#allocation28 + $0x8e8] sm:$0xff]
    %v5153 = vld [vmem:[#allocation28 + $0x8f0] sm:$0xff]
    %v5154 = vld [vmem:[#allocation28 + $0x8f8] sm:$0xff]
    %v5155 = vld [vmem:[#allocation28 + $0x900] sm:$0xff]
    %v5156 = vld [vmem:[#allocation28 + $0x908] sm:$0xff]
    %v5157 = vld [vmem:[#allocation28 + $0x910] sm:$0xff]
    %v5158 = vld [vmem:[#allocation28 + $0x918] sm:$0xff]
    %v5159 = vld [vmem:[#allocation28 + $0x920] sm:$0xff]
    %v5160 = vld [vmem:[#allocation28 + $0x928] sm:$0xff]
    %v5161 = vld [vmem:[#allocation28 + $0x930] sm:$0xff]
    %v5162 = vld [vmem:[#allocation28 + $0x938] sm:$0xff]
    %v5163 = vld [vmem:[#allocation28 + $0x940] sm:$0xff]
    %v5164 = vld [vmem:[#allocation28 + $0x948] sm:$0xff]
    %v5165 = vld [vmem:[#allocation28 + $0x950] sm:$0xff]
    %v5166 = vld [vmem:[#allocation28 + $0x958] sm:$0xff]
    %v5167 = vld [vmem:[#allocation28 + $0x960] sm:$0xff]
    %v5168 = vld [vmem:[#allocation28 + $0x968] sm:$0xff]
    %v5169 = vld [vmem:[#allocation28 + $0x970] sm:$0xff]
    %v5170 = vld [vmem:[#allocation28 + $0x978] sm:$0xff]
    %v5171 = vld [vmem:[#allocation28 + $0x980] sm:$0xff]
    %v5172 = vld [vmem:[#allocation28 + $0x988] sm:$0xff]
    %v5173 = vld [vmem:[#allocation28 + $0x990] sm:$0xff]
    %v5174 = vld [vmem:[#allocation28 + $0x998] sm:$0xff]
    %v5175 = vld [vmem:[#allocation28 + $0x9a0] sm:$0xff]
    %v5176 = vld [vmem:[#allocation28 + $0x9a8] sm:$0xff]
    %v5177 = vld [vmem:[#allocation28 + $0x9b0] sm:$0xff]
    %v5178 = vld [vmem:[#allocation28 + $0x9b8] sm:$0xff]
    %v5179 = vld [vmem:[#allocation28 + $0x9c0] sm:$0xff]
    %v5180 = vld [vmem:[#allocation28 + $0x9c8] sm:$0xff]
    %v5181 = vld [vmem:[#allocation28 + $0x9d0] sm:$0xff]
    %v5182 = vld [vmem:[#allocation28 + $0x9d8] sm:$0xff]
    %v5183 = vld [vmem:[#allocation28 + $0x9e0] sm:$0xff]
    %v5184 = vld [vmem:[#allocation28 + $0x9e8] sm:$0xff]
    %v5185 = vld [vmem:[#allocation28 + $0x9f0] sm:$0xff]
    %v5186 = vld [vmem:[#allocation28 + $0x9f8] sm:$0xff]
    %v5187 = vld [vmem:[#allocation28 + $0xa00] sm:$0xff]
    %v5188 = vld [vmem:[#allocation28 + $0xa08] sm:$0xff]
    %v5189 = vld [vmem:[#allocation28 + $0xa10] sm:$0xff]
    %v5190 = vld [vmem:[#allocation28 + $0xa18] sm:$0xff]
    %v5191 = vld [vmem:[#allocation28 + $0xa20] sm:$0xff]
    %v5192 = vld [vmem:[#allocation28 + $0xa28] sm:$0xff]
    %v5193 = vld [vmem:[#allocation28 + $0xa30] sm:$0xff]
    %v5194 = vld [vmem:[#allocation28 + $0xa38] sm:$0xff]
    %v5195 = vld [vmem:[#allocation28 + $0xa40] sm:$0xff]
    %v5196 = vld [vmem:[#allocation28 + $0xa48] sm:$0xff]
    %v5197 = vld [vmem:[#allocation28 + $0xa50] sm:$0xff]
    %v5198 = vld [vmem:[#allocation28 + $0xa58] sm:$0xff]
    %v5199 = vld [vmem:[#allocation28 + $0xa60] sm:$0xff]
    %v5200 = vld [vmem:[#allocation28 + $0xa68] sm:$0xff]
    %v5201 = vld [vmem:[#allocation28 + $0xa70] sm:$0xff]
    %v5202 = vld [vmem:[#allocation28 + $0xa78] sm:$0xff]
    %v5203 = vld [vmem:[#allocation28 + $0xa80] sm:$0xff]
    %v5204 = vld [vmem:[#allocation28 + $0xa88] sm:$0xff]
    %v5205 = vld [vmem:[#allocation28 + $0xa90] sm:$0xff]
    %v5206 = vld [vmem:[#allocation28 + $0xa98] sm:$0xff]
    %v5207 = vld [vmem:[#allocation28 + $0xaa0] sm:$0xff]
    %v5208 = vld [vmem:[#allocation28 + $0xaa8] sm:$0xff]
    %v5209 = vld [vmem:[#allocation28 + $0xab0] sm:$0xff]
    %v5210 = vld [vmem:[#allocation28 + $0xab8] sm:$0xff]
    %v5211 = vld [vmem:[#allocation28 + $0xac0] sm:$0xff]
    %v5212 = vld [vmem:[#allocation28 + $0xac8] sm:$0xff]
    %v5213 = vld [vmem:[#allocation28 + $0xad0] sm:$0xff]
    %v5214 = vld [vmem:[#allocation28 + $0xad8] sm:$0xff]
    %v5215 = vld [vmem:[#allocation28 + $0xae0] sm:$0xff]
    %v5216 = vld [vmem:[#allocation28 + $0xae8] sm:$0xff]
    %v5217 = vld [vmem:[#allocation28 + $0xaf0] sm:$0xff]
    %v5218 = vld [vmem:[#allocation28 + $0xaf8] sm:$0xff]
    %v5219 = vld [vmem:[#allocation28 + $0xb00] sm:$0xff]
    %v5220 = vld [vmem:[#allocation28 + $0xb08] sm:$0xff]
    %v5221 = vld [vmem:[#allocation28 + $0xb10] sm:$0xff]
    %v5222 = vld [vmem:[#allocation28 + $0xb18] sm:$0xff]
    %v5223 = vld [vmem:[#allocation28 + $0xb20] sm:$0xff]
    %v5224 = vld [vmem:[#allocation28 + $0xb28] sm:$0xff]
    %v5225 = vld [vmem:[#allocation28 + $0xb30] sm:$0xff]
    %v5226 = vld [vmem:[#allocation28 + $0xb38] sm:$0xff]
    %v5227 = vld [vmem:[#allocation28 + $0xb40] sm:$0xff]
    %v5228 = vld [vmem:[#allocation28 + $0xb48] sm:$0xff]
    %v5229 = vld [vmem:[#allocation28 + $0xb50] sm:$0xff]
    %v5230 = vld [vmem:[#allocation28 + $0xb58] sm:$0xff]
    %v5231 = vld [vmem:[#allocation28 + $0xb60] sm:$0xff]
    %v5232 = vld [vmem:[#allocation28 + $0xb68] sm:$0xff]
    %v5233 = vld [vmem:[#allocation28 + $0xb70] sm:$0xff]
    %v5234 = vld [vmem:[#allocation28 + $0xb78] sm:$0xff]
    %v5235 = vld [vmem:[#allocation28 + $0xb80] sm:$0xff]
    %v5236 = vld [vmem:[#allocation28 + $0xb88] sm:$0xff]
    %v5237 = vld [vmem:[#allocation28 + $0xb90] sm:$0xff]
    %v5238 = vld [vmem:[#allocation28 + $0xb98] sm:$0xff]
    %v5239 = vld [vmem:[#allocation28 + $0xba0] sm:$0xff]
    %v5240 = vld [vmem:[#allocation28 + $0xba8] sm:$0xff]
    %v5241 = vld [vmem:[#allocation28 + $0xbb0] sm:$0xff]
    %v5242 = vld [vmem:[#allocation28 + $0xbb8] sm:$0xff]
    %v5243 = vld [vmem:[#allocation28 + $0xbc0] sm:$0xff]
    %v5244 = vld [vmem:[#allocation28 + $0xbc8] sm:$0xff]
    %v5245 = vld [vmem:[#allocation28 + $0xbd0] sm:$0xff]
    %v5246 = vld [vmem:[#allocation28 + $0xbd8] sm:$0xff]
    %v5247 = vld [vmem:[#allocation28 + $0xbe0] sm:$0xff]
    %v5248 = vld [vmem:[#allocation28 + $0xbe8] sm:$0xff]
    %v5249 = vld [vmem:[#allocation28 + $0xbf0] sm:$0xff]
    %v5250 = vld [vmem:[#allocation28 + $0xbf8] sm:$0xff]
    %v5251 = vld [vmem:[#allocation29] sm:$0xff]
    %v5252 = vld [vmem:[#allocation29 + $0x8] sm:$0xf]
    %v5255 = vperm.slane %v5251, 0
    %v5256 = vperm.slane %v5251, 1
    %v5257 = vperm.slane %v5251, 2
    %v5258 = vperm.slane %v5251, 3
    %v5259 = vperm.slane %v5251, 4
    %v5260 = vperm.slane %v5251, 5
    %v5261 = vperm.slane %v5251, 6
    %v5262 = vperm.slane %v5251, 7
    %v5263 = vperm.slane %v5252, 0
    %v5264 = vperm.slane %v5252, 1
    %v5265 = vperm.slane %v5252, 2
    %v5266 = vperm.slane %v5252, 3
    %v5663 = vunpack.c.l.b16 %v4867
    %v5664 = vunpack.c.h.b16 %v4867
    %v5665 = vunpack.c.l.b16 %v4868
    %v5666 = vunpack.c.h.b16 %v4868
    %v5667 = vunpack.c.l.b16 %v4869
    %v5668 = vunpack.c.h.b16 %v4869
    %v5669 = vunpack.c.l.b16 %v4870
    %v5670 = vunpack.c.h.b16 %v4870
    %v5671 = vunpack.c.l.b16 %v4871
    %v5672 = vunpack.c.h.b16 %v4871
    %v5673 = vunpack.c.l.b16 %v4872
    %v5674 = vunpack.c.h.b16 %v4872
    %v5675 = vunpack.c.l.b16 %v4873
    %v5676 = vunpack.c.h.b16 %v4873
    %v5677 = vunpack.c.l.b16 %v4874
    %v5678 = vunpack.c.h.b16 %v4874
    %v5679 = vunpack.c.l.b16 %v4875
    %v5680 = vunpack.c.h.b16 %v4875
    %v5681 = vunpack.c.l.b16 %v4876
    %v5682 = vunpack.c.h.b16 %v4876
    %v5683 = vunpack.c.l.b16 %v4877
    %v5684 = vunpack.c.h.b16 %v4877
    %v5685 = vunpack.c.l.b16 %v4878
    %v5686 = vunpack.c.h.b16 %v4878
    %v5687 = vunpack.c.l.b16 %v4879
    %v5688 = vunpack.c.h.b16 %v4879
    %v5689 = vunpack.c.l.b16 %v4880
    %v5690 = vunpack.c.h.b16 %v4880
    %v5691 = vunpack.c.l.b16 %v4881
    %v5692 = vunpack.c.h.b16 %v4881
    %v5693 = vunpack.c.l.b16 %v4882
    %v5694 = vunpack.c.h.b16 %v4882
    %v5695 = vunpack.c.l.b16 %v4883
    %v5696 = vunpack.c.h.b16 %v4883
    %v5697 = vunpack.c.l.b16 %v4884
    %v5698 = vunpack.c.h.b16 %v4884
    %v5699 = vunpack.c.l.b16 %v4885
    %v5700 = vunpack.c.h.b16 %v4885
    %v5701 = vunpack.c.l.b16 %v4886
    %v5702 = vunpack.c.h.b16 %v4886
    %v5703 = vunpack.c.l.b16 %v4887
    %v5704 = vunpack.c.h.b16 %v4887
    %v5705 = vunpack.c.l.b16 %v4888
    %v5706 = vunpack.c.h.b16 %v4888
    %v5707 = vunpack.c.l.b16 %v4889
    %v5708 = vunpack.c.h.b16 %v4889
    %v5709 = vunpack.c.l.b16 %v4890
    %v5710 = vunpack.c.h.b16 %v4890
    %v5711 = vunpack.c.l.b16 %v4891
    %v5712 = vunpack.c.h.b16 %v4891
    %v5713 = vunpack.c.l.b16 %v4892
    %v5714 = vunpack.c.h.b16 %v4892
    %v5715 = vunpack.c.l.b16 %v4893
    %v5716 = vunpack.c.h.b16 %v4893
    %v5717 = vunpack.c.l.b16 %v4894
    %v5718 = vunpack.c.h.b16 %v4894
    %v5719 = vunpack.c.l.b16 %v4895
    %v5720 = vunpack.c.h.b16 %v4895
    %v5721 = vunpack.c.l.b16 %v4896
    %v5722 = vunpack.c.h.b16 %v4896
    %v5723 = vunpack.c.l.b16 %v4897
    %v5724 = vunpack.c.h.b16 %v4897
    %v5725 = vunpack.c.l.b16 %v4898
    %v5726 = vunpack.c.h.b16 %v4898
    %v5727 = vunpack.c.l.b16 %v4899
    %v5728 = vunpack.c.h.b16 %v4899
    %v5729 = vunpack.c.l.b16 %v4900
    %v5730 = vunpack.c.h.b16 %v4900
    %v5731 = vunpack.c.l.b16 %v4901
    %v5732 = vunpack.c.h.b16 %v4901
    %v5733 = vunpack.c.l.b16 %v4902
    %v5734 = vunpack.c.h.b16 %v4902
    %v5735 = vunpack.c.l.b16 %v4903
    %v5736 = vunpack.c.h.b16 %v4903
    %v5737 = vunpack.c.l.b16 %v4904
    %v5738 = vunpack.c.h.b16 %v4904
    %v5739 = vunpack.c.l.b16 %v4905
    %v5740 = vunpack.c.h.b16 %v4905
    %v5741 = vunpack.c.l.b16 %v4906
    %v5742 = vunpack.c.h.b16 %v4906
    %v5743 = vunpack.c.l.b16 %v4907
    %v5744 = vunpack.c.h.b16 %v4907
    %v5745 = vunpack.c.l.b16 %v4908
    %v5746 = vunpack.c.h.b16 %v4908
    %v5747 = vunpack.c.l.b16 %v4909
    %v5748 = vunpack.c.h.b16 %v4909
    %v5749 = vunpack.c.l.b16 %v4910
    %v5750 = vunpack.c.h.b16 %v4910
    %v5751 = vunpack.c.l.b16 %v4911
    %v5752 = vunpack.c.h.b16 %v4911
    %v5753 = vunpack.c.l.b16 %v4912
    %v5754 = vunpack.c.h.b16 %v4912
    %v5755 = vunpack.c.l.b16 %v4913
    %v5756 = vunpack.c.h.b16 %v4913
    %v5757 = vunpack.c.l.b16 %v4914
    %v5758 = vunpack.c.h.b16 %v4914
    %v5759 = vunpack.c.l.b16 %v4915
    %v5760 = vunpack.c.h.b16 %v4915
    %v5761 = vunpack.c.l.b16 %v4916
    %v5762 = vunpack.c.h.b16 %v4916
    %v5763 = vunpack.c.l.b16 %v4917
    %v5764 = vunpack.c.h.b16 %v4917
    %v5765 = vunpack.c.l.b16 %v4918
    %v5766 = vunpack.c.h.b16 %v4918
    %v5767 = vunpack.c.l.b16 %v4919
    %v5768 = vunpack.c.h.b16 %v4919
    %v5769 = vunpack.c.l.b16 %v4920
    %v5770 = vunpack.c.h.b16 %v4920
    %v5771 = vunpack.c.l.b16 %v4921
    %v5772 = vunpack.c.h.b16 %v4921
    %v5773 = vunpack.c.l.b16 %v4922
    %v5774 = vunpack.c.h.b16 %v4922
    %v5775 = vunpack.c.l.b16 %v4923
    %v5776 = vunpack.c.h.b16 %v4923
    %v5777 = vunpack.c.l.b16 %v4924
    %v5778 = vunpack.c.h.b16 %v4924
    %v5779 = vunpack.c.l.b16 %v4925
    %v5780 = vunpack.c.h.b16 %v4925
    %v5781 = vunpack.c.l.b16 %v4926
    %v5782 = vunpack.c.h.b16 %v4926
    %v5783 = vunpack.c.l.b16 %v4927
    %v5784 = vunpack.c.h.b16 %v4927
    %v5785 = vunpack.c.l.b16 %v4928
    %v5786 = vunpack.c.h.b16 %v4928
    %v5787 = vunpack.c.l.b16 %v4929
    %v5788 = vunpack.c.h.b16 %v4929
    %v5789 = vunpack.c.l.b16 %v4930
    %v5790 = vunpack.c.h.b16 %v4930
    %v5791 = vunpack.c.l.b16 %v4931
    %v5792 = vunpack.c.h.b16 %v4931
    %v5793 = vunpack.c.l.b16 %v4932
    %v5794 = vunpack.c.h.b16 %v4932
    %v5795 = vunpack.c.l.b16 %v4933
    %v5796 = vunpack.c.h.b16 %v4933
    %v5797 = vunpack.c.l.b16 %v4934
    %v5798 = vunpack.c.h.b16 %v4934
    %v5799 = vunpack.c.l.b16 %v4935
    %v5800 = vunpack.c.h.b16 %v4935
    %v5801 = vunpack.c.l.b16 %v4936
    %v5802 = vunpack.c.h.b16 %v4936
    %v5803 = vunpack.c.l.b16 %v4937
    %v5804 = vunpack.c.h.b16 %v4937
    %v5805 = vunpack.c.l.b16 %v4938
    %v5806 = vunpack.c.h.b16 %v4938
    %v5807 = vunpack.c.l.b16 %v4939
    %v5808 = vunpack.c.h.b16 %v4939
    %v5809 = vunpack.c.l.b16 %v4940
    %v5810 = vunpack.c.h.b16 %v4940
    %v5811 = vunpack.c.l.b16 %v4941
    %v5812 = vunpack.c.h.b16 %v4941
    %v5813 = vunpack.c.l.b16 %v4942
    %v5814 = vunpack.c.h.b16 %v4942
    %v5815 = vunpack.c.l.b16 %v4943
    %v5816 = vunpack.c.h.b16 %v4943
    %v5817 = vunpack.c.l.b16 %v4944
    %v5818 = vunpack.c.h.b16 %v4944
    %v5819 = vunpack.c.l.b16 %v4945
    %v5820 = vunpack.c.h.b16 %v4945
    %v5821 = vunpack.c.l.b16 %v4946
    %v5822 = vunpack.c.h.b16 %v4946
    %v5823 = vunpack.c.l.b16 %v4947
    %v5824 = vunpack.c.h.b16 %v4947
    %v5825 = vunpack.c.l.b16 %v4948
    %v5826 = vunpack.c.h.b16 %v4948
    %v5827 = vunpack.c.l.b16 %v4949
    %v5828 = vunpack.c.h.b16 %v4949
    %v5829 = vunpack.c.l.b16 %v4950
    %v5830 = vunpack.c.h.b16 %v4950
    %v5831 = vunpack.c.l.b16 %v4951
    %v5832 = vunpack.c.h.b16 %v4951
    %v5833 = vunpack.c.l.b16 %v4952
    %v5834 = vunpack.c.h.b16 %v4952
    %v5835 = vunpack.c.l.b16 %v4953
    %v5836 = vunpack.c.h.b16 %v4953
    %v5837 = vunpack.c.l.b16 %v4954
    %v5838 = vunpack.c.h.b16 %v4954
    %v5839 = vunpack.c.l.b16 %v4955
    %v5840 = vunpack.c.h.b16 %v4955
    %v5841 = vunpack.c.l.b16 %v4956
    %v5842 = vunpack.c.h.b16 %v4956
    %v5843 = vunpack.c.l.b16 %v4957
    %v5844 = vunpack.c.h.b16 %v4957
    %v5845 = vunpack.c.l.b16 %v4958
    %v5846 = vunpack.c.h.b16 %v4958
    %v5847 = vunpack.c.l.b16 %v4959
    %v5848 = vunpack.c.h.b16 %v4959
    %v5849 = vunpack.c.l.b16 %v4960
    %v5850 = vunpack.c.h.b16 %v4960
    %v5851 = vunpack.c.l.b16 %v4961
    %v5852 = vunpack.c.h.b16 %v4961
    %v5853 = vunpack.c.l.b16 %v4962
    %v5854 = vunpack.c.h.b16 %v4962
    %v5855 = vunpack.c.l.b16 %v4963
    %v5856 = vunpack.c.h.b16 %v4963
    %v5857 = vunpack.c.l.b16 %v4964
    %v5858 = vunpack.c.h.b16 %v4964
    %v5859 = vunpack.c.l.b16 %v4965
    %v5860 = vunpack.c.h.b16 %v4965
    %v5861 = vunpack.c.l.b16 %v4966
    %v5862 = vunpack.c.h.b16 %v4966
    %v5863 = vunpack.c.l.b16 %v4967
    %v5864 = vunpack.c.h.b16 %v4967
    %v5865 = vunpack.c.l.b16 %v4968
    %v5866 = vunpack.c.h.b16 %v4968
    %v5867 = vunpack.c.l.b16 %v4969
    %v5868 = vunpack.c.h.b16 %v4969
    %v5869 = vunpack.c.l.b16 %v4970
    %v5870 = vunpack.c.h.b16 %v4970
    %v5871 = vunpack.c.l.b16 %v4971
    %v5872 = vunpack.c.h.b16 %v4971
    %v5873 = vunpack.c.l.b16 %v4972
    %v5874 = vunpack.c.h.b16 %v4972
    %v5875 = vunpack.c.l.b16 %v4973
    %v5876 = vunpack.c.h.b16 %v4973
    %v5877 = vunpack.c.l.b16 %v4974
    %v5878 = vunpack.c.h.b16 %v4974
    %v5879 = vunpack.c.l.b16 %v4975
    %v5880 = vunpack.c.h.b16 %v4975
    %v5881 = vunpack.c.l.b16 %v4976
    %v5882 = vunpack.c.h.b16 %v4976
    %v5883 = vunpack.c.l.b16 %v4977
    %v5884 = vunpack.c.h.b16 %v4977
    %v5885 = vunpack.c.l.b16 %v4978
    %v5886 = vunpack.c.h.b16 %v4978
    %v5887 = vunpack.c.l.b16 %v4979
    %v5888 = vunpack.c.h.b16 %v4979
    %v5889 = vunpack.c.l.b16 %v4980
    %v5890 = vunpack.c.h.b16 %v4980
    %v5891 = vunpack.c.l.b16 %v4981
    %v5892 = vunpack.c.h.b16 %v4981
    %v5893 = vunpack.c.l.b16 %v4982
    %v5894 = vunpack.c.h.b16 %v4982
    %v5895 = vunpack.c.l.b16 %v4983
    %v5896 = vunpack.c.h.b16 %v4983
    %v5897 = vunpack.c.l.b16 %v4984
    %v5898 = vunpack.c.h.b16 %v4984
    %v5899 = vunpack.c.l.b16 %v4985
    %v5900 = vunpack.c.h.b16 %v4985
    %v5901 = vunpack.c.l.b16 %v4986
    %v5902 = vunpack.c.h.b16 %v4986
    %v5903 = vunpack.c.l.b16 %v4987
    %v5904 = vunpack.c.h.b16 %v4987
    %v5905 = vunpack.c.l.b16 %v4988
    %v5906 = vunpack.c.h.b16 %v4988
    %v5907 = vunpack.c.l.b16 %v4989
    %v5908 = vunpack.c.h.b16 %v4989
    %v5909 = vunpack.c.l.b16 %v4990
    %v5910 = vunpack.c.h.b16 %v4990
    %v5911 = vunpack.c.l.b16 %v4991
    %v5912 = vunpack.c.h.b16 %v4991
    %v5913 = vunpack.c.l.b16 %v4992
    %v5914 = vunpack.c.h.b16 %v4992
    %v5915 = vunpack.c.l.b16 %v4993
    %v5916 = vunpack.c.h.b16 %v4993
    %v5917 = vunpack.c.l.b16 %v4994
    %v5918 = vunpack.c.h.b16 %v4994
    %v5919 = vunpack.c.l.b16 %v4995
    %v5920 = vunpack.c.h.b16 %v4995
    %v5921 = vunpack.c.l.b16 %v4996
    %v5922 = vunpack.c.h.b16 %v4996
    %v5923 = vunpack.c.l.b16 %v4997
    %v5924 = vunpack.c.h.b16 %v4997
    %v5925 = vunpack.c.l.b16 %v4998
    %v5926 = vunpack.c.h.b16 %v4998
    %v5927 = vunpack.c.l.b16 %v4999
    %v5928 = vunpack.c.h.b16 %v4999
    %v5929 = vunpack.c.l.b16 %v5000
    %v5930 = vunpack.c.h.b16 %v5000
    %v5931 = vunpack.c.l.b16 %v5001
    %v5932 = vunpack.c.h.b16 %v5001
    %v5933 = vunpack.c.l.b16 %v5002
    %v5934 = vunpack.c.h.b16 %v5002
    %v5935 = vunpack.c.l.b16 %v5003
    %v5936 = vunpack.c.h.b16 %v5003
    %v5937 = vunpack.c.l.b16 %v5004
    %v5938 = vunpack.c.h.b16 %v5004
    %v5939 = vunpack.c.l.b16 %v5005
    %v5940 = vunpack.c.h.b16 %v5005
    %v5941 = vunpack.c.l.b16 %v5006
    %v5942 = vunpack.c.h.b16 %v5006
    %v5943 = vunpack.c.l.b16 %v5007
    %v5944 = vunpack.c.h.b16 %v5007
    %v5945 = vunpack.c.l.b16 %v5008
    %v5946 = vunpack.c.h.b16 %v5008
    %v5947 = vunpack.c.l.b16 %v5009
    %v5948 = vunpack.c.h.b16 %v5009
    %v5949 = vunpack.c.l.b16 %v5010
    %v5950 = vunpack.c.h.b16 %v5010
    %v5951 = vunpack.c.l.b16 %v5011
    %v5952 = vunpack.c.h.b16 %v5011
    %v5953 = vunpack.c.l.b16 %v5012
    %v5954 = vunpack.c.h.b16 %v5012
    %v5955 = vunpack.c.l.b16 %v5013
    %v5956 = vunpack.c.h.b16 %v5013
    %v5957 = vunpack.c.l.b16 %v5014
    %v5958 = vunpack.c.h.b16 %v5014
    %v5959 = vunpack.c.l.b16 %v5015
    %v5960 = vunpack.c.h.b16 %v5015
    %v5961 = vunpack.c.l.b16 %v5016
    %v5962 = vunpack.c.h.b16 %v5016
    %v5963 = vunpack.c.l.b16 %v5017
    %v5964 = vunpack.c.h.b16 %v5017
    %v5965 = vunpack.c.l.b16 %v5018
    %v5966 = vunpack.c.h.b16 %v5018
    %v5967 = vunpack.c.l.b16 %v5019
    %v5968 = vunpack.c.h.b16 %v5019
    %v5969 = vunpack.c.l.b16 %v5020
    %v5970 = vunpack.c.h.b16 %v5020
    %v5971 = vunpack.c.l.b16 %v5021
    %v5972 = vunpack.c.h.b16 %v5021
    %v5973 = vunpack.c.l.b16 %v5022
    %v5974 = vunpack.c.h.b16 %v5022
    %v5975 = vunpack.c.l.b16 %v5023
    %v5976 = vunpack.c.h.b16 %v5023
    %v5977 = vunpack.c.l.b16 %v5024
    %v5978 = vunpack.c.h.b16 %v5024
    %v5979 = vunpack.c.l.b16 %v5025
    %v5980 = vunpack.c.h.b16 %v5025
    %v5981 = vunpack.c.l.b16 %v5026
    %v5982 = vunpack.c.h.b16 %v5026
    %v5983 = vunpack.c.l.b16 %v5027
    %v5984 = vunpack.c.h.b16 %v5027
    %v5985 = vunpack.c.l.b16 %v5028
    %v5986 = vunpack.c.h.b16 %v5028
    %v5987 = vunpack.c.l.b16 %v5029
    %v5988 = vunpack.c.h.b16 %v5029
    %v5989 = vunpack.c.l.b16 %v5030
    %v5990 = vunpack.c.h.b16 %v5030
    %v5991 = vunpack.c.l.b16 %v5031
    %v5992 = vunpack.c.h.b16 %v5031
    %v5993 = vunpack.c.l.b16 %v5032
    %v5994 = vunpack.c.h.b16 %v5032
    %v5995 = vunpack.c.l.b16 %v5033
    %v5996 = vunpack.c.h.b16 %v5033
    %v5997 = vunpack.c.l.b16 %v5034
    %v5998 = vunpack.c.h.b16 %v5034
    %v5999 = vunpack.c.l.b16 %v5035
    %v6000 = vunpack.c.h.b16 %v5035
    %v6001 = vunpack.c.l.b16 %v5036
    %v6002 = vunpack.c.h.b16 %v5036
    %v6003 = vunpack.c.l.b16 %v5037
    %v6004 = vunpack.c.h.b16 %v5037
    %v6005 = vunpack.c.l.b16 %v5038
    %v6006 = vunpack.c.h.b16 %v5038
    %v6007 = vunpack.c.l.b16 %v5039
    %v6008 = vunpack.c.h.b16 %v5039
    %v6009 = vunpack.c.l.b16 %v5040
    %v6010 = vunpack.c.h.b16 %v5040
    %v6011 = vunpack.c.l.b16 %v5041
    %v6012 = vunpack.c.h.b16 %v5041
    %v6013 = vunpack.c.l.b16 %v5042
    %v6014 = vunpack.c.h.b16 %v5042
    %v6015 = vunpack.c.l.b16 %v5043
    %v6016 = vunpack.c.h.b16 %v5043
    %v6017 = vunpack.c.l.b16 %v5044
    %v6018 = vunpack.c.h.b16 %v5044
    %v6019 = vunpack.c.l.b16 %v5045
    %v6020 = vunpack.c.h.b16 %v5045
    %v6021 = vunpack.c.l.b16 %v5046
    %v6022 = vunpack.c.h.b16 %v5046
    %v6023 = vunpack.c.l.b16 %v5047
    %v6024 = vunpack.c.h.b16 %v5047
    %v6025 = vunpack.c.l.b16 %v5048
    %v6026 = vunpack.c.h.b16 %v5048
    %v6027 = vunpack.c.l.b16 %v5049
    %v6028 = vunpack.c.h.b16 %v5049
    %v6029 = vunpack.c.l.b16 %v5050
    %v6030 = vunpack.c.h.b16 %v5050
    %v6031 = vunpack.c.l.b16 %v5051
    %v6032 = vunpack.c.h.b16 %v5051
    %v6033 = vunpack.c.l.b16 %v5052
    %v6034 = vunpack.c.h.b16 %v5052
    %v6035 = vunpack.c.l.b16 %v5053
    %v6036 = vunpack.c.h.b16 %v5053
    %v6037 = vunpack.c.l.b16 %v5054
    %v6038 = vunpack.c.h.b16 %v5054
    %v6039 = vunpack.c.l.b16 %v5055
    %v6040 = vunpack.c.h.b16 %v5055
    %v6041 = vunpack.c.l.b16 %v5056
    %v6042 = vunpack.c.h.b16 %v5056
    %v6043 = vunpack.c.l.b16 %v5057
    %v6044 = vunpack.c.h.b16 %v5057
    %v6045 = vunpack.c.l.b16 %v5058
    %v6046 = vunpack.c.h.b16 %v5058
    %v6047 = vunpack.c.l.b16 %v5059
    %v6048 = vunpack.c.h.b16 %v5059
    %v6049 = vunpack.c.l.b16 %v5060
    %v6050 = vunpack.c.h.b16 %v5060
    %v6051 = vunpack.c.l.b16 %v5061
    %v6052 = vunpack.c.h.b16 %v5061
    %v6053 = vunpack.c.l.b16 %v5062
    %v6054 = vunpack.c.h.b16 %v5062
    %v6055 = vunpack.c.l.b16 %v5063
    %v6056 = vunpack.c.h.b16 %v5063
    %v6057 = vunpack.c.l.b16 %v5064
    %v6058 = vunpack.c.h.b16 %v5064
    %v6059 = vunpack.c.l.b16 %v5065
    %v6060 = vunpack.c.h.b16 %v5065
    %v6061 = vunpack.c.l.b16 %v5066
    %v6062 = vunpack.c.h.b16 %v5066
    %v6063 = vunpack.c.l.b16 %v5067
    %v6064 = vunpack.c.h.b16 %v5067
    %v6065 = vunpack.c.l.b16 %v5068
    %v6066 = vunpack.c.h.b16 %v5068
    %v6067 = vunpack.c.l.b16 %v5069
    %v6068 = vunpack.c.h.b16 %v5069
    %v6069 = vunpack.c.l.b16 %v5070
    %v6070 = vunpack.c.h.b16 %v5070
    %v6071 = vunpack.c.l.b16 %v5071
    %v6072 = vunpack.c.h.b16 %v5071
    %v6073 = vunpack.c.l.b16 %v5072
    %v6074 = vunpack.c.h.b16 %v5072
    %v6075 = vunpack.c.l.b16 %v5073
    %v6076 = vunpack.c.h.b16 %v5073
    %v6077 = vunpack.c.l.b16 %v5074
    %v6078 = vunpack.c.h.b16 %v5074
    %v6079 = vunpack.c.l.b16 %v5075
    %v6080 = vunpack.c.h.b16 %v5075
    %v6081 = vunpack.c.l.b16 %v5076
    %v6082 = vunpack.c.h.b16 %v5076
    %v6083 = vunpack.c.l.b16 %v5077
    %v6084 = vunpack.c.h.b16 %v5077
    %v6085 = vunpack.c.l.b16 %v5078
    %v6086 = vunpack.c.h.b16 %v5078
    %v6087 = vunpack.c.l.b16 %v5079
    %v6088 = vunpack.c.h.b16 %v5079
    %v6089 = vunpack.c.l.b16 %v5080
    %v6090 = vunpack.c.h.b16 %v5080
    %v6091 = vunpack.c.l.b16 %v5081
    %v6092 = vunpack.c.h.b16 %v5081
    %v6093 = vunpack.c.l.b16 %v5082
    %v6094 = vunpack.c.h.b16 %v5082
    %v6095 = vunpack.c.l.b16 %v5083
    %v6096 = vunpack.c.h.b16 %v5083
    %v6097 = vunpack.c.l.b16 %v5084
    %v6098 = vunpack.c.h.b16 %v5084
    %v6099 = vunpack.c.l.b16 %v5085
    %v6100 = vunpack.c.h.b16 %v5085
    %v6101 = vunpack.c.l.b16 %v5086
    %v6102 = vunpack.c.h.b16 %v5086
    %v6103 = vunpack.c.l.b16 %v5087
    %v6104 = vunpack.c.h.b16 %v5087
    %v6105 = vunpack.c.l.b16 %v5088
    %v6106 = vunpack.c.h.b16 %v5088
    %v6107 = vunpack.c.l.b16 %v5089
    %v6108 = vunpack.c.h.b16 %v5089
    %v6109 = vunpack.c.l.b16 %v5090
    %v6110 = vunpack.c.h.b16 %v5090
    %v6111 = vunpack.c.l.b16 %v5091
    %v6112 = vunpack.c.h.b16 %v5091
    %v6113 = vunpack.c.l.b16 %v5092
    %v6114 = vunpack.c.h.b16 %v5092
    %v6115 = vunpack.c.l.b16 %v5093
    %v6116 = vunpack.c.h.b16 %v5093
    %v6117 = vunpack.c.l.b16 %v5094
    %v6118 = vunpack.c.h.b16 %v5094
    %v6119 = vunpack.c.l.b16 %v5095
    %v6120 = vunpack.c.h.b16 %v5095
    %v6121 = vunpack.c.l.b16 %v5096
    %v6122 = vunpack.c.h.b16 %v5096
    %v6123 = vunpack.c.l.b16 %v5097
    %v6124 = vunpack.c.h.b16 %v5097
    %v6125 = vunpack.c.l.b16 %v5098
    %v6126 = vunpack.c.h.b16 %v5098
    %v6127 = vunpack.c.l.b16 %v5099
    %v6128 = vunpack.c.h.b16 %v5099
    %v6129 = vunpack.c.l.b16 %v5100
    %v6130 = vunpack.c.h.b16 %v5100
    %v6131 = vunpack.c.l.b16 %v5101
    %v6132 = vunpack.c.h.b16 %v5101
    %v6133 = vunpack.c.l.b16 %v5102
    %v6134 = vunpack.c.h.b16 %v5102
    %v6135 = vunpack.c.l.b16 %v5103
    %v6136 = vunpack.c.h.b16 %v5103
    %v6137 = vunpack.c.l.b16 %v5104
    %v6138 = vunpack.c.h.b16 %v5104
    %v6139 = vunpack.c.l.b16 %v5105
    %v6140 = vunpack.c.h.b16 %v5105
    %v6141 = vunpack.c.l.b16 %v5106
    %v6142 = vunpack.c.h.b16 %v5106
    %v6143 = vunpack.c.l.b16 %v5107
    %v6144 = vunpack.c.h.b16 %v5107
    %v6145 = vunpack.c.l.b16 %v5108
    %v6146 = vunpack.c.h.b16 %v5108
    %v6147 = vunpack.c.l.b16 %v5109
    %v6148 = vunpack.c.h.b16 %v5109
    %v6149 = vunpack.c.l.b16 %v5110
    %v6150 = vunpack.c.h.b16 %v5110
    %v6151 = vunpack.c.l.b16 %v5111
    %v6152 = vunpack.c.h.b16 %v5111
    %v6153 = vunpack.c.l.b16 %v5112
    %v6154 = vunpack.c.h.b16 %v5112
    %v6155 = vunpack.c.l.b16 %v5113
    %v6156 = vunpack.c.h.b16 %v5113
    %v6157 = vunpack.c.l.b16 %v5114
    %v6158 = vunpack.c.h.b16 %v5114
    %v6159 = vunpack.c.l.b16 %v5115
    %v6160 = vunpack.c.h.b16 %v5115
    %v6161 = vunpack.c.l.b16 %v5116
    %v6162 = vunpack.c.h.b16 %v5116
    %v6163 = vunpack.c.l.b16 %v5117
    %v6164 = vunpack.c.h.b16 %v5117
    %v6165 = vunpack.c.l.b16 %v5118
    %v6166 = vunpack.c.h.b16 %v5118
    %v6167 = vunpack.c.l.b16 %v5119
    %v6168 = vunpack.c.h.b16 %v5119
    %v6169 = vunpack.c.l.b16 %v5120
    %v6170 = vunpack.c.h.b16 %v5120
    %v6171 = vunpack.c.l.b16 %v5121
    %v6172 = vunpack.c.h.b16 %v5121
    %v6173 = vunpack.c.l.b16 %v5122
    %v6174 = vunpack.c.h.b16 %v5122
    %v6175 = vunpack.c.l.b16 %v5123
    %v6176 = vunpack.c.h.b16 %v5123
    %v6177 = vunpack.c.l.b16 %v5124
    %v6178 = vunpack.c.h.b16 %v5124
    %v6179 = vunpack.c.l.b16 %v5125
    %v6180 = vunpack.c.h.b16 %v5125
    %v6181 = vunpack.c.l.b16 %v5126
    %v6182 = vunpack.c.h.b16 %v5126
    %v6183 = vunpack.c.l.b16 %v5127
    %v6184 = vunpack.c.h.b16 %v5127
    %v6185 = vunpack.c.l.b16 %v5128
    %v6186 = vunpack.c.h.b16 %v5128
    %v6187 = vunpack.c.l.b16 %v5129
    %v6188 = vunpack.c.h.b16 %v5129
    %v6189 = vunpack.c.l.b16 %v5130
    %v6190 = vunpack.c.h.b16 %v5130
    %v6191 = vunpack.c.l.b16 %v5131
    %v6192 = vunpack.c.h.b16 %v5131
    %v6193 = vunpack.c.l.b16 %v5132
    %v6194 = vunpack.c.h.b16 %v5132
    %v6195 = vunpack.c.l.b16 %v5133
    %v6196 = vunpack.c.h.b16 %v5133
    %v6197 = vunpack.c.l.b16 %v5134
    %v6198 = vunpack.c.h.b16 %v5134
    %v6199 = vunpack.c.l.b16 %v5135
    %v6200 = vunpack.c.h.b16 %v5135
    %v6201 = vunpack.c.l.b16 %v5136
    %v6202 = vunpack.c.h.b16 %v5136
    %v6203 = vunpack.c.l.b16 %v5137
    %v6204 = vunpack.c.h.b16 %v5137
    %v6205 = vunpack.c.l.b16 %v5138
    %v6206 = vunpack.c.h.b16 %v5138
    %v6207 = vunpack.c.l.b16 %v5139
    %v6208 = vunpack.c.h.b16 %v5139
    %v6209 = vunpack.c.l.b16 %v5140
    %v6210 = vunpack.c.h.b16 %v5140
    %v6211 = vunpack.c.l.b16 %v5141
    %v6212 = vunpack.c.h.b16 %v5141
    %v6213 = vunpack.c.l.b16 %v5142
    %v6214 = vunpack.c.h.b16 %v5142
    %v6215 = vunpack.c.l.b16 %v5143
    %v6216 = vunpack.c.h.b16 %v5143
    %v6217 = vunpack.c.l.b16 %v5144
    %v6218 = vunpack.c.h.b16 %v5144
    %v6219 = vunpack.c.l.b16 %v5145
    %v6220 = vunpack.c.h.b16 %v5145
    %v6221 = vunpack.c.l.b16 %v5146
    %v6222 = vunpack.c.h.b16 %v5146
    %v6223 = vunpack.c.l.b16 %v5147
    %v6224 = vunpack.c.h.b16 %v5147
    %v6225 = vunpack.c.l.b16 %v5148
    %v6226 = vunpack.c.h.b16 %v5148
    %v6227 = vunpack.c.l.b16 %v5149
    %v6228 = vunpack.c.h.b16 %v5149
    %v6229 = vunpack.c.l.b16 %v5150
    %v6230 = vunpack.c.h.b16 %v5150
    %v6231 = vunpack.c.l.b16 %v5151
    %v6232 = vunpack.c.h.b16 %v5151
    %v6233 = vunpack.c.l.b16 %v5152
    %v6234 = vunpack.c.h.b16 %v5152
    %v6235 = vunpack.c.l.b16 %v5153
    %v6236 = vunpack.c.h.b16 %v5153
    %v6237 = vunpack.c.l.b16 %v5154
    %v6238 = vunpack.c.h.b16 %v5154
    %v6239 = vunpack.c.l.b16 %v5155
    %v6240 = vunpack.c.h.b16 %v5155
    %v6241 = vunpack.c.l.b16 %v5156
    %v6242 = vunpack.c.h.b16 %v5156
    %v6243 = vunpack.c.l.b16 %v5157
    %v6244 = vunpack.c.h.b16 %v5157
    %v6245 = vunpack.c.l.b16 %v5158
    %v6246 = vunpack.c.h.b16 %v5158
    %v6247 = vunpack.c.l.b16 %v5159
    %v6248 = vunpack.c.h.b16 %v5159
    %v6249 = vunpack.c.l.b16 %v5160
    %v6250 = vunpack.c.h.b16 %v5160
    %v6251 = vunpack.c.l.b16 %v5161
    %v6252 = vunpack.c.h.b16 %v5161
    %v6253 = vunpack.c.l.b16 %v5162
    %v6254 = vunpack.c.h.b16 %v5162
    %v6255 = vunpack.c.l.b16 %v5163
    %v6256 = vunpack.c.h.b16 %v5163
    %v6257 = vunpack.c.l.b16 %v5164
    %v6258 = vunpack.c.h.b16 %v5164
    %v6259 = vunpack.c.l.b16 %v5165
    %v6260 = vunpack.c.h.b16 %v5165
    %v6261 = vunpack.c.l.b16 %v5166
    %v6262 = vunpack.c.h.b16 %v5166
    %v6263 = vunpack.c.l.b16 %v5167
    %v6264 = vunpack.c.h.b16 %v5167
    %v6265 = vunpack.c.l.b16 %v5168
    %v6266 = vunpack.c.h.b16 %v5168
    %v6267 = vunpack.c.l.b16 %v5169
    %v6268 = vunpack.c.h.b16 %v5169
    %v6269 = vunpack.c.l.b16 %v5170
    %v6270 = vunpack.c.h.b16 %v5170
    %v6271 = vunpack.c.l.b16 %v5171
    %v6272 = vunpack.c.h.b16 %v5171
    %v6273 = vunpack.c.l.b16 %v5172
    %v6274 = vunpack.c.h.b16 %v5172
    %v6275 = vunpack.c.l.b16 %v5173
    %v6276 = vunpack.c.h.b16 %v5173
    %v6277 = vunpack.c.l.b16 %v5174
    %v6278 = vunpack.c.h.b16 %v5174
    %v6279 = vunpack.c.l.b16 %v5175
    %v6280 = vunpack.c.h.b16 %v5175
    %v6281 = vunpack.c.l.b16 %v5176
    %v6282 = vunpack.c.h.b16 %v5176
    %v6283 = vunpack.c.l.b16 %v5177
    %v6284 = vunpack.c.h.b16 %v5177
    %v6285 = vunpack.c.l.b16 %v5178
    %v6286 = vunpack.c.h.b16 %v5178
    %v6287 = vunpack.c.l.b16 %v5179
    %v6288 = vunpack.c.h.b16 %v5179
    %v6289 = vunpack.c.l.b16 %v5180
    %v6290 = vunpack.c.h.b16 %v5180
    %v6291 = vunpack.c.l.b16 %v5181
    %v6292 = vunpack.c.h.b16 %v5181
    %v6293 = vunpack.c.l.b16 %v5182
    %v6294 = vunpack.c.h.b16 %v5182
    %v6295 = vunpack.c.l.b16 %v5183
    %v6296 = vunpack.c.h.b16 %v5183
    %v6297 = vunpack.c.l.b16 %v5184
    %v6298 = vunpack.c.h.b16 %v5184
    %v6299 = vunpack.c.l.b16 %v5185
    %v6300 = vunpack.c.h.b16 %v5185
    %v6301 = vunpack.c.l.b16 %v5186
    %v6302 = vunpack.c.h.b16 %v5186
    %v6303 = vunpack.c.l.b16 %v5187
    %v6304 = vunpack.c.h.b16 %v5187
    %v6305 = vunpack.c.l.b16 %v5188
    %v6306 = vunpack.c.h.b16 %v5188
    %v6307 = vunpack.c.l.b16 %v5189
    %v6308 = vunpack.c.h.b16 %v5189
    %v6309 = vunpack.c.l.b16 %v5190
    %v6310 = vunpack.c.h.b16 %v5190
    %v6311 = vunpack.c.l.b16 %v5191
    %v6312 = vunpack.c.h.b16 %v5191
    %v6313 = vunpack.c.l.b16 %v5192
    %v6314 = vunpack.c.h.b16 %v5192
    %v6315 = vunpack.c.l.b16 %v5193
    %v6316 = vunpack.c.h.b16 %v5193
    %v6317 = vunpack.c.l.b16 %v5194
    %v6318 = vunpack.c.h.b16 %v5194
    %v6319 = vunpack.c.l.b16 %v5195
    %v6320 = vunpack.c.h.b16 %v5195
    %v6321 = vunpack.c.l.b16 %v5196
    %v6322 = vunpack.c.h.b16 %v5196
    %v6323 = vunpack.c.l.b16 %v5197
    %v6324 = vunpack.c.h.b16 %v5197
    %v6325 = vunpack.c.l.b16 %v5198
    %v6326 = vunpack.c.h.b16 %v5198
    %v6327 = vunpack.c.l.b16 %v5199
    %v6328 = vunpack.c.h.b16 %v5199
    %v6329 = vunpack.c.l.b16 %v5200
    %v6330 = vunpack.c.h.b16 %v5200
    %v6331 = vunpack.c.l.b16 %v5201
    %v6332 = vunpack.c.h.b16 %v5201
    %v6333 = vunpack.c.l.b16 %v5202
    %v6334 = vunpack.c.h.b16 %v5202
    %v6335 = vunpack.c.l.b16 %v5203
    %v6336 = vunpack.c.h.b16 %v5203
    %v6337 = vunpack.c.l.b16 %v5204
    %v6338 = vunpack.c.h.b16 %v5204
    %v6339 = vunpack.c.l.b16 %v5205
    %v6340 = vunpack.c.h.b16 %v5205
    %v6341 = vunpack.c.l.b16 %v5206
    %v6342 = vunpack.c.h.b16 %v5206
    %v6343 = vunpack.c.l.b16 %v5207
    %v6344 = vunpack.c.h.b16 %v5207
    %v6345 = vunpack.c.l.b16 %v5208
    %v6346 = vunpack.c.h.b16 %v5208
    %v6347 = vunpack.c.l.b16 %v5209
    %v6348 = vunpack.c.h.b16 %v5209
    %v6349 = vunpack.c.l.b16 %v5210
    %v6350 = vunpack.c.h.b16 %v5210
    %v6351 = vunpack.c.l.b16 %v5211
    %v6352 = vunpack.c.h.b16 %v5211
    %v6353 = vunpack.c.l.b16 %v5212
    %v6354 = vunpack.c.h.b16 %v5212
    %v6355 = vunpack.c.l.b16 %v5213
    %v6356 = vunpack.c.h.b16 %v5213
    %v6357 = vunpack.c.l.b16 %v5214
    %v6358 = vunpack.c.h.b16 %v5214
    %v6359 = vunpack.c.l.b16 %v5215
    %v6360 = vunpack.c.h.b16 %v5215
    %v6361 = vunpack.c.l.b16 %v5216
    %v6362 = vunpack.c.h.b16 %v5216
    %v6363 = vunpack.c.l.b16 %v5217
    %v6364 = vunpack.c.h.b16 %v5217
    %v6365 = vunpack.c.l.b16 %v5218
    %v6366 = vunpack.c.h.b16 %v5218
    %v6367 = vunpack.c.l.b16 %v5219
    %v6368 = vunpack.c.h.b16 %v5219
    %v6369 = vunpack.c.l.b16 %v5220
    %v6370 = vunpack.c.h.b16 %v5220
    %v6371 = vunpack.c.l.b16 %v5221
    %v6372 = vunpack.c.h.b16 %v5221
    %v6373 = vunpack.c.l.b16 %v5222
    %v6374 = vunpack.c.h.b16 %v5222
    %v6375 = vunpack.c.l.b16 %v5223
    %v6376 = vunpack.c.h.b16 %v5223
    %v6377 = vunpack.c.l.b16 %v5224
    %v6378 = vunpack.c.h.b16 %v5224
    %v6379 = vunpack.c.l.b16 %v5225
    %v6380 = vunpack.c.h.b16 %v5225
    %v6381 = vunpack.c.l.b16 %v5226
    %v6382 = vunpack.c.h.b16 %v5226
    %v6383 = vunpack.c.l.b16 %v5227
    %v6384 = vunpack.c.h.b16 %v5227
    %v6385 = vunpack.c.l.b16 %v5228
    %v6386 = vunpack.c.h.b16 %v5228
    %v6387 = vunpack.c.l.b16 %v5229
    %v6388 = vunpack.c.h.b16 %v5229
    %v6389 = vunpack.c.l.b16 %v5230
    %v6390 = vunpack.c.h.b16 %v5230
    %v6391 = vunpack.c.l.b16 %v5231
    %v6392 = vunpack.c.h.b16 %v5231
    %v6393 = vunpack.c.l.b16 %v5232
    %v6394 = vunpack.c.h.b16 %v5232
    %v6395 = vunpack.c.l.b16 %v5233
    %v6396 = vunpack.c.h.b16 %v5233
    %v6397 = vunpack.c.l.b16 %v5234
    %v6398 = vunpack.c.h.b16 %v5234
    %v6399 = vunpack.c.l.b16 %v5235
    %v6400 = vunpack.c.h.b16 %v5235
    %v6401 = vunpack.c.l.b16 %v5236
    %v6402 = vunpack.c.h.b16 %v5236
    %v6403 = vunpack.c.l.b16 %v5237
    %v6404 = vunpack.c.h.b16 %v5237
    %v6405 = vunpack.c.l.b16 %v5238
    %v6406 = vunpack.c.h.b16 %v5238
    %v6407 = vunpack.c.l.b16 %v5239
    %v6408 = vunpack.c.h.b16 %v5239
    %v6409 = vunpack.c.l.b16 %v5240
    %v6410 = vunpack.c.h.b16 %v5240
    %v6411 = vunpack.c.l.b16 %v5241
    %v6412 = vunpack.c.h.b16 %v5241
    %v6413 = vunpack.c.l.b16 %v5242
    %v6414 = vunpack.c.h.b16 %v5242
    %v6415 = vunpack.c.l.b16 %v5243
    %v6416 = vunpack.c.h.b16 %v5243
    %v6417 = vunpack.c.l.b16 %v5244
    %v6418 = vunpack.c.h.b16 %v5244
    %v6419 = vunpack.c.l.b16 %v5245
    %v6420 = vunpack.c.h.b16 %v5245
    %v6421 = vunpack.c.l.b16 %v5246
    %v6422 = vunpack.c.h.b16 %v5246
    %v6423 = vunpack.c.l.b16 %v5247
    %v6424 = vunpack.c.h.b16 %v5247
    %v6425 = vunpack.c.l.b16 %v5248
    %v6426 = vunpack.c.h.b16 %v5248
    %v6427 = vunpack.c.l.b16 %v5249
    %v6428 = vunpack.c.h.b16 %v5249
    %v6429 = vunpack.c.l.b16 %v5250
    %v6430 = vunpack.c.h.b16 %v5250
    %v6431 = vpack.c.b16 %v5675, %v5663
    %v6432 = vpack.c.b16 %v5676, %v5664
    %v6433 = vpack.c.b16 %v5677, %v5665
    %v6434 = vpack.c.b16 %v5678, %v5666
    %v6435 = vpack.c.b16 %v5679, %v5667
    %v6436 = vpack.c.b16 %v5680, %v5668
    %v6437 = vpack.c.b16 %v5681, %v5669
    %v6438 = vpack.c.b16 %v5682, %v5670
    %v6439 = vpack.c.b16 %v5683, %v5671
    %v6440 = vpack.c.b16 %v5684, %v5672
    %v6441 = vpack.c.b16 %v5685, %v5673
    %v6442 = vpack.c.b16 %v5686, %v5674
    %v6443 = vpack.c.b16 %v5699, %v5687
    %v6444 = vpack.c.b16 %v5700, %v5688
    %v6445 = vpack.c.b16 %v5701, %v5689
    %v6446 = vpack.c.b16 %v5702, %v5690
    %v6447 = vpack.c.b16 %v5703, %v5691
    %v6448 = vpack.c.b16 %v5704, %v5692
    %v6449 = vpack.c.b16 %v5705, %v5693
    %v6450 = vpack.c.b16 %v5706, %v5694
    %v6451 = vpack.c.b16 %v5707, %v5695
    %v6452 = vpack.c.b16 %v5708, %v5696
    %v6453 = vpack.c.b16 %v5709, %v5697
    %v6454 = vpack.c.b16 %v5710, %v5698
    %v6455 = vpack.c.b16 %v5723, %v5711
    %v6456 = vpack.c.b16 %v5724, %v5712
    %v6457 = vpack.c.b16 %v5725, %v5713
    %v6458 = vpack.c.b16 %v5726, %v5714
    %v6459 = vpack.c.b16 %v5727, %v5715
    %v6460 = vpack.c.b16 %v5728, %v5716
    %v6461 = vpack.c.b16 %v5729, %v5717
    %v6462 = vpack.c.b16 %v5730, %v5718
    %v6463 = vpack.c.b16 %v5731, %v5719
    %v6464 = vpack.c.b16 %v5732, %v5720
    %v6465 = vpack.c.b16 %v5733, %v5721
    %v6466 = vpack.c.b16 %v5734, %v5722
    %v6467 = vpack.c.b16 %v5747, %v5735
    %v6468 = vpack.c.b16 %v5748, %v5736
    %v6469 = vpack.c.b16 %v5749, %v5737
    %v6470 = vpack.c.b16 %v5750, %v5738
    %v6471 = vpack.c.b16 %v5751, %v5739
    %v6472 = vpack.c.b16 %v5752, %v5740
    %v6473 = vpack.c.b16 %v5753, %v5741
    %v6474 = vpack.c.b16 %v5754, %v5742
    %v6475 = vpack.c.b16 %v5755, %v5743
    %v6476 = vpack.c.b16 %v5756, %v5744
    %v6477 = vpack.c.b16 %v5757, %v5745
    %v6478 = vpack.c.b16 %v5758, %v5746
    %v6479 = vpack.c.b16 %v5771, %v5759
    %v6480 = vpack.c.b16 %v5772, %v5760
    %v6481 = vpack.c.b16 %v5773, %v5761
    %v6482 = vpack.c.b16 %v5774, %v5762
    %v6483 = vpack.c.b16 %v5775, %v5763
    %v6484 = vpack.c.b16 %v5776, %v5764
    %v6485 = vpack.c.b16 %v5777, %v5765
    %v6486 = vpack.c.b16 %v5778, %v5766
    %v6487 = vpack.c.b16 %v5779, %v5767
    %v6488 = vpack.c.b16 %v5780, %v5768
    %v6489 = vpack.c.b16 %v5781, %v5769
    %v6490 = vpack.c.b16 %v5782, %v5770
    %v6491 = vpack.c.b16 %v5795, %v5783
    %v6492 = vpack.c.b16 %v5796, %v5784
    %v6493 = vpack.c.b16 %v5797, %v5785
    %v6494 = vpack.c.b16 %v5798, %v5786
    %v6495 = vpack.c.b16 %v5799, %v5787
    %v6496 = vpack.c.b16 %v5800, %v5788
    %v6497 = vpack.c.b16 %v5801, %v5789
    %v6498 = vpack.c.b16 %v5802, %v5790
    %v6499 = vpack.c.b16 %v5803, %v5791
    %v6500 = vpack.c.b16 %v5804, %v5792
    %v6501 = vpack.c.b16 %v5805, %v5793
    %v6502 = vpack.c.b16 %v5806, %v5794
    %v6503 = vpack.c.b16 %v5819, %v5807
    %v6504 = vpack.c.b16 %v5820, %v5808
    %v6505 = vpack.c.b16 %v5821, %v5809
    %v6506 = vpack.c.b16 %v5822, %v5810
    %v6507 = vpack.c.b16 %v5823, %v5811
    %v6508 = vpack.c.b16 %v5824, %v5812
    %v6509 = vpack.c.b16 %v5825, %v5813
    %v6510 = vpack.c.b16 %v5826, %v5814
    %v6511 = vpack.c.b16 %v5827, %v5815
    %v6512 = vpack.c.b16 %v5828, %v5816
    %v6513 = vpack.c.b16 %v5829, %v5817
    %v6514 = vpack.c.b16 %v5830, %v5818
    %v6515 = vpack.c.b16 %v5843, %v5831
    %v6516 = vpack.c.b16 %v5844, %v5832
    %v6517 = vpack.c.b16 %v5845, %v5833
    %v6518 = vpack.c.b16 %v5846, %v5834
    %v6519 = vpack.c.b16 %v5847, %v5835
    %v6520 = vpack.c.b16 %v5848, %v5836
    %v6521 = vpack.c.b16 %v5849, %v5837
    %v6522 = vpack.c.b16 %v5850, %v5838
    %v6523 = vpack.c.b16 %v5851, %v5839
    %v6524 = vpack.c.b16 %v5852, %v5840
    %v6525 = vpack.c.b16 %v5853, %v5841
    %v6526 = vpack.c.b16 %v5854, %v5842
    %v6527 = vpack.c.b16 %v5867, %v5855
    %v6528 = vpack.c.b16 %v5868, %v5856
    %v6529 = vpack.c.b16 %v5869, %v5857
    %v6530 = vpack.c.b16 %v5870, %v5858
    %v6531 = vpack.c.b16 %v5871, %v5859
    %v6532 = vpack.c.b16 %v5872, %v5860
    %v6533 = vpack.c.b16 %v5873, %v5861
    %v6534 = vpack.c.b16 %v5874, %v5862
    %v6535 = vpack.c.b16 %v5875, %v5863
    %v6536 = vpack.c.b16 %v5876, %v5864
    %v6537 = vpack.c.b16 %v5877, %v5865
    %v6538 = vpack.c.b16 %v5878, %v5866
    %v6539 = vpack.c.b16 %v5891, %v5879
    %v6540 = vpack.c.b16 %v5892, %v5880
    %v6541 = vpack.c.b16 %v5893, %v5881
    %v6542 = vpack.c.b16 %v5894, %v5882
    %v6543 = vpack.c.b16 %v5895, %v5883
    %v6544 = vpack.c.b16 %v5896, %v5884
    %v6545 = vpack.c.b16 %v5897, %v5885
    %v6546 = vpack.c.b16 %v5898, %v5886
    %v6547 = vpack.c.b16 %v5899, %v5887
    %v6548 = vpack.c.b16 %v5900, %v5888
    %v6549 = vpack.c.b16 %v5901, %v5889
    %v6550 = vpack.c.b16 %v5902, %v5890
    %v6551 = vpack.c.b16 %v5915, %v5903
    %v6552 = vpack.c.b16 %v5916, %v5904
    %v6553 = vpack.c.b16 %v5917, %v5905
    %v6554 = vpack.c.b16 %v5918, %v5906
    %v6555 = vpack.c.b16 %v5919, %v5907
    %v6556 = vpack.c.b16 %v5920, %v5908
    %v6557 = vpack.c.b16 %v5921, %v5909
    %v6558 = vpack.c.b16 %v5922, %v5910
    %v6559 = vpack.c.b16 %v5923, %v5911
    %v6560 = vpack.c.b16 %v5924, %v5912
    %v6561 = vpack.c.b16 %v5925, %v5913
    %v6562 = vpack.c.b16 %v5926, %v5914
    %v6563 = vpack.c.b16 %v5939, %v5927
    %v6564 = vpack.c.b16 %v5940, %v5928
    %v6565 = vpack.c.b16 %v5941, %v5929
    %v6566 = vpack.c.b16 %v5942, %v5930
    %v6567 = vpack.c.b16 %v5943, %v5931
    %v6568 = vpack.c.b16 %v5944, %v5932
    %v6569 = vpack.c.b16 %v5945, %v5933
    %v6570 = vpack.c.b16 %v5946, %v5934
    %v6571 = vpack.c.b16 %v5947, %v5935
    %v6572 = vpack.c.b16 %v5948, %v5936
    %v6573 = vpack.c.b16 %v5949, %v5937
    %v6574 = vpack.c.b16 %v5950, %v5938
    %v6575 = vpack.c.b16 %v5963, %v5951
    %v6576 = vpack.c.b16 %v5964, %v5952
    %v6577 = vpack.c.b16 %v5965, %v5953
    %v6578 = vpack.c.b16 %v5966, %v5954
    %v6579 = vpack.c.b16 %v5967, %v5955
    %v6580 = vpack.c.b16 %v5968, %v5956
    %v6581 = vpack.c.b16 %v5969, %v5957
    %v6582 = vpack.c.b16 %v5970, %v5958
    %v6583 = vpack.c.b16 %v5971, %v5959
    %v6584 = vpack.c.b16 %v5972, %v5960
    %v6585 = vpack.c.b16 %v5973, %v5961
    %v6586 = vpack.c.b16 %v5974, %v5962
    %v6587 = vpack.c.b16 %v5987, %v5975
    %v6588 = vpack.c.b16 %v5988, %v5976
    %v6589 = vpack.c.b16 %v5989, %v5977
    %v6590 = vpack.c.b16 %v5990, %v5978
    %v6591 = vpack.c.b16 %v5991, %v5979
    %v6592 = vpack.c.b16 %v5992, %v5980
    %v6593 = vpack.c.b16 %v5993, %v5981
    %v6594 = vpack.c.b16 %v5994, %v5982
    %v6595 = vpack.c.b16 %v5995, %v5983
    %v6596 = vpack.c.b16 %v5996, %v5984
    %v6597 = vpack.c.b16 %v5997, %v5985
    %v6598 = vpack.c.b16 %v5998, %v5986
    %v6599 = vpack.c.b16 %v6011, %v5999
    %v6600 = vpack.c.b16 %v6012, %v6000
    %v6601 = vpack.c.b16 %v6013, %v6001
    %v6602 = vpack.c.b16 %v6014, %v6002
    %v6603 = vpack.c.b16 %v6015, %v6003
    %v6604 = vpack.c.b16 %v6016, %v6004
    %v6605 = vpack.c.b16 %v6017, %v6005
    %v6606 = vpack.c.b16 %v6018, %v6006
    %v6607 = vpack.c.b16 %v6019, %v6007
    %v6608 = vpack.c.b16 %v6020, %v6008
    %v6609 = vpack.c.b16 %v6021, %v6009
    %v6610 = vpack.c.b16 %v6022, %v6010
    %v6611 = vpack.c.b16 %v6035, %v6023
    %v6612 = vpack.c.b16 %v6036, %v6024
    %v6613 = vpack.c.b16 %v6037, %v6025
    %v6614 = vpack.c.b16 %v6038, %v6026
    %v6615 = vpack.c.b16 %v6039, %v6027
    %v6616 = vpack.c.b16 %v6040, %v6028
    %v6617 = vpack.c.b16 %v6041, %v6029
    %v6618 = vpack.c.b16 %v6042, %v6030
    %v6619 = vpack.c.b16 %v6043, %v6031
    %v6620 = vpack.c.b16 %v6044, %v6032
    %v6621 = vpack.c.b16 %v6045, %v6033
    %v6622 = vpack.c.b16 %v6046, %v6034
    %v6623 = vpack.c.b16 %v6059, %v6047
    %v6624 = vpack.c.b16 %v6060, %v6048
    %v6625 = vpack.c.b16 %v6061, %v6049
    %v6626 = vpack.c.b16 %v6062, %v6050
    %v6627 = vpack.c.b16 %v6063, %v6051
    %v6628 = vpack.c.b16 %v6064, %v6052
    %v6629 = vpack.c.b16 %v6065, %v6053
    %v6630 = vpack.c.b16 %v6066, %v6054
    %v6631 = vpack.c.b16 %v6067, %v6055
    %v6632 = vpack.c.b16 %v6068, %v6056
    %v6633 = vpack.c.b16 %v6069, %v6057
    %v6634 = vpack.c.b16 %v6070, %v6058
    %v6635 = vpack.c.b16 %v6083, %v6071
    %v6636 = vpack.c.b16 %v6084, %v6072
    %v6637 = vpack.c.b16 %v6085, %v6073
    %v6638 = vpack.c.b16 %v6086, %v6074
    %v6639 = vpack.c.b16 %v6087, %v6075
    %v6640 = vpack.c.b16 %v6088, %v6076
    %v6641 = vpack.c.b16 %v6089, %v6077
    %v6642 = vpack.c.b16 %v6090, %v6078
    %v6643 = vpack.c.b16 %v6091, %v6079
    %v6644 = vpack.c.b16 %v6092, %v6080
    %v6645 = vpack.c.b16 %v6093, %v6081
    %v6646 = vpack.c.b16 %v6094, %v6082
    %v6647 = vpack.c.b16 %v6107, %v6095
    %v6648 = vpack.c.b16 %v6108, %v6096
    %v6649 = vpack.c.b16 %v6109, %v6097
    %v6650 = vpack.c.b16 %v6110, %v6098
    %v6651 = vpack.c.b16 %v6111, %v6099
    %v6652 = vpack.c.b16 %v6112, %v6100
    %v6653 = vpack.c.b16 %v6113, %v6101
    %v6654 = vpack.c.b16 %v6114, %v6102
    %v6655 = vpack.c.b16 %v6115, %v6103
    %v6656 = vpack.c.b16 %v6116, %v6104
    %v6657 = vpack.c.b16 %v6117, %v6105
    %v6658 = vpack.c.b16 %v6118, %v6106
    %v6659 = vpack.c.b16 %v6131, %v6119
    %v6660 = vpack.c.b16 %v6132, %v6120
    %v6661 = vpack.c.b16 %v6133, %v6121
    %v6662 = vpack.c.b16 %v6134, %v6122
    %v6663 = vpack.c.b16 %v6135, %v6123
    %v6664 = vpack.c.b16 %v6136, %v6124
    %v6665 = vpack.c.b16 %v6137, %v6125
    %v6666 = vpack.c.b16 %v6138, %v6126
    %v6667 = vpack.c.b16 %v6139, %v6127
    %v6668 = vpack.c.b16 %v6140, %v6128
    %v6669 = vpack.c.b16 %v6141, %v6129
    %v6670 = vpack.c.b16 %v6142, %v6130
    %v6671 = vpack.c.b16 %v6155, %v6143
    %v6672 = vpack.c.b16 %v6156, %v6144
    %v6673 = vpack.c.b16 %v6157, %v6145
    %v6674 = vpack.c.b16 %v6158, %v6146
    %v6675 = vpack.c.b16 %v6159, %v6147
    %v6676 = vpack.c.b16 %v6160, %v6148
    %v6677 = vpack.c.b16 %v6161, %v6149
    %v6678 = vpack.c.b16 %v6162, %v6150
    %v6679 = vpack.c.b16 %v6163, %v6151
    %v6680 = vpack.c.b16 %v6164, %v6152
    %v6681 = vpack.c.b16 %v6165, %v6153
    %v6682 = vpack.c.b16 %v6166, %v6154
    %v6683 = vpack.c.b16 %v6179, %v6167
    %v6684 = vpack.c.b16 %v6180, %v6168
    %v6685 = vpack.c.b16 %v6181, %v6169
    %v6686 = vpack.c.b16 %v6182, %v6170
    %v6687 = vpack.c.b16 %v6183, %v6171
    %v6688 = vpack.c.b16 %v6184, %v6172
    %v6689 = vpack.c.b16 %v6185, %v6173
    %v6690 = vpack.c.b16 %v6186, %v6174
    %v6691 = vpack.c.b16 %v6187, %v6175
    %v6692 = vpack.c.b16 %v6188, %v6176
    %v6693 = vpack.c.b16 %v6189, %v6177
    %v6694 = vpack.c.b16 %v6190, %v6178
    %v6695 = vpack.c.b16 %v6203, %v6191
    %v6696 = vpack.c.b16 %v6204, %v6192
    %v6697 = vpack.c.b16 %v6205, %v6193
    %v6698 = vpack.c.b16 %v6206, %v6194
    %v6699 = vpack.c.b16 %v6207, %v6195
    %v6700 = vpack.c.b16 %v6208, %v6196
    %v6701 = vpack.c.b16 %v6209, %v6197
    %v6702 = vpack.c.b16 %v6210, %v6198
    %v6703 = vpack.c.b16 %v6211, %v6199
    %v6704 = vpack.c.b16 %v6212, %v6200
    %v6705 = vpack.c.b16 %v6213, %v6201
    %v6706 = vpack.c.b16 %v6214, %v6202
    %v6707 = vpack.c.b16 %v6227, %v6215
    %v6708 = vpack.c.b16 %v6228, %v6216
    %v6709 = vpack.c.b16 %v6229, %v6217
    %v6710 = vpack.c.b16 %v6230, %v6218
    %v6711 = vpack.c.b16 %v6231, %v6219
    %v6712 = vpack.c.b16 %v6232, %v6220
    %v6713 = vpack.c.b16 %v6233, %v6221
    %v6714 = vpack.c.b16 %v6234, %v6222
    %v6715 = vpack.c.b16 %v6235, %v6223
    %v6716 = vpack.c.b16 %v6236, %v6224
    %v6717 = vpack.c.b16 %v6237, %v6225
    %v6718 = vpack.c.b16 %v6238, %v6226
    %v6719 = vpack.c.b16 %v6251, %v6239
    %v6720 = vpack.c.b16 %v6252, %v6240
    %v6721 = vpack.c.b16 %v6253, %v6241
    %v6722 = vpack.c.b16 %v6254, %v6242
    %v6723 = vpack.c.b16 %v6255, %v6243
    %v6724 = vpack.c.b16 %v6256, %v6244
    %v6725 = vpack.c.b16 %v6257, %v6245
    %v6726 = vpack.c.b16 %v6258, %v6246
    %v6727 = vpack.c.b16 %v6259, %v6247
    %v6728 = vpack.c.b16 %v6260, %v6248
    %v6729 = vpack.c.b16 %v6261, %v6249
    %v6730 = vpack.c.b16 %v6262, %v6250
    %v6731 = vpack.c.b16 %v6275, %v6263
    %v6732 = vpack.c.b16 %v6276, %v6264
    %v6733 = vpack.c.b16 %v6277, %v6265
    %v6734 = vpack.c.b16 %v6278, %v6266
    %v6735 = vpack.c.b16 %v6279, %v6267
    %v6736 = vpack.c.b16 %v6280, %v6268
    %v6737 = vpack.c.b16 %v6281, %v6269
    %v6738 = vpack.c.b16 %v6282, %v6270
    %v6739 = vpack.c.b16 %v6283, %v6271
    %v6740 = vpack.c.b16 %v6284, %v6272
    %v6741 = vpack.c.b16 %v6285, %v6273
    %v6742 = vpack.c.b16 %v6286, %v6274
    %v6743 = vpack.c.b16 %v6299, %v6287
    %v6744 = vpack.c.b16 %v6300, %v6288
    %v6745 = vpack.c.b16 %v6301, %v6289
    %v6746 = vpack.c.b16 %v6302, %v6290
    %v6747 = vpack.c.b16 %v6303, %v6291
    %v6748 = vpack.c.b16 %v6304, %v6292
    %v6749 = vpack.c.b16 %v6305, %v6293
    %v6750 = vpack.c.b16 %v6306, %v6294
    %v6751 = vpack.c.b16 %v6307, %v6295
    %v6752 = vpack.c.b16 %v6308, %v6296
    %v6753 = vpack.c.b16 %v6309, %v6297
    %v6754 = vpack.c.b16 %v6310, %v6298
    %v6755 = vpack.c.b16 %v6323, %v6311
    %v6756 = vpack.c.b16 %v6324, %v6312
    %v6757 = vpack.c.b16 %v6325, %v6313
    %v6758 = vpack.c.b16 %v6326, %v6314
    %v6759 = vpack.c.b16 %v6327, %v6315
    %v6760 = vpack.c.b16 %v6328, %v6316
    %v6761 = vpack.c.b16 %v6329, %v6317
    %v6762 = vpack.c.b16 %v6330, %v6318
    %v6763 = vpack.c.b16 %v6331, %v6319
    %v6764 = vpack.c.b16 %v6332, %v6320
    %v6765 = vpack.c.b16 %v6333, %v6321
    %v6766 = vpack.c.b16 %v6334, %v6322
    %v6767 = vpack.c.b16 %v6347, %v6335
    %v6768 = vpack.c.b16 %v6348, %v6336
    %v6769 = vpack.c.b16 %v6349, %v6337
    %v6770 = vpack.c.b16 %v6350, %v6338
    %v6771 = vpack.c.b16 %v6351, %v6339
    %v6772 = vpack.c.b16 %v6352, %v6340
    %v6773 = vpack.c.b16 %v6353, %v6341
    %v6774 = vpack.c.b16 %v6354, %v6342
    %v6775 = vpack.c.b16 %v6355, %v6343
    %v6776 = vpack.c.b16 %v6356, %v6344
    %v6777 = vpack.c.b16 %v6357, %v6345
    %v6778 = vpack.c.b16 %v6358, %v6346
    %v6779 = vpack.c.b16 %v6371, %v6359
    %v6780 = vpack.c.b16 %v6372, %v6360
    %v6781 = vpack.c.b16 %v6373, %v6361
    %v6782 = vpack.c.b16 %v6374, %v6362
    %v6783 = vpack.c.b16 %v6375, %v6363
    %v6784 = vpack.c.b16 %v6376, %v6364
    %v6785 = vpack.c.b16 %v6377, %v6365
    %v6786 = vpack.c.b16 %v6378, %v6366
    %v6787 = vpack.c.b16 %v6379, %v6367
    %v6788 = vpack.c.b16 %v6380, %v6368
    %v6789 = vpack.c.b16 %v6381, %v6369
    %v6790 = vpack.c.b16 %v6382, %v6370
    %v6791 = vpack.c.b16 %v6395, %v6383
    %v6792 = vpack.c.b16 %v6396, %v6384
    %v6793 = vpack.c.b16 %v6397, %v6385
    %v6794 = vpack.c.b16 %v6398, %v6386
    %v6795 = vpack.c.b16 %v6399, %v6387
    %v6796 = vpack.c.b16 %v6400, %v6388
    %v6797 = vpack.c.b16 %v6401, %v6389
    %v6798 = vpack.c.b16 %v6402, %v6390
    %v6799 = vpack.c.b16 %v6403, %v6391
    %v6800 = vpack.c.b16 %v6404, %v6392
    %v6801 = vpack.c.b16 %v6405, %v6393
    %v6802 = vpack.c.b16 %v6406, %v6394
    %v6803 = vpack.c.b16 %v6419, %v6407
    %v6804 = vpack.c.b16 %v6420, %v6408
    %v6805 = vpack.c.b16 %v6421, %v6409
    %v6806 = vpack.c.b16 %v6422, %v6410
    %v6807 = vpack.c.b16 %v6423, %v6411
    %v6808 = vpack.c.b16 %v6424, %v6412
    %v6809 = vpack.c.b16 %v6425, %v6413
    %v6810 = vpack.c.b16 %v6426, %v6414
    %v6811 = vpack.c.b16 %v6427, %v6415
    %v6812 = vpack.c.b16 %v6428, %v6416
    %v6813 = vpack.c.b16 %v6429, %v6417
    %v6814 = vpack.c.b16 %v6430, %v6418
    %7199 = vmatpush.bf16.msra.mxu0 %v6515
    %7200 = vmatpush.bf16.msra.mxu0 %v6503
    %7201 = vmatpush.bf16.msra.mxu0 %v6491
    %7202 = vmatpush.bf16.msra.mxu0 %v6479
    %7203 = vmatpush.bf16.msra.mxu0 %v6467
    %7204 = vmatpush.bf16.msra.mxu0 %v6455
    %7205 = vmatpush.bf16.msra.mxu0 %v6443
    %7206 = vmatpush.bf16.msra.mxu0 %v6431
    %7207 = vmatmul.bf16.gmra.mxu0 %v4863
    %v7208 = vpop.f32.mrf.mxu0
    %v7209 = vadd.f32 %v5255, %v7208
    %v7210 = vpop.f32.mrf.mxu0
    %7211 = vdwg.mxu0
    %7212 = vmatpush.bf16.msra.mxu0 %v6611
    %7213 = vmatpush.bf16.msra.mxu0 %v6599
    %7214 = vmatpush.bf16.msra.mxu0 %v6587
    %7215 = vmatpush.bf16.msra.mxu0 %v6575
    %7216 = vmatpush.bf16.msra.mxu0 %v6563
    %7217 = vmatpush.bf16.msra.mxu0 %v6551
    %7218 = vmatpush.bf16.msra.mxu0 %v6539
    %7219 = vmatpush.bf16.msra.mxu0 %v6527
    %7220 = vmatmul.bf16.gmra.mxu0 %v4864
    %v7221 = vpop.f32.mrf.mxu0
    %v7222 = vadd.f32 %v7209, %v7221
    %v7223 = vpop.f32.mrf.mxu0
    %7224 = vdwg.mxu0
    %7225 = vmatpush.bf16.msra.mxu0 %v6707
    %7226 = vmatpush.bf16.msra.mxu0 %v6695
    %7227 = vmatpush.bf16.msra.mxu0 %v6683
    %7228 = vmatpush.bf16.msra.mxu0 %v6671
    %7229 = vmatpush.bf16.msra.mxu0 %v6659
    %7230 = vmatpush.bf16.msra.mxu0 %v6647
    %7231 = vmatpush.bf16.msra.mxu0 %v6635
    %7232 = vmatpush.bf16.msra.mxu0 %v6623
    %7233 = vmatmul.bf16.gmra.mxu0 %v4865
    %v7234 = vpop.f32.mrf.mxu0
    %v7235 = vadd.f32 %v7222, %v7234
    %v7236 = vpop.f32.mrf.mxu0
    %7237 = vdwg.mxu0
    %7238 = vmatpush.bf16.msra.mxu0 %v6803
    %7239 = vmatpush.bf16.msra.mxu0 %v6791
    %7240 = vmatpush.bf16.msra.mxu0 %v6779
    %7241 = vmatpush.bf16.msra.mxu0 %v6767
    %7242 = vmatpush.bf16.msra.mxu0 %v6755
    %7243 = vmatpush.bf16.msra.mxu0 %v6743
    %7244 = vmatpush.bf16.msra.mxu0 %v6731
    %7245 = vmatpush.bf16.msra.mxu0 %v6719
    %7246 = vmatmul.bf16.gmra.mxu0 %v4866
    %v7247 = vpop.f32.mrf.mxu0
    %v7248 = vadd.f32 %v7235, %v7247
    %v7249 = vpop.f32.mrf.mxu0
    %7250 = vdwg.mxu0
    %7251 = vmatpush.bf16.msra.mxu0 %v6516
    %7252 = vmatpush.bf16.msra.mxu0 %v6504
    %7253 = vmatpush.bf16.msra.mxu0 %v6492
    %7254 = vmatpush.bf16.msra.mxu0 %v6480
    %7255 = vmatpush.bf16.msra.mxu0 %v6468
    %7256 = vmatpush.bf16.msra.mxu0 %v6456
    %7257 = vmatpush.bf16.msra.mxu0 %v6444
    %7258 = vmatpush.bf16.msra.mxu0 %v6432
    %7259 = vmatmul.bf16.gmra.mxu0 %v4863
    %v7260 = vpop.f32.mrf.mxu0
    %v7261 = vadd.f32 %v5256, %v7260
    %v7262 = vpop.f32.mrf.mxu0
    %7263 = vdwg.mxu0
    %7264 = vmatpush.bf16.msra.mxu0 %v6612
    %7265 = vmatpush.bf16.msra.mxu0 %v6600
    %7266 = vmatpush.bf16.msra.mxu0 %v6588
    %7267 = vmatpush.bf16.msra.mxu0 %v6576
    %7268 = vmatpush.bf16.msra.mxu0 %v6564
    %7269 = vmatpush.bf16.msra.mxu0 %v6552
    %7270 = vmatpush.bf16.msra.mxu0 %v6540
    %7271 = vmatpush.bf16.msra.mxu0 %v6528
    %7272 = vmatmul.bf16.gmra.mxu0 %v4864
    %v7273 = vpop.f32.mrf.mxu0
    %v7274 = vadd.f32 %v7261, %v7273
    %v7275 = vpop.f32.mrf.mxu0
    %7276 = vdwg.mxu0
    %7277 = vmatpush.bf16.msra.mxu0 %v6708
    %7278 = vmatpush.bf16.msra.mxu0 %v6696
    %7279 = vmatpush.bf16.msra.mxu0 %v6684
    %7280 = vmatpush.bf16.msra.mxu0 %v6672
    %7281 = vmatpush.bf16.msra.mxu0 %v6660
    %7282 = vmatpush.bf16.msra.mxu0 %v6648
    %7283 = vmatpush.bf16.msra.mxu0 %v6636
    %7284 = vmatpush.bf16.msra.mxu0 %v6624
    %7285 = vmatmul.bf16.gmra.mxu0 %v4865
    %v7286 = vpop.f32.mrf.mxu0
    %v7287 = vadd.f32 %v7274, %v7286
    %v7288 = vpop.f32.mrf.mxu0
    %7289 = vdwg.mxu0
    %7290 = vmatpush.bf16.msra.mxu0 %v6804
    %7291 = vmatpush.bf16.msra.mxu0 %v6792
    %7292 = vmatpush.bf16.msra.mxu0 %v6780
    %7293 = vmatpush.bf16.msra.mxu0 %v6768
    %7294 = vmatpush.bf16.msra.mxu0 %v6756
    %7295 = vmatpush.bf16.msra.mxu0 %v6744
    %7296 = vmatpush.bf16.msra.mxu0 %v6732
    %7297 = vmatpush.bf16.msra.mxu0 %v6720
    %7298 = vmatmul.bf16.gmra.mxu0 %v4866
    %v7299 = vpop.f32.mrf.mxu0
    %v7300 = vadd.f32 %v7287, %v7299
    %v7301 = vpop.f32.mrf.mxu0
    %7302 = vdwg.mxu0
    %7303 = vmatpush.bf16.msra.mxu0 %v6517
    %7304 = vmatpush.bf16.msra.mxu0 %v6505
    %7305 = vmatpush.bf16.msra.mxu0 %v6493
    %7306 = vmatpush.bf16.msra.mxu0 %v6481
    %7307 = vmatpush.bf16.msra.mxu0 %v6469
    %7308 = vmatpush.bf16.msra.mxu0 %v6457
    %7309 = vmatpush.bf16.msra.mxu0 %v6445
    %7310 = vmatpush.bf16.msra.mxu0 %v6433
    %7311 = vmatmul.bf16.gmra.mxu0 %v4863
    %v7312 = vpop.f32.mrf.mxu0
    %v7313 = vadd.f32 %v5257, %v7312
    %v7314 = vpop.f32.mrf.mxu0
    %7315 = vdwg.mxu0
    %7316 = vmatpush.bf16.msra.mxu0 %v6613
    %7317 = vmatpush.bf16.msra.mxu0 %v6601
    %7318 = vmatpush.bf16.msra.mxu0 %v6589
    %7319 = vmatpush.bf16.msra.mxu0 %v6577
    %7320 = vmatpush.bf16.msra.mxu0 %v6565
    %7321 = vmatpush.bf16.msra.mxu0 %v6553
    %7322 = vmatpush.bf16.msra.mxu0 %v6541
    %7323 = vmatpush.bf16.msra.mxu0 %v6529
    %7324 = vmatmul.bf16.gmra.mxu0 %v4864
    %v7325 = vpop.f32.mrf.mxu0
    %v7326 = vadd.f32 %v7313, %v7325
    %v7327 = vpop.f32.mrf.mxu0
    %7328 = vdwg.mxu0
    %7329 = vmatpush.bf16.msra.mxu0 %v6709
    %7330 = vmatpush.bf16.msra.mxu0 %v6697
    %7331 = vmatpush.bf16.msra.mxu0 %v6685
    %7332 = vmatpush.bf16.msra.mxu0 %v6673
    %7333 = vmatpush.bf16.msra.mxu0 %v6661
    %7334 = vmatpush.bf16.msra.mxu0 %v6649
    %7335 = vmatpush.bf16.msra.mxu0 %v6637
    %7336 = vmatpush.bf16.msra.mxu0 %v6625
    %7337 = vmatmul.bf16.gmra.mxu0 %v4865
    %v7338 = vpop.f32.mrf.mxu0
    %v7339 = vadd.f32 %v7326, %v7338
    %v7340 = vpop.f32.mrf.mxu0
    %7341 = vdwg.mxu0
    %7342 = vmatpush.bf16.msra.mxu0 %v6805
    %7343 = vmatpush.bf16.msra.mxu0 %v6793
    %7344 = vmatpush.bf16.msra.mxu0 %v6781
    %7345 = vmatpush.bf16.msra.mxu0 %v6769
    %7346 = vmatpush.bf16.msra.mxu0 %v6757
    %7347 = vmatpush.bf16.msra.mxu0 %v6745
    %7348 = vmatpush.bf16.msra.mxu0 %v6733
    %7349 = vmatpush.bf16.msra.mxu0 %v6721
    %7350 = vmatmul.bf16.gmra.mxu0 %v4866
    %v7351 = vpop.f32.mrf.mxu0
    %v7352 = vadd.f32 %v7339, %v7351
    %v7353 = vpop.f32.mrf.mxu0
    %7354 = vdwg.mxu0
    %7355 = vmatpush.bf16.msra.mxu0 %v6518
    %7356 = vmatpush.bf16.msra.mxu0 %v6506
    %7357 = vmatpush.bf16.msra.mxu0 %v6494
    %7358 = vmatpush.bf16.msra.mxu0 %v6482
    %7359 = vmatpush.bf16.msra.mxu0 %v6470
    %7360 = vmatpush.bf16.msra.mxu0 %v6458
    %7361 = vmatpush.bf16.msra.mxu0 %v6446
    %7362 = vmatpush.bf16.msra.mxu0 %v6434
    %7363 = vmatmul.bf16.gmra.mxu0 %v4863
    %v7364 = vpop.f32.mrf.mxu0
    %v7365 = vadd.f32 %v5258, %v7364
    %v7366 = vpop.f32.mrf.mxu0
    %7367 = vdwg.mxu0
    %7368 = vmatpush.bf16.msra.mxu0 %v6614
    %7369 = vmatpush.bf16.msra.mxu0 %v6602
    %7370 = vmatpush.bf16.msra.mxu0 %v6590
    %7371 = vmatpush.bf16.msra.mxu0 %v6578
    %7372 = vmatpush.bf16.msra.mxu0 %v6566
    %7373 = vmatpush.bf16.msra.mxu0 %v6554
    %7374 = vmatpush.bf16.msra.mxu0 %v6542
    %7375 = vmatpush.bf16.msra.mxu0 %v6530
    %7376 = vmatmul.bf16.gmra.mxu0 %v4864
    %v7377 = vpop.f32.mrf.mxu0
    %v7378 = vadd.f32 %v7365, %v7377
    %v7379 = vpop.f32.mrf.mxu0
    %7380 = vdwg.mxu0
    %7381 = vmatpush.bf16.msra.mxu0 %v6710
    %7382 = vmatpush.bf16.msra.mxu0 %v6698
    %7383 = vmatpush.bf16.msra.mxu0 %v6686
    %7384 = vmatpush.bf16.msra.mxu0 %v6674
    %7385 = vmatpush.bf16.msra.mxu0 %v6662
    %7386 = vmatpush.bf16.msra.mxu0 %v6650
    %7387 = vmatpush.bf16.msra.mxu0 %v6638
    %7388 = vmatpush.bf16.msra.mxu0 %v6626
    %7389 = vmatmul.bf16.gmra.mxu0 %v4865
    %v7390 = vpop.f32.mrf.mxu0
    %v7391 = vadd.f32 %v7378, %v7390
    %v7392 = vpop.f32.mrf.mxu0
    %7393 = vdwg.mxu0
    %7394 = vmatpush.bf16.msra.mxu0 %v6806
    %7395 = vmatpush.bf16.msra.mxu0 %v6794
    %7396 = vmatpush.bf16.msra.mxu0 %v6782
    %7397 = vmatpush.bf16.msra.mxu0 %v6770
    %7398 = vmatpush.bf16.msra.mxu0 %v6758
    %7399 = vmatpush.bf16.msra.mxu0 %v6746
    %7400 = vmatpush.bf16.msra.mxu0 %v6734
    %7401 = vmatpush.bf16.msra.mxu0 %v6722
    %7402 = vmatmul.bf16.gmra.mxu0 %v4866
    %v7403 = vpop.f32.mrf.mxu0
    %v7404 = vadd.f32 %v7391, %v7403
    %v7405 = vpop.f32.mrf.mxu0
    %7406 = vdwg.mxu0
    %7407 = vmatpush.bf16.msra.mxu0 %v6519
    %7408 = vmatpush.bf16.msra.mxu0 %v6507
    %7409 = vmatpush.bf16.msra.mxu0 %v6495
    %7410 = vmatpush.bf16.msra.mxu0 %v6483
    %7411 = vmatpush.bf16.msra.mxu0 %v6471
    %7412 = vmatpush.bf16.msra.mxu0 %v6459
    %7413 = vmatpush.bf16.msra.mxu0 %v6447
    %7414 = vmatpush.bf16.msra.mxu0 %v6435
    %7415 = vmatmul.bf16.gmra.mxu0 %v4863
    %v7416 = vpop.f32.mrf.mxu0
    %v7417 = vadd.f32 %v5259, %v7416
    %v7418 = vpop.f32.mrf.mxu0
    %7419 = vdwg.mxu0
    %7420 = vmatpush.bf16.msra.mxu0 %v6615
    %7421 = vmatpush.bf16.msra.mxu0 %v6603
    %7422 = vmatpush.bf16.msra.mxu0 %v6591
    %7423 = vmatpush.bf16.msra.mxu0 %v6579
    %7424 = vmatpush.bf16.msra.mxu0 %v6567
    %7425 = vmatpush.bf16.msra.mxu0 %v6555
    %7426 = vmatpush.bf16.msra.mxu0 %v6543
    %7427 = vmatpush.bf16.msra.mxu0 %v6531
    %7428 = vmatmul.bf16.gmra.mxu0 %v4864
    %v7429 = vpop.f32.mrf.mxu0
    %v7430 = vadd.f32 %v7417, %v7429
    %v7431 = vpop.f32.mrf.mxu0
    %7432 = vdwg.mxu0
    %7433 = vmatpush.bf16.msra.mxu0 %v6711
    %7434 = vmatpush.bf16.msra.mxu0 %v6699
    %7435 = vmatpush.bf16.msra.mxu0 %v6687
    %7436 = vmatpush.bf16.msra.mxu0 %v6675
    %7437 = vmatpush.bf16.msra.mxu0 %v6663
    %7438 = vmatpush.bf16.msra.mxu0 %v6651
    %7439 = vmatpush.bf16.msra.mxu0 %v6639
    %7440 = vmatpush.bf16.msra.mxu0 %v6627
    %7441 = vmatmul.bf16.gmra.mxu0 %v4865
    %v7442 = vpop.f32.mrf.mxu0
    %v7443 = vadd.f32 %v7430, %v7442
    %v7444 = vpop.f32.mrf.mxu0
    %7445 = vdwg.mxu0
    %7446 = vmatpush.bf16.msra.mxu0 %v6807
    %7447 = vmatpush.bf16.msra.mxu0 %v6795
    %7448 = vmatpush.bf16.msra.mxu0 %v6783
    %7449 = vmatpush.bf16.msra.mxu0 %v6771
    %7450 = vmatpush.bf16.msra.mxu0 %v6759
    %7451 = vmatpush.bf16.msra.mxu0 %v6747
    %7452 = vmatpush.bf16.msra.mxu0 %v6735
    %7453 = vmatpush.bf16.msra.mxu0 %v6723
    %7454 = vmatmul.bf16.gmra.mxu0 %v4866
    %v7455 = vpop.f32.mrf.mxu0
    %v7456 = vadd.f32 %v7443, %v7455
    %v7457 = vpop.f32.mrf.mxu0
    %7458 = vdwg.mxu0
    %7459 = vmatpush.bf16.msra.mxu0 %v6520
    %7460 = vmatpush.bf16.msra.mxu0 %v6508
    %7461 = vmatpush.bf16.msra.mxu0 %v6496
    %7462 = vmatpush.bf16.msra.mxu0 %v6484
    %7463 = vmatpush.bf16.msra.mxu0 %v6472
    %7464 = vmatpush.bf16.msra.mxu0 %v6460
    %7465 = vmatpush.bf16.msra.mxu0 %v6448
    %7466 = vmatpush.bf16.msra.mxu0 %v6436
    %7467 = vmatmul.bf16.gmra.mxu0 %v4863
    %v7468 = vpop.f32.mrf.mxu0
    %v7469 = vadd.f32 %v5260, %v7468
    %v7470 = vpop.f32.mrf.mxu0
    %7471 = vdwg.mxu0
    %7472 = vmatpush.bf16.msra.mxu0 %v6616
    %7473 = vmatpush.bf16.msra.mxu0 %v6604
    %7474 = vmatpush.bf16.msra.mxu0 %v6592
    %7475 = vmatpush.bf16.msra.mxu0 %v6580
    %7476 = vmatpush.bf16.msra.mxu0 %v6568
    %7477 = vmatpush.bf16.msra.mxu0 %v6556
    %7478 = vmatpush.bf16.msra.mxu0 %v6544
    %7479 = vmatpush.bf16.msra.mxu0 %v6532
    %7480 = vmatmul.bf16.gmra.mxu0 %v4864
    %v7481 = vpop.f32.mrf.mxu0
    %v7482 = vadd.f32 %v7469, %v7481
    %v7483 = vpop.f32.mrf.mxu0
    %7484 = vdwg.mxu0
    %7485 = vmatpush.bf16.msra.mxu0 %v6712
    %7486 = vmatpush.bf16.msra.mxu0 %v6700
    %7487 = vmatpush.bf16.msra.mxu0 %v6688
    %7488 = vmatpush.bf16.msra.mxu0 %v6676
    %7489 = vmatpush.bf16.msra.mxu0 %v6664
    %7490 = vmatpush.bf16.msra.mxu0 %v6652
    %7491 = vmatpush.bf16.msra.mxu0 %v6640
    %7492 = vmatpush.bf16.msra.mxu0 %v6628
    %7493 = vmatmul.bf16.gmra.mxu0 %v4865
    %v7494 = vpop.f32.mrf.mxu0
    %v7495 = vadd.f32 %v7482, %v7494
    %v7496 = vpop.f32.mrf.mxu0
    %7497 = vdwg.mxu0
    %7498 = vmatpush.bf16.msra.mxu0 %v6808
    %7499 = vmatpush.bf16.msra.mxu0 %v6796
    %7500 = vmatpush.bf16.msra.mxu0 %v6784
    %7501 = vmatpush.bf16.msra.mxu0 %v6772
    %7502 = vmatpush.bf16.msra.mxu0 %v6760
    %7503 = vmatpush.bf16.msra.mxu0 %v6748
    %7504 = vmatpush.bf16.msra.mxu0 %v6736
    %7505 = vmatpush.bf16.msra.mxu0 %v6724
    %7506 = vmatmul.bf16.gmra.mxu0 %v4866
    %v7507 = vpop.f32.mrf.mxu0
    %v7508 = vadd.f32 %v7495, %v7507
    %v7509 = vpop.f32.mrf.mxu0
    %7510 = vdwg.mxu0
    %7511 = vmatpush.bf16.msra.mxu0 %v6521
    %7512 = vmatpush.bf16.msra.mxu0 %v6509
    %7513 = vmatpush.bf16.msra.mxu0 %v6497
    %7514 = vmatpush.bf16.msra.mxu0 %v6485
    %7515 = vmatpush.bf16.msra.mxu0 %v6473
    %7516 = vmatpush.bf16.msra.mxu0 %v6461
    %7517 = vmatpush.bf16.msra.mxu0 %v6449
    %7518 = vmatpush.bf16.msra.mxu0 %v6437
    %7519 = vmatmul.bf16.gmra.mxu0 %v4863
    %v7520 = vpop.f32.mrf.mxu0
    %v7521 = vadd.f32 %v5261, %v7520
    %v7522 = vpop.f32.mrf.mxu0
    %7523 = vdwg.mxu0
    %7524 = vmatpush.bf16.msra.mxu0 %v6617
    %7525 = vmatpush.bf16.msra.mxu0 %v6605
    %7526 = vmatpush.bf16.msra.mxu0 %v6593
    %7527 = vmatpush.bf16.msra.mxu0 %v6581
    %7528 = vmatpush.bf16.msra.mxu0 %v6569
    %7529 = vmatpush.bf16.msra.mxu0 %v6557
    %7530 = vmatpush.bf16.msra.mxu0 %v6545
    %7531 = vmatpush.bf16.msra.mxu0 %v6533
    %7532 = vmatmul.bf16.gmra.mxu0 %v4864
    %v7533 = vpop.f32.mrf.mxu0
    %v7534 = vadd.f32 %v7521, %v7533
    %v7535 = vpop.f32.mrf.mxu0
    %7536 = vdwg.mxu0
    %7537 = vmatpush.bf16.msra.mxu0 %v6713
    %7538 = vmatpush.bf16.msra.mxu0 %v6701
    %7539 = vmatpush.bf16.msra.mxu0 %v6689
    %7540 = vmatpush.bf16.msra.mxu0 %v6677
    %7541 = vmatpush.bf16.msra.mxu0 %v6665
    %7542 = vmatpush.bf16.msra.mxu0 %v6653
    %7543 = vmatpush.bf16.msra.mxu0 %v6641
    %7544 = vmatpush.bf16.msra.mxu0 %v6629
    %7545 = vmatmul.bf16.gmra.mxu0 %v4865
    %v7546 = vpop.f32.mrf.mxu0
    %v7547 = vadd.f32 %v7534, %v7546
    %v7548 = vpop.f32.mrf.mxu0
    %7549 = vdwg.mxu0
    %7550 = vmatpush.bf16.msra.mxu0 %v6809
    %7551 = vmatpush.bf16.msra.mxu0 %v6797
    %7552 = vmatpush.bf16.msra.mxu0 %v6785
    %7553 = vmatpush.bf16.msra.mxu0 %v6773
    %7554 = vmatpush.bf16.msra.mxu0 %v6761
    %7555 = vmatpush.bf16.msra.mxu0 %v6749
    %7556 = vmatpush.bf16.msra.mxu0 %v6737
    %7557 = vmatpush.bf16.msra.mxu0 %v6725
    %7558 = vmatmul.bf16.gmra.mxu0 %v4866
    %v7559 = vpop.f32.mrf.mxu0
    %v7560 = vadd.f32 %v7547, %v7559
    %v7561 = vpop.f32.mrf.mxu0
    %7562 = vdwg.mxu0
    %7563 = vmatpush.bf16.msra.mxu0 %v6522
    %7564 = vmatpush.bf16.msra.mxu0 %v6510
    %7565 = vmatpush.bf16.msra.mxu0 %v6498
    %7566 = vmatpush.bf16.msra.mxu0 %v6486
    %7567 = vmatpush.bf16.msra.mxu0 %v6474
    %7568 = vmatpush.bf16.msra.mxu0 %v6462
    %7569 = vmatpush.bf16.msra.mxu0 %v6450
    %7570 = vmatpush.bf16.msra.mxu0 %v6438
    %7571 = vmatmul.bf16.gmra.mxu0 %v4863
    %v7572 = vpop.f32.mrf.mxu0
    %v7573 = vadd.f32 %v5262, %v7572
    %v7574 = vpop.f32.mrf.mxu0
    %7575 = vdwg.mxu0
    %7576 = vmatpush.bf16.msra.mxu0 %v6618
    %7577 = vmatpush.bf16.msra.mxu0 %v6606
    %7578 = vmatpush.bf16.msra.mxu0 %v6594
    %7579 = vmatpush.bf16.msra.mxu0 %v6582
    %7580 = vmatpush.bf16.msra.mxu0 %v6570
    %7581 = vmatpush.bf16.msra.mxu0 %v6558
    %7582 = vmatpush.bf16.msra.mxu0 %v6546
    %7583 = vmatpush.bf16.msra.mxu0 %v6534
    %7584 = vmatmul.bf16.gmra.mxu0 %v4864
    %v7585 = vpop.f32.mrf.mxu0
    %v7586 = vadd.f32 %v7573, %v7585
    %v7587 = vpop.f32.mrf.mxu0
    %7588 = vdwg.mxu0
    %7589 = vmatpush.bf16.msra.mxu0 %v6714
    %7590 = vmatpush.bf16.msra.mxu0 %v6702
    %7591 = vmatpush.bf16.msra.mxu0 %v6690
    %7592 = vmatpush.bf16.msra.mxu0 %v6678
    %7593 = vmatpush.bf16.msra.mxu0 %v6666
    %7594 = vmatpush.bf16.msra.mxu0 %v6654
    %7595 = vmatpush.bf16.msra.mxu0 %v6642
    %7596 = vmatpush.bf16.msra.mxu0 %v6630
    %7597 = vmatmul.bf16.gmra.mxu0 %v4865
    %v7598 = vpop.f32.mrf.mxu0
    %v7599 = vadd.f32 %v7586, %v7598
    %v7600 = vpop.f32.mrf.mxu0
    %7601 = vdwg.mxu0
    %7602 = vmatpush.bf16.msra.mxu0 %v6810
    %7603 = vmatpush.bf16.msra.mxu0 %v6798
    %7604 = vmatpush.bf16.msra.mxu0 %v6786
    %7605 = vmatpush.bf16.msra.mxu0 %v6774
    %7606 = vmatpush.bf16.msra.mxu0 %v6762
    %7607 = vmatpush.bf16.msra.mxu0 %v6750
    %7608 = vmatpush.bf16.msra.mxu0 %v6738
    %7609 = vmatpush.bf16.msra.mxu0 %v6726
    %7610 = vmatmul.bf16.gmra.mxu0 %v4866
    %v7611 = vpop.f32.mrf.mxu0
    %v7612 = vadd.f32 %v7599, %v7611
    %v7613 = vpop.f32.mrf.mxu0
    %7614 = vdwg.mxu0
    %7615 = vmatpush.bf16.msra.mxu0 %v6523
    %7616 = vmatpush.bf16.msra.mxu0 %v6511
    %7617 = vmatpush.bf16.msra.mxu0 %v6499
    %7618 = vmatpush.bf16.msra.mxu0 %v6487
    %7619 = vmatpush.bf16.msra.mxu0 %v6475
    %7620 = vmatpush.bf16.msra.mxu0 %v6463
    %7621 = vmatpush.bf16.msra.mxu0 %v6451
    %7622 = vmatpush.bf16.msra.mxu0 %v6439
    %7623 = vmatmul.bf16.gmra.mxu0 %v4863
    %v7624 = vpop.f32.mrf.mxu0
    %v7625 = vadd.f32 %v5263, %v7624
    %v7626 = vpop.f32.mrf.mxu0
    %7627 = vdwg.mxu0
    %7628 = vmatpush.bf16.msra.mxu0 %v6619
    %7629 = vmatpush.bf16.msra.mxu0 %v6607
    %7630 = vmatpush.bf16.msra.mxu0 %v6595
    %7631 = vmatpush.bf16.msra.mxu0 %v6583
    %7632 = vmatpush.bf16.msra.mxu0 %v6571
    %7633 = vmatpush.bf16.msra.mxu0 %v6559
    %7634 = vmatpush.bf16.msra.mxu0 %v6547
    %7635 = vmatpush.bf16.msra.mxu0 %v6535
    %7636 = vmatmul.bf16.gmra.mxu0 %v4864
    %v7637 = vpop.f32.mrf.mxu0
    %v7638 = vadd.f32 %v7625, %v7637
    %v7639 = vpop.f32.mrf.mxu0
    %7640 = vdwg.mxu0
    %7641 = vmatpush.bf16.msra.mxu0 %v6715
    %7642 = vmatpush.bf16.msra.mxu0 %v6703
    %7643 = vmatpush.bf16.msra.mxu0 %v6691
    %7644 = vmatpush.bf16.msra.mxu0 %v6679
    %7645 = vmatpush.bf16.msra.mxu0 %v6667
    %7646 = vmatpush.bf16.msra.mxu0 %v6655
    %7647 = vmatpush.bf16.msra.mxu0 %v6643
    %7648 = vmatpush.bf16.msra.mxu0 %v6631
    %7649 = vmatmul.bf16.gmra.mxu0 %v4865
    %v7650 = vpop.f32.mrf.mxu0
    %v7651 = vadd.f32 %v7638, %v7650
    %v7652 = vpop.f32.mrf.mxu0
    %7653 = vdwg.mxu0
    %7654 = vmatpush.bf16.msra.mxu0 %v6811
    %7655 = vmatpush.bf16.msra.mxu0 %v6799
    %7656 = vmatpush.bf16.msra.mxu0 %v6787
    %7657 = vmatpush.bf16.msra.mxu0 %v6775
    %7658 = vmatpush.bf16.msra.mxu0 %v6763
    %7659 = vmatpush.bf16.msra.mxu0 %v6751
    %7660 = vmatpush.bf16.msra.mxu0 %v6739
    %7661 = vmatpush.bf16.msra.mxu0 %v6727
    %7662 = vmatmul.bf16.gmra.mxu0 %v4866
    %v7663 = vpop.f32.mrf.mxu0
    %v7664 = vadd.f32 %v7651, %v7663
    %v7665 = vpop.f32.mrf.mxu0
    %7666 = vdwg.mxu0
    %7667 = vmatpush.bf16.msra.mxu0 %v6524
    %7668 = vmatpush.bf16.msra.mxu0 %v6512
    %7669 = vmatpush.bf16.msra.mxu0 %v6500
    %7670 = vmatpush.bf16.msra.mxu0 %v6488
    %7671 = vmatpush.bf16.msra.mxu0 %v6476
    %7672 = vmatpush.bf16.msra.mxu0 %v6464
    %7673 = vmatpush.bf16.msra.mxu0 %v6452
    %7674 = vmatpush.bf16.msra.mxu0 %v6440
    %7675 = vmatmul.bf16.gmra.mxu0 %v4863
    %v7676 = vpop.f32.mrf.mxu0
    %v7677 = vadd.f32 %v5264, %v7676
    %v7678 = vpop.f32.mrf.mxu0
    %7679 = vdwg.mxu0
    %7680 = vmatpush.bf16.msra.mxu0 %v6620
    %7681 = vmatpush.bf16.msra.mxu0 %v6608
    %7682 = vmatpush.bf16.msra.mxu0 %v6596
    %7683 = vmatpush.bf16.msra.mxu0 %v6584
    %7684 = vmatpush.bf16.msra.mxu0 %v6572
    %7685 = vmatpush.bf16.msra.mxu0 %v6560
    %7686 = vmatpush.bf16.msra.mxu0 %v6548
    %7687 = vmatpush.bf16.msra.mxu0 %v6536
    %7688 = vmatmul.bf16.gmra.mxu0 %v4864
    %v7689 = vpop.f32.mrf.mxu0
    %v7690 = vadd.f32 %v7677, %v7689
    %v7691 = vpop.f32.mrf.mxu0
    %7692 = vdwg.mxu0
    %7693 = vmatpush.bf16.msra.mxu0 %v6716
    %7694 = vmatpush.bf16.msra.mxu0 %v6704
    %7695 = vmatpush.bf16.msra.mxu0 %v6692
    %7696 = vmatpush.bf16.msra.mxu0 %v6680
    %7697 = vmatpush.bf16.msra.mxu0 %v6668
    %7698 = vmatpush.bf16.msra.mxu0 %v6656
    %7699 = vmatpush.bf16.msra.mxu0 %v6644
    %7700 = vmatpush.bf16.msra.mxu0 %v6632
    %7701 = vmatmul.bf16.gmra.mxu0 %v4865
    %v7702 = vpop.f32.mrf.mxu0
    %v7703 = vadd.f32 %v7690, %v7702
    %v7704 = vpop.f32.mrf.mxu0
    %7705 = vdwg.mxu0
    %7706 = vmatpush.bf16.msra.mxu0 %v6812
    %7707 = vmatpush.bf16.msra.mxu0 %v6800
    %7708 = vmatpush.bf16.msra.mxu0 %v6788
    %7709 = vmatpush.bf16.msra.mxu0 %v6776
    %7710 = vmatpush.bf16.msra.mxu0 %v6764
    %7711 = vmatpush.bf16.msra.mxu0 %v6752
    %7712 = vmatpush.bf16.msra.mxu0 %v6740
    %7713 = vmatpush.bf16.msra.mxu0 %v6728
    %7714 = vmatmul.bf16.gmra.mxu0 %v4866
    %v7715 = vpop.f32.mrf.mxu0
    %v7716 = vadd.f32 %v7703, %v7715
    %v7717 = vpop.f32.mrf.mxu0
    %7718 = vdwg.mxu0
    %7719 = vmatpush.bf16.msra.mxu0 %v6525
    %7720 = vmatpush.bf16.msra.mxu0 %v6513
    %7721 = vmatpush.bf16.msra.mxu0 %v6501
    %7722 = vmatpush.bf16.msra.mxu0 %v6489
    %7723 = vmatpush.bf16.msra.mxu0 %v6477
    %7724 = vmatpush.bf16.msra.mxu0 %v6465
    %7725 = vmatpush.bf16.msra.mxu0 %v6453
    %7726 = vmatpush.bf16.msra.mxu0 %v6441
    %7727 = vmatmul.bf16.gmra.mxu0 %v4863
    %v7728 = vpop.f32.mrf.mxu0
    %v7729 = vadd.f32 %v5265, %v7728
    %v7730 = vpop.f32.mrf.mxu0
    %7731 = vdwg.mxu0
    %7732 = vmatpush.bf16.msra.mxu0 %v6621
    %7733 = vmatpush.bf16.msra.mxu0 %v6609
    %7734 = vmatpush.bf16.msra.mxu0 %v6597
    %7735 = vmatpush.bf16.msra.mxu0 %v6585
    %7736 = vmatpush.bf16.msra.mxu0 %v6573
    %7737 = vmatpush.bf16.msra.mxu0 %v6561
    %7738 = vmatpush.bf16.msra.mxu0 %v6549
    %7739 = vmatpush.bf16.msra.mxu0 %v6537
    %7740 = vmatmul.bf16.gmra.mxu0 %v4864
    %v7741 = vpop.f32.mrf.mxu0
    %v7742 = vadd.f32 %v7729, %v7741
    %v7743 = vpop.f32.mrf.mxu0
    %7744 = vdwg.mxu0
    %7745 = vmatpush.bf16.msra.mxu0 %v6717
    %7746 = vmatpush.bf16.msra.mxu0 %v6705
    %7747 = vmatpush.bf16.msra.mxu0 %v6693
    %7748 = vmatpush.bf16.msra.mxu0 %v6681
    %7749 = vmatpush.bf16.msra.mxu0 %v6669
    %7750 = vmatpush.bf16.msra.mxu0 %v6657
    %7751 = vmatpush.bf16.msra.mxu0 %v6645
    %7752 = vmatpush.bf16.msra.mxu0 %v6633
    %7753 = vmatmul.bf16.gmra.mxu0 %v4865
    %v7754 = vpop.f32.mrf.mxu0
    %v7755 = vadd.f32 %v7742, %v7754
    %v7756 = vpop.f32.mrf.mxu0
    %7757 = vdwg.mxu0
    %7758 = vmatpush.bf16.msra.mxu0 %v6813
    %7759 = vmatpush.bf16.msra.mxu0 %v6801
    %7760 = vmatpush.bf16.msra.mxu0 %v6789
    %7761 = vmatpush.bf16.msra.mxu0 %v6777
    %7762 = vmatpush.bf16.msra.mxu0 %v6765
    %7763 = vmatpush.bf16.msra.mxu0 %v6753
    %7764 = vmatpush.bf16.msra.mxu0 %v6741
    %7765 = vmatpush.bf16.msra.mxu0 %v6729
    %7766 = vmatmul.bf16.gmra.mxu0 %v4866
    %v7767 = vpop.f32.mrf.mxu0
    %v7768 = vadd.f32 %v7755, %v7767
    %v7769 = vpop.f32.mrf.mxu0
    %7770 = vdwg.mxu0
    %7771 = vmatpush.bf16.msra.mxu0 %v6526
    %7772 = vmatpush.bf16.msra.mxu0 %v6514
    %7773 = vmatpush.bf16.msra.mxu0 %v6502
    %7774 = vmatpush.bf16.msra.mxu0 %v6490
    %7775 = vmatpush.bf16.msra.mxu0 %v6478
    %7776 = vmatpush.bf16.msra.mxu0 %v6466
    %7777 = vmatpush.bf16.msra.mxu0 %v6454
    %7778 = vmatpush.bf16.msra.mxu0 %v6442
    %7779 = vmatmul.bf16.gmra.mxu0 %v4863
    %v7780 = vpop.f32.mrf.mxu0
    %v7781 = vadd.f32 %v5266, %v7780
    %v7782 = vpop.f32.mrf.mxu0
    %7783 = vdwg.mxu0
    %7784 = vmatpush.bf16.msra.mxu0 %v6622
    %7785 = vmatpush.bf16.msra.mxu0 %v6610
    %7786 = vmatpush.bf16.msra.mxu0 %v6598
    %7787 = vmatpush.bf16.msra.mxu0 %v6586
    %7788 = vmatpush.bf16.msra.mxu0 %v6574
    %7789 = vmatpush.bf16.msra.mxu0 %v6562
    %7790 = vmatpush.bf16.msra.mxu0 %v6550
    %7791 = vmatpush.bf16.msra.mxu0 %v6538
    %7792 = vmatmul.bf16.gmra.mxu0 %v4864
    %v7793 = vpop.f32.mrf.mxu0
    %v7794 = vadd.f32 %v7781, %v7793
    %v7795 = vpop.f32.mrf.mxu0
    %7796 = vdwg.mxu0
    %7797 = vmatpush.bf16.msra.mxu0 %v6718
    %7798 = vmatpush.bf16.msra.mxu0 %v6706
    %7799 = vmatpush.bf16.msra.mxu0 %v6694
    %7800 = vmatpush.bf16.msra.mxu0 %v6682
    %7801 = vmatpush.bf16.msra.mxu0 %v6670
    %7802 = vmatpush.bf16.msra.mxu0 %v6658
    %7803 = vmatpush.bf16.msra.mxu0 %v6646
    %7804 = vmatpush.bf16.msra.mxu0 %v6634
    %7805 = vmatmul.bf16.gmra.mxu0 %v4865
    %v7806 = vpop.f32.mrf.mxu0
    %v7807 = vadd.f32 %v7794, %v7806
    %v7808 = vpop.f32.mrf.mxu0
    %7809 = vdwg.mxu0
    %7810 = vmatpush.bf16.msra.mxu0 %v6814
    %7811 = vmatpush.bf16.msra.mxu0 %v6802
    %7812 = vmatpush.bf16.msra.mxu0 %v6790
    %7813 = vmatpush.bf16.msra.mxu0 %v6778
    %7814 = vmatpush.bf16.msra.mxu0 %v6766
    %7815 = vmatpush.bf16.msra.mxu0 %v6754
    %7816 = vmatpush.bf16.msra.mxu0 %v6742
    %7817 = vmatpush.bf16.msra.mxu0 %v6730
    %7818 = vmatmul.bf16.gmra.mxu0 %v4866
    %v7819 = vpop.f32.mrf.mxu0
    %v7820 = vadd.f32 %v7807, %v7819
    %v7821 = vpop.f32.mrf.mxu0
    %7822 = vdwg.mxu0
    %v7823 = vmax.f32 %v7248, 0.0
    %v7824 = vmax.f32 %v7300, 0.0
    %v7825 = vmax.f32 %v7352, 0.0
    %v7826 = vmax.f32 %v7404, 0.0
    %v7827 = vmax.f32 %v7456, 0.0
    %v7828 = vmax.f32 %v7508, 0.0
    %v7829 = vmax.f32 %v7560, 0.0
    %v7830 = vmax.f32 %v7612, 0.0
    %v7831 = vmax.f32 %v7664, 0.0
    %v7832 = vmax.f32 %v7716, 0.0
    %v7833 = vmax.f32 %v7768, 0.0
    %v7834 = vmax.f32 %v7820, 0.0
    %v7835 = vpack.c.bf16 %v7824, %v7823
    %v7836 = vpack.c.bf16 %v7826, %v7825
    %v7837 = vpack.c.bf16 %v7828, %v7827
    %v7838 = vpack.c.bf16 %v7830, %v7829
    %v7839 = vpack.c.bf16 %v7832, %v7831
    %v7840 = vpack.c.bf16 %v7834, %v7833
    %7841 = vst [vmem:[%s22] sm:$0xff] %v7835
    %7842 = vst [vmem:[%s22 + $0x8] sm:$0xff] %v7836
    %7843 = vst [vmem:[%s22 + $0x10] sm:$0xff] %v7837
    %7844 = vst [vmem:[%s22 + $0x18] sm:$0xff] %v7838
    %7845 = vst [vmem:[%s22 + $0x20] sm:$0xff] %v7839
    %7846 = vst [vmem:[%s22 + $0x28] sm:$0xff] %v7840
    // Predicated region
    $region158: #{stacked_autoencoder_forward.1} parent=1 // pred_check
      _
    $region159: #{stacked_autoencoder_forward.1} parent=1 // pred_check_branch
      %7848 = sbr.rel (0) target = $region161
    $region160: #{stacked_autoencoder_forward.1} parent=1 // pred_region
      %7850 = vsyncadd [#allocation4], 0
      %s7852 = sshll.u32 [#allocation31], 4
      %s7853 = int_to_ptr.vmem [resolvable:$true] %s7852
      %s7854 = sshll.u32 %s21, 4
      %s7855 = int_to_ptr.hbm [resolvable:$true] %s7854
      %7857 = dma.vmem_to_hbm [thread:$0]  %s7853, 128, %s7855, [#allocation4]
    $region161: #{stacked_autoencoder_forward.1} parent=1 // pred_fallthru
      _
    // Predicated region
    $region162: #{stacked_autoencoder_forward.1} parent=1 // pred_check
      _
    $region163: #{stacked_autoencoder_forward.1} parent=1 // pred_check_branch
      %7859 = sbr.rel (0) target = $region165
    $region164: #{stacked_autoencoder_forward.1} parent=1 // pred_region
      _
    $region165: #{stacked_autoencoder_forward.1} parent=1 // pred_fallthru
      _
    // Predicated region
    $region166: #{stacked_autoencoder_forward.1} parent=1 // pred_check
      _
    $region167: #{stacked_autoencoder_forward.1} parent=1 // pred_check_branch
      %7861 = sbr.rel (0) target = $region169
    $region168: #{stacked_autoencoder_forward.1} parent=1 // pred_region
      %7863 = dma.done [#allocation4], 128
    $region169: #{stacked_autoencoder_forward.1} parent=1 // pred_fallthru
      _
    // Predicated region
    $region170: #{stacked_autoencoder_forward.1} parent=1 // pred_check
      _
    $region171: #{stacked_autoencoder_forward.1} parent=1 // pred_check_branch
      %7865 = sbr.rel (0) target = $region173
    $region172: #{stacked_autoencoder_forward.1} parent=1 // pred_region
      _
    $region173: #{stacked_autoencoder_forward.1} parent=1 // pred_fallthru
      _
    %7866 = vsyncpa [#allocation3], 1
    %7867 = vsyncpa [#allocation6], 1
    %7868 = vsyncpa [#allocation9], 1
    %7869 = vsyncpa [#allocation12], 1
    %7870 = vsyncpa [#allocation15], 1
    %7871 = vsyncpa [#allocation18], 1
    %7872 = vsyncpa [#allocation21], 1
    %7873 = vsyncpa [#allocation24], 1
    %7874 = vsyncpa [#allocation27], 1
    %7875 = vsyncpa [#allocation30], 1
    %7876 = vsyncpa [#allocation4], 1

</llo_original>
